<compile_context>
chip_gen: v7x
topology: tpu7x:2x2x1
jax: 0.10.0
libtpu: 0.0.40
codegen_flags: <defaults>
</compile_context>

<pallas_src>
import functools

import jax
import jax.numpy as jnp
from jax import lax
from jax.experimental import pallas as pl
from jax.experimental.pallas import tpu as pltpu

_INV_SQRT2 = 0.7071067811865476
_LN_EPS = 1e-5                       # torch.nn.LayerNorm default eps
_TRANS_B = (((1,), (1,)), ((), ()))  # contract last dims of both operands: A @ B^T


def _layernorm_f32(x, gamma, beta):
    mu = jnp.mean(x, axis=-1, keepdims=True)
    xc = x - mu
    var = jnp.mean(xc * xc, axis=-1, keepdims=True)
    return xc * lax.rsqrt(var + _LN_EPS) * gamma + beta


def _gelu_f32(x):
    # exact GELU (torch.nn.GELU default): 0.5*x*(1+erf(x/sqrt(2))); multiply, not divide
    return 0.5 * x * (1.0 + lax.erf(x * _INV_SQRT2))


# --------------------------------------------------------------------------------------
# Kernel 1: x_out = x + Proj(MHSA(LayerNorm1(x)))          one grid step per batch item
# --------------------------------------------------------------------------------------
def _attn_block_kernel(x_ref, g1_ref, b1_ref, wqkv_ref, wproj_ref, bproj_ref,
                       o_ref, qkv_vmem, acc_vmem, *, num_heads, head_dim, scale):
    cdt = wqkv_ref.dtype                       # matmul compute dtype (bf16 or f32)
    _, n_tok, dim = x_ref.shape

    x = x_ref[0].astype(jnp.float32)           # (N, C)
    ln = _layernorm_f32(x, g1_ref[...], b1_ref[...])

    # fused QKV projection (qkv_bias=False default) -> stash in VMEM scratch
    qkv_vmem[...] = jnp.dot(ln.astype(cdt), wqkv_ref[...],
                            preferred_element_type=jnp.float32)          # (N, 3C) f32

    acc_vmem[...] = jnp.zeros_like(acc_vmem)
    for h in range(num_heads):                 # static unroll over heads
        lo = h * head_dim
        qh = qkv_vmem[:, lo:lo + head_dim]                               # (N, hd)
        kh = qkv_vmem[:, dim + lo:dim + lo + head_dim]
        vh = qkv_vmem[:, 2 * dim + lo:2 * dim + lo + head_dim]

        # scores = q @ k^T * scale  (NT matmul on the MXU, bf16 in / f32 acc)
        s = lax.dot_general(qh.astype(cdt), kh.astype(cdt), _TRANS_B,
                            preferred_element_type=jnp.float32) * scale  # (N, N)
        s = s - jnp.max(s, axis=-1, keepdims=True)
        p = jnp.exp(s)
        p = p / jnp.sum(p, axis=-1, keepdims=True)
        # attn_drop(p) with ratio 0.0 is identity

        oh = jnp.dot(p.astype(cdt), vh.astype(cdt),
                     preferred_element_type=jnp.float32)                 # (N, hd)
        # fold "concat heads + proj" into per-head partial matmuls into the accumulator
        acc_vmem[...] += jnp.dot(oh.astype(cdt), wproj_ref[lo:lo + head_dim, :],
                                 preferred_element_type=jnp.float32)

    # proj bias + residual (proj_drop / drop_path ratios are 0.0 -> identity)
    o_ref[0] = (x_ref[0].astype(jnp.float32) + acc_vmem[...] + bproj_ref[...]
                ).astype(o_ref.dtype)


# --------------------------------------------------------------------------------------
# Kernel 2: x_out = x + fc2(GELU(fc1(LayerNorm2(x))))       grid over (B*N) row tiles
# --------------------------------------------------------------------------------------
def _mlp_block_kernel(x_ref, g2_ref, b2_ref, w1_ref, bias1_ref, w2_ref, bias2_ref, o_ref):
    cdt = w1_ref.dtype
    x = x_ref[...].astype(jnp.float32)                                   # (tm, C)
    ln = _layernorm_f32(x, g2_ref[...], b2_ref[...])
    h = jnp.dot(ln.astype(cdt), w1_ref[...],
                preferred_element_type=jnp.float32) + bias1_ref[...]     # (tm, H)
    h = _gelu_f32(h)
    # dropout ratio 0.0 -> identity
    y = jnp.dot(h.astype(cdt), w2_ref[...],
                preferred_element_type=jnp.float32) + bias2_ref[...]     # (tm, C)
    o_ref[...] = (x_ref[...].astype(jnp.float32) + y).astype(o_ref.dtype)


def vit_block_pallas(x, params, *, num_heads, tm=256, use_bf16=True):
    """Forward pass of the ViT Block. x: (B, N, C) float32, params: dict of weights."""
    B, N, C = x.shape
    assert C % num_heads == 0
    head_dim = C // num_heads
    scale = head_dim ** -0.5                    # qk_scale=None default
    H = params["w1"].shape[1]

    cdt = jnp.bfloat16 if use_bf16 else jnp.float32
    wqkv = params["wqkv"].astype(cdt)
    wproj = params["wproj"].astype(cdt)
    w1 = params["w1"].astype(cdt)
    w2 = params["w2"].astype(cdt)

    g1 = params["g1"].reshape(1, C).astype(jnp.float32)
    b1 = params["b1"].reshape(1, C).astype(jnp.float32)
    g2 = params["g2"].reshape(1, C).astype(jnp.float32)
    b2 = params["b2"].reshape(1, C).astype(jnp.float32)
    bproj = params["bproj"].reshape(1, C).astype(jnp.float32)
    bias1 = params["bias1"].reshape(1, H).astype(jnp.float32)
    bias2 = params["bias2"].reshape(1, C).astype(jnp.float32)

    wbytes = 2 if use_bf16 else 4

    # -------- sub-block 1: attention + residual --------
    attn_cost = pl.CostEstimate(
        flops=int(B * (8 * N * C * C + 4 * N * N * C)),
        transcendentals=int(B * num_heads * N * N + B * N),
        bytes_accessed=int(2 * B * N * C * 4 + 4 * C * C * wbytes + 8 * C * 4),
    )
    attn_kernel = functools.partial(_attn_block_kernel, num_heads=num_heads,
                                    head_dim=head_dim, scale=scale)
    x_attn = pl.pallas_call(
        attn_kernel,
        out_shape=jax.ShapeDtypeStruct((B, N, C), x.dtype),
        grid_spec=pltpu.PrefetchScalarGridSpec(
            num_scalar_prefetch=0,
            grid=(B,),
            in_specs=[
                pl.BlockSpec((1, N, C), lambda b: (b, 0, 0)),   # x (per-batch slab)
                pl.BlockSpec((1, C), lambda b: (0, 0)),         # ln1 gamma
                pl.BlockSpec((1, C), lambda b: (0, 0)),         # ln1 beta
                pl.BlockSpec((C, 3 * C), lambda b: (0, 0)),     # wqkv (resident)
                pl.BlockSpec((C, C), lambda b: (0, 0)),         # wproj (resident)
                pl.BlockSpec((1, C), lambda b: (0, 0)),         # proj bias
            ],
            out_specs=pl.BlockSpec((1, N, C), lambda b: (b, 0, 0)),
            scratch_shapes=[
                pltpu.VMEM((N, 3 * C), jnp.float32),            # qkv
                pltpu.VMEM((N, C), jnp.float32),                # head/proj accumulator
            ],
        ),
        compiler_params=pltpu.CompilerParams(
            dimension_semantics=("parallel",),
            internal_scratch_in_bytes=4 * 1024 * 1024,
        ),
        cost_estimate=attn_cost,
    )(x, g1, b1, wqkv, wproj, bproj)

    # -------- sub-block 2: KAN-approx MLP + residual over flattened tokens --------
    M = B * N
    tm = min(tm, M)
    while M % tm != 0:      # fall back to a divisor; TODO(synk): pad ragged tails instead
        tm //= 2
    assert tm >= 1 and (tm % 8 == 0 or tm == M), "row tile must be a multiple of 8"

    x2 = x_attn.reshape(M, C)
    mlp_cost = pl.CostEstimate(
        flops=int(4 * M * C * H),
        transcendentals=int(M * (H + 1)),
        bytes_accessed=int(2 * M * C * 4 + 2 * C * H * wbytes + (3 * C + H) * 4),
    )
    out2 = pl.pallas_call(
        _mlp_block_kernel,
        out_shape=jax.ShapeDtypeStruct((M, C), x.dtype),
        grid_spec=pltpu.PrefetchScalarGridSpec(
            num_scalar_prefetch=0,
            grid=(M // tm,),
            in_specs=[
                pl.BlockSpec((tm, C), lambda i: (i, 0)),        # row tile of tokens
                pl.BlockSpec((1, C), lambda i: (0, 0)),         # ln2 gamma
                pl.BlockSpec((1, C), lambda i: (0, 0)),         # ln2 beta
                pl.BlockSpec((C, H), lambda i: (0, 0)),         # fc1 weight (resident)
                pl.BlockSpec((1, H), lambda i: (0, 0)),         # fc1 bias
                pl.BlockSpec((H, C), lambda i: (0, 0)),         # fc2 weight (resident)
                pl.BlockSpec((1, C), lambda i: (0, 0)),         # fc2 bias
            ],
            out_specs=pl.BlockSpec((tm, C), lambda i: (i, 0)),  # lane-dense (C % 128 == 0)
        ),
        compiler_params=pltpu.CompilerParams(
            dimension_semantics=("parallel",),
            internal_scratch_in_bytes=4 * 1024 * 1024,
        ),
        cost_estimate=mlp_cost,
    )(x2, g2, b2, w1, bias1, w2, bias2)

    return out2.reshape(B, N, C)


# --------------------------------------------------------------------------------------
# Pure-JAX reference (mirrors the PyTorch Block forward; same precision policy as kernels)
# --------------------------------------------------------------------------------------
def _block_reference(x, params, *, num_heads, use_bf16=True):
    cdt = jnp.bfloat16 if use_bf16 else jnp.float32
    cast = lambda a: a.astype(cdt)
    B, N, C = x.shape
    hd = C // num_heads
    scale = hd ** -0.5

    h1 = _layernorm_f32(x, params["g1"], params["b1"])
    qkv = jnp.einsum("bnc,cd->bnd", cast(h1), cast(params["wqkv"]),
                     preferred_element_type=jnp.float32)
    qkv = qkv.reshape(B, N, 3, num_heads, hd).transpose(2, 0, 3, 1, 4)
    q, k, v = qkv[0], qkv[1], qkv[2]                                     # (B, H, N, hd)
    s = jnp.einsum("bhqd,bhkd->bhqk", cast(q), cast(k),
                   preferred_element_type=jnp.float32) * scale
    s = s - jnp.max(s, axis=-1, keepdims=True)
    p = jnp.exp(s)
    p = p / jnp.sum(p, axis=-1, keepdims=True)
    o = jnp.einsum("bhqk,bhkd->bhqd", cast(p), cast(v),
                   preferred_element_type=jnp.float32)
    o = o.transpose(0, 2, 1, 3).reshape(B, N, C)
    attn = jnp.einsum("bnc,cd->bnd", cast(o), cast(params["wproj"]),
                      preferred_element_type=jnp.float32) + params["bproj"]
    x = x + attn

    h2 = _layernorm_f32(x, params["g2"], params["b2"])
    hh = jnp.einsum("bnc,ch->bnh", cast(h2), cast(params["w1"]),
                    preferred_element_type=jnp.float32) + params["bias1"]
    hh = _gelu_f32(hh)
    y = jnp.einsum("bnh,hc->bnc", cast(hh), cast(params["w2"]),
                   preferred_element_type=jnp.float32) + params["bias2"]
    return x + y


if __name__ == "__main__":
    # Small ViT-ish shapes: channel dim a multiple of 128 (lane-dense), B*N large enough
    # that the MLP grid has >= 2 steps (both v7x TensorCores get work).
    B, N = 4, 128
    dim, num_heads = 128, 8
    kan_hidden = 64               # KAN([dim, 64, dim]) hidden width from the module spec

    key = jax.random.PRNGKey(0)
    keys = jax.random.split(key, 12)

    x = jax.random.normal(keys[0], (B, N, dim), dtype=jnp.float32)
    params = dict(
        g1=1.0 + 0.1 * jax.random.normal(keys[1], (dim,), dtype=jnp.float32),
        b1=0.01 * jax.random.normal(keys[2], (dim,), dtype=jnp.float32),
        wqkv=jax.random.normal(keys[3], (dim, 3 * dim), dtype=jnp.float32) * dim ** -0.5,
        wproj=jax.random.normal(keys[4], (dim, dim), dtype=jnp.float32) * dim ** -0.5,
        bproj=0.01 * jax.random.normal(keys[5], (dim,), dtype=jnp.float32),
        g2=1.0 + 0.1 * jax.random.normal(keys[6], (dim,), dtype=jnp.float32),
        b2=0.01 * jax.random.normal(keys[7], (dim,), dtype=jnp.float32),
        w1=jax.random.normal(keys[8], (dim, kan_hidden), dtype=jnp.float32) * dim ** -0.5,
        bias1=0.01 * jax.random.normal(keys[9], (kan_hidden,), dtype=jnp.float32),
        w2=jax.random.normal(keys[10], (kan_hidden, dim), dtype=jnp.float32) * kan_hidden ** -0.5,
        bias2=0.01 * jax.random.normal(keys[11], (dim,), dtype=jnp.float32),
    )

    out = vit_block_pallas(x, params, num_heads=num_heads, tm=256, use_bf16=True)
    out = jax.block_until_ready(out)

    ref = _block_reference(x, params, num_heads=num_heads, use_bf16=True)
    ref = jax.block_until_ready(ref)

    assert out.shape == (B, N, dim)
    max_err = float(jnp.max(jnp.abs(out - ref)))
    assert jnp.allclose(out, ref, atol=1e-2, rtol=1e-2), \
        f"mismatch vs reference (max abs err {max_err})"

    print("KERNEL_OK")
</pallas_src>

<mosaic_0001>
module attributes {stable_mosaic.version = 11 : i64} {
  func.func @_attn_block_kernel(%arg0: i32, %arg1: memref<1x128x128xf32, #tpu.memory_space<vmem>>, %arg2: memref<1x128xf32, #tpu.memory_space<vmem>>, %arg3: memref<1x128xf32, #tpu.memory_space<vmem>>, %arg4: memref<128x384xbf16, #tpu.memory_space<vmem>>, %arg5: memref<128x128xbf16, #tpu.memory_space<vmem>>, %arg6: memref<1x128xf32, #tpu.memory_space<vmem>>, %arg7: memref<1x128x128xf32, #tpu.memory_space<vmem>>, %arg8: memref<128x384xf32, #tpu.memory_space<vmem>>, %arg9: memref<128x128xf32, #tpu.memory_space<vmem>>) attributes {dimension_semantics = [#tpu.dimension_semantics<parallel>], iteration_bounds = array<i64: 4>, scalar_prefetch = 0 : i64, scratch_operands = 2 : i64, tpu.core_type = #tpu.core_type<tc>, window_params = [{transform_indices = @transform_0, window_bounds = array<i64: 1, 128, 128>}, {pipeline_mode = #tpu.pipeline_mode<synchronous>, transform_indices = @transform_1, window_bounds = array<i64: 1, 128>}, {pipeline_mode = #tpu.pipeline_mode<synchronous>, transform_indices = @transform_2, window_bounds = array<i64: 1, 128>}, {pipeline_mode = #tpu.pipeline_mode<synchronous>, transform_indices = @transform_3, window_bounds = array<i64: 128, 384>}, {pipeline_mode = #tpu.pipeline_mode<synchronous>, transform_indices = @transform_4, window_bounds = array<i64: 128, 128>}, {pipeline_mode = #tpu.pipeline_mode<synchronous>, transform_indices = @transform_5, window_bounds = array<i64: 1, 128>}, {transform_indices = @transform_6, window_bounds = array<i64: 1, 128, 128>}]} {
    %c0 = arith.constant 0 : index
    %c0_0 = arith.constant 0 : index
    %c0_1 = arith.constant 0 : index
    %0 = vector.load %arg1[%c0, %c0_0, %c0_1] : memref<1x128x128xf32, #tpu.memory_space<vmem>>, vector<1x128x128xf32>
    %1 = vector.shape_cast %0 : vector<1x128x128xf32> to vector<128x128xf32>
    %c0_2 = arith.constant 0 : index
    %c0_3 = arith.constant 0 : index
    %2 = vector.load %arg2[%c0_2, %c0_3] : memref<1x128xf32, #tpu.memory_space<vmem>>, vector<1x128xf32>
    %c0_4 = arith.constant 0 : index
    %c0_5 = arith.constant 0 : index
    %3 = vector.load %arg3[%c0_4, %c0_5] : memref<1x128xf32, #tpu.memory_space<vmem>>, vector<1x128xf32>
    %cst = arith.constant dense<0.000000e+00> : vector<128xf32>
    %4 = vector.multi_reduction <add>, %1, %cst [1] : vector<128x128xf32> to vector<128xf32>
    %5 = vector.shape_cast %4 : vector<128xf32> to vector<128x1xf32>
    %cst_6 = arith.constant 1.280000e+02 : f32
    %6 = vector.broadcast %cst_6 : f32 to vector<128x1xf32>
    %7 = arith.divf %5, %6 : vector<128x1xf32>
    %8 = vector.broadcast %7 : vector<128x1xf32> to vector<128x128xf32>
    %9 = arith.subf %1, %8 : vector<128x128xf32>
    %10 = arith.mulf %9, %9 : vector<128x128xf32>
    %cst_7 = arith.constant dense<0.000000e+00> : vector<128xf32>
    %11 = vector.multi_reduction <add>, %10, %cst_7 [1] : vector<128x128xf32> to vector<128xf32>
    %12 = vector.shape_cast %11 : vector<128xf32> to vector<128x1xf32>
    %cst_8 = arith.constant 1.280000e+02 : f32
    %13 = vector.broadcast %cst_8 : f32 to vector<128x1xf32>
    %14 = arith.divf %12, %13 : vector<128x1xf32>
    %cst_9 = arith.constant 9.99999974E-6 : f32
    %15 = vector.broadcast %cst_9 : f32 to vector<128x1xf32>
    %16 = arith.addf %14, %15 : vector<128x1xf32>
    %17 = math.rsqrt %16 : vector<128x1xf32>
    %18 = vector.broadcast %17 : vector<128x1xf32> to vector<128x128xf32>
    %19 = arith.mulf %9, %18 : vector<128x128xf32>
    %20 = vector.broadcast %2 : vector<1x128xf32> to vector<128x128xf32>
    %21 = arith.mulf %19, %20 : vector<128x128xf32>
    %22 = vector.broadcast %3 : vector<1x128xf32> to vector<128x128xf32>
    %23 = arith.addf %21, %22 : vector<128x128xf32>
    %24 = arith.truncf %23 : vector<128x128xf32> to vector<128x128xbf16>
    %c0_10 = arith.constant 0 : index
    %c0_11 = arith.constant 0 : index
    %25 = vector.load %arg4[%c0_10, %c0_11] : memref<128x384xbf16, #tpu.memory_space<vmem>>, vector<128x384xbf16>
    %cst_12 = arith.constant dense<0.000000e+00> : vector<128x384xf32>
    %26 = tpu.matmul %24, %25, %cst_12 {dimension_numbers = #tpu.dot_dimension_numbers<[1], [0], [0], [1], [0, 0, 1, 1], [], []>} : vector<128x128xbf16>, vector<128x384xbf16>, vector<128x384xf32> -> vector<128x384xf32>
    %c0_13 = arith.constant 0 : index
    %c0_14 = arith.constant 0 : index
    %27 = vector.load %arg8[%c0_13, %c0_14] : memref<128x384xf32, #tpu.memory_space<vmem>>, vector<128x384xf32>
    tpu.vector_store %arg8[%c0_13, %c0_14], %26 {strides = array<i32>} : memref<128x384xf32, #tpu.memory_space<vmem>>, vector<128x384xf32>,
    %cst_15 = arith.constant 0.000000e+00 : f32
    %28 = vector.broadcast %cst_15 : f32 to vector<128x128xf32>
    %c0_16 = arith.constant 0 : index
    %c0_17 = arith.constant 0 : index
    %29 = vector.load %arg9[%c0_16, %c0_17] : memref<128x128xf32, #tpu.memory_space<vmem>>, vector<128x128xf32>
    tpu.vector_store %arg9[%c0_16, %c0_17], %28 {strides = array<i32>} : memref<128x128xf32, #tpu.memory_space<vmem>>, vector<128x128xf32>,
    %c0_18 = arith.constant 0 : index
    %c0_19 = arith.constant 0 : index
    %30 = vector.load %arg8[%c0_18, %c0_19] : memref<128x384xf32, #tpu.memory_space<vmem>>, vector<128x16xf32>
    %c0_20 = arith.constant 0 : index
    %c128 = arith.constant 128 : index
    %31 = vector.load %arg8[%c0_20, %c128] : memref<128x384xf32, #tpu.memory_space<vmem>>, vector<128x16xf32>
    %c0_21 = arith.constant 0 : index
    %c256 = arith.constant 256 : index
    %32 = vector.load %arg8[%c0_21, %c256] : memref<128x384xf32, #tpu.memory_space<vmem>>, vector<128x16xf32>
    %33 = arith.truncf %30 : vector<128x16xf32> to vector<128x16xbf16>
    %34 = arith.truncf %31 : vector<128x16xf32> to vector<128x16xbf16>
    %cst_22 = arith.constant dense<0.000000e+00> : vector<128x128xf32>
    %35 = tpu.matmul %33, %34, %cst_22 {dimension_numbers = #tpu.dot_dimension_numbers<[1], [1], [0], [0], [0, 0, 1, 0], [], []>} : vector<128x16xbf16>, vector<128x16xbf16>, vector<128x128xf32> -> vector<128x128xf32>
    %cst_23 = arith.constant 2.500000e-01 : f32
    %36 = vector.broadcast %cst_23 : f32 to vector<128x128xf32>
    %37 = arith.mulf %35, %36 : vector<128x128xf32>
    %cst_24 = arith.constant dense<0xFF800000> : vector<128xf32>
    %38 = vector.multi_reduction <maximumf>, %37, %cst_24 [1] : vector<128x128xf32> to vector<128xf32>
    %39 = vector.shape_cast %38 : vector<128xf32> to vector<128x1xf32>
    %40 = vector.broadcast %39 : vector<128x1xf32> to vector<128x128xf32>
    %41 = arith.subf %37, %40 : vector<128x128xf32>
    %42 = math.exp %41 : vector<128x128xf32>
    %cst_25 = arith.constant dense<0.000000e+00> : vector<128xf32>
    %43 = vector.multi_reduction <add>, %42, %cst_25 [1] : vector<128x128xf32> to vector<128xf32>
    %44 = vector.shape_cast %43 : vector<128xf32> to vector<128x1xf32>
    %45 = vector.broadcast %44 : vector<128x1xf32> to vector<128x128xf32>
    %46 = arith.divf %42, %45 : vector<128x128xf32>
    %47 = arith.truncf %46 : vector<128x128xf32> to vector<128x128xbf16>
    %48 = arith.truncf %32 : vector<128x16xf32> to vector<128x16xbf16>
    %cst_26 = arith.constant dense<0.000000e+00> : vector<128x16xf32>
    %49 = tpu.matmul %47, %48, %cst_26 {dimension_numbers = #tpu.dot_dimension_numbers<[1], [0], [0], [1], [0, 0, 1, 1], [], []>} : vector<128x128xbf16>, vector<128x16xbf16>, vector<128x16xf32> -> vector<128x16xf32>
    %c0_27 = arith.constant 0 : index
    %c0_28 = arith.constant 0 : index
    %50 = vector.load %arg9[%c0_27, %c0_28] : memref<128x128xf32, #tpu.memory_space<vmem>>, vector<128x128xf32>
    %51 = arith.truncf %49 : vector<128x16xf32> to vector<128x16xbf16>
    %c0_29 = arith.constant 0 : index
    %c0_30 = arith.constant 0 : index
    %52 = vector.load %arg5[%c0_29, %c0_30] : memref<128x128xbf16, #tpu.memory_space<vmem>>, vector<16x128xbf16>
    %cst_31 = arith.constant dense<0.000000e+00> : vector<128x128xf32>
    %53 = tpu.matmul %51, %52, %cst_31 {dimension_numbers = #tpu.dot_dimension_numbers<[1], [0], [0], [1], [0, 0, 1, 1], [], []>} : vector<128x16xbf16>, vector<16x128xbf16>, vector<128x128xf32> -> vector<128x128xf32>
    %54 = arith.addf %50, %53 : vector<128x128xf32>
    %c0_32 = arith.constant 0 : index
    %c0_33 = arith.constant 0 : index
    %55 = vector.load %arg9[%c0_32, %c0_33] : memref<128x128xf32, #tpu.memory_space<vmem>>, vector<128x128xf32>
    tpu.vector_store %arg9[%c0_32, %c0_33], %54 {strides = array<i32>} : memref<128x128xf32, #tpu.memory_space<vmem>>, vector<128x128xf32>,
    %c0_34 = arith.constant 0 : index
    %c16 = arith.constant 16 : index
    %56 = vector.load %arg8[%c0_34, %c16] : memref<128x384xf32, #tpu.memory_space<vmem>>, vector<128x16xf32>
    %c0_35 = arith.constant 0 : index
    %c144 = arith.constant 144 : index
    %57 = vector.load %arg8[%c0_35, %c144] : memref<128x384xf32, #tpu.memory_space<vmem>>, vector<128x16xf32>
    %c0_36 = arith.constant 0 : index
    %c272 = arith.constant 272 : index
    %58 = vector.load %arg8[%c0_36, %c272] : memref<128x384xf32, #tpu.memory_space<vmem>>, vector<128x16xf32>
    %59 = arith.truncf %56 : vector<128x16xf32> to vector<128x16xbf16>
    %60 = arith.truncf %57 : vector<128x16xf32> to vector<128x16xbf16>
    %cst_37 = arith.constant dense<0.000000e+00> : vector<128x128xf32>
    %61 = tpu.matmul %59, %60, %cst_37 {dimension_numbers = #tpu.dot_dimension_numbers<[1], [1], [0], [0], [0, 0, 1, 0], [], []>} : vector<128x16xbf16>, vector<128x16xbf16>, vector<128x128xf32> -> vector<128x128xf32>
    %cst_38 = arith.constant 2.500000e-01 : f32
    %62 = vector.broadcast %cst_38 : f32 to vector<128x128xf32>
    %63 = arith.mulf %61, %62 : vector<128x128xf32>
    %cst_39 = arith.constant dense<0xFF800000> : vector<128xf32>
    %64 = vector.multi_reduction <maximumf>, %63, %cst_39 [1] : vector<128x128xf32> to vector<128xf32>
    %65 = vector.shape_cast %64 : vector<128xf32> to vector<128x1xf32>
    %66 = vector.broadcast %65 : vector<128x1xf32> to vector<128x128xf32>
    %67 = arith.subf %63, %66 : vector<128x128xf32>
    %68 = math.exp %67 : vector<128x128xf32>
    %cst_40 = arith.constant dense<0.000000e+00> : vector<128xf32>
    %69 = vector.multi_reduction <add>, %68, %cst_40 [1] : vector<128x128xf32> to vector<128xf32>
    %70 = vector.shape_cast %69 : vector<128xf32> to vector<128x1xf32>
    %71 = vector.broadcast %70 : vector<128x1xf32> to vector<128x128xf32>
    %72 = arith.divf %68, %71 : vector<128x128xf32>
    %73 = arith.truncf %72 : vector<128x128xf32> to vector<128x128xbf16>
    %74 = arith.truncf %58 : vector<128x16xf32> to vector<128x16xbf16>
    %cst_41 = arith.constant dense<0.000000e+00> : vector<128x16xf32>
    %75 = tpu.matmul %73, %74, %cst_41 {dimension_numbers = #tpu.dot_dimension_numbers<[1], [0], [0], [1], [0, 0, 1, 1], [], []>} : vector<128x128xbf16>, vector<128x16xbf16>, vector<128x16xf32> -> vector<128x16xf32>
    %c0_42 = arith.constant 0 : index
    %c0_43 = arith.constant 0 : index
    %76 = vector.load %arg9[%c0_42, %c0_43] : memref<128x128xf32, #tpu.memory_space<vmem>>, vector<128x128xf32>
    %77 = arith.truncf %75 : vector<128x16xf32> to vector<128x16xbf16>
    %c16_44 = arith.constant 16 : index
    %c0_45 = arith.constant 0 : index
    %78 = vector.load %arg5[%c16_44, %c0_45] : memref<128x128xbf16, #tpu.memory_space<vmem>>, vector<16x128xbf16>
    %cst_46 = arith.constant dense<0.000000e+00> : vector<128x128xf32>
    %79 = tpu.matmul %77, %78, %cst_46 {dimension_numbers = #tpu.dot_dimension_numbers<[1], [0], [0], [1], [0, 0, 1, 1], [], []>} : vector<128x16xbf16>, vector<16x128xbf16>, vector<128x128xf32> -> vector<128x128xf32>
    %80 = arith.addf %76, %79 : vector<128x128xf32>
    %c0_47 = arith.constant 0 : index
    %c0_48 = arith.constant 0 : index
    %81 = vector.load %arg9[%c0_47, %c0_48] : memref<128x128xf32, #tpu.memory_space<vmem>>, vector<128x128xf32>
    tpu.vector_store %arg9[%c0_47, %c0_48], %80 {strides = array<i32>} : memref<128x128xf32, #tpu.memory_space<vmem>>, vector<128x128xf32>,
    %c0_49 = arith.constant 0 : index
    %c32 = arith.constant 32 : index
    %82 = vector.load %arg8[%c0_49, %c32] : memref<128x384xf32, #tpu.memory_space<vmem>>, vector<128x16xf32>
    %c0_50 = arith.constant 0 : index
    %c160 = arith.constant 160 : index
    %83 = vector.load %arg8[%c0_50, %c160] : memref<128x384xf32, #tpu.memory_space<vmem>>, vector<128x16xf32>
    %c0_51 = arith.constant 0 : index
    %c288 = arith.constant 288 : index
    %84 = vector.load %arg8[%c0_51, %c288] : memref<128x384xf32, #tpu.memory_space<vmem>>, vector<128x16xf32>
    %85 = arith.truncf %82 : vector<128x16xf32> to vector<128x16xbf16>
    %86 = arith.truncf %83 : vector<128x16xf32> to vector<128x16xbf16>
    %cst_52 = arith.constant dense<0.000000e+00> : vector<128x128xf32>
    %87 = tpu.matmul %85, %86, %cst_52 {dimension_numbers = #tpu.dot_dimension_numbers<[1], [1], [0], [0], [0, 0, 1, 0], [], []>} : vector<128x16xbf16>, vector<128x16xbf16>, vector<128x128xf32> -> vector<128x128xf32>
    %cst_53 = arith.constant 2.500000e-01 : f32
    %88 = vector.broadcast %cst_53 : f32 to vector<128x128xf32>
    %89 = arith.mulf %87, %88 : vector<128x128xf32>
    %cst_54 = arith.constant dense<0xFF800000> : vector<128xf32>
    %90 = vector.multi_reduction <maximumf>, %89, %cst_54 [1] : vector<128x128xf32> to vector<128xf32>
    %91 = vector.shape_cast %90 : vector<128xf32> to vector<128x1xf32>
    %92 = vector.broadcast %91 : vector<128x1xf32> to vector<128x128xf32>
    %93 = arith.subf %89, %92 : vector<128x128xf32>
    %94 = math.exp %93 : vector<128x128xf32>
    %cst_55 = arith.constant dense<0.000000e+00> : vector<128xf32>
    %95 = vector.multi_reduction <add>, %94, %cst_55 [1] : vector<128x128xf32> to vector<128xf32>
    %96 = vector.shape_cast %95 : vector<128xf32> to vector<128x1xf32>
    %97 = vector.broadcast %96 : vector<128x1xf32> to vector<128x128xf32>
    %98 = arith.divf %94, %97 : vector<128x128xf32>
    %99 = arith.truncf %98 : vector<128x128xf32> to vector<128x128xbf16>
    %100 = arith.truncf %84 : vector<128x16xf32> to vector<128x16xbf16>
    %cst_56 = arith.constant dense<0.000000e+00> : vector<128x16xf32>
    %101 = tpu.matmul %99, %100, %cst_56 {dimension_numbers = #tpu.dot_dimension_numbers<[1], [0], [0], [1], [0, 0, 1, 1], [], []>} : vector<128x128xbf16>, vector<128x16xbf16>, vector<128x16xf32> -> vector<128x16xf32>
    %c0_57 = arith.constant 0 : index
    %c0_58 = arith.constant 0 : index
    %102 = vector.load %arg9[%c0_57, %c0_58] : memref<128x128xf32, #tpu.memory_space<vmem>>, vector<128x128xf32>
    %103 = arith.truncf %101 : vector<128x16xf32> to vector<128x16xbf16>
    %c32_59 = arith.constant 32 : index
    %c0_60 = arith.constant 0 : index
    %104 = vector.load %arg5[%c32_59, %c0_60] : memref<128x128xbf16, #tpu.memory_space<vmem>>, vector<16x128xbf16>
    %cst_61 = arith.constant dense<0.000000e+00> : vector<128x128xf32>
    %105 = tpu.matmul %103, %104, %cst_61 {dimension_numbers = #tpu.dot_dimension_numbers<[1], [0], [0], [1], [0, 0, 1, 1], [], []>} : vector<128x16xbf16>, vector<16x128xbf16>, vector<128x128xf32> -> vector<128x128xf32>
    %106 = arith.addf %102, %105 : vector<128x128xf32>
    %c0_62 = arith.constant 0 : index
    %c0_63 = arith.constant 0 : index
    %107 = vector.load %arg9[%c0_62, %c0_63] : memref<128x128xf32, #tpu.memory_space<vmem>>, vector<128x128xf32>
    tpu.vector_store %arg9[%c0_62, %c0_63], %106 {strides = array<i32>} : memref<128x128xf32, #tpu.memory_space<vmem>>, vector<128x128xf32>,
    %c0_64 = arith.constant 0 : index
    %c48 = arith.constant 48 : index
    %108 = vector.load %arg8[%c0_64, %c48] : memref<128x384xf32, #tpu.memory_space<vmem>>, vector<128x16xf32>
    %c0_65 = arith.constant 0 : index
    %c176 = arith.constant 176 : index
    %109 = vector.load %arg8[%c0_65, %c176] : memref<128x384xf32, #tpu.memory_space<vmem>>, vector<128x16xf32>
    %c0_66 = arith.constant 0 : index
    %c304 = arith.constant 304 : index
    %110 = vector.load %arg8[%c0_66, %c304] : memref<128x384xf32, #tpu.memory_space<vmem>>, vector<128x16xf32>
    %111 = arith.truncf %108 : vector<128x16xf32> to vector<128x16xbf16>
    %112 = arith.truncf %109 : vector<128x16xf32> to vector<128x16xbf16>
    %cst_67 = arith.constant dense<0.000000e+00> : vector<128x128xf32>
    %113 = tpu.matmul %111, %112, %cst_67 {dimension_numbers = #tpu.dot_dimension_numbers<[1], [1], [0], [0], [0, 0, 1, 0], [], []>} : vector<128x16xbf16>, vector<128x16xbf16>, vector<128x128xf32> -> vector<128x128xf32>
    %cst_68 = arith.constant 2.500000e-01 : f32
    %114 = vector.broadcast %cst_68 : f32 to vector<128x128xf32>
    %115 = arith.mulf %113, %114 : vector<128x128xf32>
    %cst_69 = arith.constant dense<0xFF800000> : vector<128xf32>
    %116 = vector.multi_reduction <maximumf>, %115, %cst_69 [1] : vector<128x128xf32> to vector<128xf32>
    %117 = vector.shape_cast %116 : vector<128xf32> to vector<128x1xf32>
    %118 = vector.broadcast %117 : vector<128x1xf32> to vector<128x128xf32>
    %119 = arith.subf %115, %118 : vector<128x128xf32>
    %120 = math.exp %119 : vector<128x128xf32>
    %cst_70 = arith.constant dense<0.000000e+00> : vector<128xf32>
    %121 = vector.multi_reduction <add>, %120, %cst_70 [1] : vector<128x128xf32> to vector<128xf32>
    %122 = vector.shape_cast %121 : vector<128xf32> to vector<128x1xf32>
    %123 = vector.broadcast %122 : vector<128x1xf32> to vector<128x128xf32>
    %124 = arith.divf %120, %123 : vector<128x128xf32>
    %125 = arith.truncf %124 : vector<128x128xf32> to vector<128x128xbf16>
    %126 = arith.truncf %110 : vector<128x16xf32> to vector<128x16xbf16>
    %cst_71 = arith.constant dense<0.000000e+00> : vector<128x16xf32>
    %127 = tpu.matmul %125, %126, %cst_71 {dimension_numbers = #tpu.dot_dimension_numbers<[1], [0], [0], [1], [0, 0, 1, 1], [], []>} : vector<128x128xbf16>, vector<128x16xbf16>, vector<128x16xf32> -> vector<128x16xf32>
    %c0_72 = arith.constant 0 : index
    %c0_73 = arith.constant 0 : index
    %128 = vector.load %arg9[%c0_72, %c0_73] : memref<128x128xf32, #tpu.memory_space<vmem>>, vector<128x128xf32>
    %129 = arith.truncf %127 : vector<128x16xf32> to vector<128x16xbf16>
    %c48_74 = arith.constant 48 : index
    %c0_75 = arith.constant 0 : index
    %130 = vector.load %arg5[%c48_74, %c0_75] : memref<128x128xbf16, #tpu.memory_space<vmem>>, vector<16x128xbf16>
    %cst_76 = arith.constant dense<0.000000e+00> : vector<128x128xf32>
    %131 = tpu.matmul %129, %130, %cst_76 {dimension_numbers = #tpu.dot_dimension_numbers<[1], [0], [0], [1], [0, 0, 1, 1], [], []>} : vector<128x16xbf16>, vector<16x128xbf16>, vector<128x128xf32> -> vector<128x128xf32>
    %132 = arith.addf %128, %131 : vector<128x128xf32>
    %c0_77 = arith.constant 0 : index
    %c0_78 = arith.constant 0 : index
    %133 = vector.load %arg9[%c0_77, %c0_78] : memref<128x128xf32, #tpu.memory_space<vmem>>, vector<128x128xf32>
    tpu.vector_store %arg9[%c0_77, %c0_78], %132 {strides = array<i32>} : memref<128x128xf32, #tpu.memory_space<vmem>>, vector<128x128xf32>,
    %c0_79 = arith.constant 0 : index
    %c64 = arith.constant 64 : index
    %134 = vector.load %arg8[%c0_79, %c64] : memref<128x384xf32, #tpu.memory_space<vmem>>, vector<128x16xf32>
    %c0_80 = arith.constant 0 : index
    %c192 = arith.constant 192 : index
    %135 = vector.load %arg8[%c0_80, %c192] : memref<128x384xf32, #tpu.memory_space<vmem>>, vector<128x16xf32>
    %c0_81 = arith.constant 0 : index
    %c320 = arith.constant 320 : index
    %136 = vector.load %arg8[%c0_81, %c320] : memref<128x384xf32, #tpu.memory_space<vmem>>, vector<128x16xf32>
    %137 = arith.truncf %134 : vector<128x16xf32> to vector<128x16xbf16>
    %138 = arith.truncf %135 : vector<128x16xf32> to vector<128x16xbf16>
    %cst_82 = arith.constant dense<0.000000e+00> : vector<128x128xf32>
    %139 = tpu.matmul %137, %138, %cst_82 {dimension_numbers = #tpu.dot_dimension_numbers<[1], [1], [0], [0], [0, 0, 1, 0], [], []>} : vector<128x16xbf16>, vector<128x16xbf16>, vector<128x128xf32> -> vector<128x128xf32>
    %cst_83 = arith.constant 2.500000e-01 : f32
    %140 = vector.broadcast %cst_83 : f32 to vector<128x128xf32>
    %141 = arith.mulf %139, %140 : vector<128x128xf32>
    %cst_84 = arith.constant dense<0xFF800000> : vector<128xf32>
    %142 = vector.multi_reduction <maximumf>, %141, %cst_84 [1] : vector<128x128xf32> to vector<128xf32>
    %143 = vector.shape_cast %142 : vector<128xf32> to vector<128x1xf32>
    %144 = vector.broadcast %143 : vector<128x1xf32> to vector<128x128xf32>
    %145 = arith.subf %141, %144 : vector<128x128xf32>
    %146 = math.exp %145 : vector<128x128xf32>
    %cst_85 = arith.constant dense<0.000000e+00> : vector<128xf32>
    %147 = vector.multi_reduction <add>, %146, %cst_85 [1] : vector<128x128xf32> to vector<128xf32>
    %148 = vector.shape_cast %147 : vector<128xf32> to vector<128x1xf32>
    %149 = vector.broadcast %148 : vector<128x1xf32> to vector<128x128xf32>
    %150 = arith.divf %146, %149 : vector<128x128xf32>
    %151 = arith.truncf %150 : vector<128x128xf32> to vector<128x128xbf16>
    %152 = arith.truncf %136 : vector<128x16xf32> to vector<128x16xbf16>
    %cst_86 = arith.constant dense<0.000000e+00> : vector<128x16xf32>
    %153 = tpu.matmul %151, %152, %cst_86 {dimension_numbers = #tpu.dot_dimension_numbers<[1], [0], [0], [1], [0, 0, 1, 1], [], []>} : vector<128x128xbf16>, vector<128x16xbf16>, vector<128x16xf32> -> vector<128x16xf32>
    %c0_87 = arith.constant 0 : index
    %c0_88 = arith.constant 0 : index
    %154 = vector.load %arg9[%c0_87, %c0_88] : memref<128x128xf32, #tpu.memory_space<vmem>>, vector<128x128xf32>
    %155 = arith.truncf %153 : vector<128x16xf32> to vector<128x16xbf16>
    %c64_89 = arith.constant 64 : index
    %c0_90 = arith.constant 0 : index
    %156 = vector.load %arg5[%c64_89, %c0_90] : memref<128x128xbf16, #tpu.memory_space<vmem>>, vector<16x128xbf16>
    %cst_91 = arith.constant dense<0.000000e+00> : vector<128x128xf32>
    %157 = tpu.matmul %155, %156, %cst_91 {dimension_numbers = #tpu.dot_dimension_numbers<[1], [0], [0], [1], [0, 0, 1, 1], [], []>} : vector<128x16xbf16>, vector<16x128xbf16>, vector<128x128xf32> -> vector<128x128xf32>
    %158 = arith.addf %154, %157 : vector<128x128xf32>
    %c0_92 = arith.constant 0 : index
    %c0_93 = arith.constant 0 : index
    %159 = vector.load %arg9[%c0_92, %c0_93] : memref<128x128xf32, #tpu.memory_space<vmem>>, vector<128x128xf32>
    tpu.vector_store %arg9[%c0_92, %c0_93], %158 {strides = array<i32>} : memref<128x128xf32, #tpu.memory_space<vmem>>, vector<128x128xf32>,
    %c0_94 = arith.constant 0 : index
    %c80 = arith.constant 80 : index
    %160 = vector.load %arg8[%c0_94, %c80] : memref<128x384xf32, #tpu.memory_space<vmem>>, vector<128x16xf32>
    %c0_95 = arith.constant 0 : index
    %c208 = arith.constant 208 : index
    %161 = vector.load %arg8[%c0_95, %c208] : memref<128x384xf32, #tpu.memory_space<vmem>>, vector<128x16xf32>
    %c0_96 = arith.constant 0 : index
    %c336 = arith.constant 336 : index
    %162 = vector.load %arg8[%c0_96, %c336] : memref<128x384xf32, #tpu.memory_space<vmem>>, vector<128x16xf32>
    %163 = arith.truncf %160 : vector<128x16xf32> to vector<128x16xbf16>
    %164 = arith.truncf %161 : vector<128x16xf32> to vector<128x16xbf16>
    %cst_97 = arith.constant dense<0.000000e+00> : vector<128x128xf32>
    %165 = tpu.matmul %163, %164, %cst_97 {dimension_numbers = #tpu.dot_dimension_numbers<[1], [1], [0], [0], [0, 0, 1, 0], [], []>} : vector<128x16xbf16>, vector<128x16xbf16>, vector<128x128xf32> -> vector<128x128xf32>
    %cst_98 = arith.constant 2.500000e-01 : f32
    %166 = vector.broadcast %cst_98 : f32 to vector<128x128xf32>
    %167 = arith.mulf %165, %166 : vector<128x128xf32>
    %cst_99 = arith.constant dense<0xFF800000> : vector<128xf32>
    %168 = vector.multi_reduction <maximumf>, %167, %cst_99 [1] : vector<128x128xf32> to vector<128xf32>
    %169 = vector.shape_cast %168 : vector<128xf32> to vector<128x1xf32>
    %170 = vector.broadcast %169 : vector<128x1xf32> to vector<128x128xf32>
    %171 = arith.subf %167, %170 : vector<128x128xf32>
    %172 = math.exp %171 : vector<128x128xf32>
    %cst_100 = arith.constant dense<0.000000e+00> : vector<128xf32>
    %173 = vector.multi_reduction <add>, %172, %cst_100 [1] : vector<128x128xf32> to vector<128xf32>
    %174 = vector.shape_cast %173 : vector<128xf32> to vector<128x1xf32>
    %175 = vector.broadcast %174 : vector<128x1xf32> to vector<128x128xf32>
    %176 = arith.divf %172, %175 : vector<128x128xf32>
    %177 = arith.truncf %176 : vector<128x128xf32> to vector<128x128xbf16>
    %178 = arith.truncf %162 : vector<128x16xf32> to vector<128x16xbf16>
    %cst_101 = arith.constant dense<0.000000e+00> : vector<128x16xf32>
    %179 = tpu.matmul %177, %178, %cst_101 {dimension_numbers = #tpu.dot_dimension_numbers<[1], [0], [0], [1], [0, 0, 1, 1], [], []>} : vector<128x128xbf16>, vector<128x16xbf16>, vector<128x16xf32> -> vector<128x16xf32>
    %c0_102 = arith.constant 0 : index
    %c0_103 = arith.constant 0 : index
    %180 = vector.load %arg9[%c0_102, %c0_103] : memref<128x128xf32, #tpu.memory_space<vmem>>, vector<128x128xf32>
    %181 = arith.truncf %179 : vector<128x16xf32> to vector<128x16xbf16>
    %c80_104 = arith.constant 80 : index
    %c0_105 = arith.constant 0 : index
    %182 = vector.load %arg5[%c80_104, %c0_105] : memref<128x128xbf16, #tpu.memory_space<vmem>>, vector<16x128xbf16>
    %cst_106 = arith.constant dense<0.000000e+00> : vector<128x128xf32>
    %183 = tpu.matmul %181, %182, %cst_106 {dimension_numbers = #tpu.dot_dimension_numbers<[1], [0], [0], [1], [0, 0, 1, 1], [], []>} : vector<128x16xbf16>, vector<16x128xbf16>, vector<128x128xf32> -> vector<128x128xf32>
    %184 = arith.addf %180, %183 : vector<128x128xf32>
    %c0_107 = arith.constant 0 : index
    %c0_108 = arith.constant 0 : index
    %185 = vector.load %arg9[%c0_107, %c0_108] : memref<128x128xf32, #tpu.memory_space<vmem>>, vector<128x128xf32>
    tpu.vector_store %arg9[%c0_107, %c0_108], %184 {strides = array<i32>} : memref<128x128xf32, #tpu.memory_space<vmem>>, vector<128x128xf32>,
    %c0_109 = arith.constant 0 : index
    %c96 = arith.constant 96 : index
    %186 = vector.load %arg8[%c0_109, %c96] : memref<128x384xf32, #tpu.memory_space<vmem>>, vector<128x16xf32>
    %c0_110 = arith.constant 0 : index
    %c224 = arith.constant 224 : index
    %187 = vector.load %arg8[%c0_110, %c224] : memref<128x384xf32, #tpu.memory_space<vmem>>, vector<128x16xf32>
    %c0_111 = arith.constant 0 : index
    %c352 = arith.constant 352 : index
    %188 = vector.load %arg8[%c0_111, %c352] : memref<128x384xf32, #tpu.memory_space<vmem>>, vector<128x16xf32>
    %189 = arith.truncf %186 : vector<128x16xf32> to vector<128x16xbf16>
    %190 = arith.truncf %187 : vector<128x16xf32> to vector<128x16xbf16>
    %cst_112 = arith.constant dense<0.000000e+00> : vector<128x128xf32>
    %191 = tpu.matmul %189, %190, %cst_112 {dimension_numbers = #tpu.dot_dimension_numbers<[1], [1], [0], [0], [0, 0, 1, 0], [], []>} : vector<128x16xbf16>, vector<128x16xbf16>, vector<128x128xf32> -> vector<128x128xf32>
    %cst_113 = arith.constant 2.500000e-01 : f32
    %192 = vector.broadcast %cst_113 : f32 to vector<128x128xf32>
    %193 = arith.mulf %191, %192 : vector<128x128xf32>
    %cst_114 = arith.constant dense<0xFF800000> : vector<128xf32>
    %194 = vector.multi_reduction <maximumf>, %193, %cst_114 [1] : vector<128x128xf32> to vector<128xf32>
    %195 = vector.shape_cast %194 : vector<128xf32> to vector<128x1xf32>
    %196 = vector.broadcast %195 : vector<128x1xf32> to vector<128x128xf32>
    %197 = arith.subf %193, %196 : vector<128x128xf32>
    %198 = math.exp %197 : vector<128x128xf32>
    %cst_115 = arith.constant dense<0.000000e+00> : vector<128xf32>
    %199 = vector.multi_reduction <add>, %198, %cst_115 [1] : vector<128x128xf32> to vector<128xf32>
    %200 = vector.shape_cast %199 : vector<128xf32> to vector<128x1xf32>
    %201 = vector.broadcast %200 : vector<128x1xf32> to vector<128x128xf32>
    %202 = arith.divf %198, %201 : vector<128x128xf32>
    %203 = arith.truncf %202 : vector<128x128xf32> to vector<128x128xbf16>
    %204 = arith.truncf %188 : vector<128x16xf32> to vector<128x16xbf16>
    %cst_116 = arith.constant dense<0.000000e+00> : vector<128x16xf32>
    %205 = tpu.matmul %203, %204, %cst_116 {dimension_numbers = #tpu.dot_dimension_numbers<[1], [0], [0], [1], [0, 0, 1, 1], [], []>} : vector<128x128xbf16>, vector<128x16xbf16>, vector<128x16xf32> -> vector<128x16xf32>
    %c0_117 = arith.constant 0 : index
    %c0_118 = arith.constant 0 : index
    %206 = vector.load %arg9[%c0_117, %c0_118] : memref<128x128xf32, #tpu.memory_space<vmem>>, vector<128x128xf32>
    %207 = arith.truncf %205 : vector<128x16xf32> to vector<128x16xbf16>
    %c96_119 = arith.constant 96 : index
    %c0_120 = arith.constant 0 : index
    %208 = vector.load %arg5[%c96_119, %c0_120] : memref<128x128xbf16, #tpu.memory_space<vmem>>, vector<16x128xbf16>
    %cst_121 = arith.constant dense<0.000000e+00> : vector<128x128xf32>
    %209 = tpu.matmul %207, %208, %cst_121 {dimension_numbers = #tpu.dot_dimension_numbers<[1], [0], [0], [1], [0, 0, 1, 1], [], []>} : vector<128x16xbf16>, vector<16x128xbf16>, vector<128x128xf32> -> vector<128x128xf32>
    %210 = arith.addf %206, %209 : vector<128x128xf32>
    %c0_122 = arith.constant 0 : index
    %c0_123 = arith.constant 0 : index
    %211 = vector.load %arg9[%c0_122, %c0_123] : memref<128x128xf32, #tpu.memory_space<vmem>>, vector<128x128xf32>
    tpu.vector_store %arg9[%c0_122, %c0_123], %210 {strides = array<i32>} : memref<128x128xf32, #tpu.memory_space<vmem>>, vector<128x128xf32>,
    %c0_124 = arith.constant 0 : index
    %c112 = arith.constant 112 : index
    %212 = vector.load %arg8[%c0_124, %c112] : memref<128x384xf32, #tpu.memory_space<vmem>>, vector<128x16xf32>
    %c0_125 = arith.constant 0 : index
    %c240 = arith.constant 240 : index
    %213 = vector.load %arg8[%c0_125, %c240] : memref<128x384xf32, #tpu.memory_space<vmem>>, vector<128x16xf32>
    %c0_126 = arith.constant 0 : index
    %c368 = arith.constant 368 : index
    %214 = vector.load %arg8[%c0_126, %c368] : memref<128x384xf32, #tpu.memory_space<vmem>>, vector<128x16xf32>
    %215 = arith.truncf %212 : vector<128x16xf32> to vector<128x16xbf16>
    %216 = arith.truncf %213 : vector<128x16xf32> to vector<128x16xbf16>
    %cst_127 = arith.constant dense<0.000000e+00> : vector<128x128xf32>
    %217 = tpu.matmul %215, %216, %cst_127 {dimension_numbers = #tpu.dot_dimension_numbers<[1], [1], [0], [0], [0, 0, 1, 0], [], []>} : vector<128x16xbf16>, vector<128x16xbf16>, vector<128x128xf32> -> vector<128x128xf32>
    %cst_128 = arith.constant 2.500000e-01 : f32
    %218 = vector.broadcast %cst_128 : f32 to vector<128x128xf32>
    %219 = arith.mulf %217, %218 : vector<128x128xf32>
    %cst_129 = arith.constant dense<0xFF800000> : vector<128xf32>
    %220 = vector.multi_reduction <maximumf>, %219, %cst_129 [1] : vector<128x128xf32> to vector<128xf32>
    %221 = vector.shape_cast %220 : vector<128xf32> to vector<128x1xf32>
    %222 = vector.broadcast %221 : vector<128x1xf32> to vector<128x128xf32>
    %223 = arith.subf %219, %222 : vector<128x128xf32>
    %224 = math.exp %223 : vector<128x128xf32>
    %cst_130 = arith.constant dense<0.000000e+00> : vector<128xf32>
    %225 = vector.multi_reduction <add>, %224, %cst_130 [1] : vector<128x128xf32> to vector<128xf32>
    %226 = vector.shape_cast %225 : vector<128xf32> to vector<128x1xf32>
    %227 = vector.broadcast %226 : vector<128x1xf32> to vector<128x128xf32>
    %228 = arith.divf %224, %227 : vector<128x128xf32>
    %229 = arith.truncf %228 : vector<128x128xf32> to vector<128x128xbf16>
    %230 = arith.truncf %214 : vector<128x16xf32> to vector<128x16xbf16>
    %cst_131 = arith.constant dense<0.000000e+00> : vector<128x16xf32>
    %231 = tpu.matmul %229, %230, %cst_131 {dimension_numbers = #tpu.dot_dimension_numbers<[1], [0], [0], [1], [0, 0, 1, 1], [], []>} : vector<128x128xbf16>, vector<128x16xbf16>, vector<128x16xf32> -> vector<128x16xf32>
    %c0_132 = arith.constant 0 : index
    %c0_133 = arith.constant 0 : index
    %232 = vector.load %arg9[%c0_132, %c0_133] : memref<128x128xf32, #tpu.memory_space<vmem>>, vector<128x128xf32>
    %233 = arith.truncf %231 : vector<128x16xf32> to vector<128x16xbf16>
    %c112_134 = arith.constant 112 : index
    %c0_135 = arith.constant 0 : index
    %234 = vector.load %arg5[%c112_134, %c0_135] : memref<128x128xbf16, #tpu.memory_space<vmem>>, vector<16x128xbf16>
    %cst_136 = arith.constant dense<0.000000e+00> : vector<128x128xf32>
    %235 = tpu.matmul %233, %234, %cst_136 {dimension_numbers = #tpu.dot_dimension_numbers<[1], [0], [0], [1], [0, 0, 1, 1], [], []>} : vector<128x16xbf16>, vector<16x128xbf16>, vector<128x128xf32> -> vector<128x128xf32>
    %236 = arith.addf %232, %235 : vector<128x128xf32>
    %c0_137 = arith.constant 0 : index
    %c0_138 = arith.constant 0 : index
    %237 = vector.load %arg9[%c0_137, %c0_138] : memref<128x128xf32, #tpu.memory_space<vmem>>, vector<128x128xf32>
    tpu.vector_store %arg9[%c0_137, %c0_138], %236 {strides = array<i32>} : memref<128x128xf32, #tpu.memory_space<vmem>>, vector<128x128xf32>,
    %c0_139 = arith.constant 0 : index
    %c0_140 = arith.constant 0 : index
    %c0_141 = arith.constant 0 : index
    %238 = vector.load %arg1[%c0_139, %c0_140, %c0_141] : memref<1x128x128xf32, #tpu.memory_space<vmem>>, vector<1x128x128xf32>
    %239 = vector.shape_cast %238 : vector<1x128x128xf32> to vector<128x128xf32>
    %c0_142 = arith.constant 0 : index
    %c0_143 = arith.constant 0 : index
    %240 = vector.load %arg9[%c0_142, %c0_143] : memref<128x128xf32, #tpu.memory_space<vmem>>, vector<128x128xf32>
    %241 = arith.addf %239, %240 : vector<128x128xf32>
    %c0_144 = arith.constant 0 : index
    %c0_145 = arith.constant 0 : index
    %242 = vector.load %arg6[%c0_144, %c0_145] : memref<1x128xf32, #tpu.memory_space<vmem>>, vector<1x128xf32>
    %243 = vector.broadcast %242 : vector<1x128xf32> to vector<128x128xf32>
    %244 = arith.addf %241, %243 : vector<128x128xf32>
    %c0_146 = arith.constant 0 : index
    %c0_147 = arith.constant 0 : index
    %c0_148 = arith.constant 0 : index
    %245 = vector.load %arg7[%c0_146, %c0_147, %c0_148] : memref<1x128x128xf32, #tpu.memory_space<vmem>>, vector<1x128x128xf32>
    %246 = vector.shape_cast %245 : vector<1x128x128xf32> to vector<128x128xf32>
    %247 = vector.shape_cast %244 : vector<128x128xf32> to vector<1x128x128xf32>
    tpu.vector_store %arg7[%c0_146, %c0_147, %c0_148], %247 {strides = array<i32>} : memref<1x128x128xf32, #tpu.memory_space<vmem>>, vector<1x128x128xf32>,
    return
  }
  func.func @transform_0(%arg0: i32) -> (i32, i32, i32) {
    %c0_i32 = arith.constant 0 : i32
    %c0_i32_0 = arith.constant 0 : i32
    %c0_i32_1 = arith.constant 0 : i32
    return %arg0, %c0_i32, %c0_i32_0 : i32, i32, i32
  }
  func.func @transform_1(%arg0: i32) -> (i32, i32) {
    %c0_i32 = arith.constant 0 : i32
    %c0_i32_0 = arith.constant 0 : i32
    %c0_i32_1 = arith.constant 0 : i32
    return %c0_i32, %c0_i32_0 : i32, i32
  }
  func.func @transform_2(%arg0: i32) -> (i32, i32) {
    %c0_i32 = arith.constant 0 : i32
    %c0_i32_0 = arith.constant 0 : i32
    %c0_i32_1 = arith.constant 0 : i32
    return %c0_i32, %c0_i32_0 : i32, i32
  }
  func.func @transform_3(%arg0: i32) -> (i32, i32) {
    %c0_i32 = arith.constant 0 : i32
    %c0_i32_0 = arith.constant 0 : i32
    %c0_i32_1 = arith.constant 0 : i32
    return %c0_i32, %c0_i32_0 : i32, i32
  }
  func.func @transform_4(%arg0: i32) -> (i32, i32) {
    %c0_i32 = arith.constant 0 : i32
    %c0_i32_0 = arith.constant 0 : i32
    %c0_i32_1 = arith.constant 0 : i32
    return %c0_i32, %c0_i32_0 : i32, i32
  }
  func.func @transform_5(%arg0: i32) -> (i32, i32) {
    %c0_i32 = arith.constant 0 : i32
    %c0_i32_0 = arith.constant 0 : i32
    %c0_i32_1 = arith.constant 0 : i32
    return %c0_i32, %c0_i32_0 : i32, i32
  }
  func.func @transform_6(%arg0: i32) -> (i32, i32, i32) {
    %c0_i32 = arith.constant 0 : i32
    %c0_i32_0 = arith.constant 0 : i32
    %c0_i32_1 = arith.constant 0 : i32
    return %arg0, %c0_i32, %c0_i32_0 : i32, i32, i32
  }
}

</mosaic_0001>

<llo_original>
// kernel: tpu_custom_call.1
$region0: #{tpu_custom_call.1}
  #allocation0 [shape = 'u32[]', space=smem, size = 0x4, offset = 0x4, fixed_abs, tag = 'smem constant byte address 0x4 - core index']
  #allocation1 [shape = 'u32[8192,128]{1,0:T(1,128)}', space=vmem, size = 0x400000, scoped, tag = 'internal scratch']
  #allocation2 [shape = 'f32[128,384]{1,0:T(8,128)}', space=vmem, size = 0x30000, scoped, tag = 'scratch operand']
  #allocation3 [shape = 'f32[128,128]{1,0:T(8,128)}', space=vmem, size = 0x10000, scoped, tag = 'scratch operand']
  %s0 = inlined_call_operand.hbm [shape: f32[4,128,128], index: 0, kind: input, shape index: {}]
  %s1 = inlined_call_operand.vmem [shape: f32[1,128], index: 1, kind: input, shape index: {}]
  %s2 = inlined_call_operand.vmem [shape: f32[1,128], index: 2, kind: input, shape index: {}]
  %s3 = inlined_call_operand.hbm [shape: bf16[128,384], index: 3, kind: input, shape index: {}]
  %s4 = inlined_call_operand.hbm [shape: bf16[128,128], index: 4, kind: input, shape index: {}]
  %s5 = inlined_call_operand.vmem [shape: f32[1,128], index: 5, kind: input, shape index: {}]
  %s6 = inlined_call_operand.hbm [shape: f32[4,128,128], index: 6, kind: output, shape index: {}]
  %s7 = sld [smem:[#allocation0]]
  $region69: #{tpu_custom_call.1} parent=0
    _
  %s9 = ssub.s32 1, %s7
  %s10 = scalar_select 0, %s9, %s7
  $region1: #{tpu_custom_call.1} parent=0
    #allocation4 [shape = 'u8[131072]{0}', space=vmem, size = 0x20000, scoped, tag = 'input window, operand 0']
    #allocation5 [shape = 's32[2]{0}', space=sflag, size = 0x8, scoped, tag = 'scoped memory for tpu_custom_call.1']
    #allocation6 [shape = 's32[2]{0}', space=sflag, size = 0x8, scoped, tag = 'scoped memory for tpu_custom_call.1']
    #allocation7 [shape = 'u8[98304]{0}', space=vmem, size = 0x18000, scoped, tag = 'input window, operand 3, single buffered']
    #allocation8 [shape = 's32[1]{0}', space=sflag, size = 0x4, scoped, tag = 'scoped memory for tpu_custom_call.1']
    #allocation9 [shape = 'u8[32768]{0}', space=vmem, size = 0x8000, scoped, tag = 'input window, operand 4, single buffered']
    #allocation10 [shape = 'u8[131072]{0}', space=vmem, size = 0x20000, scoped, tag = 'output window, operand 0']
    %11 = vsyncpa [#allocation5], 0
    %s12 = scalar_lea.sflag [#allocation5], 1
    %13 = vsyncpa %s12, 0
    %14 = vsyncpa [#allocation8], 0
    %15 = vsyncpa [#allocation6], 0
    %s16 = scalar_lea.sflag [#allocation6], 1
    %17 = vsyncpa %s16, 0
    loop: start=0, step=1, limit=6
    $region2: #{tpu_custom_call.1} parent=1 // loop_pre_header
      _
    $region3: #{tpu_custom_call.1} parent=1 // loop_header
      %s19 = sphi 0, %s23
      %p20 = scmp.ge.s32.totalorder %s19, 6
      %s29 = sphi 0, %s31
      %s32 = sphi 0, %s29
      %s33 = sphi 0, %s32
      %s49 = sphi 0, %s33
      %s53 = sphi 0, %s53
      %s55 = sphi 0, %s53
      %s56 = sphi 0, %s55
      %s70 = sphi 0, %s56
      %s74 = sphi 0, %s74
      %s76 = sphi 0, %s74
      %s77 = sphi 0, %s76
      %s91 = sphi 0, %s77
      %s95 = sphi 0, %s95
      %s97 = sphi 0, %s95
      %s98 = sphi 0, %s97
      %s112 = sphi 0, %s98
      %s116 = sphi 0, %s116
      %s118 = sphi 0, %s116
      %s119 = sphi 0, %s118
      %s133 = sphi 0, %s119
      %s137 = sphi 0, %s137
      %s139 = sphi 0, %s137
      %s140 = sphi 0, %s139
      %s154 = sphi 0, %s140
      %s160 = sphi 0, %s162
      %s163 = sphi 0, %s160
      %s164 = sphi 0, %s163
      %s180 = sphi 0, %s164
    $region4: #{tpu_custom_call.1} parent=1 // loop_header_branch
      %22 = sbr.rel (%p20) target = $region8
    $region5: #{tpu_custom_call.1} parent=1 // loop_body
      %s24 = ssub.s32 %s19, 1
      %s25 = ssub.s32 %s19, 2
      %s26 = sadd.s32 %s19, 1
      %s27 = ssub.s32 %s19, %s26
      %p28 = scmp.eq.s32.totalorder %s27, 0
      %s30 = sadd.s32 %s29, 1
      %s31 = scalar_select %p28, %s29, %s30
      %p34 = pneg %p28
      %p35 = scmp.eq.s32.totalorder %s19, 3
      %p36 = por %p34, %p35
      %p37 = scmp.ne.s32.totalorder %s29, %s32
      %p38 = scmp.eq.s32.totalorder %s19, 0
      %p39 = por %p37, %p38
      %p40 = scmp.ne.s32.totalorder %s29, %s32
      %p41 = scmp.eq.s32.totalorder %s24, 3
      %p42 = por %p40, %p41
      %p43 = scmp.ne.s32.totalorder %s32, %s33
      %p44 = scmp.eq.s32.totalorder %s24, 0
      %p45 = por %p43, %p44
      %p46 = scmp.ne.s32.totalorder %s32, %s33
      %p47 = scmp.eq.s32.totalorder %s25, 3
      %p48 = por %p46, %p47
      %p50 = scmp.ne.s32.totalorder %s33, %s49
      %p51 = scmp.eq.s32.totalorder %s25, 0
      %p52 = por %p50, %p51
      %s54 = sadd.s32 %s53, 1
      %p57 = scmp.eq.s32.totalorder %s19, 3
      %p58 = scmp.ne.s32.totalorder %s53, %s55
      %p59 = scmp.eq.s32.totalorder %s19, 0
      %p60 = por %p58, %p59
      %p61 = scmp.ne.s32.totalorder %s53, %s55
      %p62 = scmp.eq.s32.totalorder %s24, 3
      %p63 = por %p61, %p62
      %p64 = scmp.ne.s32.totalorder %s55, %s56
      %p65 = scmp.eq.s32.totalorder %s24, 0
      %p66 = por %p64, %p65
      %p67 = scmp.ne.s32.totalorder %s55, %s56
      %p68 = scmp.eq.s32.totalorder %s25, 3
      %p69 = por %p67, %p68
      %p71 = scmp.ne.s32.totalorder %s56, %s70
      %p72 = scmp.eq.s32.totalorder %s25, 0
      %p73 = por %p71, %p72
      %s75 = sadd.s32 %s74, 1
      %p78 = scmp.eq.s32.totalorder %s19, 3
      %p79 = scmp.ne.s32.totalorder %s74, %s76
      %p80 = scmp.eq.s32.totalorder %s19, 0
      %p81 = por %p79, %p80
      %p82 = scmp.ne.s32.totalorder %s74, %s76
      %p83 = scmp.eq.s32.totalorder %s24, 3
      %p84 = por %p82, %p83
      %p85 = scmp.ne.s32.totalorder %s76, %s77
      %p86 = scmp.eq.s32.totalorder %s24, 0
      %p87 = por %p85, %p86
      %p88 = scmp.ne.s32.totalorder %s76, %s77
      %p89 = scmp.eq.s32.totalorder %s25, 3
      %p90 = por %p88, %p89
      %p92 = scmp.ne.s32.totalorder %s77, %s91
      %p93 = scmp.eq.s32.totalorder %s25, 0
      %p94 = por %p92, %p93
      %s96 = sadd.s32 %s95, 1
      %p99 = scmp.eq.s32.totalorder %s19, 3
      %p100 = scmp.ne.s32.totalorder %s95, %s97
      %p101 = scmp.eq.s32.totalorder %s19, 0
      %p102 = por %p100, %p101
      %p103 = scmp.ne.s32.totalorder %s95, %s97
      %p104 = scmp.eq.s32.totalorder %s24, 3
      %p105 = por %p103, %p104
      %p106 = scmp.ne.s32.totalorder %s97, %s98
      %p107 = scmp.eq.s32.totalorder %s24, 0
      %p108 = por %p106, %p107
      %p109 = scmp.ne.s32.totalorder %s97, %s98
      %p110 = scmp.eq.s32.totalorder %s25, 3
      %p111 = por %p109, %p110
      %p113 = scmp.ne.s32.totalorder %s98, %s112
      %p114 = scmp.eq.s32.totalorder %s25, 0
      %p115 = por %p113, %p114
      %s117 = sadd.s32 %s116, 1
      %p120 = scmp.eq.s32.totalorder %s19, 3
      %p121 = scmp.ne.s32.totalorder %s116, %s118
      %p122 = scmp.eq.s32.totalorder %s19, 0
      %p123 = por %p121, %p122
      %p124 = scmp.ne.s32.totalorder %s116, %s118
      %p125 = scmp.eq.s32.totalorder %s24, 3
      %p126 = por %p124, %p125
      %p127 = scmp.ne.s32.totalorder %s118, %s119
      %p128 = scmp.eq.s32.totalorder %s24, 0
      %p129 = por %p127, %p128
      %p130 = scmp.ne.s32.totalorder %s118, %s119
      %p131 = scmp.eq.s32.totalorder %s25, 3
      %p132 = por %p130, %p131
      %p134 = scmp.ne.s32.totalorder %s119, %s133
      %p135 = scmp.eq.s32.totalorder %s25, 0
      %p136 = por %p134, %p135
      %s138 = sadd.s32 %s137, 1
      %p141 = scmp.eq.s32.totalorder %s19, 3
      %p142 = scmp.ne.s32.totalorder %s137, %s139
      %p143 = scmp.eq.s32.totalorder %s19, 0
      %p144 = por %p142, %p143
      %p145 = scmp.ne.s32.totalorder %s137, %s139
      %p146 = scmp.eq.s32.totalorder %s24, 3
      %p147 = por %p145, %p146
      %p148 = scmp.ne.s32.totalorder %s139, %s140
      %p149 = scmp.eq.s32.totalorder %s24, 0
      %p150 = por %p148, %p149
      %p151 = scmp.ne.s32.totalorder %s139, %s140
      %p152 = scmp.eq.s32.totalorder %s25, 3
      %p153 = por %p151, %p152
      %p155 = scmp.ne.s32.totalorder %s140, %s154
      %p156 = scmp.eq.s32.totalorder %s25, 0
      %p157 = por %p155, %p156
      %s158 = ssub.s32 %s19, %s26
      %p159 = scmp.eq.s32.totalorder %s158, 0
      %s161 = sadd.s32 %s160, 1
      %s162 = scalar_select %p159, %s160, %s161
      %p165 = pneg %p159
      %p166 = scmp.eq.s32.totalorder %s19, 3
      %p167 = por %p165, %p166
      %p168 = scmp.ne.s32.totalorder %s160, %s163
      %p169 = scmp.eq.s32.totalorder %s19, 0
      %p170 = por %p168, %p169
      %p171 = scmp.ne.s32.totalorder %s160, %s163
      %p172 = scmp.eq.s32.totalorder %s24, 3
      %p173 = por %p171, %p172
      %p174 = scmp.ne.s32.totalorder %s163, %s164
      %p175 = scmp.eq.s32.totalorder %s24, 0
      %p176 = por %p174, %p175
      %p177 = scmp.ne.s32.totalorder %s163, %s164
      %p178 = scmp.eq.s32.totalorder %s25, 3
      %p179 = por %p177, %p178
      %p181 = scmp.ne.s32.totalorder %s164, %s180
      %p182 = scmp.eq.s32.totalorder %s25, 0
      %p183 = por %p181, %p182
      %p184 = scmp.le.s32.totalorder 1, %s19
      %p185 = scmp.lt.s32.totalorder %s19, 5
      %p186 = pnand %p184, %p185
      %p187 = pneg %p186
      // Predicated region
      $region9: #{tpu_custom_call.1} parent=5 // pred_check
        _
      $region10: #{tpu_custom_call.1} parent=5 // pred_check_branch
        %189 = sbr.rel (%p186) target = $region12
      $region11: #{tpu_custom_call.1} parent=5 // pred_region
        %s190 = ssub.s32 %s19, 1
        // Predicated region
        $region13: #{tpu_custom_call.1} parent=11 // pred_check
          %p191 = pneg %p66
        $region14: #{tpu_custom_call.1} parent=11 // pred_check_branch
          %193 = sbr.rel (%p191) target = $region16
        $region15: #{tpu_custom_call.1} parent=11 // pred_region
          _
        $region16: #{tpu_custom_call.1} parent=11 // pred_fallthru
          _
        // Predicated region
        $region17: #{tpu_custom_call.1} parent=11 // pred_check
          %p194 = pneg %p87
        $region18: #{tpu_custom_call.1} parent=11 // pred_check_branch
          %196 = sbr.rel (%p194) target = $region20
        $region19: #{tpu_custom_call.1} parent=11 // pred_region
          _
        $region20: #{tpu_custom_call.1} parent=11 // pred_fallthru
          _
        // Predicated region
        $region21: #{tpu_custom_call.1} parent=11 // pred_check
          %p197 = pneg %p108
        $region22: #{tpu_custom_call.1} parent=11 // pred_check_branch
          %199 = sbr.rel (%p197) target = $region24
        $region23: #{tpu_custom_call.1} parent=11 // pred_region
          %s201 = ssub.s32 3072, 3072
          %202 = vsyncadd [#allocation8], %s201
          %s203 = sshll.u32 [#allocation7], 4
          %s204 = int_to_ptr.vmem [resolvable:$true] %s203
          %209 = dma.hbm_to_vmem [thread:$0]  %s3, 3072, %s204, [#allocation8], 192, 192, 12
        $region24: #{tpu_custom_call.1} parent=11 // pred_fallthru
          _
        // Predicated region
        $region25: #{tpu_custom_call.1} parent=11 // pred_check
          %p210 = pneg %p129
        $region26: #{tpu_custom_call.1} parent=11 // pred_check_branch
          %212 = sbr.rel (%p210) target = $region28
        $region27: #{tpu_custom_call.1} parent=11 // pred_region
          %s214 = ssub.s32 1024, 1024
          %215 = vsyncadd [#allocation8], %s214
          %s216 = sshll.u32 [#allocation9], 4
          %s217 = int_to_ptr.vmem [resolvable:$true] %s216
          %222 = dma.hbm_to_vmem [thread:$0]  %s4, 1024, %s217, [#allocation8], 64, 64, 4
        $region28: #{tpu_custom_call.1} parent=11 // pred_fallthru
          _
        // Predicated region
        $region29: #{tpu_custom_call.1} parent=11 // pred_check
          %p223 = pneg %p150
        $region30: #{tpu_custom_call.1} parent=11 // pred_check_branch
          %225 = sbr.rel (%p223) target = $region32
        $region31: #{tpu_custom_call.1} parent=11 // pred_region
          _
        $region32: #{tpu_custom_call.1} parent=11 // pred_fallthru
          _
      $region12: #{tpu_custom_call.1} parent=5 // pred_fallthru
        _
      %p226 = scmp.lt.s32.totalorder %s19, 4
      // Predicated region
      $region33: #{tpu_custom_call.1} parent=5 // pred_check
        %p227 = pneg %p226
      $region34: #{tpu_custom_call.1} parent=5 // pred_check_branch
        %229 = sbr.rel (%p227) target = $region36
      $region35: #{tpu_custom_call.1} parent=5 // pred_region
        // Predicated region
        $region37: #{tpu_custom_call.1} parent=35 // pred_check
          %p230 = pneg %p39
        $region38: #{tpu_custom_call.1} parent=35 // pred_check_branch
          %232 = sbr.rel (%p230) target = $region40
        $region39: #{tpu_custom_call.1} parent=35 // pred_region
          %s233 = sand.u32 %s29, 1
          %s234 = scalar_lea.sflag [#allocation5], %s233
          %s235 = sand.u32 %s29, 1
          %s236 = smul.addr %s235, 128
          %s237 = scalar_lea.vmem [#allocation4], %s236
          %s239 = ssub.s32 2048, 2048
          %240 = vsyncadd %s234, %s239
          %s241 = smul.addr %s19, 16
          %s242 = smul.addr %s241, 128
          %s243 = scalar_lea.hbm %s0, %s242
          %s244 = sshll.u32 %s237, 4
          %s245 = int_to_ptr.vmem [resolvable:$true] %s244
          %250 = dma.hbm_to_vmem [thread:$0]  %s243, 2048, %s245, %s234, 128, 128, 8
        $region40: #{tpu_custom_call.1} parent=35 // pred_fallthru
          _
      $region36: #{tpu_custom_call.1} parent=5 // pred_fallthru
        _
      %p251 = scmp.le.s32.totalorder 1, %s19
      %p252 = scmp.lt.s32.totalorder %s19, 5
      %p253 = pnand %p251, %p252
      %p254 = pneg %p253
      // Predicated region
      $region41: #{tpu_custom_call.1} parent=5 // pred_check
        _
      $region42: #{tpu_custom_call.1} parent=5 // pred_check_branch
        %256 = sbr.rel (%p253) target = $region44
      $region43: #{tpu_custom_call.1} parent=5 // pred_region
        %s257 = ssub.s32 %s19, 1
        %s258 = sand.u32 %s32, 1
        %s259 = scalar_lea.sflag [#allocation5], %s258
        %s260 = sand.u32 %s32, 1
        %s261 = smul.addr %s260, 128
        %s262 = scalar_lea.vmem [#allocation4], %s261
        // Predicated region
        $region45: #{tpu_custom_call.1} parent=43 // pred_check
          %p263 = pneg %p45
        $region46: #{tpu_custom_call.1} parent=43 // pred_check_branch
          %265 = sbr.rel (%p263) target = $region48
        $region47: #{tpu_custom_call.1} parent=43 // pred_region
          %266 = dma.done %s259, 2048
        $region48: #{tpu_custom_call.1} parent=43 // pred_fallthru
          _
        // Predicated region
        $region49: #{tpu_custom_call.1} parent=43 // pred_check
          %p267 = pneg %p108
        $region50: #{tpu_custom_call.1} parent=43 // pred_check_branch
          %269 = sbr.rel (%p267) target = $region52
        $region51: #{tpu_custom_call.1} parent=43 // pred_region
          %270 = dma.done [#allocation8], 3072
        $region52: #{tpu_custom_call.1} parent=43 // pred_fallthru
          _
        // Predicated region
        $region53: #{tpu_custom_call.1} parent=43 // pred_check
          %p271 = pneg %p129
        $region54: #{tpu_custom_call.1} parent=43 // pred_check_branch
          %273 = sbr.rel (%p271) target = $region56
        $region55: #{tpu_custom_call.1} parent=43 // pred_region
          %274 = dma.done [#allocation8], 1024
        $region56: #{tpu_custom_call.1} parent=43 // pred_fallthru
          _
        %s275 = sand.u32 %s32, 1
        %s276 = scalar_lea.sflag [#allocation5], %s275
        %s277 = sand.u32 %s32, 1
        %s278 = smul.addr %s277, 128
        %s279 = scalar_lea.vmem [#allocation4], %s278
        %p280 = pneg %p45
        %p281 = pneg %p42
        %p282 = pneg %p66
        %p283 = pneg %p63
        %p284 = pneg %p87
        %p285 = pneg %p84
        %p286 = pneg %p108
        %p287 = pneg %p105
        %p288 = pneg %p129
        %p289 = pneg %p126
        %p290 = pneg %p150
        %p291 = pneg %p147
        %p292 = pneg %p176
        %p293 = pneg %p173
        %s294 = sand.u32 %s163, 1
        %s295 = scalar_lea.sflag [#allocation6], %s294
        %s296 = sand.u32 %s163, 1
        %s297 = smul.addr %s296, 128
        %s298 = scalar_lea.vmem [#allocation10], %s297
        %v300 = vld [vmem:[%s262] sm:$0xff]
        %v301 = vld [vmem:[%s262 + $0x8] sm:$0xff]
        %v302 = vld [vmem:[%s262 + $0x10] sm:$0xff]
        %v303 = vld [vmem:[%s262 + $0x18] sm:$0xff]
        %v304 = vld [vmem:[%s262 + $0x20] sm:$0xff]
        %v305 = vld [vmem:[%s262 + $0x28] sm:$0xff]
        %v306 = vld [vmem:[%s262 + $0x30] sm:$0xff]
        %v307 = vld [vmem:[%s262 + $0x38] sm:$0xff]
        %v308 = vld [vmem:[%s262 + $0x40] sm:$0xff]
        %v309 = vld [vmem:[%s262 + $0x48] sm:$0xff]
        %v310 = vld [vmem:[%s262 + $0x50] sm:$0xff]
        %v311 = vld [vmem:[%s262 + $0x58] sm:$0xff]
        %v312 = vld [vmem:[%s262 + $0x60] sm:$0xff]
        %v313 = vld [vmem:[%s262 + $0x68] sm:$0xff]
        %v314 = vld [vmem:[%s262 + $0x70] sm:$0xff]
        %v315 = vld [vmem:[%s262 + $0x78] sm:$0xff]
        %v316 = vld [vmem:[%s1] sm:$0x1]
        %v317 = vld [vmem:[%s2] sm:$0x1]
        %318 = vadd.xlane.f32.xlu0 %v300
        %v319 = vpop.xlane.xlu0 %318
        %320 = vadd.xlane.f32.xlu0 %v301
        %v321 = vpop.xlane.xlu0 %320
        %322 = vadd.xlane.f32.xlu0 %v302
        %v323 = vpop.xlane.xlu0 %322
        %324 = vadd.xlane.f32.xlu0 %v303
        %v325 = vpop.xlane.xlu0 %324
        %326 = vadd.xlane.f32.xlu0 %v304
        %v327 = vpop.xlane.xlu0 %326
        %328 = vadd.xlane.f32.xlu0 %v305
        %v329 = vpop.xlane.xlu0 %328
        %330 = vadd.xlane.f32.xlu0 %v306
        %v331 = vpop.xlane.xlu0 %330
        %332 = vadd.xlane.f32.xlu0 %v307
        %v333 = vpop.xlane.xlu0 %332
        %334 = vadd.xlane.f32.xlu0 %v308
        %v335 = vpop.xlane.xlu0 %334
        %336 = vadd.xlane.f32.xlu0 %v309
        %v337 = vpop.xlane.xlu0 %336
        %338 = vadd.xlane.f32.xlu0 %v310
        %v339 = vpop.xlane.xlu0 %338
        %340 = vadd.xlane.f32.xlu0 %v311
        %v341 = vpop.xlane.xlu0 %340
        %342 = vadd.xlane.f32.xlu0 %v312
        %v343 = vpop.xlane.xlu0 %342
        %344 = vadd.xlane.f32.xlu0 %v313
        %v345 = vpop.xlane.xlu0 %344
        %346 = vadd.xlane.f32.xlu0 %v314
        %v347 = vpop.xlane.xlu0 %346
        %348 = vadd.xlane.f32.xlu0 %v315
        %v349 = vpop.xlane.xlu0 %348
        %v350 = vrcp.pop 128.0
        %v351 = vmul.f32 %v319, %v350
        %v352 = vmul.f32 %v321, %v350
        %v353 = vmul.f32 %v323, %v350
        %v354 = vmul.f32 %v325, %v350
        %v355 = vmul.f32 %v327, %v350
        %v356 = vmul.f32 %v329, %v350
        %v357 = vmul.f32 %v331, %v350
        %v358 = vmul.f32 %v333, %v350
        %v359 = vmul.f32 %v335, %v350
        %v360 = vmul.f32 %v337, %v350
        %v361 = vmul.f32 %v339, %v350
        %v362 = vmul.f32 %v341, %v350
        %v363 = vmul.f32 %v343, %v350
        %v364 = vmul.f32 %v345, %v350
        %v365 = vmul.f32 %v347, %v350
        %v366 = vmul.f32 %v349, %v350
        %v367 = vsub.f32 %v300, %v351
        %v368 = vsub.f32 %v301, %v352
        %v369 = vsub.f32 %v302, %v353
        %v370 = vsub.f32 %v303, %v354
        %v371 = vsub.f32 %v304, %v355
        %v372 = vsub.f32 %v305, %v356
        %v373 = vsub.f32 %v306, %v357
        %v374 = vsub.f32 %v307, %v358
        %v375 = vsub.f32 %v308, %v359
        %v376 = vsub.f32 %v309, %v360
        %v377 = vsub.f32 %v310, %v361
        %v378 = vsub.f32 %v311, %v362
        %v379 = vsub.f32 %v312, %v363
        %v380 = vsub.f32 %v313, %v364
        %v381 = vsub.f32 %v314, %v365
        %v382 = vsub.f32 %v315, %v366
        %v383 = vmul.f32 %v367, %v367
        %v384 = vmul.f32 %v368, %v368
        %v385 = vmul.f32 %v369, %v369
        %v386 = vmul.f32 %v370, %v370
        %v387 = vmul.f32 %v371, %v371
        %v388 = vmul.f32 %v372, %v372
        %v389 = vmul.f32 %v373, %v373
        %v390 = vmul.f32 %v374, %v374
        %v391 = vmul.f32 %v375, %v375
        %v392 = vmul.f32 %v376, %v376
        %v393 = vmul.f32 %v377, %v377
        %v394 = vmul.f32 %v378, %v378
        %v395 = vmul.f32 %v379, %v379
        %v396 = vmul.f32 %v380, %v380
        %v397 = vmul.f32 %v381, %v381
        %v398 = vmul.f32 %v382, %v382
        %399 = vadd.xlane.f32.xlu0 %v383
        %v400 = vpop.xlane.xlu0 %399
        %401 = vadd.xlane.f32.xlu0 %v384
        %v402 = vpop.xlane.xlu0 %401
        %403 = vadd.xlane.f32.xlu0 %v385
        %v404 = vpop.xlane.xlu0 %403
        %405 = vadd.xlane.f32.xlu0 %v386
        %v406 = vpop.xlane.xlu0 %405
        %407 = vadd.xlane.f32.xlu0 %v387
        %v408 = vpop.xlane.xlu0 %407
        %409 = vadd.xlane.f32.xlu0 %v388
        %v410 = vpop.xlane.xlu0 %409
        %411 = vadd.xlane.f32.xlu0 %v389
        %v412 = vpop.xlane.xlu0 %411
        %413 = vadd.xlane.f32.xlu0 %v390
        %v414 = vpop.xlane.xlu0 %413
        %415 = vadd.xlane.f32.xlu0 %v391
        %v416 = vpop.xlane.xlu0 %415
        %417 = vadd.xlane.f32.xlu0 %v392
        %v418 = vpop.xlane.xlu0 %417
        %419 = vadd.xlane.f32.xlu0 %v393
        %v420 = vpop.xlane.xlu0 %419
        %421 = vadd.xlane.f32.xlu0 %v394
        %v422 = vpop.xlane.xlu0 %421
        %423 = vadd.xlane.f32.xlu0 %v395
        %v424 = vpop.xlane.xlu0 %423
        %425 = vadd.xlane.f32.xlu0 %v396
        %v426 = vpop.xlane.xlu0 %425
        %427 = vadd.xlane.f32.xlu0 %v397
        %v428 = vpop.xlane.xlu0 %427
        %429 = vadd.xlane.f32.xlu0 %v398
        %v430 = vpop.xlane.xlu0 %429
        %v431 = vmul.f32 %v400, %v350
        %v432 = vmul.f32 %v402, %v350
        %v433 = vmul.f32 %v404, %v350
        %v434 = vmul.f32 %v406, %v350
        %v435 = vmul.f32 %v408, %v350
        %v436 = vmul.f32 %v410, %v350
        %v437 = vmul.f32 %v412, %v350
        %v438 = vmul.f32 %v414, %v350
        %v439 = vmul.f32 %v416, %v350
        %v440 = vmul.f32 %v418, %v350
        %v441 = vmul.f32 %v420, %v350
        %v442 = vmul.f32 %v422, %v350
        %v443 = vmul.f32 %v424, %v350
        %v444 = vmul.f32 %v426, %v350
        %v445 = vmul.f32 %v428, %v350
        %v446 = vmul.f32 %v430, %v350
        %v447 = vadd.f32 %v431, 1e-05
        %v448 = vadd.f32 %v432, 1e-05
        %v449 = vadd.f32 %v433, 1e-05
        %v450 = vadd.f32 %v434, 1e-05
        %v451 = vadd.f32 %v435, 1e-05
        %v452 = vadd.f32 %v436, 1e-05
        %v453 = vadd.f32 %v437, 1e-05
        %v454 = vadd.f32 %v438, 1e-05
        %v455 = vadd.f32 %v439, 1e-05
        %v456 = vadd.f32 %v440, 1e-05
        %v457 = vadd.f32 %v441, 1e-05
        %v458 = vadd.f32 %v442, 1e-05
        %v459 = vadd.f32 %v443, 1e-05
        %v460 = vadd.f32 %v444, 1e-05
        %v461 = vadd.f32 %v445, 1e-05
        %v462 = vadd.f32 %v446, 1e-05
        %v463 = vrsqrt.pop %v447
        %v464 = vrsqrt.pop %v448
        %v465 = vrsqrt.pop %v449
        %v466 = vrsqrt.pop %v450
        %v467 = vrsqrt.pop %v451
        %v468 = vrsqrt.pop %v452
        %v469 = vrsqrt.pop %v453
        %v470 = vrsqrt.pop %v454
        %v471 = vrsqrt.pop %v455
        %v472 = vrsqrt.pop %v456
        %v473 = vrsqrt.pop %v457
        %v474 = vrsqrt.pop %v458
        %v475 = vrsqrt.pop %v459
        %v476 = vrsqrt.pop %v460
        %v477 = vrsqrt.pop %v461
        %v478 = vrsqrt.pop %v462
        %v479 = vmul.f32 %v367, %v463
        %v480 = vmul.f32 %v368, %v464
        %v481 = vmul.f32 %v369, %v465
        %v482 = vmul.f32 %v370, %v466
        %v483 = vmul.f32 %v371, %v467
        %v484 = vmul.f32 %v372, %v468
        %v485 = vmul.f32 %v373, %v469
        %v486 = vmul.f32 %v374, %v470
        %v487 = vmul.f32 %v375, %v471
        %v488 = vmul.f32 %v376, %v472
        %v489 = vmul.f32 %v377, %v473
        %v490 = vmul.f32 %v378, %v474
        %v491 = vmul.f32 %v379, %v475
        %v492 = vmul.f32 %v380, %v476
        %v493 = vmul.f32 %v381, %v477
        %v494 = vmul.f32 %v382, %v478
        %v496 = vlaneseq
        %v497 = vshrl.u32 %v496, 7
        %v498 = vsub.s32 0, %v497
        %v499 = vrot.slane %v316, %v498
        %v501 = vmul.f32 %v479, %v499
        %v502 = vmul.f32 %v480, %v499
        %v503 = vmul.f32 %v481, %v499
        %v504 = vmul.f32 %v482, %v499
        %v505 = vmul.f32 %v483, %v499
        %v506 = vmul.f32 %v484, %v499
        %v507 = vmul.f32 %v485, %v499
        %v508 = vmul.f32 %v486, %v499
        %v509 = vmul.f32 %v487, %v499
        %v510 = vmul.f32 %v488, %v499
        %v511 = vmul.f32 %v489, %v499
        %v512 = vmul.f32 %v490, %v499
        %v513 = vmul.f32 %v491, %v499
        %v514 = vmul.f32 %v492, %v499
        %v515 = vmul.f32 %v493, %v499
        %v516 = vmul.f32 %v494, %v499
        %v518 = vlaneseq
        %v519 = vshrl.u32 %v518, 7
        %v520 = vsub.s32 0, %v519
        %v521 = vrot.slane %v317, %v520
        %v523 = vadd.f32 %v501, %v521
        %v524 = vadd.f32 %v502, %v521
        %v525 = vadd.f32 %v503, %v521
        %v526 = vadd.f32 %v504, %v521
        %v527 = vadd.f32 %v505, %v521
        %v528 = vadd.f32 %v506, %v521
        %v529 = vadd.f32 %v507, %v521
        %v530 = vadd.f32 %v508, %v521
        %v531 = vadd.f32 %v509, %v521
        %v532 = vadd.f32 %v510, %v521
        %v533 = vadd.f32 %v511, %v521
        %v534 = vadd.f32 %v512, %v521
        %v535 = vadd.f32 %v513, %v521
        %v536 = vadd.f32 %v514, %v521
        %v537 = vadd.f32 %v515, %v521
        %v538 = vadd.f32 %v516, %v521
        %v539 = vpack.c.bf16 %v524, %v523
        %v540 = vpack.c.bf16 %v526, %v525
        %v541 = vpack.c.bf16 %v528, %v527
        %v542 = vpack.c.bf16 %v530, %v529
        %v543 = vpack.c.bf16 %v532, %v531
        %v544 = vpack.c.bf16 %v534, %v533
        %v545 = vpack.c.bf16 %v536, %v535
        %v546 = vpack.c.bf16 %v538, %v537
        %v547 = vld [vmem:[#allocation7] sm:$0xff]
        %v548 = vld [vmem:[#allocation7 + $0x8] sm:$0xf]
        %v549 = vld [vmem:[#allocation7 + $0xc] sm:$0xff]
        %v550 = vld [vmem:[#allocation7 + $0x14] sm:$0xf]
        %v551 = vld [vmem:[#allocation7 + $0x18] sm:$0xff]
        %v552 = vld [vmem:[#allocation7 + $0x20] sm:$0xf]
        %v553 = vld [vmem:[#allocation7 + $0x24] sm:$0xff]
        %v554 = vld [vmem:[#allocation7 + $0x2c] sm:$0xf]
        %v555 = vld [vmem:[#allocation7 + $0x30] sm:$0xff]
        %v556 = vld [vmem:[#allocation7 + $0x38] sm:$0xf]
        %v557 = vld [vmem:[#allocation7 + $0x3c] sm:$0xff]
        %v558 = vld [vmem:[#allocation7 + $0x44] sm:$0xf]
        %v559 = vld [vmem:[#allocation7 + $0x48] sm:$0xff]
        %v560 = vld [vmem:[#allocation7 + $0x50] sm:$0xf]
        %v561 = vld [vmem:[#allocation7 + $0x54] sm:$0xff]
        %v562 = vld [vmem:[#allocation7 + $0x5c] sm:$0xf]
        %v563 = vld [vmem:[#allocation7 + $0x60] sm:$0xff]
        %v564 = vld [vmem:[#allocation7 + $0x68] sm:$0xf]
        %v565 = vld [vmem:[#allocation7 + $0x6c] sm:$0xff]
        %v566 = vld [vmem:[#allocation7 + $0x74] sm:$0xf]
        %v567 = vld [vmem:[#allocation7 + $0x78] sm:$0xff]
        %v568 = vld [vmem:[#allocation7 + $0x80] sm:$0xf]
        %v569 = vld [vmem:[#allocation7 + $0x84] sm:$0xff]
        %v570 = vld [vmem:[#allocation7 + $0x8c] sm:$0xf]
        %v571 = vld [vmem:[#allocation7 + $0x90] sm:$0xff]
        %v572 = vld [vmem:[#allocation7 + $0x98] sm:$0xf]
        %v573 = vld [vmem:[#allocation7 + $0x9c] sm:$0xff]
        %v574 = vld [vmem:[#allocation7 + $0xa4] sm:$0xf]
        %v575 = vld [vmem:[#allocation7 + $0xa8] sm:$0xff]
        %v576 = vld [vmem:[#allocation7 + $0xb0] sm:$0xf]
        %v577 = vld [vmem:[#allocation7 + $0xb4] sm:$0xff]
        %v578 = vld [vmem:[#allocation7 + $0xbc] sm:$0xf]
        %v611 = vunpack.c.l.b16 %v547
        %v612 = vunpack.c.h.b16 %v547
        %v613 = vunpack.c.l.b16 %v548
        %v614 = vunpack.c.l.b16 %v549
        %v615 = vunpack.c.h.b16 %v549
        %v616 = vunpack.c.l.b16 %v550
        %v617 = vunpack.c.l.b16 %v551
        %v618 = vunpack.c.h.b16 %v551
        %v619 = vunpack.c.l.b16 %v552
        %v620 = vunpack.c.l.b16 %v553
        %v621 = vunpack.c.h.b16 %v553
        %v622 = vunpack.c.l.b16 %v554
        %v623 = vunpack.c.l.b16 %v555
        %v624 = vunpack.c.h.b16 %v555
        %v625 = vunpack.c.l.b16 %v556
        %v626 = vunpack.c.l.b16 %v557
        %v627 = vunpack.c.h.b16 %v557
        %v628 = vunpack.c.l.b16 %v558
        %v629 = vunpack.c.l.b16 %v559
        %v630 = vunpack.c.h.b16 %v559
        %v631 = vunpack.c.l.b16 %v560
        %v632 = vunpack.c.l.b16 %v561
        %v633 = vunpack.c.h.b16 %v561
        %v634 = vunpack.c.l.b16 %v562
        %v635 = vunpack.c.l.b16 %v563
        %v636 = vunpack.c.h.b16 %v563
        %v637 = vunpack.c.l.b16 %v564
        %v638 = vunpack.c.l.b16 %v565
        %v639 = vunpack.c.h.b16 %v565
        %v640 = vunpack.c.l.b16 %v566
        %v641 = vunpack.c.l.b16 %v567
        %v642 = vunpack.c.h.b16 %v567
        %v643 = vunpack.c.l.b16 %v568
        %v644 = vunpack.c.l.b16 %v569
        %v645 = vunpack.c.h.b16 %v569
        %v646 = vunpack.c.l.b16 %v570
        %v647 = vunpack.c.l.b16 %v571
        %v648 = vunpack.c.h.b16 %v571
        %v649 = vunpack.c.l.b16 %v572
        %v650 = vunpack.c.l.b16 %v573
        %v651 = vunpack.c.h.b16 %v573
        %v652 = vunpack.c.l.b16 %v574
        %v653 = vunpack.c.l.b16 %v575
        %v654 = vunpack.c.h.b16 %v575
        %v655 = vunpack.c.l.b16 %v576
        %v656 = vunpack.c.l.b16 %v577
        %v657 = vunpack.c.h.b16 %v577
        %v658 = vunpack.c.l.b16 %v578
        %v659 = vpack.c.b16 %v614, %v611
        %v660 = vpack.c.b16 %v615, %v612
        %v661 = vpack.c.b16 %v616, %v613
        %v662 = vpack.c.b16 %v620, %v617
        %v663 = vpack.c.b16 %v621, %v618
        %v664 = vpack.c.b16 %v622, %v619
        %v665 = vpack.c.b16 %v626, %v623
        %v666 = vpack.c.b16 %v627, %v624
        %v667 = vpack.c.b16 %v628, %v625
        %v668 = vpack.c.b16 %v632, %v629
        %v669 = vpack.c.b16 %v633, %v630
        %v670 = vpack.c.b16 %v634, %v631
        %v671 = vpack.c.b16 %v638, %v635
        %v672 = vpack.c.b16 %v639, %v636
        %v673 = vpack.c.b16 %v640, %v637
        %v674 = vpack.c.b16 %v644, %v641
        %v675 = vpack.c.b16 %v645, %v642
        %v676 = vpack.c.b16 %v646, %v643
        %v677 = vpack.c.b16 %v650, %v647
        %v678 = vpack.c.b16 %v651, %v648
        %v679 = vpack.c.b16 %v652, %v649
        %v680 = vpack.c.b16 %v656, %v653
        %v681 = vpack.c.b16 %v657, %v654
        %v682 = vpack.c.b16 %v658, %v655
        %707 = vmatprep.subr.bf16.mxu0 %v660
        %708 = vmatpush1.bf16.msra.mxu0 %v659
        %709 = vmatprep.subr.bf16.mxu0 %v663
        %710 = vmatpush1.bf16.msra.mxu0 %v662
        %711 = vmatprep.subr.bf16.mxu0 %v666
        %712 = vmatpush1.bf16.msra.mxu0 %v665
        %713 = vmatprep.subr.bf16.mxu0 %v669
        %714 = vmatpush1.bf16.msra.mxu0 %v668
        %715 = vmatprep.subr.bf16.mxu0 %v672
        %716 = vmatpush1.bf16.msra.mxu0 %v671
        %717 = vmatprep.subr.bf16.mxu0 %v675
        %718 = vmatpush1.bf16.msra.mxu0 %v674
        %719 = vmatprep.subr.bf16.mxu0 %v678
        %720 = vmatpush1.bf16.msra.mxu0 %v677
        %721 = vmatprep.subr.bf16.mxu0 %v681
        %722 = vmatpush1.bf16.msra.mxu0 %v680
        %723 = vmatprep.subr.bf16.mxu0 0
        %724 = vmatpush1.bf16.msra.mxu0 0
        %725 = vmatprep.subr.bf16.mxu0 0
        %726 = vmatpush1.bf16.msra.mxu0 0
        %727 = vmatprep.subr.bf16.mxu0 0
        %728 = vmatpush1.bf16.msra.mxu0 0
        %729 = vmatprep.subr.bf16.mxu0 0
        %730 = vmatpush1.bf16.msra.mxu0 0
        %731 = vmatprep.subr.bf16.mxu0 0
        %732 = vmatpush1.bf16.msra.mxu0 0
        %733 = vmatprep.subr.bf16.mxu0 0
        %734 = vmatpush1.bf16.msra.mxu0 0
        %735 = vmatprep.subr.bf16.mxu0 0
        %736 = vmatpush1.bf16.msra.mxu0 0
        %737 = vmatprep.subr.bf16.mxu0 0
        %738 = vmatpush1.bf16.msra.mxu0 0
        %739 = vmatprep.mubr.bf16.mxu0 0
        %740 = vmatmul.mubr.bf16.gmra.mrb[0].mxu0 %v539
        %v741 = vpop.f32.mrb[0].mxu0
        %v742 = vadd.f32 0.0, %v741
        %v743 = vpop.f32.mrb[0].mxu0
        %v744 = vadd.f32 0.0, %v743
        %v745 = vpop.f32.mrb[0].mxu0
        %v746 = vadd.f32 0.0, %v745
        %v747 = vpop.f32.mrb[0].mxu0
        %v748 = vadd.f32 0.0, %v747
        %749 = vmatprep.mubr.bf16.mxu0 0
        %750 = vmatmul.mubr.bf16.gmra.mrb[0].mxu0 %v540
        %v751 = vpop.f32.mrb[0].mxu0
        %v752 = vadd.f32 0.0, %v751
        %v753 = vpop.f32.mrb[0].mxu0
        %v754 = vadd.f32 0.0, %v753
        %v755 = vpop.f32.mrb[0].mxu0
        %v756 = vadd.f32 0.0, %v755
        %v757 = vpop.f32.mrb[0].mxu0
        %v758 = vadd.f32 0.0, %v757
        %759 = vmatprep.mubr.bf16.mxu0 0
        %760 = vmatmul.mubr.bf16.gmra.mrb[0].mxu0 %v541
        %v761 = vpop.f32.mrb[0].mxu0
        %v762 = vadd.f32 0.0, %v761
        %v763 = vpop.f32.mrb[0].mxu0
        %v764 = vadd.f32 0.0, %v763
        %v765 = vpop.f32.mrb[0].mxu0
        %v766 = vadd.f32 0.0, %v765
        %v767 = vpop.f32.mrb[0].mxu0
        %v768 = vadd.f32 0.0, %v767
        %769 = vmatprep.mubr.bf16.mxu0 0
        %770 = vmatmul.mubr.bf16.gmra.mrb[0].mxu0 %v542
        %v771 = vpop.f32.mrb[0].mxu0
        %v772 = vadd.f32 0.0, %v771
        %v773 = vpop.f32.mrb[0].mxu0
        %v774 = vadd.f32 0.0, %v773
        %v775 = vpop.f32.mrb[0].mxu0
        %v776 = vadd.f32 0.0, %v775
        %v777 = vpop.f32.mrb[0].mxu0
        %v778 = vadd.f32 0.0, %v777
        %779 = vmatprep.mubr.bf16.mxu0 0
        %780 = vmatmul.mubr.bf16.gmra.mrb[0].mxu0 %v543
        %v781 = vpop.f32.mrb[0].mxu0
        %v782 = vadd.f32 0.0, %v781
        %v783 = vpop.f32.mrb[0].mxu0
        %v784 = vadd.f32 0.0, %v783
        %v785 = vpop.f32.mrb[0].mxu0
        %v786 = vadd.f32 0.0, %v785
        %v787 = vpop.f32.mrb[0].mxu0
        %v788 = vadd.f32 0.0, %v787
        %789 = vmatprep.mubr.bf16.mxu0 0
        %790 = vmatmul.mubr.bf16.gmra.mrb[0].mxu0 %v544
        %v791 = vpop.f32.mrb[0].mxu0
        %v792 = vadd.f32 0.0, %v791
        %v793 = vpop.f32.mrb[0].mxu0
        %v794 = vadd.f32 0.0, %v793
        %v795 = vpop.f32.mrb[0].mxu0
        %v796 = vadd.f32 0.0, %v795
        %v797 = vpop.f32.mrb[0].mxu0
        %v798 = vadd.f32 0.0, %v797
        %799 = vmatprep.mubr.bf16.mxu0 0
        %800 = vmatmul.mubr.bf16.gmra.mrb[0].mxu0 %v545
        %v801 = vpop.f32.mrb[0].mxu0
        %v802 = vadd.f32 0.0, %v801
        %v803 = vpop.f32.mrb[0].mxu0
        %v804 = vadd.f32 0.0, %v803
        %v805 = vpop.f32.mrb[0].mxu0
        %v806 = vadd.f32 0.0, %v805
        %v807 = vpop.f32.mrb[0].mxu0
        %v808 = vadd.f32 0.0, %v807
        %809 = vmatprep.mubr.bf16.mxu0 0
        %810 = vmatmul.mubr.bf16.gmra.mrb[0].mxu0 %v546
        %v811 = vpop.f32.mrb[0].mxu0
        %v812 = vadd.f32 0.0, %v811
        %v813 = vpop.f32.mrb[0].mxu0
        %v814 = vadd.f32 0.0, %v813
        %v815 = vpop.f32.mrb[0].mxu0
        %v816 = vadd.f32 0.0, %v815
        %v817 = vpop.f32.mrb[0].mxu0
        %v818 = vadd.f32 0.0, %v817
        %819 = vdwg.mxu0
        %820 = vmatprep.subr.bf16.mxu0 0
        %821 = vmatpush1.bf16.msra.mxu0 %v661
        %822 = vmatprep.subr.bf16.mxu0 0
        %823 = vmatpush1.bf16.msra.mxu0 %v664
        %824 = vmatprep.subr.bf16.mxu0 0
        %825 = vmatpush1.bf16.msra.mxu0 %v667
        %826 = vmatprep.subr.bf16.mxu0 0
        %827 = vmatpush1.bf16.msra.mxu0 %v670
        %828 = vmatprep.subr.bf16.mxu0 0
        %829 = vmatpush1.bf16.msra.mxu0 %v673
        %830 = vmatprep.subr.bf16.mxu0 0
        %831 = vmatpush1.bf16.msra.mxu0 %v676
        %832 = vmatprep.subr.bf16.mxu0 0
        %833 = vmatpush1.bf16.msra.mxu0 %v679
        %834 = vmatprep.subr.bf16.mxu0 0
        %835 = vmatpush1.bf16.msra.mxu0 %v682
        %836 = vmatprep.subr.bf16.mxu0 0
        %837 = vmatpush1.bf16.msra.mxu0 0
        %838 = vmatprep.subr.bf16.mxu0 0
        %839 = vmatpush1.bf16.msra.mxu0 0
        %840 = vmatprep.subr.bf16.mxu0 0
        %841 = vmatpush1.bf16.msra.mxu0 0
        %842 = vmatprep.subr.bf16.mxu0 0
        %843 = vmatpush1.bf16.msra.mxu0 0
        %844 = vmatprep.subr.bf16.mxu0 0
        %845 = vmatpush1.bf16.msra.mxu0 0
        %846 = vmatprep.subr.bf16.mxu0 0
        %847 = vmatpush1.bf16.msra.mxu0 0
        %848 = vmatprep.subr.bf16.mxu0 0
        %849 = vmatpush1.bf16.msra.mxu0 0
        %850 = vmatprep.subr.bf16.mxu0 0
        %851 = vmatpush1.bf16.msra.mxu0 0
        %852 = vmatprep.mubr.bf16.mxu0 0
        %853 = vmatmul.mubr.bf16.gmra.mrb[0].mxu0 %v539
        %v854 = vpop.f32.mrb[0].mxu0
        %v855 = vadd.f32 0.0, %v854
        %v856 = vpop.f32.mrb[0].mxu0
        %v857 = vpop.f32.mrb[0].mxu0
        %v858 = vadd.f32 0.0, %v857
        %v859 = vpop.f32.mrb[0].mxu0
        %860 = vmatprep.mubr.bf16.mxu0 0
        %861 = vmatmul.mubr.bf16.gmra.mrb[0].mxu0 %v540
        %v862 = vpop.f32.mrb[0].mxu0
        %v863 = vadd.f32 0.0, %v862
        %v864 = vpop.f32.mrb[0].mxu0
        %v865 = vpop.f32.mrb[0].mxu0
        %v866 = vadd.f32 0.0, %v865
        %v867 = vpop.f32.mrb[0].mxu0
        %868 = vmatprep.mubr.bf16.mxu0 0
        %869 = vmatmul.mubr.bf16.gmra.mrb[0].mxu0 %v541
        %v870 = vpop.f32.mrb[0].mxu0
        %v871 = vadd.f32 0.0, %v870
        %v872 = vpop.f32.mrb[0].mxu0
        %v873 = vpop.f32.mrb[0].mxu0
        %v874 = vadd.f32 0.0, %v873
        %v875 = vpop.f32.mrb[0].mxu0
        %876 = vmatprep.mubr.bf16.mxu0 0
        %877 = vmatmul.mubr.bf16.gmra.mrb[0].mxu0 %v542
        %v878 = vpop.f32.mrb[0].mxu0
        %v879 = vadd.f32 0.0, %v878
        %v880 = vpop.f32.mrb[0].mxu0
        %v881 = vpop.f32.mrb[0].mxu0
        %v882 = vadd.f32 0.0, %v881
        %v883 = vpop.f32.mrb[0].mxu0
        %884 = vmatprep.mubr.bf16.mxu0 0
        %885 = vmatmul.mubr.bf16.gmra.mrb[0].mxu0 %v543
        %v886 = vpop.f32.mrb[0].mxu0
        %v887 = vadd.f32 0.0, %v886
        %v888 = vpop.f32.mrb[0].mxu0
        %v889 = vpop.f32.mrb[0].mxu0
        %v890 = vadd.f32 0.0, %v889
        %v891 = vpop.f32.mrb[0].mxu0
        %892 = vmatprep.mubr.bf16.mxu0 0
        %893 = vmatmul.mubr.bf16.gmra.mrb[0].mxu0 %v544
        %v894 = vpop.f32.mrb[0].mxu0
        %v895 = vadd.f32 0.0, %v894
        %v896 = vpop.f32.mrb[0].mxu0
        %v897 = vpop.f32.mrb[0].mxu0
        %v898 = vadd.f32 0.0, %v897
        %v899 = vpop.f32.mrb[0].mxu0
        %900 = vmatprep.mubr.bf16.mxu0 0
        %901 = vmatmul.mubr.bf16.gmra.mrb[0].mxu0 %v545
        %v902 = vpop.f32.mrb[0].mxu0
        %v903 = vadd.f32 0.0, %v902
        %v904 = vpop.f32.mrb[0].mxu0
        %v905 = vpop.f32.mrb[0].mxu0
        %v906 = vadd.f32 0.0, %v905
        %v907 = vpop.f32.mrb[0].mxu0
        %908 = vmatprep.mubr.bf16.mxu0 0
        %909 = vmatmul.mubr.bf16.gmra.mrb[0].mxu0 %v546
        %v910 = vpop.f32.mrb[0].mxu0
        %v911 = vadd.f32 0.0, %v910
        %v912 = vpop.f32.mrb[0].mxu0
        %v913 = vpop.f32.mrb[0].mxu0
        %v914 = vadd.f32 0.0, %v913
        %v915 = vpop.f32.mrb[0].mxu0
        %916 = vdwg.mxu0
        %917 = vst [vmem:[#allocation2] sm:$0xff] %v742
        %918 = vst [vmem:[#allocation2 + $0x8] sm:$0xff] %v744
        %919 = vst [vmem:[#allocation2 + $0x10] sm:$0xff] %v855
        %920 = vst [vmem:[#allocation2 + $0x18] sm:$0xff] %v746
        %921 = vst [vmem:[#allocation2 + $0x20] sm:$0xff] %v748
        %922 = vst [vmem:[#allocation2 + $0x28] sm:$0xff] %v858
        %923 = vst [vmem:[#allocation2 + $0x30] sm:$0xff] %v752
        %924 = vst [vmem:[#allocation2 + $0x38] sm:$0xff] %v754
        %925 = vst [vmem:[#allocation2 + $0x40] sm:$0xff] %v863
        %926 = vst [vmem:[#allocation2 + $0x48] sm:$0xff] %v756
        %927 = vst [vmem:[#allocation2 + $0x50] sm:$0xff] %v758
        %928 = vst [vmem:[#allocation2 + $0x58] sm:$0xff] %v866
        %929 = vst [vmem:[#allocation2 + $0x60] sm:$0xff] %v762
        %930 = vst [vmem:[#allocation2 + $0x68] sm:$0xff] %v764
        %931 = vst [vmem:[#allocation2 + $0x70] sm:$0xff] %v871
        %932 = vst [vmem:[#allocation2 + $0x78] sm:$0xff] %v766
        %933 = vst [vmem:[#allocation2 + $0x80] sm:$0xff] %v768
        %934 = vst [vmem:[#allocation2 + $0x88] sm:$0xff] %v874
        %935 = vst [vmem:[#allocation2 + $0x90] sm:$0xff] %v772
        %936 = vst [vmem:[#allocation2 + $0x98] sm:$0xff] %v774
        %937 = vst [vmem:[#allocation2 + $0xa0] sm:$0xff] %v879
        %938 = vst [vmem:[#allocation2 + $0xa8] sm:$0xff] %v776
        %939 = vst [vmem:[#allocation2 + $0xb0] sm:$0xff] %v778
        %940 = vst [vmem:[#allocation2 + $0xb8] sm:$0xff] %v882
        %941 = vst [vmem:[#allocation2 + $0xc0] sm:$0xff] %v782
        %942 = vst [vmem:[#allocation2 + $0xc8] sm:$0xff] %v784
        %943 = vst [vmem:[#allocation2 + $0xd0] sm:$0xff] %v887
        %944 = vst [vmem:[#allocation2 + $0xd8] sm:$0xff] %v786
        %945 = vst [vmem:[#allocation2 + $0xe0] sm:$0xff] %v788
        %946 = vst [vmem:[#allocation2 + $0xe8] sm:$0xff] %v890
        %947 = vst [vmem:[#allocation2 + $0xf0] sm:$0xff] %v792
        %948 = vst [vmem:[#allocation2 + $0xf8] sm:$0xff] %v794
        %949 = vst [vmem:[#allocation2 + $0x100] sm:$0xff] %v895
        %950 = vst [vmem:[#allocation2 + $0x108] sm:$0xff] %v796
        %951 = vst [vmem:[#allocation2 + $0x110] sm:$0xff] %v798
        %952 = vst [vmem:[#allocation2 + $0x118] sm:$0xff] %v898
        %953 = vst [vmem:[#allocation2 + $0x120] sm:$0xff] %v802
        %954 = vst [vmem:[#allocation2 + $0x128] sm:$0xff] %v804
        %955 = vst [vmem:[#allocation2 + $0x130] sm:$0xff] %v903
        %956 = vst [vmem:[#allocation2 + $0x138] sm:$0xff] %v806
        %957 = vst [vmem:[#allocation2 + $0x140] sm:$0xff] %v808
        %958 = vst [vmem:[#allocation2 + $0x148] sm:$0xff] %v906
        %959 = vst [vmem:[#allocation2 + $0x150] sm:$0xff] %v812
        %960 = vst [vmem:[#allocation2 + $0x158] sm:$0xff] %v814
        %961 = vst [vmem:[#allocation2 + $0x160] sm:$0xff] %v911
        %962 = vst [vmem:[#allocation2 + $0x168] sm:$0xff] %v816
        %963 = vst [vmem:[#allocation2 + $0x170] sm:$0xff] %v818
        %964 = vst [vmem:[#allocation2 + $0x178] sm:$0xff] %v914
        %965 = vst [vmem:[#allocation3] sm:$0xff] 0.0
        %966 = vst [vmem:[#allocation3 + $0x8] sm:$0xff] 0.0
        %967 = vst [vmem:[#allocation3 + $0x10] sm:$0xff] 0.0
        %968 = vst [vmem:[#allocation3 + $0x18] sm:$0xff] 0.0
        %969 = vst [vmem:[#allocation3 + $0x20] sm:$0xff] 0.0
        %970 = vst [vmem:[#allocation3 + $0x28] sm:$0xff] 0.0
        %971 = vst [vmem:[#allocation3 + $0x30] sm:$0xff] 0.0
        %972 = vst [vmem:[#allocation3 + $0x38] sm:$0xff] 0.0
        %973 = vst [vmem:[#allocation3 + $0x40] sm:$0xff] 0.0
        %974 = vst [vmem:[#allocation3 + $0x48] sm:$0xff] 0.0
        %975 = vst [vmem:[#allocation3 + $0x50] sm:$0xff] 0.0
        %976 = vst [vmem:[#allocation3 + $0x58] sm:$0xff] 0.0
        %977 = vst [vmem:[#allocation3 + $0x60] sm:$0xff] 0.0
        %978 = vst [vmem:[#allocation3 + $0x68] sm:$0xff] 0.0
        %979 = vst [vmem:[#allocation3 + $0x70] sm:$0xff] 0.0
        %980 = vst [vmem:[#allocation3 + $0x78] sm:$0xff] 0.0
        %v981 = vld [vmem:[#allocation2] sm:$0xff]
        %v982 = vld [vmem:[#allocation2 + $0x18] sm:$0xff]
        %v983 = vld [vmem:[#allocation2 + $0x30] sm:$0xff]
        %v984 = vld [vmem:[#allocation2 + $0x48] sm:$0xff]
        %v985 = vld [vmem:[#allocation2 + $0x60] sm:$0xff]
        %v986 = vld [vmem:[#allocation2 + $0x78] sm:$0xff]
        %v987 = vld [vmem:[#allocation2 + $0x90] sm:$0xff]
        %v988 = vld [vmem:[#allocation2 + $0xa8] sm:$0xff]
        %v989 = vld [vmem:[#allocation2 + $0xc0] sm:$0xff]
        %v990 = vld [vmem:[#allocation2 + $0xd8] sm:$0xff]
        %v991 = vld [vmem:[#allocation2 + $0xf0] sm:$0xff]
        %v992 = vld [vmem:[#allocation2 + $0x108] sm:$0xff]
        %v993 = vld [vmem:[#allocation2 + $0x120] sm:$0xff]
        %v994 = vld [vmem:[#allocation2 + $0x138] sm:$0xff]
        %v995 = vld [vmem:[#allocation2 + $0x150] sm:$0xff]
        %v996 = vld [vmem:[#allocation2 + $0x168] sm:$0xff]
        %v997 = vld [vmem:[#allocation2 + $0x8] sm:$0xff]
        %v998 = vld [vmem:[#allocation2 + $0x20] sm:$0xff]
        %v999 = vld [vmem:[#allocation2 + $0x38] sm:$0xff]
        %v1000 = vld [vmem:[#allocation2 + $0x50] sm:$0xff]
        %v1001 = vld [vmem:[#allocation2 + $0x68] sm:$0xff]
        %v1002 = vld [vmem:[#allocation2 + $0x80] sm:$0xff]
        %v1003 = vld [vmem:[#allocation2 + $0x98] sm:$0xff]
        %v1004 = vld [vmem:[#allocation2 + $0xb0] sm:$0xff]
        %v1005 = vld [vmem:[#allocation2 + $0xc8] sm:$0xff]
        %v1006 = vld [vmem:[#allocation2 + $0xe0] sm:$0xff]
        %v1007 = vld [vmem:[#allocation2 + $0xf8] sm:$0xff]
        %v1008 = vld [vmem:[#allocation2 + $0x110] sm:$0xff]
        %v1009 = vld [vmem:[#allocation2 + $0x128] sm:$0xff]
        %v1010 = vld [vmem:[#allocation2 + $0x140] sm:$0xff]
        %v1011 = vld [vmem:[#allocation2 + $0x158] sm:$0xff]
        %v1012 = vld [vmem:[#allocation2 + $0x170] sm:$0xff]
        %v1013 = vld [vmem:[#allocation2 + $0x10] sm:$0xff]
        %v1014 = vld [vmem:[#allocation2 + $0x28] sm:$0xff]
        %v1015 = vld [vmem:[#allocation2 + $0x40] sm:$0xff]
        %v1016 = vld [vmem:[#allocation2 + $0x58] sm:$0xff]
        %v1017 = vld [vmem:[#allocation2 + $0x70] sm:$0xff]
        %v1018 = vld [vmem:[#allocation2 + $0x88] sm:$0xff]
        %v1019 = vld [vmem:[#allocation2 + $0xa0] sm:$0xff]
        %v1020 = vld [vmem:[#allocation2 + $0xb8] sm:$0xff]
        %v1021 = vld [vmem:[#allocation2 + $0xd0] sm:$0xff]
        %v1022 = vld [vmem:[#allocation2 + $0xe8] sm:$0xff]
        %v1023 = vld [vmem:[#allocation2 + $0x100] sm:$0xff]
        %v1024 = vld [vmem:[#allocation2 + $0x118] sm:$0xff]
        %v1025 = vld [vmem:[#allocation2 + $0x130] sm:$0xff]
        %v1026 = vld [vmem:[#allocation2 + $0x148] sm:$0xff]
        %v1027 = vld [vmem:[#allocation2 + $0x160] sm:$0xff]
        %v1028 = vld [vmem:[#allocation2 + $0x178] sm:$0xff]
        %v1029 = vpack.c.bf16 %v982, %v981
        %v1030 = vpack.c.bf16 %v984, %v983
        %v1031 = vpack.c.bf16 %v986, %v985
        %v1032 = vpack.c.bf16 %v988, %v987
        %v1033 = vpack.c.bf16 %v990, %v989
        %v1034 = vpack.c.bf16 %v992, %v991
        %v1035 = vpack.c.bf16 %v994, %v993
        %v1036 = vpack.c.bf16 %v996, %v995
        %v1037 = vpack.c.bf16 %v998, %v997
        %v1038 = vpack.c.bf16 %v1000, %v999
        %v1039 = vpack.c.bf16 %v1002, %v1001
        %v1040 = vpack.c.bf16 %v1004, %v1003
        %v1041 = vpack.c.bf16 %v1006, %v1005
        %v1042 = vpack.c.bf16 %v1008, %v1007
        %v1043 = vpack.c.bf16 %v1010, %v1009
        %v1044 = vpack.c.bf16 %v1012, %v1011
        %vm1045 = vcmask 130048
        %v1047 = vsel %vm1045, %v1029, 0
        %v1050 = vsel %vm1045, %v1030, 0
        %v1053 = vsel %vm1045, %v1031, 0
        %v1056 = vsel %vm1045, %v1032, 0
        %v1059 = vsel %vm1045, %v1033, 0
        %v1062 = vsel %vm1045, %v1034, 0
        %v1065 = vsel %vm1045, %v1035, 0
        %v1068 = vsel %vm1045, %v1036, 0
        %v1071 = vsel %vm1045, %v1037, 0
        %v1074 = vsel %vm1045, %v1038, 0
        %v1077 = vsel %vm1045, %v1039, 0
        %v1080 = vsel %vm1045, %v1040, 0
        %v1083 = vsel %vm1045, %v1041, 0
        %v1086 = vsel %vm1045, %v1042, 0
        %v1089 = vsel %vm1045, %v1043, 0
        %v1092 = vsel %vm1045, %v1044, 0
        %1094 = vmatprep.subr.bf16.mxu0 0
        %1095 = vmatpush1.bf16.xpose.msra.mxu0 %v1071
        %1096 = vmatprep.subr.bf16.mxu0 0
        %1097 = vmatpush1.bf16.xpose.msra.mxu0 %v1074
        %1098 = vmatprep.subr.bf16.mxu0 0
        %1099 = vmatpush1.bf16.xpose.msra.mxu0 %v1077
        %1100 = vmatprep.subr.bf16.mxu0 0
        %1101 = vmatpush1.bf16.xpose.msra.mxu0 %v1080
        %1102 = vmatprep.subr.bf16.mxu0 0
        %1103 = vmatpush1.bf16.xpose.msra.mxu0 %v1083
        %1104 = vmatprep.subr.bf16.mxu0 0
        %1105 = vmatpush1.bf16.xpose.msra.mxu0 %v1086
        %1106 = vmatprep.subr.bf16.mxu0 0
        %1107 = vmatpush1.bf16.xpose.msra.mxu0 %v1089
        %1108 = vmatprep.subr.bf16.mxu0 0
        %1109 = vmatpush1.bf16.xpose.msra.mxu0 %v1092
        %1110 = vmatprep.subr.bf16.mxu0 0
        %1111 = vmatpush1.bf16.xpose.msra.mxu0 0
        %1112 = vmatprep.subr.bf16.mxu0 0
        %1113 = vmatpush1.bf16.xpose.msra.mxu0 0
        %1114 = vmatprep.subr.bf16.mxu0 0
        %1115 = vmatpush1.bf16.xpose.msra.mxu0 0
        %1116 = vmatprep.subr.bf16.mxu0 0
        %1117 = vmatpush1.bf16.xpose.msra.mxu0 0
        %1118 = vmatprep.subr.bf16.mxu0 0
        %1119 = vmatpush1.bf16.xpose.msra.mxu0 0
        %1120 = vmatprep.subr.bf16.mxu0 0
        %1121 = vmatpush1.bf16.xpose.msra.mxu0 0
        %1122 = vmatprep.subr.bf16.mxu0 0
        %1123 = vmatpush1.bf16.xpose.msra.mxu0 0
        %1124 = vmatprep.subr.bf16.mxu0 0
        %1125 = vmatpush1.bf16.xpose.msra.mxu0 0
        %1126 = vmatprep.mubr.bf16.mxu0 0
        %1127 = vmatmul.mubr.bf16.gmra.mrb[0].mxu0 %v1047
        %v1128 = vpop.f32.mrb[0].mxu0
        %v1129 = vadd.f32 0.0, %v1128
        %v1130 = vpop.f32.mrb[0].mxu0
        %v1131 = vpop.f32.mrb[0].mxu0
        %v1132 = vadd.f32 0.0, %v1131
        %v1133 = vpop.f32.mrb[0].mxu0
        %1134 = vmatprep.mubr.bf16.mxu0 0
        %1135 = vmatmul.mubr.bf16.gmra.mrb[0].mxu0 %v1050
        %v1136 = vpop.f32.mrb[0].mxu0
        %v1137 = vadd.f32 0.0, %v1136
        %v1138 = vpop.f32.mrb[0].mxu0
        %v1139 = vpop.f32.mrb[0].mxu0
        %v1140 = vadd.f32 0.0, %v1139
        %v1141 = vpop.f32.mrb[0].mxu0
        %1142 = vmatprep.mubr.bf16.mxu0 0
        %1143 = vmatmul.mubr.bf16.gmra.mrb[0].mxu0 %v1053
        %v1144 = vpop.f32.mrb[0].mxu0
        %v1145 = vadd.f32 0.0, %v1144
        %v1146 = vpop.f32.mrb[0].mxu0
        %v1147 = vpop.f32.mrb[0].mxu0
        %v1148 = vadd.f32 0.0, %v1147
        %v1149 = vpop.f32.mrb[0].mxu0
        %1150 = vmatprep.mubr.bf16.mxu0 0
        %1151 = vmatmul.mubr.bf16.gmra.mrb[0].mxu0 %v1056
        %v1152 = vpop.f32.mrb[0].mxu0
        %v1153 = vadd.f32 0.0, %v1152
        %v1154 = vpop.f32.mrb[0].mxu0
        %v1155 = vpop.f32.mrb[0].mxu0
        %v1156 = vadd.f32 0.0, %v1155
        %v1157 = vpop.f32.mrb[0].mxu0
        %1158 = vmatprep.mubr.bf16.mxu0 0
        %1159 = vmatmul.mubr.bf16.gmra.mrb[0].mxu0 %v1059
        %v1160 = vpop.f32.mrb[0].mxu0
        %v1161 = vadd.f32 0.0, %v1160
        %v1162 = vpop.f32.mrb[0].mxu0
        %v1163 = vpop.f32.mrb[0].mxu0
        %v1164 = vadd.f32 0.0, %v1163
        %v1165 = vpop.f32.mrb[0].mxu0
        %1166 = vmatprep.mubr.bf16.mxu0 0
        %1167 = vmatmul.mubr.bf16.gmra.mrb[0].mxu0 %v1062
        %v1168 = vpop.f32.mrb[0].mxu0
        %v1169 = vadd.f32 0.0, %v1168
        %v1170 = vpop.f32.mrb[0].mxu0
        %v1171 = vpop.f32.mrb[0].mxu0
        %v1172 = vadd.f32 0.0, %v1171
        %v1173 = vpop.f32.mrb[0].mxu0
        %1174 = vmatprep.mubr.bf16.mxu0 0
        %1175 = vmatmul.mubr.bf16.gmra.mrb[0].mxu0 %v1065
        %v1176 = vpop.f32.mrb[0].mxu0
        %v1177 = vadd.f32 0.0, %v1176
        %v1178 = vpop.f32.mrb[0].mxu0
        %v1179 = vpop.f32.mrb[0].mxu0
        %v1180 = vadd.f32 0.0, %v1179
        %v1181 = vpop.f32.mrb[0].mxu0
        %1182 = vmatprep.mubr.bf16.mxu0 0
        %1183 = vmatmul.mubr.bf16.gmra.mrb[0].mxu0 %v1068
        %v1184 = vpop.f32.mrb[0].mxu0
        %v1185 = vadd.f32 0.0, %v1184
        %v1186 = vpop.f32.mrb[0].mxu0
        %v1187 = vpop.f32.mrb[0].mxu0
        %v1188 = vadd.f32 0.0, %v1187
        %v1189 = vpop.f32.mrb[0].mxu0
        %1190 = vdwg.mxu0
        %v1191 = vmul.f32 %v1129, 0.25
        %v1192 = vmul.f32 %v1132, 0.25
        %v1193 = vmul.f32 %v1137, 0.25
        %v1194 = vmul.f32 %v1140, 0.25
        %v1195 = vmul.f32 %v1145, 0.25
        %v1196 = vmul.f32 %v1148, 0.25
        %v1197 = vmul.f32 %v1153, 0.25
        %v1198 = vmul.f32 %v1156, 0.25
        %v1199 = vmul.f32 %v1161, 0.25
        %v1200 = vmul.f32 %v1164, 0.25
        %v1201 = vmul.f32 %v1169, 0.25
        %v1202 = vmul.f32 %v1172, 0.25
        %v1203 = vmul.f32 %v1177, 0.25
        %v1204 = vmul.f32 %v1180, 0.25
        %v1205 = vmul.f32 %v1185, 0.25
        %v1206 = vmul.f32 %v1188, 0.25
        %1207 = vmax.xlane.f32.xlu0 %v1191
        %v1208 = vpop.xlane.xlu0 %1207
        %1209 = vmax.xlane.f32.xlu0 %v1192
        %v1210 = vpop.xlane.xlu0 %1209
        %1211 = vmax.xlane.f32.xlu0 %v1193
        %v1212 = vpop.xlane.xlu0 %1211
        %1213 = vmax.xlane.f32.xlu0 %v1194
        %v1214 = vpop.xlane.xlu0 %1213
        %1215 = vmax.xlane.f32.xlu0 %v1195
        %v1216 = vpop.xlane.xlu0 %1215
        %1217 = vmax.xlane.f32.xlu0 %v1196
        %v1218 = vpop.xlane.xlu0 %1217
        %1219 = vmax.xlane.f32.xlu0 %v1197
        %v1220 = vpop.xlane.xlu0 %1219
        %1221 = vmax.xlane.f32.xlu0 %v1198
        %v1222 = vpop.xlane.xlu0 %1221
        %1223 = vmax.xlane.f32.xlu0 %v1199
        %v1224 = vpop.xlane.xlu0 %1223
        %1225 = vmax.xlane.f32.xlu0 %v1200
        %v1226 = vpop.xlane.xlu0 %1225
        %1227 = vmax.xlane.f32.xlu0 %v1201
        %v1228 = vpop.xlane.xlu0 %1227
        %1229 = vmax.xlane.f32.xlu0 %v1202
        %v1230 = vpop.xlane.xlu0 %1229
        %1231 = vmax.xlane.f32.xlu0 %v1203
        %v1232 = vpop.xlane.xlu0 %1231
        %1233 = vmax.xlane.f32.xlu0 %v1204
        %v1234 = vpop.xlane.xlu0 %1233
        %1235 = vmax.xlane.f32.xlu0 %v1205
        %v1236 = vpop.xlane.xlu0 %1235
        %1237 = vmax.xlane.f32.xlu0 %v1206
        %v1238 = vpop.xlane.xlu0 %1237
        %v1239 = vsub.f32 %v1191, %v1208
        %v1240 = vsub.f32 %v1192, %v1210
        %v1241 = vsub.f32 %v1193, %v1212
        %v1242 = vsub.f32 %v1194, %v1214
        %v1243 = vsub.f32 %v1195, %v1216
        %v1244 = vsub.f32 %v1196, %v1218
        %v1245 = vsub.f32 %v1197, %v1220
        %v1246 = vsub.f32 %v1198, %v1222
        %v1247 = vsub.f32 %v1199, %v1224
        %v1248 = vsub.f32 %v1200, %v1226
        %v1249 = vsub.f32 %v1201, %v1228
        %v1250 = vsub.f32 %v1202, %v1230
        %v1251 = vsub.f32 %v1203, %v1232
        %v1252 = vsub.f32 %v1204, %v1234
        %v1253 = vsub.f32 %v1205, %v1236
        %v1254 = vsub.f32 %v1206, %v1238
        %v1255 = vmul.f32 %v1239, 1.442695
        %v1256 = vpow.pop %v1255
        %v1257 = vmul.f32 %v1240, 1.442695
        %v1258 = vpow.pop %v1257
        %v1259 = vmul.f32 %v1241, 1.442695
        %v1260 = vpow.pop %v1259
        %v1261 = vmul.f32 %v1242, 1.442695
        %v1262 = vpow.pop %v1261
        %v1263 = vmul.f32 %v1243, 1.442695
        %v1264 = vpow.pop %v1263
        %v1265 = vmul.f32 %v1244, 1.442695
        %v1266 = vpow.pop %v1265
        %v1267 = vmul.f32 %v1245, 1.442695
        %v1268 = vpow.pop %v1267
        %v1269 = vmul.f32 %v1246, 1.442695
        %v1270 = vpow.pop %v1269
        %v1271 = vmul.f32 %v1247, 1.442695
        %v1272 = vpow.pop %v1271
        %v1273 = vmul.f32 %v1248, 1.442695
        %v1274 = vpow.pop %v1273
        %v1275 = vmul.f32 %v1249, 1.442695
        %v1276 = vpow.pop %v1275
        %v1277 = vmul.f32 %v1250, 1.442695
        %v1278 = vpow.pop %v1277
        %v1279 = vmul.f32 %v1251, 1.442695
        %v1280 = vpow.pop %v1279
        %v1281 = vmul.f32 %v1252, 1.442695
        %v1282 = vpow.pop %v1281
        %v1283 = vmul.f32 %v1253, 1.442695
        %v1284 = vpow.pop %v1283
        %v1285 = vmul.f32 %v1254, 1.442695
        %v1286 = vpow.pop %v1285
        %1287 = vadd.xlane.f32.xlu0 %v1256
        %v1288 = vpop.xlane.xlu0 %1287
        %1289 = vadd.xlane.f32.xlu0 %v1258
        %v1290 = vpop.xlane.xlu0 %1289
        %1291 = vadd.xlane.f32.xlu0 %v1260
        %v1292 = vpop.xlane.xlu0 %1291
        %1293 = vadd.xlane.f32.xlu0 %v1262
        %v1294 = vpop.xlane.xlu0 %1293
        %1295 = vadd.xlane.f32.xlu0 %v1264
        %v1296 = vpop.xlane.xlu0 %1295
        %1297 = vadd.xlane.f32.xlu0 %v1266
        %v1298 = vpop.xlane.xlu0 %1297
        %1299 = vadd.xlane.f32.xlu0 %v1268
        %v1300 = vpop.xlane.xlu0 %1299
        %1301 = vadd.xlane.f32.xlu0 %v1270
        %v1302 = vpop.xlane.xlu0 %1301
        %1303 = vadd.xlane.f32.xlu0 %v1272
        %v1304 = vpop.xlane.xlu0 %1303
        %1305 = vadd.xlane.f32.xlu0 %v1274
        %v1306 = vpop.xlane.xlu0 %1305
        %1307 = vadd.xlane.f32.xlu0 %v1276
        %v1308 = vpop.xlane.xlu0 %1307
        %1309 = vadd.xlane.f32.xlu0 %v1278
        %v1310 = vpop.xlane.xlu0 %1309
        %1311 = vadd.xlane.f32.xlu0 %v1280
        %v1312 = vpop.xlane.xlu0 %1311
        %1313 = vadd.xlane.f32.xlu0 %v1282
        %v1314 = vpop.xlane.xlu0 %1313
        %1315 = vadd.xlane.f32.xlu0 %v1284
        %v1316 = vpop.xlane.xlu0 %1315
        %1317 = vadd.xlane.f32.xlu0 %v1286
        %v1318 = vpop.xlane.xlu0 %1317
        %v1319 = vrcp.pop %v1288
        %v1320 = vmul.f32 %v1256, %v1319
        %v1321 = vrcp.pop %v1290
        %v1322 = vmul.f32 %v1258, %v1321
        %v1323 = vrcp.pop %v1292
        %v1324 = vmul.f32 %v1260, %v1323
        %v1325 = vrcp.pop %v1294
        %v1326 = vmul.f32 %v1262, %v1325
        %v1327 = vrcp.pop %v1296
        %v1328 = vmul.f32 %v1264, %v1327
        %v1329 = vrcp.pop %v1298
        %v1330 = vmul.f32 %v1266, %v1329
        %v1331 = vrcp.pop %v1300
        %v1332 = vmul.f32 %v1268, %v1331
        %v1333 = vrcp.pop %v1302
        %v1334 = vmul.f32 %v1270, %v1333
        %v1335 = vrcp.pop %v1304
        %v1336 = vmul.f32 %v1272, %v1335
        %v1337 = vrcp.pop %v1306
        %v1338 = vmul.f32 %v1274, %v1337
        %v1339 = vrcp.pop %v1308
        %v1340 = vmul.f32 %v1276, %v1339
        %v1341 = vrcp.pop %v1310
        %v1342 = vmul.f32 %v1278, %v1341
        %v1343 = vrcp.pop %v1312
        %v1344 = vmul.f32 %v1280, %v1343
        %v1345 = vrcp.pop %v1314
        %v1346 = vmul.f32 %v1282, %v1345
        %v1347 = vrcp.pop %v1316
        %v1348 = vmul.f32 %v1284, %v1347
        %v1349 = vrcp.pop %v1318
        %v1350 = vmul.f32 %v1286, %v1349
        %v1351 = vpack.c.bf16 %v1322, %v1320
        %v1352 = vpack.c.bf16 %v1326, %v1324
        %v1353 = vpack.c.bf16 %v1330, %v1328
        %v1354 = vpack.c.bf16 %v1334, %v1332
        %v1355 = vpack.c.bf16 %v1338, %v1336
        %v1356 = vpack.c.bf16 %v1342, %v1340
        %v1357 = vpack.c.bf16 %v1346, %v1344
        %v1358 = vpack.c.bf16 %v1350, %v1348
        %v1359 = vpack.c.bf16 %v1014, %v1013
        %v1360 = vpack.c.bf16 %v1016, %v1015
        %v1361 = vpack.c.bf16 %v1018, %v1017
        %v1362 = vpack.c.bf16 %v1020, %v1019
        %v1363 = vpack.c.bf16 %v1022, %v1021
        %v1364 = vpack.c.bf16 %v1024, %v1023
        %v1365 = vpack.c.bf16 %v1026, %v1025
        %v1366 = vpack.c.bf16 %v1028, %v1027
        %1367 = vmatprep.subr.bf16.mxu0 0
        %1368 = vmatpush1.bf16.msra.mxu0 %v1359
        %1369 = vmatprep.subr.bf16.mxu0 0
        %1370 = vmatpush1.bf16.msra.mxu0 %v1360
        %1371 = vmatprep.subr.bf16.mxu0 0
        %1372 = vmatpush1.bf16.msra.mxu0 %v1361
        %1373 = vmatprep.subr.bf16.mxu0 0
        %1374 = vmatpush1.bf16.msra.mxu0 %v1362
        %1375 = vmatprep.subr.bf16.mxu0 0
        %1376 = vmatpush1.bf16.msra.mxu0 %v1363
        %1377 = vmatprep.subr.bf16.mxu0 0
        %1378 = vmatpush1.bf16.msra.mxu0 %v1364
        %1379 = vmatprep.subr.bf16.mxu0 0
        %1380 = vmatpush1.bf16.msra.mxu0 %v1365
        %1381 = vmatprep.subr.bf16.mxu0 0
        %1382 = vmatpush1.bf16.msra.mxu0 %v1366
        %1383 = vmatprep.subr.bf16.mxu0 0
        %1384 = vmatpush1.bf16.msra.mxu0 0
        %1385 = vmatprep.subr.bf16.mxu0 0
        %1386 = vmatpush1.bf16.msra.mxu0 0
        %1387 = vmatprep.subr.bf16.mxu0 0
        %1388 = vmatpush1.bf16.msra.mxu0 0
        %1389 = vmatprep.subr.bf16.mxu0 0
        %1390 = vmatpush1.bf16.msra.mxu0 0
        %1391 = vmatprep.subr.bf16.mxu0 0
        %1392 = vmatpush1.bf16.msra.mxu0 0
        %1393 = vmatprep.subr.bf16.mxu0 0
        %1394 = vmatpush1.bf16.msra.mxu0 0
        %1395 = vmatprep.subr.bf16.mxu0 0
        %1396 = vmatpush1.bf16.msra.mxu0 0
        %1397 = vmatprep.subr.bf16.mxu0 0
        %1398 = vmatpush1.bf16.msra.mxu0 0
        %1399 = vmatprep.mubr.bf16.mxu0 0
        %1400 = vmatmul.mubr.bf16.gmra.mrb[0].mxu0 %v1351
        %v1401 = vpop.f32.mrb[0].mxu0
        %v1402 = vadd.f32 0.0, %v1401
        %v1403 = vpop.f32.mrb[0].mxu0
        %v1404 = vpop.f32.mrb[0].mxu0
        %v1405 = vadd.f32 0.0, %v1404
        %v1406 = vpop.f32.mrb[0].mxu0
        %1407 = vmatprep.mubr.bf16.mxu0 0
        %1408 = vmatmul.mubr.bf16.gmra.mrb[0].mxu0 %v1352
        %v1409 = vpop.f32.mrb[0].mxu0
        %v1410 = vadd.f32 0.0, %v1409
        %v1411 = vpop.f32.mrb[0].mxu0
        %v1412 = vpop.f32.mrb[0].mxu0
        %v1413 = vadd.f32 0.0, %v1412
        %v1414 = vpop.f32.mrb[0].mxu0
        %1415 = vmatprep.mubr.bf16.mxu0 0
        %1416 = vmatmul.mubr.bf16.gmra.mrb[0].mxu0 %v1353
        %v1417 = vpop.f32.mrb[0].mxu0
        %v1418 = vadd.f32 0.0, %v1417
        %v1419 = vpop.f32.mrb[0].mxu0
        %v1420 = vpop.f32.mrb[0].mxu0
        %v1421 = vadd.f32 0.0, %v1420
        %v1422 = vpop.f32.mrb[0].mxu0
        %1423 = vmatprep.mubr.bf16.mxu0 0
        %1424 = vmatmul.mubr.bf16.gmra.mrb[0].mxu0 %v1354
        %v1425 = vpop.f32.mrb[0].mxu0
        %v1426 = vadd.f32 0.0, %v1425
        %v1427 = vpop.f32.mrb[0].mxu0
        %v1428 = vpop.f32.mrb[0].mxu0
        %v1429 = vadd.f32 0.0, %v1428
        %v1430 = vpop.f32.mrb[0].mxu0
        %1431 = vmatprep.mubr.bf16.mxu0 0
        %1432 = vmatmul.mubr.bf16.gmra.mrb[0].mxu0 %v1355
        %v1433 = vpop.f32.mrb[0].mxu0
        %v1434 = vadd.f32 0.0, %v1433
        %v1435 = vpop.f32.mrb[0].mxu0
        %v1436 = vpop.f32.mrb[0].mxu0
        %v1437 = vadd.f32 0.0, %v1436
        %v1438 = vpop.f32.mrb[0].mxu0
        %1439 = vmatprep.mubr.bf16.mxu0 0
        %1440 = vmatmul.mubr.bf16.gmra.mrb[0].mxu0 %v1356
        %v1441 = vpop.f32.mrb[0].mxu0
        %v1442 = vadd.f32 0.0, %v1441
        %v1443 = vpop.f32.mrb[0].mxu0
        %v1444 = vpop.f32.mrb[0].mxu0
        %v1445 = vadd.f32 0.0, %v1444
        %v1446 = vpop.f32.mrb[0].mxu0
        %1447 = vmatprep.mubr.bf16.mxu0 0
        %1448 = vmatmul.mubr.bf16.gmra.mrb[0].mxu0 %v1357
        %v1449 = vpop.f32.mrb[0].mxu0
        %v1450 = vadd.f32 0.0, %v1449
        %v1451 = vpop.f32.mrb[0].mxu0
        %v1452 = vpop.f32.mrb[0].mxu0
        %v1453 = vadd.f32 0.0, %v1452
        %v1454 = vpop.f32.mrb[0].mxu0
        %1455 = vmatprep.mubr.bf16.mxu0 0
        %1456 = vmatmul.mubr.bf16.gmra.mrb[0].mxu0 %v1358
        %v1457 = vpop.f32.mrb[0].mxu0
        %v1458 = vadd.f32 0.0, %v1457
        %v1459 = vpop.f32.mrb[0].mxu0
        %v1460 = vpop.f32.mrb[0].mxu0
        %v1461 = vadd.f32 0.0, %v1460
        %v1462 = vpop.f32.mrb[0].mxu0
        %1463 = vdwg.mxu0
        %v1464 = vld [vmem:[#allocation3] sm:$0xff]
        %v1465 = vld [vmem:[#allocation3 + $0x8] sm:$0xff]
        %v1466 = vld [vmem:[#allocation3 + $0x10] sm:$0xff]
        %v1467 = vld [vmem:[#allocation3 + $0x18] sm:$0xff]
        %v1468 = vld [vmem:[#allocation3 + $0x20] sm:$0xff]
        %v1469 = vld [vmem:[#allocation3 + $0x28] sm:$0xff]
        %v1470 = vld [vmem:[#allocation3 + $0x30] sm:$0xff]
        %v1471 = vld [vmem:[#allocation3 + $0x38] sm:$0xff]
        %v1472 = vld [vmem:[#allocation3 + $0x40] sm:$0xff]
        %v1473 = vld [vmem:[#allocation3 + $0x48] sm:$0xff]
        %v1474 = vld [vmem:[#allocation3 + $0x50] sm:$0xff]
        %v1475 = vld [vmem:[#allocation3 + $0x58] sm:$0xff]
        %v1476 = vld [vmem:[#allocation3 + $0x60] sm:$0xff]
        %v1477 = vld [vmem:[#allocation3 + $0x68] sm:$0xff]
        %v1478 = vld [vmem:[#allocation3 + $0x70] sm:$0xff]
        %v1479 = vld [vmem:[#allocation3 + $0x78] sm:$0xff]
        %v1480 = vpack.c.bf16 %v1405, %v1402
        %v1481 = vpack.c.bf16 %v1413, %v1410
        %v1482 = vpack.c.bf16 %v1421, %v1418
        %v1483 = vpack.c.bf16 %v1429, %v1426
        %v1484 = vpack.c.bf16 %v1437, %v1434
        %v1485 = vpack.c.bf16 %v1445, %v1442
        %v1486 = vpack.c.bf16 %v1453, %v1450
        %v1487 = vpack.c.bf16 %v1461, %v1458
        %v1488 = vld [vmem:[#allocation9] sm:$0xf]
        %v1489 = vld [vmem:[#allocation9 + $0x4] sm:$0xf]
        %v1492 = vunpack.c.l.b16 %v1488
        %v1493 = vunpack.c.l.b16 %v1489
        %v1494 = vpack.c.b16 %v1493, %v1492
        %v1497 = vsel %vm1045, %v1480, 0
        %v1500 = vsel %vm1045, %v1481, 0
        %v1503 = vsel %vm1045, %v1482, 0
        %v1506 = vsel %vm1045, %v1483, 0
        %v1509 = vsel %vm1045, %v1484, 0
        %v1512 = vsel %vm1045, %v1485, 0
        %v1515 = vsel %vm1045, %v1486, 0
        %v1518 = vsel %vm1045, %v1487, 0
        %1520 = vmatprep.subr.bf16.mxu0 0
        %1521 = vmatpush1.bf16.msra.mxu0 %v1494
        %1522 = vmatprep.subr.bf16.mxu0 0
        %1523 = vmatpush1.bf16.msra.mxu0 0
        %1524 = vmatprep.subr.bf16.mxu0 0
        %1525 = vmatpush1.bf16.msra.mxu0 0
        %1526 = vmatprep.subr.bf16.mxu0 0
        %1527 = vmatpush1.bf16.msra.mxu0 0
        %1528 = vmatprep.subr.bf16.mxu0 0
        %1529 = vmatpush1.bf16.msra.mxu0 0
        %1530 = vmatprep.subr.bf16.mxu0 0
        %1531 = vmatpush1.bf16.msra.mxu0 0
        %1532 = vmatprep.subr.bf16.mxu0 0
        %1533 = vmatpush1.bf16.msra.mxu0 0
        %1534 = vmatprep.subr.bf16.mxu0 0
        %1535 = vmatpush1.bf16.msra.mxu0 0
        %1536 = vmatprep.subr.bf16.mxu0 0
        %1537 = vmatpush1.bf16.msra.mxu0 0
        %1538 = vmatprep.subr.bf16.mxu0 0
        %1539 = vmatpush1.bf16.msra.mxu0 0
        %1540 = vmatprep.subr.bf16.mxu0 0
        %1541 = vmatpush1.bf16.msra.mxu0 0
        %1542 = vmatprep.subr.bf16.mxu0 0
        %1543 = vmatpush1.bf16.msra.mxu0 0
        %1544 = vmatprep.subr.bf16.mxu0 0
        %1545 = vmatpush1.bf16.msra.mxu0 0
        %1546 = vmatprep.subr.bf16.mxu0 0
        %1547 = vmatpush1.bf16.msra.mxu0 0
        %1548 = vmatprep.subr.bf16.mxu0 0
        %1549 = vmatpush1.bf16.msra.mxu0 0
        %1550 = vmatprep.subr.bf16.mxu0 0
        %1551 = vmatpush1.bf16.msra.mxu0 0
        %1552 = vmatprep.mubr.bf16.mxu0 0
        %1553 = vmatmul.mubr.bf16.gmra.mrb[0].mxu0 %v1497
        %v1554 = vpop.f32.mrb[0].mxu0
        %v1555 = vadd.f32 0.0, %v1554
        %v1556 = vpop.f32.mrb[0].mxu0
        %v1557 = vpop.f32.mrb[0].mxu0
        %v1558 = vadd.f32 0.0, %v1557
        %v1559 = vpop.f32.mrb[0].mxu0
        %1560 = vmatprep.mubr.bf16.mxu0 0
        %1561 = vmatmul.mubr.bf16.gmra.mrb[0].mxu0 %v1500
        %v1562 = vpop.f32.mrb[0].mxu0
        %v1563 = vadd.f32 0.0, %v1562
        %v1564 = vpop.f32.mrb[0].mxu0
        %v1565 = vpop.f32.mrb[0].mxu0
        %v1566 = vadd.f32 0.0, %v1565
        %v1567 = vpop.f32.mrb[0].mxu0
        %1568 = vmatprep.mubr.bf16.mxu0 0
        %1569 = vmatmul.mubr.bf16.gmra.mrb[0].mxu0 %v1503
        %v1570 = vpop.f32.mrb[0].mxu0
        %v1571 = vadd.f32 0.0, %v1570
        %v1572 = vpop.f32.mrb[0].mxu0
        %v1573 = vpop.f32.mrb[0].mxu0
        %v1574 = vadd.f32 0.0, %v1573
        %v1575 = vpop.f32.mrb[0].mxu0
        %1576 = vmatprep.mubr.bf16.mxu0 0
        %1577 = vmatmul.mubr.bf16.gmra.mrb[0].mxu0 %v1506
        %v1578 = vpop.f32.mrb[0].mxu0
        %v1579 = vadd.f32 0.0, %v1578
        %v1580 = vpop.f32.mrb[0].mxu0
        %v1581 = vpop.f32.mrb[0].mxu0
        %v1582 = vadd.f32 0.0, %v1581
        %v1583 = vpop.f32.mrb[0].mxu0
        %1584 = vmatprep.mubr.bf16.mxu0 0
        %1585 = vmatmul.mubr.bf16.gmra.mrb[0].mxu0 %v1509
        %v1586 = vpop.f32.mrb[0].mxu0
        %v1587 = vadd.f32 0.0, %v1586
        %v1588 = vpop.f32.mrb[0].mxu0
        %v1589 = vpop.f32.mrb[0].mxu0
        %v1590 = vadd.f32 0.0, %v1589
        %v1591 = vpop.f32.mrb[0].mxu0
        %1592 = vmatprep.mubr.bf16.mxu0 0
        %1593 = vmatmul.mubr.bf16.gmra.mrb[0].mxu0 %v1512
        %v1594 = vpop.f32.mrb[0].mxu0
        %v1595 = vadd.f32 0.0, %v1594
        %v1596 = vpop.f32.mrb[0].mxu0
        %v1597 = vpop.f32.mrb[0].mxu0
        %v1598 = vadd.f32 0.0, %v1597
        %v1599 = vpop.f32.mrb[0].mxu0
        %1600 = vmatprep.mubr.bf16.mxu0 0
        %1601 = vmatmul.mubr.bf16.gmra.mrb[0].mxu0 %v1515
        %v1602 = vpop.f32.mrb[0].mxu0
        %v1603 = vadd.f32 0.0, %v1602
        %v1604 = vpop.f32.mrb[0].mxu0
        %v1605 = vpop.f32.mrb[0].mxu0
        %v1606 = vadd.f32 0.0, %v1605
        %v1607 = vpop.f32.mrb[0].mxu0
        %1608 = vmatprep.mubr.bf16.mxu0 0
        %1609 = vmatmul.mubr.bf16.gmra.mrb[0].mxu0 %v1518
        %v1610 = vpop.f32.mrb[0].mxu0
        %v1611 = vadd.f32 0.0, %v1610
        %v1612 = vpop.f32.mrb[0].mxu0
        %v1613 = vpop.f32.mrb[0].mxu0
        %v1614 = vadd.f32 0.0, %v1613
        %v1615 = vpop.f32.mrb[0].mxu0
        %1616 = vdwg.mxu0
        %v1617 = vadd.f32 %v1464, %v1555
        %v1618 = vadd.f32 %v1465, %v1558
        %v1619 = vadd.f32 %v1466, %v1563
        %v1620 = vadd.f32 %v1467, %v1566
        %v1621 = vadd.f32 %v1468, %v1571
        %v1622 = vadd.f32 %v1469, %v1574
        %v1623 = vadd.f32 %v1470, %v1579
        %v1624 = vadd.f32 %v1471, %v1582
        %v1625 = vadd.f32 %v1472, %v1587
        %v1626 = vadd.f32 %v1473, %v1590
        %v1627 = vadd.f32 %v1474, %v1595
        %v1628 = vadd.f32 %v1475, %v1598
        %v1629 = vadd.f32 %v1476, %v1603
        %v1630 = vadd.f32 %v1477, %v1606
        %v1631 = vadd.f32 %v1478, %v1611
        %v1632 = vadd.f32 %v1479, %v1614
        %1633 = vst [vmem:[#allocation3] sm:$0xff] %v1617
        %1634 = vst [vmem:[#allocation3 + $0x8] sm:$0xff] %v1618
        %1635 = vst [vmem:[#allocation3 + $0x10] sm:$0xff] %v1619
        %1636 = vst [vmem:[#allocation3 + $0x18] sm:$0xff] %v1620
        %1637 = vst [vmem:[#allocation3 + $0x20] sm:$0xff] %v1621
        %1638 = vst [vmem:[#allocation3 + $0x28] sm:$0xff] %v1622
        %1639 = vst [vmem:[#allocation3 + $0x30] sm:$0xff] %v1623
        %1640 = vst [vmem:[#allocation3 + $0x38] sm:$0xff] %v1624
        %1641 = vst [vmem:[#allocation3 + $0x40] sm:$0xff] %v1625
        %1642 = vst [vmem:[#allocation3 + $0x48] sm:$0xff] %v1626
        %1643 = vst [vmem:[#allocation3 + $0x50] sm:$0xff] %v1627
        %1644 = vst [vmem:[#allocation3 + $0x58] sm:$0xff] %v1628
        %1645 = vst [vmem:[#allocation3 + $0x60] sm:$0xff] %v1629
        %1646 = vst [vmem:[#allocation3 + $0x68] sm:$0xff] %v1630
        %1647 = vst [vmem:[#allocation3 + $0x70] sm:$0xff] %v1631
        %1648 = vst [vmem:[#allocation3 + $0x78] sm:$0xff] %v1632
        %v1649 = vld [vmem:[#allocation2] sm:$0xff]
        %v1650 = vld [vmem:[#allocation2 + $0x18] sm:$0xff]
        %v1651 = vld [vmem:[#allocation2 + $0x30] sm:$0xff]
        %v1652 = vld [vmem:[#allocation2 + $0x48] sm:$0xff]
        %v1653 = vld [vmem:[#allocation2 + $0x60] sm:$0xff]
        %v1654 = vld [vmem:[#allocation2 + $0x78] sm:$0xff]
        %v1655 = vld [vmem:[#allocation2 + $0x90] sm:$0xff]
        %v1656 = vld [vmem:[#allocation2 + $0xa8] sm:$0xff]
        %v1657 = vld [vmem:[#allocation2 + $0xc0] sm:$0xff]
        %v1658 = vld [vmem:[#allocation2 + $0xd8] sm:$0xff]
        %v1659 = vld [vmem:[#allocation2 + $0xf0] sm:$0xff]
        %v1660 = vld [vmem:[#allocation2 + $0x108] sm:$0xff]
        %v1661 = vld [vmem:[#allocation2 + $0x120] sm:$0xff]
        %v1662 = vld [vmem:[#allocation2 + $0x138] sm:$0xff]
        %v1663 = vld [vmem:[#allocation2 + $0x150] sm:$0xff]
        %v1664 = vld [vmem:[#allocation2 + $0x168] sm:$0xff]
        %v1665 = vld [vmem:[#allocation2 + $0x8] sm:$0xff]
        %v1666 = vld [vmem:[#allocation2 + $0x20] sm:$0xff]
        %v1667 = vld [vmem:[#allocation2 + $0x38] sm:$0xff]
        %v1668 = vld [vmem:[#allocation2 + $0x50] sm:$0xff]
        %v1669 = vld [vmem:[#allocation2 + $0x68] sm:$0xff]
        %v1670 = vld [vmem:[#allocation2 + $0x80] sm:$0xff]
        %v1671 = vld [vmem:[#allocation2 + $0x98] sm:$0xff]
        %v1672 = vld [vmem:[#allocation2 + $0xb0] sm:$0xff]
        %v1673 = vld [vmem:[#allocation2 + $0xc8] sm:$0xff]
        %v1674 = vld [vmem:[#allocation2 + $0xe0] sm:$0xff]
        %v1675 = vld [vmem:[#allocation2 + $0xf8] sm:$0xff]
        %v1676 = vld [vmem:[#allocation2 + $0x110] sm:$0xff]
        %v1677 = vld [vmem:[#allocation2 + $0x128] sm:$0xff]
        %v1678 = vld [vmem:[#allocation2 + $0x140] sm:$0xff]
        %v1679 = vld [vmem:[#allocation2 + $0x158] sm:$0xff]
        %v1680 = vld [vmem:[#allocation2 + $0x170] sm:$0xff]
        %v1681 = vld [vmem:[#allocation2 + $0x10] sm:$0xff]
        %v1682 = vld [vmem:[#allocation2 + $0x28] sm:$0xff]
        %v1683 = vld [vmem:[#allocation2 + $0x40] sm:$0xff]
        %v1684 = vld [vmem:[#allocation2 + $0x58] sm:$0xff]
        %v1685 = vld [vmem:[#allocation2 + $0x70] sm:$0xff]
        %v1686 = vld [vmem:[#allocation2 + $0x88] sm:$0xff]
        %v1687 = vld [vmem:[#allocation2 + $0xa0] sm:$0xff]
        %v1688 = vld [vmem:[#allocation2 + $0xb8] sm:$0xff]
        %v1689 = vld [vmem:[#allocation2 + $0xd0] sm:$0xff]
        %v1690 = vld [vmem:[#allocation2 + $0xe8] sm:$0xff]
        %v1691 = vld [vmem:[#allocation2 + $0x100] sm:$0xff]
        %v1692 = vld [vmem:[#allocation2 + $0x118] sm:$0xff]
        %v1693 = vld [vmem:[#allocation2 + $0x130] sm:$0xff]
        %v1694 = vld [vmem:[#allocation2 + $0x148] sm:$0xff]
        %v1695 = vld [vmem:[#allocation2 + $0x160] sm:$0xff]
        %v1696 = vld [vmem:[#allocation2 + $0x178] sm:$0xff]
        %v1697 = vpack.c.bf16 %v1650, %v1649
        %v1698 = vpack.c.bf16 %v1652, %v1651
        %v1699 = vpack.c.bf16 %v1654, %v1653
        %v1700 = vpack.c.bf16 %v1656, %v1655
        %v1701 = vpack.c.bf16 %v1658, %v1657
        %v1702 = vpack.c.bf16 %v1660, %v1659
        %v1703 = vpack.c.bf16 %v1662, %v1661
        %v1704 = vpack.c.bf16 %v1664, %v1663
        %v1705 = vpack.c.bf16 %v1666, %v1665
        %v1706 = vpack.c.bf16 %v1668, %v1667
        %v1707 = vpack.c.bf16 %v1670, %v1669
        %v1708 = vpack.c.bf16 %v1672, %v1671
        %v1709 = vpack.c.bf16 %v1674, %v1673
        %v1710 = vpack.c.bf16 %v1676, %v1675
        %v1711 = vpack.c.bf16 %v1678, %v1677
        %v1712 = vpack.c.bf16 %v1680, %v1679
        %1721 = vrot.lane.b32.xlu0 %v1697, 112
        %v1722 = vpop.permute.xlu0 %1721
        %1723 = vrot.lane.b32.xlu0 %v1698, 112
        %v1724 = vpop.permute.xlu0 %1723
        %1725 = vrot.lane.b32.xlu0 %v1699, 112
        %v1726 = vpop.permute.xlu0 %1725
        %1727 = vrot.lane.b32.xlu0 %v1700, 112
        %v1728 = vpop.permute.xlu0 %1727
        %1729 = vrot.lane.b32.xlu0 %v1701, 112
        %v1730 = vpop.permute.xlu0 %1729
        %1731 = vrot.lane.b32.xlu0 %v1702, 112
        %v1732 = vpop.permute.xlu0 %1731
        %1733 = vrot.lane.b32.xlu0 %v1703, 112
        %v1734 = vpop.permute.xlu0 %1733
        %1735 = vrot.lane.b32.xlu0 %v1704, 112
        %v1736 = vpop.permute.xlu0 %1735
        %1745 = vrot.lane.b32.xlu0 %v1705, 112
        %v1746 = vpop.permute.xlu0 %1745
        %1747 = vrot.lane.b32.xlu0 %v1706, 112
        %v1748 = vpop.permute.xlu0 %1747
        %1749 = vrot.lane.b32.xlu0 %v1707, 112
        %v1750 = vpop.permute.xlu0 %1749
        %1751 = vrot.lane.b32.xlu0 %v1708, 112
        %v1752 = vpop.permute.xlu0 %1751
        %1753 = vrot.lane.b32.xlu0 %v1709, 112
        %v1754 = vpop.permute.xlu0 %1753
        %1755 = vrot.lane.b32.xlu0 %v1710, 112
        %v1756 = vpop.permute.xlu0 %1755
        %1757 = vrot.lane.b32.xlu0 %v1711, 112
        %v1758 = vpop.permute.xlu0 %1757
        %1759 = vrot.lane.b32.xlu0 %v1712, 112
        %v1760 = vpop.permute.xlu0 %1759
        %v1762 = vsel %vm1045, %v1722, 0
        %v1765 = vsel %vm1045, %v1724, 0
        %v1768 = vsel %vm1045, %v1726, 0
        %v1771 = vsel %vm1045, %v1728, 0
        %v1774 = vsel %vm1045, %v1730, 0
        %v1777 = vsel %vm1045, %v1732, 0
        %v1780 = vsel %vm1045, %v1734, 0
        %v1783 = vsel %vm1045, %v1736, 0
        %v1786 = vsel %vm1045, %v1746, 0
        %v1789 = vsel %vm1045, %v1748, 0
        %v1792 = vsel %vm1045, %v1750, 0
        %v1795 = vsel %vm1045, %v1752, 0
        %v1798 = vsel %vm1045, %v1754, 0
        %v1801 = vsel %vm1045, %v1756, 0
        %v1804 = vsel %vm1045, %v1758, 0
        %v1807 = vsel %vm1045, %v1760, 0
        %1809 = vmatprep.subr.bf16.mxu0 0
        %1810 = vmatpush1.bf16.xpose.msra.mxu0 %v1786
        %1811 = vmatprep.subr.bf16.mxu0 0
        %1812 = vmatpush1.bf16.xpose.msra.mxu0 %v1789
        %1813 = vmatprep.subr.bf16.mxu0 0
        %1814 = vmatpush1.bf16.xpose.msra.mxu0 %v1792
        %1815 = vmatprep.subr.bf16.mxu0 0
        %1816 = vmatpush1.bf16.xpose.msra.mxu0 %v1795
        %1817 = vmatprep.subr.bf16.mxu0 0
        %1818 = vmatpush1.bf16.xpose.msra.mxu0 %v1798
        %1819 = vmatprep.subr.bf16.mxu0 0
        %1820 = vmatpush1.bf16.xpose.msra.mxu0 %v1801
        %1821 = vmatprep.subr.bf16.mxu0 0
        %1822 = vmatpush1.bf16.xpose.msra.mxu0 %v1804
        %1823 = vmatprep.subr.bf16.mxu0 0
        %1824 = vmatpush1.bf16.xpose.msra.mxu0 %v1807
        %1825 = vmatprep.subr.bf16.mxu0 0
        %1826 = vmatpush1.bf16.xpose.msra.mxu0 0
        %1827 = vmatprep.subr.bf16.mxu0 0
        %1828 = vmatpush1.bf16.xpose.msra.mxu0 0
        %1829 = vmatprep.subr.bf16.mxu0 0
        %1830 = vmatpush1.bf16.xpose.msra.mxu0 0
        %1831 = vmatprep.subr.bf16.mxu0 0
        %1832 = vmatpush1.bf16.xpose.msra.mxu0 0
        %1833 = vmatprep.subr.bf16.mxu0 0
        %1834 = vmatpush1.bf16.xpose.msra.mxu0 0
        %1835 = vmatprep.subr.bf16.mxu0 0
        %1836 = vmatpush1.bf16.xpose.msra.mxu0 0
        %1837 = vmatprep.subr.bf16.mxu0 0
        %1838 = vmatpush1.bf16.xpose.msra.mxu0 0
        %1839 = vmatprep.subr.bf16.mxu0 0
        %1840 = vmatpush1.bf16.xpose.msra.mxu0 0
        %1841 = vmatprep.mubr.bf16.mxu0 0
        %1842 = vmatmul.mubr.bf16.gmra.mrb[0].mxu0 %v1762
        %v1843 = vpop.f32.mrb[0].mxu0
        %v1844 = vadd.f32 0.0, %v1843
        %v1845 = vpop.f32.mrb[0].mxu0
        %v1846 = vpop.f32.mrb[0].mxu0
        %v1847 = vadd.f32 0.0, %v1846
        %v1848 = vpop.f32.mrb[0].mxu0
        %1849 = vmatprep.mubr.bf16.mxu0 0
        %1850 = vmatmul.mubr.bf16.gmra.mrb[0].mxu0 %v1765
        %v1851 = vpop.f32.mrb[0].mxu0
        %v1852 = vadd.f32 0.0, %v1851
        %v1853 = vpop.f32.mrb[0].mxu0
        %v1854 = vpop.f32.mrb[0].mxu0
        %v1855 = vadd.f32 0.0, %v1854
        %v1856 = vpop.f32.mrb[0].mxu0
        %1857 = vmatprep.mubr.bf16.mxu0 0
        %1858 = vmatmul.mubr.bf16.gmra.mrb[0].mxu0 %v1768
        %v1859 = vpop.f32.mrb[0].mxu0
        %v1860 = vadd.f32 0.0, %v1859
        %v1861 = vpop.f32.mrb[0].mxu0
        %v1862 = vpop.f32.mrb[0].mxu0
        %v1863 = vadd.f32 0.0, %v1862
        %v1864 = vpop.f32.mrb[0].mxu0
        %1865 = vmatprep.mubr.bf16.mxu0 0
        %1866 = vmatmul.mubr.bf16.gmra.mrb[0].mxu0 %v1771
        %v1867 = vpop.f32.mrb[0].mxu0
        %v1868 = vadd.f32 0.0, %v1867
        %v1869 = vpop.f32.mrb[0].mxu0
        %v1870 = vpop.f32.mrb[0].mxu0
        %v1871 = vadd.f32 0.0, %v1870
        %v1872 = vpop.f32.mrb[0].mxu0
        %1873 = vmatprep.mubr.bf16.mxu0 0
        %1874 = vmatmul.mubr.bf16.gmra.mrb[0].mxu0 %v1774
        %v1875 = vpop.f32.mrb[0].mxu0
        %v1876 = vadd.f32 0.0, %v1875
        %v1877 = vpop.f32.mrb[0].mxu0
        %v1878 = vpop.f32.mrb[0].mxu0
        %v1879 = vadd.f32 0.0, %v1878
        %v1880 = vpop.f32.mrb[0].mxu0
        %1881 = vmatprep.mubr.bf16.mxu0 0
        %1882 = vmatmul.mubr.bf16.gmra.mrb[0].mxu0 %v1777
        %v1883 = vpop.f32.mrb[0].mxu0
        %v1884 = vadd.f32 0.0, %v1883
        %v1885 = vpop.f32.mrb[0].mxu0
        %v1886 = vpop.f32.mrb[0].mxu0
        %v1887 = vadd.f32 0.0, %v1886
        %v1888 = vpop.f32.mrb[0].mxu0
        %1889 = vmatprep.mubr.bf16.mxu0 0
        %1890 = vmatmul.mubr.bf16.gmra.mrb[0].mxu0 %v1780
        %v1891 = vpop.f32.mrb[0].mxu0
        %v1892 = vadd.f32 0.0, %v1891
        %v1893 = vpop.f32.mrb[0].mxu0
        %v1894 = vpop.f32.mrb[0].mxu0
        %v1895 = vadd.f32 0.0, %v1894
        %v1896 = vpop.f32.mrb[0].mxu0
        %1897 = vmatprep.mubr.bf16.mxu0 0
        %1898 = vmatmul.mubr.bf16.gmra.mrb[0].mxu0 %v1783
        %v1899 = vpop.f32.mrb[0].mxu0
        %v1900 = vadd.f32 0.0, %v1899
        %v1901 = vpop.f32.mrb[0].mxu0
        %v1902 = vpop.f32.mrb[0].mxu0
        %v1903 = vadd.f32 0.0, %v1902
        %v1904 = vpop.f32.mrb[0].mxu0
        %1905 = vdwg.mxu0
        %v1906 = vmul.f32 %v1844, 0.25
        %v1907 = vmul.f32 %v1847, 0.25
        %v1908 = vmul.f32 %v1852, 0.25
        %v1909 = vmul.f32 %v1855, 0.25
        %v1910 = vmul.f32 %v1860, 0.25
        %v1911 = vmul.f32 %v1863, 0.25
        %v1912 = vmul.f32 %v1868, 0.25
        %v1913 = vmul.f32 %v1871, 0.25
        %v1914 = vmul.f32 %v1876, 0.25
        %v1915 = vmul.f32 %v1879, 0.25
        %v1916 = vmul.f32 %v1884, 0.25
        %v1917 = vmul.f32 %v1887, 0.25
        %v1918 = vmul.f32 %v1892, 0.25
        %v1919 = vmul.f32 %v1895, 0.25
        %v1920 = vmul.f32 %v1900, 0.25
        %v1921 = vmul.f32 %v1903, 0.25
        %1922 = vmax.xlane.f32.xlu0 %v1906
        %v1923 = vpop.xlane.xlu0 %1922
        %1924 = vmax.xlane.f32.xlu0 %v1907
        %v1925 = vpop.xlane.xlu0 %1924
        %1926 = vmax.xlane.f32.xlu0 %v1908
        %v1927 = vpop.xlane.xlu0 %1926
        %1928 = vmax.xlane.f32.xlu0 %v1909
        %v1929 = vpop.xlane.xlu0 %1928
        %1930 = vmax.xlane.f32.xlu0 %v1910
        %v1931 = vpop.xlane.xlu0 %1930
        %1932 = vmax.xlane.f32.xlu0 %v1911
        %v1933 = vpop.xlane.xlu0 %1932
        %1934 = vmax.xlane.f32.xlu0 %v1912
        %v1935 = vpop.xlane.xlu0 %1934
        %1936 = vmax.xlane.f32.xlu0 %v1913
        %v1937 = vpop.xlane.xlu0 %1936
        %1938 = vmax.xlane.f32.xlu0 %v1914
        %v1939 = vpop.xlane.xlu0 %1938
        %1940 = vmax.xlane.f32.xlu0 %v1915
        %v1941 = vpop.xlane.xlu0 %1940
        %1942 = vmax.xlane.f32.xlu0 %v1916
        %v1943 = vpop.xlane.xlu0 %1942
        %1944 = vmax.xlane.f32.xlu0 %v1917
        %v1945 = vpop.xlane.xlu0 %1944
        %1946 = vmax.xlane.f32.xlu0 %v1918
        %v1947 = vpop.xlane.xlu0 %1946
        %1948 = vmax.xlane.f32.xlu0 %v1919
        %v1949 = vpop.xlane.xlu0 %1948
        %1950 = vmax.xlane.f32.xlu0 %v1920
        %v1951 = vpop.xlane.xlu0 %1950
        %1952 = vmax.xlane.f32.xlu0 %v1921
        %v1953 = vpop.xlane.xlu0 %1952
        %v1954 = vsub.f32 %v1906, %v1923
        %v1955 = vsub.f32 %v1907, %v1925
        %v1956 = vsub.f32 %v1908, %v1927
        %v1957 = vsub.f32 %v1909, %v1929
        %v1958 = vsub.f32 %v1910, %v1931
        %v1959 = vsub.f32 %v1911, %v1933
        %v1960 = vsub.f32 %v1912, %v1935
        %v1961 = vsub.f32 %v1913, %v1937
        %v1962 = vsub.f32 %v1914, %v1939
        %v1963 = vsub.f32 %v1915, %v1941
        %v1964 = vsub.f32 %v1916, %v1943
        %v1965 = vsub.f32 %v1917, %v1945
        %v1966 = vsub.f32 %v1918, %v1947
        %v1967 = vsub.f32 %v1919, %v1949
        %v1968 = vsub.f32 %v1920, %v1951
        %v1969 = vsub.f32 %v1921, %v1953
        %v1970 = vmul.f32 %v1954, 1.442695
        %v1971 = vpow.pop %v1970
        %v1972 = vmul.f32 %v1955, 1.442695
        %v1973 = vpow.pop %v1972
        %v1974 = vmul.f32 %v1956, 1.442695
        %v1975 = vpow.pop %v1974
        %v1976 = vmul.f32 %v1957, 1.442695
        %v1977 = vpow.pop %v1976
        %v1978 = vmul.f32 %v1958, 1.442695
        %v1979 = vpow.pop %v1978
        %v1980 = vmul.f32 %v1959, 1.442695
        %v1981 = vpow.pop %v1980
        %v1982 = vmul.f32 %v1960, 1.442695
        %v1983 = vpow.pop %v1982
        %v1984 = vmul.f32 %v1961, 1.442695
        %v1985 = vpow.pop %v1984
        %v1986 = vmul.f32 %v1962, 1.442695
        %v1987 = vpow.pop %v1986
        %v1988 = vmul.f32 %v1963, 1.442695
        %v1989 = vpow.pop %v1988
        %v1990 = vmul.f32 %v1964, 1.442695
        %v1991 = vpow.pop %v1990
        %v1992 = vmul.f32 %v1965, 1.442695
        %v1993 = vpow.pop %v1992
        %v1994 = vmul.f32 %v1966, 1.442695
        %v1995 = vpow.pop %v1994
        %v1996 = vmul.f32 %v1967, 1.442695
        %v1997 = vpow.pop %v1996
        %v1998 = vmul.f32 %v1968, 1.442695
        %v1999 = vpow.pop %v1998
        %v2000 = vmul.f32 %v1969, 1.442695
        %v2001 = vpow.pop %v2000
        %2002 = vadd.xlane.f32.xlu0 %v1971
        %v2003 = vpop.xlane.xlu0 %2002
        %2004 = vadd.xlane.f32.xlu0 %v1973
        %v2005 = vpop.xlane.xlu0 %2004
        %2006 = vadd.xlane.f32.xlu0 %v1975
        %v2007 = vpop.xlane.xlu0 %2006
        %2008 = vadd.xlane.f32.xlu0 %v1977
        %v2009 = vpop.xlane.xlu0 %2008
        %2010 = vadd.xlane.f32.xlu0 %v1979
        %v2011 = vpop.xlane.xlu0 %2010
        %2012 = vadd.xlane.f32.xlu0 %v1981
        %v2013 = vpop.xlane.xlu0 %2012
        %2014 = vadd.xlane.f32.xlu0 %v1983
        %v2015 = vpop.xlane.xlu0 %2014
        %2016 = vadd.xlane.f32.xlu0 %v1985
        %v2017 = vpop.xlane.xlu0 %2016
        %2018 = vadd.xlane.f32.xlu0 %v1987
        %v2019 = vpop.xlane.xlu0 %2018
        %2020 = vadd.xlane.f32.xlu0 %v1989
        %v2021 = vpop.xlane.xlu0 %2020
        %2022 = vadd.xlane.f32.xlu0 %v1991
        %v2023 = vpop.xlane.xlu0 %2022
        %2024 = vadd.xlane.f32.xlu0 %v1993
        %v2025 = vpop.xlane.xlu0 %2024
        %2026 = vadd.xlane.f32.xlu0 %v1995
        %v2027 = vpop.xlane.xlu0 %2026
        %2028 = vadd.xlane.f32.xlu0 %v1997
        %v2029 = vpop.xlane.xlu0 %2028
        %2030 = vadd.xlane.f32.xlu0 %v1999
        %v2031 = vpop.xlane.xlu0 %2030
        %2032 = vadd.xlane.f32.xlu0 %v2001
        %v2033 = vpop.xlane.xlu0 %2032
        %v2034 = vrcp.pop %v2003
        %v2035 = vmul.f32 %v1971, %v2034
        %v2036 = vrcp.pop %v2005
        %v2037 = vmul.f32 %v1973, %v2036
        %v2038 = vrcp.pop %v2007
        %v2039 = vmul.f32 %v1975, %v2038
        %v2040 = vrcp.pop %v2009
        %v2041 = vmul.f32 %v1977, %v2040
        %v2042 = vrcp.pop %v2011
        %v2043 = vmul.f32 %v1979, %v2042
        %v2044 = vrcp.pop %v2013
        %v2045 = vmul.f32 %v1981, %v2044
        %v2046 = vrcp.pop %v2015
        %v2047 = vmul.f32 %v1983, %v2046
        %v2048 = vrcp.pop %v2017
        %v2049 = vmul.f32 %v1985, %v2048
        %v2050 = vrcp.pop %v2019
        %v2051 = vmul.f32 %v1987, %v2050
        %v2052 = vrcp.pop %v2021
        %v2053 = vmul.f32 %v1989, %v2052
        %v2054 = vrcp.pop %v2023
        %v2055 = vmul.f32 %v1991, %v2054
        %v2056 = vrcp.pop %v2025
        %v2057 = vmul.f32 %v1993, %v2056
        %v2058 = vrcp.pop %v2027
        %v2059 = vmul.f32 %v1995, %v2058
        %v2060 = vrcp.pop %v2029
        %v2061 = vmul.f32 %v1997, %v2060
        %v2062 = vrcp.pop %v2031
        %v2063 = vmul.f32 %v1999, %v2062
        %v2064 = vrcp.pop %v2033
        %v2065 = vmul.f32 %v2001, %v2064
        %v2066 = vpack.c.bf16 %v2037, %v2035
        %v2067 = vpack.c.bf16 %v2041, %v2039
        %v2068 = vpack.c.bf16 %v2045, %v2043
        %v2069 = vpack.c.bf16 %v2049, %v2047
        %v2070 = vpack.c.bf16 %v2053, %v2051
        %v2071 = vpack.c.bf16 %v2057, %v2055
        %v2072 = vpack.c.bf16 %v2061, %v2059
        %v2073 = vpack.c.bf16 %v2065, %v2063
        %v2074 = vpack.c.bf16 %v1682, %v1681
        %v2075 = vpack.c.bf16 %v1684, %v1683
        %v2076 = vpack.c.bf16 %v1686, %v1685
        %v2077 = vpack.c.bf16 %v1688, %v1687
        %v2078 = vpack.c.bf16 %v1690, %v1689
        %v2079 = vpack.c.bf16 %v1692, %v1691
        %v2080 = vpack.c.bf16 %v1694, %v1693
        %v2081 = vpack.c.bf16 %v1696, %v1695
        %2090 = vrot.lane.b32.xlu0 %v2074, 112
        %v2091 = vpop.permute.xlu0 %2090
        %2092 = vrot.lane.b32.xlu0 %v2075, 112
        %v2093 = vpop.permute.xlu0 %2092
        %2094 = vrot.lane.b32.xlu0 %v2076, 112
        %v2095 = vpop.permute.xlu0 %2094
        %2096 = vrot.lane.b32.xlu0 %v2077, 112
        %v2097 = vpop.permute.xlu0 %2096
        %2098 = vrot.lane.b32.xlu0 %v2078, 112
        %v2099 = vpop.permute.xlu0 %2098
        %2100 = vrot.lane.b32.xlu0 %v2079, 112
        %v2101 = vpop.permute.xlu0 %2100
        %2102 = vrot.lane.b32.xlu0 %v2080, 112
        %v2103 = vpop.permute.xlu0 %2102
        %2104 = vrot.lane.b32.xlu0 %v2081, 112
        %v2105 = vpop.permute.xlu0 %2104
        %2114 = vmatprep.subr.bf16.mxu0 0
        %2115 = vmatpush1.bf16.msra.mxu0 %v2091
        %2116 = vmatprep.subr.bf16.mxu0 0
        %2117 = vmatpush1.bf16.msra.mxu0 %v2093
        %2118 = vmatprep.subr.bf16.mxu0 0
        %2119 = vmatpush1.bf16.msra.mxu0 %v2095
        %2120 = vmatprep.subr.bf16.mxu0 0
        %2121 = vmatpush1.bf16.msra.mxu0 %v2097
        %2122 = vmatprep.subr.bf16.mxu0 0
        %2123 = vmatpush1.bf16.msra.mxu0 %v2099
        %2124 = vmatprep.subr.bf16.mxu0 0
        %2125 = vmatpush1.bf16.msra.mxu0 %v2101
        %2126 = vmatprep.subr.bf16.mxu0 0
        %2127 = vmatpush1.bf16.msra.mxu0 %v2103
        %2128 = vmatprep.subr.bf16.mxu0 0
        %2129 = vmatpush1.bf16.msra.mxu0 %v2105
        %2130 = vmatprep.subr.bf16.mxu0 0
        %2131 = vmatpush1.bf16.msra.mxu0 0
        %2132 = vmatprep.subr.bf16.mxu0 0
        %2133 = vmatpush1.bf16.msra.mxu0 0
        %2134 = vmatprep.subr.bf16.mxu0 0
        %2135 = vmatpush1.bf16.msra.mxu0 0
        %2136 = vmatprep.subr.bf16.mxu0 0
        %2137 = vmatpush1.bf16.msra.mxu0 0
        %2138 = vmatprep.subr.bf16.mxu0 0
        %2139 = vmatpush1.bf16.msra.mxu0 0
        %2140 = vmatprep.subr.bf16.mxu0 0
        %2141 = vmatpush1.bf16.msra.mxu0 0
        %2142 = vmatprep.subr.bf16.mxu0 0
        %2143 = vmatpush1.bf16.msra.mxu0 0
        %2144 = vmatprep.subr.bf16.mxu0 0
        %2145 = vmatpush1.bf16.msra.mxu0 0
        %2146 = vmatprep.mubr.bf16.mxu0 0
        %2147 = vmatmul.mubr.bf16.gmra.mrb[0].mxu0 %v2066
        %v2148 = vpop.f32.mrb[0].mxu0
        %v2149 = vadd.f32 0.0, %v2148
        %v2150 = vpop.f32.mrb[0].mxu0
        %v2151 = vpop.f32.mrb[0].mxu0
        %v2152 = vadd.f32 0.0, %v2151
        %v2153 = vpop.f32.mrb[0].mxu0
        %2154 = vmatprep.mubr.bf16.mxu0 0
        %2155 = vmatmul.mubr.bf16.gmra.mrb[0].mxu0 %v2067
        %v2156 = vpop.f32.mrb[0].mxu0
        %v2157 = vadd.f32 0.0, %v2156
        %v2158 = vpop.f32.mrb[0].mxu0
        %v2159 = vpop.f32.mrb[0].mxu0
        %v2160 = vadd.f32 0.0, %v2159
        %v2161 = vpop.f32.mrb[0].mxu0
        %2162 = vmatprep.mubr.bf16.mxu0 0
        %2163 = vmatmul.mubr.bf16.gmra.mrb[0].mxu0 %v2068
        %v2164 = vpop.f32.mrb[0].mxu0
        %v2165 = vadd.f32 0.0, %v2164
        %v2166 = vpop.f32.mrb[0].mxu0
        %v2167 = vpop.f32.mrb[0].mxu0
        %v2168 = vadd.f32 0.0, %v2167
        %v2169 = vpop.f32.mrb[0].mxu0
        %2170 = vmatprep.mubr.bf16.mxu0 0
        %2171 = vmatmul.mubr.bf16.gmra.mrb[0].mxu0 %v2069
        %v2172 = vpop.f32.mrb[0].mxu0
        %v2173 = vadd.f32 0.0, %v2172
        %v2174 = vpop.f32.mrb[0].mxu0
        %v2175 = vpop.f32.mrb[0].mxu0
        %v2176 = vadd.f32 0.0, %v2175
        %v2177 = vpop.f32.mrb[0].mxu0
        %2178 = vmatprep.mubr.bf16.mxu0 0
        %2179 = vmatmul.mubr.bf16.gmra.mrb[0].mxu0 %v2070
        %v2180 = vpop.f32.mrb[0].mxu0
        %v2181 = vadd.f32 0.0, %v2180
        %v2182 = vpop.f32.mrb[0].mxu0
        %v2183 = vpop.f32.mrb[0].mxu0
        %v2184 = vadd.f32 0.0, %v2183
        %v2185 = vpop.f32.mrb[0].mxu0
        %2186 = vmatprep.mubr.bf16.mxu0 0
        %2187 = vmatmul.mubr.bf16.gmra.mrb[0].mxu0 %v2071
        %v2188 = vpop.f32.mrb[0].mxu0
        %v2189 = vadd.f32 0.0, %v2188
        %v2190 = vpop.f32.mrb[0].mxu0
        %v2191 = vpop.f32.mrb[0].mxu0
        %v2192 = vadd.f32 0.0, %v2191
        %v2193 = vpop.f32.mrb[0].mxu0
        %2194 = vmatprep.mubr.bf16.mxu0 0
        %2195 = vmatmul.mubr.bf16.gmra.mrb[0].mxu0 %v2072
        %v2196 = vpop.f32.mrb[0].mxu0
        %v2197 = vadd.f32 0.0, %v2196
        %v2198 = vpop.f32.mrb[0].mxu0
        %v2199 = vpop.f32.mrb[0].mxu0
        %v2200 = vadd.f32 0.0, %v2199
        %v2201 = vpop.f32.mrb[0].mxu0
        %2202 = vmatprep.mubr.bf16.mxu0 0
        %2203 = vmatmul.mubr.bf16.gmra.mrb[0].mxu0 %v2073
        %v2204 = vpop.f32.mrb[0].mxu0
        %v2205 = vadd.f32 0.0, %v2204
        %v2206 = vpop.f32.mrb[0].mxu0
        %v2207 = vpop.f32.mrb[0].mxu0
        %v2208 = vadd.f32 0.0, %v2207
        %v2209 = vpop.f32.mrb[0].mxu0
        %2210 = vdwg.mxu0
        %v2211 = vld [vmem:[#allocation3] sm:$0xff]
        %v2212 = vld [vmem:[#allocation3 + $0x8] sm:$0xff]
        %v2213 = vld [vmem:[#allocation3 + $0x10] sm:$0xff]
        %v2214 = vld [vmem:[#allocation3 + $0x18] sm:$0xff]
        %v2215 = vld [vmem:[#allocation3 + $0x20] sm:$0xff]
        %v2216 = vld [vmem:[#allocation3 + $0x28] sm:$0xff]
        %v2217 = vld [vmem:[#allocation3 + $0x30] sm:$0xff]
        %v2218 = vld [vmem:[#allocation3 + $0x38] sm:$0xff]
        %v2219 = vld [vmem:[#allocation3 + $0x40] sm:$0xff]
        %v2220 = vld [vmem:[#allocation3 + $0x48] sm:$0xff]
        %v2221 = vld [vmem:[#allocation3 + $0x50] sm:$0xff]
        %v2222 = vld [vmem:[#allocation3 + $0x58] sm:$0xff]
        %v2223 = vld [vmem:[#allocation3 + $0x60] sm:$0xff]
        %v2224 = vld [vmem:[#allocation3 + $0x68] sm:$0xff]
        %v2225 = vld [vmem:[#allocation3 + $0x70] sm:$0xff]
        %v2226 = vld [vmem:[#allocation3 + $0x78] sm:$0xff]
        %v2227 = vpack.c.bf16 %v2152, %v2149
        %v2228 = vpack.c.bf16 %v2160, %v2157
        %v2229 = vpack.c.bf16 %v2168, %v2165
        %v2230 = vpack.c.bf16 %v2176, %v2173
        %v2231 = vpack.c.bf16 %v2184, %v2181
        %v2232 = vpack.c.bf16 %v2192, %v2189
        %v2233 = vpack.c.bf16 %v2200, %v2197
        %v2234 = vpack.c.bf16 %v2208, %v2205
        %v2235 = vld [vmem:[#allocation9 + $0x8] sm:$0xf]
        %v2236 = vld [vmem:[#allocation9 + $0xc] sm:$0xf]
        %v2239 = vunpack.c.l.b16 %v2235
        %v2240 = vunpack.c.l.b16 %v2236
        %v2241 = vpack.c.b16 %v2240, %v2239
        %v2244 = vsel %vm1045, %v2227, 0
        %v2247 = vsel %vm1045, %v2228, 0
        %v2250 = vsel %vm1045, %v2229, 0
        %v2253 = vsel %vm1045, %v2230, 0
        %v2256 = vsel %vm1045, %v2231, 0
        %v2259 = vsel %vm1045, %v2232, 0
        %v2262 = vsel %vm1045, %v2233, 0
        %v2265 = vsel %vm1045, %v2234, 0
        %2267 = vmatprep.subr.bf16.mxu0 0
        %2268 = vmatpush1.bf16.msra.mxu0 %v2241
        %2269 = vmatprep.subr.bf16.mxu0 0
        %2270 = vmatpush1.bf16.msra.mxu0 0
        %2271 = vmatprep.subr.bf16.mxu0 0
        %2272 = vmatpush1.bf16.msra.mxu0 0
        %2273 = vmatprep.subr.bf16.mxu0 0
        %2274 = vmatpush1.bf16.msra.mxu0 0
        %2275 = vmatprep.subr.bf16.mxu0 0
        %2276 = vmatpush1.bf16.msra.mxu0 0
        %2277 = vmatprep.subr.bf16.mxu0 0
        %2278 = vmatpush1.bf16.msra.mxu0 0
        %2279 = vmatprep.subr.bf16.mxu0 0
        %2280 = vmatpush1.bf16.msra.mxu0 0
        %2281 = vmatprep.subr.bf16.mxu0 0
        %2282 = vmatpush1.bf16.msra.mxu0 0
        %2283 = vmatprep.subr.bf16.mxu0 0
        %2284 = vmatpush1.bf16.msra.mxu0 0
        %2285 = vmatprep.subr.bf16.mxu0 0
        %2286 = vmatpush1.bf16.msra.mxu0 0
        %2287 = vmatprep.subr.bf16.mxu0 0
        %2288 = vmatpush1.bf16.msra.mxu0 0
        %2289 = vmatprep.subr.bf16.mxu0 0
        %2290 = vmatpush1.bf16.msra.mxu0 0
        %2291 = vmatprep.subr.bf16.mxu0 0
        %2292 = vmatpush1.bf16.msra.mxu0 0
        %2293 = vmatprep.subr.bf16.mxu0 0
        %2294 = vmatpush1.bf16.msra.mxu0 0
        %2295 = vmatprep.subr.bf16.mxu0 0
        %2296 = vmatpush1.bf16.msra.mxu0 0
        %2297 = vmatprep.subr.bf16.mxu0 0
        %2298 = vmatpush1.bf16.msra.mxu0 0
        %2299 = vmatprep.mubr.bf16.mxu0 0
        %2300 = vmatmul.mubr.bf16.gmra.mrb[0].mxu0 %v2244
        %v2301 = vpop.f32.mrb[0].mxu0
        %v2302 = vadd.f32 0.0, %v2301
        %v2303 = vpop.f32.mrb[0].mxu0
        %v2304 = vpop.f32.mrb[0].mxu0
        %v2305 = vadd.f32 0.0, %v2304
        %v2306 = vpop.f32.mrb[0].mxu0
        %2307 = vmatprep.mubr.bf16.mxu0 0
        %2308 = vmatmul.mubr.bf16.gmra.mrb[0].mxu0 %v2247
        %v2309 = vpop.f32.mrb[0].mxu0
        %v2310 = vadd.f32 0.0, %v2309
        %v2311 = vpop.f32.mrb[0].mxu0
        %v2312 = vpop.f32.mrb[0].mxu0
        %v2313 = vadd.f32 0.0, %v2312
        %v2314 = vpop.f32.mrb[0].mxu0
        %2315 = vmatprep.mubr.bf16.mxu0 0
        %2316 = vmatmul.mubr.bf16.gmra.mrb[0].mxu0 %v2250
        %v2317 = vpop.f32.mrb[0].mxu0
        %v2318 = vadd.f32 0.0, %v2317
        %v2319 = vpop.f32.mrb[0].mxu0
        %v2320 = vpop.f32.mrb[0].mxu0
        %v2321 = vadd.f32 0.0, %v2320
        %v2322 = vpop.f32.mrb[0].mxu0
        %2323 = vmatprep.mubr.bf16.mxu0 0
        %2324 = vmatmul.mubr.bf16.gmra.mrb[0].mxu0 %v2253
        %v2325 = vpop.f32.mrb[0].mxu0
        %v2326 = vadd.f32 0.0, %v2325
        %v2327 = vpop.f32.mrb[0].mxu0
        %v2328 = vpop.f32.mrb[0].mxu0
        %v2329 = vadd.f32 0.0, %v2328
        %v2330 = vpop.f32.mrb[0].mxu0
        %2331 = vmatprep.mubr.bf16.mxu0 0
        %2332 = vmatmul.mubr.bf16.gmra.mrb[0].mxu0 %v2256
        %v2333 = vpop.f32.mrb[0].mxu0
        %v2334 = vadd.f32 0.0, %v2333
        %v2335 = vpop.f32.mrb[0].mxu0
        %v2336 = vpop.f32.mrb[0].mxu0
        %v2337 = vadd.f32 0.0, %v2336
        %v2338 = vpop.f32.mrb[0].mxu0
        %2339 = vmatprep.mubr.bf16.mxu0 0
        %2340 = vmatmul.mubr.bf16.gmra.mrb[0].mxu0 %v2259
        %v2341 = vpop.f32.mrb[0].mxu0
        %v2342 = vadd.f32 0.0, %v2341
        %v2343 = vpop.f32.mrb[0].mxu0
        %v2344 = vpop.f32.mrb[0].mxu0
        %v2345 = vadd.f32 0.0, %v2344
        %v2346 = vpop.f32.mrb[0].mxu0
        %2347 = vmatprep.mubr.bf16.mxu0 0
        %2348 = vmatmul.mubr.bf16.gmra.mrb[0].mxu0 %v2262
        %v2349 = vpop.f32.mrb[0].mxu0
        %v2350 = vadd.f32 0.0, %v2349
        %v2351 = vpop.f32.mrb[0].mxu0
        %v2352 = vpop.f32.mrb[0].mxu0
        %v2353 = vadd.f32 0.0, %v2352
        %v2354 = vpop.f32.mrb[0].mxu0
        %2355 = vmatprep.mubr.bf16.mxu0 0
        %2356 = vmatmul.mubr.bf16.gmra.mrb[0].mxu0 %v2265
        %v2357 = vpop.f32.mrb[0].mxu0
        %v2358 = vadd.f32 0.0, %v2357
        %v2359 = vpop.f32.mrb[0].mxu0
        %v2360 = vpop.f32.mrb[0].mxu0
        %v2361 = vadd.f32 0.0, %v2360
        %v2362 = vpop.f32.mrb[0].mxu0
        %2363 = vdwg.mxu0
        %v2364 = vadd.f32 %v2211, %v2302
        %v2365 = vadd.f32 %v2212, %v2305
        %v2366 = vadd.f32 %v2213, %v2310
        %v2367 = vadd.f32 %v2214, %v2313
        %v2368 = vadd.f32 %v2215, %v2318
        %v2369 = vadd.f32 %v2216, %v2321
        %v2370 = vadd.f32 %v2217, %v2326
        %v2371 = vadd.f32 %v2218, %v2329
        %v2372 = vadd.f32 %v2219, %v2334
        %v2373 = vadd.f32 %v2220, %v2337
        %v2374 = vadd.f32 %v2221, %v2342
        %v2375 = vadd.f32 %v2222, %v2345
        %v2376 = vadd.f32 %v2223, %v2350
        %v2377 = vadd.f32 %v2224, %v2353
        %v2378 = vadd.f32 %v2225, %v2358
        %v2379 = vadd.f32 %v2226, %v2361
        %2380 = vst [vmem:[#allocation3] sm:$0xff] %v2364
        %2381 = vst [vmem:[#allocation3 + $0x8] sm:$0xff] %v2365
        %2382 = vst [vmem:[#allocation3 + $0x10] sm:$0xff] %v2366
        %2383 = vst [vmem:[#allocation3 + $0x18] sm:$0xff] %v2367
        %2384 = vst [vmem:[#allocation3 + $0x20] sm:$0xff] %v2368
        %2385 = vst [vmem:[#allocation3 + $0x28] sm:$0xff] %v2369
        %2386 = vst [vmem:[#allocation3 + $0x30] sm:$0xff] %v2370
        %2387 = vst [vmem:[#allocation3 + $0x38] sm:$0xff] %v2371
        %2388 = vst [vmem:[#allocation3 + $0x40] sm:$0xff] %v2372
        %2389 = vst [vmem:[#allocation3 + $0x48] sm:$0xff] %v2373
        %2390 = vst [vmem:[#allocation3 + $0x50] sm:$0xff] %v2374
        %2391 = vst [vmem:[#allocation3 + $0x58] sm:$0xff] %v2375
        %2392 = vst [vmem:[#allocation3 + $0x60] sm:$0xff] %v2376
        %2393 = vst [vmem:[#allocation3 + $0x68] sm:$0xff] %v2377
        %2394 = vst [vmem:[#allocation3 + $0x70] sm:$0xff] %v2378
        %2395 = vst [vmem:[#allocation3 + $0x78] sm:$0xff] %v2379
        %v2396 = vld [vmem:[#allocation2] sm:$0xff]
        %v2397 = vld [vmem:[#allocation2 + $0x18] sm:$0xff]
        %v2398 = vld [vmem:[#allocation2 + $0x30] sm:$0xff]
        %v2399 = vld [vmem:[#allocation2 + $0x48] sm:$0xff]
        %v2400 = vld [vmem:[#allocation2 + $0x60] sm:$0xff]
        %v2401 = vld [vmem:[#allocation2 + $0x78] sm:$0xff]
        %v2402 = vld [vmem:[#allocation2 + $0x90] sm:$0xff]
        %v2403 = vld [vmem:[#allocation2 + $0xa8] sm:$0xff]
        %v2404 = vld [vmem:[#allocation2 + $0xc0] sm:$0xff]
        %v2405 = vld [vmem:[#allocation2 + $0xd8] sm:$0xff]
        %v2406 = vld [vmem:[#allocation2 + $0xf0] sm:$0xff]
        %v2407 = vld [vmem:[#allocation2 + $0x108] sm:$0xff]
        %v2408 = vld [vmem:[#allocation2 + $0x120] sm:$0xff]
        %v2409 = vld [vmem:[#allocation2 + $0x138] sm:$0xff]
        %v2410 = vld [vmem:[#allocation2 + $0x150] sm:$0xff]
        %v2411 = vld [vmem:[#allocation2 + $0x168] sm:$0xff]
        %v2412 = vld [vmem:[#allocation2 + $0x8] sm:$0xff]
        %v2413 = vld [vmem:[#allocation2 + $0x20] sm:$0xff]
        %v2414 = vld [vmem:[#allocation2 + $0x38] sm:$0xff]
        %v2415 = vld [vmem:[#allocation2 + $0x50] sm:$0xff]
        %v2416 = vld [vmem:[#allocation2 + $0x68] sm:$0xff]
        %v2417 = vld [vmem:[#allocation2 + $0x80] sm:$0xff]
        %v2418 = vld [vmem:[#allocation2 + $0x98] sm:$0xff]
        %v2419 = vld [vmem:[#allocation2 + $0xb0] sm:$0xff]
        %v2420 = vld [vmem:[#allocation2 + $0xc8] sm:$0xff]
        %v2421 = vld [vmem:[#allocation2 + $0xe0] sm:$0xff]
        %v2422 = vld [vmem:[#allocation2 + $0xf8] sm:$0xff]
        %v2423 = vld [vmem:[#allocation2 + $0x110] sm:$0xff]
        %v2424 = vld [vmem:[#allocation2 + $0x128] sm:$0xff]
        %v2425 = vld [vmem:[#allocation2 + $0x140] sm:$0xff]
        %v2426 = vld [vmem:[#allocation2 + $0x158] sm:$0xff]
        %v2427 = vld [vmem:[#allocation2 + $0x170] sm:$0xff]
        %v2428 = vld [vmem:[#allocation2 + $0x10] sm:$0xff]
        %v2429 = vld [vmem:[#allocation2 + $0x28] sm:$0xff]
        %v2430 = vld [vmem:[#allocation2 + $0x40] sm:$0xff]
        %v2431 = vld [vmem:[#allocation2 + $0x58] sm:$0xff]
        %v2432 = vld [vmem:[#allocation2 + $0x70] sm:$0xff]
        %v2433 = vld [vmem:[#allocation2 + $0x88] sm:$0xff]
        %v2434 = vld [vmem:[#allocation2 + $0xa0] sm:$0xff]
        %v2435 = vld [vmem:[#allocation2 + $0xb8] sm:$0xff]
        %v2436 = vld [vmem:[#allocation2 + $0xd0] sm:$0xff]
        %v2437 = vld [vmem:[#allocation2 + $0xe8] sm:$0xff]
        %v2438 = vld [vmem:[#allocation2 + $0x100] sm:$0xff]
        %v2439 = vld [vmem:[#allocation2 + $0x118] sm:$0xff]
        %v2440 = vld [vmem:[#allocation2 + $0x130] sm:$0xff]
        %v2441 = vld [vmem:[#allocation2 + $0x148] sm:$0xff]
        %v2442 = vld [vmem:[#allocation2 + $0x160] sm:$0xff]
        %v2443 = vld [vmem:[#allocation2 + $0x178] sm:$0xff]
        %v2444 = vpack.c.bf16 %v2397, %v2396
        %v2445 = vpack.c.bf16 %v2399, %v2398
        %v2446 = vpack.c.bf16 %v2401, %v2400
        %v2447 = vpack.c.bf16 %v2403, %v2402
        %v2448 = vpack.c.bf16 %v2405, %v2404
        %v2449 = vpack.c.bf16 %v2407, %v2406
        %v2450 = vpack.c.bf16 %v2409, %v2408
        %v2451 = vpack.c.bf16 %v2411, %v2410
        %v2452 = vpack.c.bf16 %v2413, %v2412
        %v2453 = vpack.c.bf16 %v2415, %v2414
        %v2454 = vpack.c.bf16 %v2417, %v2416
        %v2455 = vpack.c.bf16 %v2419, %v2418
        %v2456 = vpack.c.bf16 %v2421, %v2420
        %v2457 = vpack.c.bf16 %v2423, %v2422
        %v2458 = vpack.c.bf16 %v2425, %v2424
        %v2459 = vpack.c.bf16 %v2427, %v2426
        %2468 = vrot.lane.b32.xlu0 %v2444, 96
        %v2469 = vpop.permute.xlu0 %2468
        %2470 = vrot.lane.b32.xlu0 %v2445, 96
        %v2471 = vpop.permute.xlu0 %2470
        %2472 = vrot.lane.b32.xlu0 %v2446, 96
        %v2473 = vpop.permute.xlu0 %2472
        %2474 = vrot.lane.b32.xlu0 %v2447, 96
        %v2475 = vpop.permute.xlu0 %2474
        %2476 = vrot.lane.b32.xlu0 %v2448, 96
        %v2477 = vpop.permute.xlu0 %2476
        %2478 = vrot.lane.b32.xlu0 %v2449, 96
        %v2479 = vpop.permute.xlu0 %2478
        %2480 = vrot.lane.b32.xlu0 %v2450, 96
        %v2481 = vpop.permute.xlu0 %2480
        %2482 = vrot.lane.b32.xlu0 %v2451, 96
        %v2483 = vpop.permute.xlu0 %2482
        %2492 = vrot.lane.b32.xlu0 %v2452, 96
        %v2493 = vpop.permute.xlu0 %2492
        %2494 = vrot.lane.b32.xlu0 %v2453, 96
        %v2495 = vpop.permute.xlu0 %2494
        %2496 = vrot.lane.b32.xlu0 %v2454, 96
        %v2497 = vpop.permute.xlu0 %2496
        %2498 = vrot.lane.b32.xlu0 %v2455, 96
        %v2499 = vpop.permute.xlu0 %2498
        %2500 = vrot.lane.b32.xlu0 %v2456, 96
        %v2501 = vpop.permute.xlu0 %2500
        %2502 = vrot.lane.b32.xlu0 %v2457, 96
        %v2503 = vpop.permute.xlu0 %2502
        %2504 = vrot.lane.b32.xlu0 %v2458, 96
        %v2505 = vpop.permute.xlu0 %2504
        %2506 = vrot.lane.b32.xlu0 %v2459, 96
        %v2507 = vpop.permute.xlu0 %2506
        %v2509 = vsel %vm1045, %v2469, 0
        %v2512 = vsel %vm1045, %v2471, 0
        %v2515 = vsel %vm1045, %v2473, 0
        %v2518 = vsel %vm1045, %v2475, 0
        %v2521 = vsel %vm1045, %v2477, 0
        %v2524 = vsel %vm1045, %v2479, 0
        %v2527 = vsel %vm1045, %v2481, 0
        %v2530 = vsel %vm1045, %v2483, 0
        %v2533 = vsel %vm1045, %v2493, 0
        %v2536 = vsel %vm1045, %v2495, 0
        %v2539 = vsel %vm1045, %v2497, 0
        %v2542 = vsel %vm1045, %v2499, 0
        %v2545 = vsel %vm1045, %v2501, 0
        %v2548 = vsel %vm1045, %v2503, 0
        %v2551 = vsel %vm1045, %v2505, 0
        %v2554 = vsel %vm1045, %v2507, 0
        %2556 = vmatprep.subr.bf16.mxu0 0
        %2557 = vmatpush1.bf16.xpose.msra.mxu0 %v2533
        %2558 = vmatprep.subr.bf16.mxu0 0
        %2559 = vmatpush1.bf16.xpose.msra.mxu0 %v2536
        %2560 = vmatprep.subr.bf16.mxu0 0
        %2561 = vmatpush1.bf16.xpose.msra.mxu0 %v2539
        %2562 = vmatprep.subr.bf16.mxu0 0
        %2563 = vmatpush1.bf16.xpose.msra.mxu0 %v2542
        %2564 = vmatprep.subr.bf16.mxu0 0
        %2565 = vmatpush1.bf16.xpose.msra.mxu0 %v2545
        %2566 = vmatprep.subr.bf16.mxu0 0
        %2567 = vmatpush1.bf16.xpose.msra.mxu0 %v2548
        %2568 = vmatprep.subr.bf16.mxu0 0
        %2569 = vmatpush1.bf16.xpose.msra.mxu0 %v2551
        %2570 = vmatprep.subr.bf16.mxu0 0
        %2571 = vmatpush1.bf16.xpose.msra.mxu0 %v2554
        %2572 = vmatprep.subr.bf16.mxu0 0
        %2573 = vmatpush1.bf16.xpose.msra.mxu0 0
        %2574 = vmatprep.subr.bf16.mxu0 0
        %2575 = vmatpush1.bf16.xpose.msra.mxu0 0
        %2576 = vmatprep.subr.bf16.mxu0 0
        %2577 = vmatpush1.bf16.xpose.msra.mxu0 0
        %2578 = vmatprep.subr.bf16.mxu0 0
        %2579 = vmatpush1.bf16.xpose.msra.mxu0 0
        %2580 = vmatprep.subr.bf16.mxu0 0
        %2581 = vmatpush1.bf16.xpose.msra.mxu0 0
        %2582 = vmatprep.subr.bf16.mxu0 0
        %2583 = vmatpush1.bf16.xpose.msra.mxu0 0
        %2584 = vmatprep.subr.bf16.mxu0 0
        %2585 = vmatpush1.bf16.xpose.msra.mxu0 0
        %2586 = vmatprep.subr.bf16.mxu0 0
        %2587 = vmatpush1.bf16.xpose.msra.mxu0 0
        %2588 = vmatprep.mubr.bf16.mxu0 0
        %2589 = vmatmul.mubr.bf16.gmra.mrb[0].mxu0 %v2509
        %v2590 = vpop.f32.mrb[0].mxu0
        %v2591 = vadd.f32 0.0, %v2590
        %v2592 = vpop.f32.mrb[0].mxu0
        %v2593 = vpop.f32.mrb[0].mxu0
        %v2594 = vadd.f32 0.0, %v2593
        %v2595 = vpop.f32.mrb[0].mxu0
        %2596 = vmatprep.mubr.bf16.mxu0 0
        %2597 = vmatmul.mubr.bf16.gmra.mrb[0].mxu0 %v2512
        %v2598 = vpop.f32.mrb[0].mxu0
        %v2599 = vadd.f32 0.0, %v2598
        %v2600 = vpop.f32.mrb[0].mxu0
        %v2601 = vpop.f32.mrb[0].mxu0
        %v2602 = vadd.f32 0.0, %v2601
        %v2603 = vpop.f32.mrb[0].mxu0
        %2604 = vmatprep.mubr.bf16.mxu0 0
        %2605 = vmatmul.mubr.bf16.gmra.mrb[0].mxu0 %v2515
        %v2606 = vpop.f32.mrb[0].mxu0
        %v2607 = vadd.f32 0.0, %v2606
        %v2608 = vpop.f32.mrb[0].mxu0
        %v2609 = vpop.f32.mrb[0].mxu0
        %v2610 = vadd.f32 0.0, %v2609
        %v2611 = vpop.f32.mrb[0].mxu0
        %2612 = vmatprep.mubr.bf16.mxu0 0
        %2613 = vmatmul.mubr.bf16.gmra.mrb[0].mxu0 %v2518
        %v2614 = vpop.f32.mrb[0].mxu0
        %v2615 = vadd.f32 0.0, %v2614
        %v2616 = vpop.f32.mrb[0].mxu0
        %v2617 = vpop.f32.mrb[0].mxu0
        %v2618 = vadd.f32 0.0, %v2617
        %v2619 = vpop.f32.mrb[0].mxu0
        %2620 = vmatprep.mubr.bf16.mxu0 0
        %2621 = vmatmul.mubr.bf16.gmra.mrb[0].mxu0 %v2521
        %v2622 = vpop.f32.mrb[0].mxu0
        %v2623 = vadd.f32 0.0, %v2622
        %v2624 = vpop.f32.mrb[0].mxu0
        %v2625 = vpop.f32.mrb[0].mxu0
        %v2626 = vadd.f32 0.0, %v2625
        %v2627 = vpop.f32.mrb[0].mxu0
        %2628 = vmatprep.mubr.bf16.mxu0 0
        %2629 = vmatmul.mubr.bf16.gmra.mrb[0].mxu0 %v2524
        %v2630 = vpop.f32.mrb[0].mxu0
        %v2631 = vadd.f32 0.0, %v2630
        %v2632 = vpop.f32.mrb[0].mxu0
        %v2633 = vpop.f32.mrb[0].mxu0
        %v2634 = vadd.f32 0.0, %v2633
        %v2635 = vpop.f32.mrb[0].mxu0
        %2636 = vmatprep.mubr.bf16.mxu0 0
        %2637 = vmatmul.mubr.bf16.gmra.mrb[0].mxu0 %v2527
        %v2638 = vpop.f32.mrb[0].mxu0
        %v2639 = vadd.f32 0.0, %v2638
        %v2640 = vpop.f32.mrb[0].mxu0
        %v2641 = vpop.f32.mrb[0].mxu0
        %v2642 = vadd.f32 0.0, %v2641
        %v2643 = vpop.f32.mrb[0].mxu0
        %2644 = vmatprep.mubr.bf16.mxu0 0
        %2645 = vmatmul.mubr.bf16.gmra.mrb[0].mxu0 %v2530
        %v2646 = vpop.f32.mrb[0].mxu0
        %v2647 = vadd.f32 0.0, %v2646
        %v2648 = vpop.f32.mrb[0].mxu0
        %v2649 = vpop.f32.mrb[0].mxu0
        %v2650 = vadd.f32 0.0, %v2649
        %v2651 = vpop.f32.mrb[0].mxu0
        %2652 = vdwg.mxu0
        %v2653 = vmul.f32 %v2591, 0.25
        %v2654 = vmul.f32 %v2594, 0.25
        %v2655 = vmul.f32 %v2599, 0.25
        %v2656 = vmul.f32 %v2602, 0.25
        %v2657 = vmul.f32 %v2607, 0.25
        %v2658 = vmul.f32 %v2610, 0.25
        %v2659 = vmul.f32 %v2615, 0.25
        %v2660 = vmul.f32 %v2618, 0.25
        %v2661 = vmul.f32 %v2623, 0.25
        %v2662 = vmul.f32 %v2626, 0.25
        %v2663 = vmul.f32 %v2631, 0.25
        %v2664 = vmul.f32 %v2634, 0.25
        %v2665 = vmul.f32 %v2639, 0.25
        %v2666 = vmul.f32 %v2642, 0.25
        %v2667 = vmul.f32 %v2647, 0.25
        %v2668 = vmul.f32 %v2650, 0.25
        %2669 = vmax.xlane.f32.xlu0 %v2653
        %v2670 = vpop.xlane.xlu0 %2669
        %2671 = vmax.xlane.f32.xlu0 %v2654
        %v2672 = vpop.xlane.xlu0 %2671
        %2673 = vmax.xlane.f32.xlu0 %v2655
        %v2674 = vpop.xlane.xlu0 %2673
        %2675 = vmax.xlane.f32.xlu0 %v2656
        %v2676 = vpop.xlane.xlu0 %2675
        %2677 = vmax.xlane.f32.xlu0 %v2657
        %v2678 = vpop.xlane.xlu0 %2677
        %2679 = vmax.xlane.f32.xlu0 %v2658
        %v2680 = vpop.xlane.xlu0 %2679
        %2681 = vmax.xlane.f32.xlu0 %v2659
        %v2682 = vpop.xlane.xlu0 %2681
        %2683 = vmax.xlane.f32.xlu0 %v2660
        %v2684 = vpop.xlane.xlu0 %2683
        %2685 = vmax.xlane.f32.xlu0 %v2661
        %v2686 = vpop.xlane.xlu0 %2685
        %2687 = vmax.xlane.f32.xlu0 %v2662
        %v2688 = vpop.xlane.xlu0 %2687
        %2689 = vmax.xlane.f32.xlu0 %v2663
        %v2690 = vpop.xlane.xlu0 %2689
        %2691 = vmax.xlane.f32.xlu0 %v2664
        %v2692 = vpop.xlane.xlu0 %2691
        %2693 = vmax.xlane.f32.xlu0 %v2665
        %v2694 = vpop.xlane.xlu0 %2693
        %2695 = vmax.xlane.f32.xlu0 %v2666
        %v2696 = vpop.xlane.xlu0 %2695
        %2697 = vmax.xlane.f32.xlu0 %v2667
        %v2698 = vpop.xlane.xlu0 %2697
        %2699 = vmax.xlane.f32.xlu0 %v2668
        %v2700 = vpop.xlane.xlu0 %2699
        %v2701 = vsub.f32 %v2653, %v2670
        %v2702 = vsub.f32 %v2654, %v2672
        %v2703 = vsub.f32 %v2655, %v2674
        %v2704 = vsub.f32 %v2656, %v2676
        %v2705 = vsub.f32 %v2657, %v2678
        %v2706 = vsub.f32 %v2658, %v2680
        %v2707 = vsub.f32 %v2659, %v2682
        %v2708 = vsub.f32 %v2660, %v2684
        %v2709 = vsub.f32 %v2661, %v2686
        %v2710 = vsub.f32 %v2662, %v2688
        %v2711 = vsub.f32 %v2663, %v2690
        %v2712 = vsub.f32 %v2664, %v2692
        %v2713 = vsub.f32 %v2665, %v2694
        %v2714 = vsub.f32 %v2666, %v2696
        %v2715 = vsub.f32 %v2667, %v2698
        %v2716 = vsub.f32 %v2668, %v2700
        %v2717 = vmul.f32 %v2701, 1.442695
        %v2718 = vpow.pop %v2717
        %v2719 = vmul.f32 %v2702, 1.442695
        %v2720 = vpow.pop %v2719
        %v2721 = vmul.f32 %v2703, 1.442695
        %v2722 = vpow.pop %v2721
        %v2723 = vmul.f32 %v2704, 1.442695
        %v2724 = vpow.pop %v2723
        %v2725 = vmul.f32 %v2705, 1.442695
        %v2726 = vpow.pop %v2725
        %v2727 = vmul.f32 %v2706, 1.442695
        %v2728 = vpow.pop %v2727
        %v2729 = vmul.f32 %v2707, 1.442695
        %v2730 = vpow.pop %v2729
        %v2731 = vmul.f32 %v2708, 1.442695
        %v2732 = vpow.pop %v2731
        %v2733 = vmul.f32 %v2709, 1.442695
        %v2734 = vpow.pop %v2733
        %v2735 = vmul.f32 %v2710, 1.442695
        %v2736 = vpow.pop %v2735
        %v2737 = vmul.f32 %v2711, 1.442695
        %v2738 = vpow.pop %v2737
        %v2739 = vmul.f32 %v2712, 1.442695
        %v2740 = vpow.pop %v2739
        %v2741 = vmul.f32 %v2713, 1.442695
        %v2742 = vpow.pop %v2741
        %v2743 = vmul.f32 %v2714, 1.442695
        %v2744 = vpow.pop %v2743
        %v2745 = vmul.f32 %v2715, 1.442695
        %v2746 = vpow.pop %v2745
        %v2747 = vmul.f32 %v2716, 1.442695
        %v2748 = vpow.pop %v2747
        %2749 = vadd.xlane.f32.xlu0 %v2718
        %v2750 = vpop.xlane.xlu0 %2749
        %2751 = vadd.xlane.f32.xlu0 %v2720
        %v2752 = vpop.xlane.xlu0 %2751
        %2753 = vadd.xlane.f32.xlu0 %v2722
        %v2754 = vpop.xlane.xlu0 %2753
        %2755 = vadd.xlane.f32.xlu0 %v2724
        %v2756 = vpop.xlane.xlu0 %2755
        %2757 = vadd.xlane.f32.xlu0 %v2726
        %v2758 = vpop.xlane.xlu0 %2757
        %2759 = vadd.xlane.f32.xlu0 %v2728
        %v2760 = vpop.xlane.xlu0 %2759
        %2761 = vadd.xlane.f32.xlu0 %v2730
        %v2762 = vpop.xlane.xlu0 %2761
        %2763 = vadd.xlane.f32.xlu0 %v2732
        %v2764 = vpop.xlane.xlu0 %2763
        %2765 = vadd.xlane.f32.xlu0 %v2734
        %v2766 = vpop.xlane.xlu0 %2765
        %2767 = vadd.xlane.f32.xlu0 %v2736
        %v2768 = vpop.xlane.xlu0 %2767
        %2769 = vadd.xlane.f32.xlu0 %v2738
        %v2770 = vpop.xlane.xlu0 %2769
        %2771 = vadd.xlane.f32.xlu0 %v2740
        %v2772 = vpop.xlane.xlu0 %2771
        %2773 = vadd.xlane.f32.xlu0 %v2742
        %v2774 = vpop.xlane.xlu0 %2773
        %2775 = vadd.xlane.f32.xlu0 %v2744
        %v2776 = vpop.xlane.xlu0 %2775
        %2777 = vadd.xlane.f32.xlu0 %v2746
        %v2778 = vpop.xlane.xlu0 %2777
        %2779 = vadd.xlane.f32.xlu0 %v2748
        %v2780 = vpop.xlane.xlu0 %2779
        %v2781 = vrcp.pop %v2750
        %v2782 = vmul.f32 %v2718, %v2781
        %v2783 = vrcp.pop %v2752
        %v2784 = vmul.f32 %v2720, %v2783
        %v2785 = vrcp.pop %v2754
        %v2786 = vmul.f32 %v2722, %v2785
        %v2787 = vrcp.pop %v2756
        %v2788 = vmul.f32 %v2724, %v2787
        %v2789 = vrcp.pop %v2758
        %v2790 = vmul.f32 %v2726, %v2789
        %v2791 = vrcp.pop %v2760
        %v2792 = vmul.f32 %v2728, %v2791
        %v2793 = vrcp.pop %v2762
        %v2794 = vmul.f32 %v2730, %v2793
        %v2795 = vrcp.pop %v2764
        %v2796 = vmul.f32 %v2732, %v2795
        %v2797 = vrcp.pop %v2766
        %v2798 = vmul.f32 %v2734, %v2797
        %v2799 = vrcp.pop %v2768
        %v2800 = vmul.f32 %v2736, %v2799
        %v2801 = vrcp.pop %v2770
        %v2802 = vmul.f32 %v2738, %v2801
        %v2803 = vrcp.pop %v2772
        %v2804 = vmul.f32 %v2740, %v2803
        %v2805 = vrcp.pop %v2774
        %v2806 = vmul.f32 %v2742, %v2805
        %v2807 = vrcp.pop %v2776
        %v2808 = vmul.f32 %v2744, %v2807
        %v2809 = vrcp.pop %v2778
        %v2810 = vmul.f32 %v2746, %v2809
        %v2811 = vrcp.pop %v2780
        %v2812 = vmul.f32 %v2748, %v2811
        %v2813 = vpack.c.bf16 %v2784, %v2782
        %v2814 = vpack.c.bf16 %v2788, %v2786
        %v2815 = vpack.c.bf16 %v2792, %v2790
        %v2816 = vpack.c.bf16 %v2796, %v2794
        %v2817 = vpack.c.bf16 %v2800, %v2798
        %v2818 = vpack.c.bf16 %v2804, %v2802
        %v2819 = vpack.c.bf16 %v2808, %v2806
        %v2820 = vpack.c.bf16 %v2812, %v2810
        %v2821 = vpack.c.bf16 %v2429, %v2428
        %v2822 = vpack.c.bf16 %v2431, %v2430
        %v2823 = vpack.c.bf16 %v2433, %v2432
        %v2824 = vpack.c.bf16 %v2435, %v2434
        %v2825 = vpack.c.bf16 %v2437, %v2436
        %v2826 = vpack.c.bf16 %v2439, %v2438
        %v2827 = vpack.c.bf16 %v2441, %v2440
        %v2828 = vpack.c.bf16 %v2443, %v2442
        %2837 = vrot.lane.b32.xlu0 %v2821, 96
        %v2838 = vpop.permute.xlu0 %2837
        %2839 = vrot.lane.b32.xlu0 %v2822, 96
        %v2840 = vpop.permute.xlu0 %2839
        %2841 = vrot.lane.b32.xlu0 %v2823, 96
        %v2842 = vpop.permute.xlu0 %2841
        %2843 = vrot.lane.b32.xlu0 %v2824, 96
        %v2844 = vpop.permute.xlu0 %2843
        %2845 = vrot.lane.b32.xlu0 %v2825, 96
        %v2846 = vpop.permute.xlu0 %2845
        %2847 = vrot.lane.b32.xlu0 %v2826, 96
        %v2848 = vpop.permute.xlu0 %2847
        %2849 = vrot.lane.b32.xlu0 %v2827, 96
        %v2850 = vpop.permute.xlu0 %2849
        %2851 = vrot.lane.b32.xlu0 %v2828, 96
        %v2852 = vpop.permute.xlu0 %2851
        %2861 = vmatprep.subr.bf16.mxu0 0
        %2862 = vmatpush1.bf16.msra.mxu0 %v2838
        %2863 = vmatprep.subr.bf16.mxu0 0
        %2864 = vmatpush1.bf16.msra.mxu0 %v2840
        %2865 = vmatprep.subr.bf16.mxu0 0
        %2866 = vmatpush1.bf16.msra.mxu0 %v2842
        %2867 = vmatprep.subr.bf16.mxu0 0
        %2868 = vmatpush1.bf16.msra.mxu0 %v2844
        %2869 = vmatprep.subr.bf16.mxu0 0
        %2870 = vmatpush1.bf16.msra.mxu0 %v2846
        %2871 = vmatprep.subr.bf16.mxu0 0
        %2872 = vmatpush1.bf16.msra.mxu0 %v2848
        %2873 = vmatprep.subr.bf16.mxu0 0
        %2874 = vmatpush1.bf16.msra.mxu0 %v2850
        %2875 = vmatprep.subr.bf16.mxu0 0
        %2876 = vmatpush1.bf16.msra.mxu0 %v2852
        %2877 = vmatprep.subr.bf16.mxu0 0
        %2878 = vmatpush1.bf16.msra.mxu0 0
        %2879 = vmatprep.subr.bf16.mxu0 0
        %2880 = vmatpush1.bf16.msra.mxu0 0
        %2881 = vmatprep.subr.bf16.mxu0 0
        %2882 = vmatpush1.bf16.msra.mxu0 0
        %2883 = vmatprep.subr.bf16.mxu0 0
        %2884 = vmatpush1.bf16.msra.mxu0 0
        %2885 = vmatprep.subr.bf16.mxu0 0
        %2886 = vmatpush1.bf16.msra.mxu0 0
        %2887 = vmatprep.subr.bf16.mxu0 0
        %2888 = vmatpush1.bf16.msra.mxu0 0
        %2889 = vmatprep.subr.bf16.mxu0 0
        %2890 = vmatpush1.bf16.msra.mxu0 0
        %2891 = vmatprep.subr.bf16.mxu0 0
        %2892 = vmatpush1.bf16.msra.mxu0 0
        %2893 = vmatprep.mubr.bf16.mxu0 0
        %2894 = vmatmul.mubr.bf16.gmra.mrb[0].mxu0 %v2813
        %v2895 = vpop.f32.mrb[0].mxu0
        %v2896 = vadd.f32 0.0, %v2895
        %v2897 = vpop.f32.mrb[0].mxu0
        %v2898 = vpop.f32.mrb[0].mxu0
        %v2899 = vadd.f32 0.0, %v2898
        %v2900 = vpop.f32.mrb[0].mxu0
        %2901 = vmatprep.mubr.bf16.mxu0 0
        %2902 = vmatmul.mubr.bf16.gmra.mrb[0].mxu0 %v2814
        %v2903 = vpop.f32.mrb[0].mxu0
        %v2904 = vadd.f32 0.0, %v2903
        %v2905 = vpop.f32.mrb[0].mxu0
        %v2906 = vpop.f32.mrb[0].mxu0
        %v2907 = vadd.f32 0.0, %v2906
        %v2908 = vpop.f32.mrb[0].mxu0
        %2909 = vmatprep.mubr.bf16.mxu0 0
        %2910 = vmatmul.mubr.bf16.gmra.mrb[0].mxu0 %v2815
        %v2911 = vpop.f32.mrb[0].mxu0
        %v2912 = vadd.f32 0.0, %v2911
        %v2913 = vpop.f32.mrb[0].mxu0
        %v2914 = vpop.f32.mrb[0].mxu0
        %v2915 = vadd.f32 0.0, %v2914
        %v2916 = vpop.f32.mrb[0].mxu0
        %2917 = vmatprep.mubr.bf16.mxu0 0
        %2918 = vmatmul.mubr.bf16.gmra.mrb[0].mxu0 %v2816
        %v2919 = vpop.f32.mrb[0].mxu0
        %v2920 = vadd.f32 0.0, %v2919
        %v2921 = vpop.f32.mrb[0].mxu0
        %v2922 = vpop.f32.mrb[0].mxu0
        %v2923 = vadd.f32 0.0, %v2922
        %v2924 = vpop.f32.mrb[0].mxu0
        %2925 = vmatprep.mubr.bf16.mxu0 0
        %2926 = vmatmul.mubr.bf16.gmra.mrb[0].mxu0 %v2817
        %v2927 = vpop.f32.mrb[0].mxu0
        %v2928 = vadd.f32 0.0, %v2927
        %v2929 = vpop.f32.mrb[0].mxu0
        %v2930 = vpop.f32.mrb[0].mxu0
        %v2931 = vadd.f32 0.0, %v2930
        %v2932 = vpop.f32.mrb[0].mxu0
        %2933 = vmatprep.mubr.bf16.mxu0 0
        %2934 = vmatmul.mubr.bf16.gmra.mrb[0].mxu0 %v2818
        %v2935 = vpop.f32.mrb[0].mxu0
        %v2936 = vadd.f32 0.0, %v2935
        %v2937 = vpop.f32.mrb[0].mxu0
        %v2938 = vpop.f32.mrb[0].mxu0
        %v2939 = vadd.f32 0.0, %v2938
        %v2940 = vpop.f32.mrb[0].mxu0
        %2941 = vmatprep.mubr.bf16.mxu0 0
        %2942 = vmatmul.mubr.bf16.gmra.mrb[0].mxu0 %v2819
        %v2943 = vpop.f32.mrb[0].mxu0
        %v2944 = vadd.f32 0.0, %v2943
        %v2945 = vpop.f32.mrb[0].mxu0
        %v2946 = vpop.f32.mrb[0].mxu0
        %v2947 = vadd.f32 0.0, %v2946
        %v2948 = vpop.f32.mrb[0].mxu0
        %2949 = vmatprep.mubr.bf16.mxu0 0
        %2950 = vmatmul.mubr.bf16.gmra.mrb[0].mxu0 %v2820
        %v2951 = vpop.f32.mrb[0].mxu0
        %v2952 = vadd.f32 0.0, %v2951
        %v2953 = vpop.f32.mrb[0].mxu0
        %v2954 = vpop.f32.mrb[0].mxu0
        %v2955 = vadd.f32 0.0, %v2954
        %v2956 = vpop.f32.mrb[0].mxu0
        %2957 = vdwg.mxu0
        %v2958 = vld [vmem:[#allocation3] sm:$0xff]
        %v2959 = vld [vmem:[#allocation3 + $0x8] sm:$0xff]
        %v2960 = vld [vmem:[#allocation3 + $0x10] sm:$0xff]
        %v2961 = vld [vmem:[#allocation3 + $0x18] sm:$0xff]
        %v2962 = vld [vmem:[#allocation3 + $0x20] sm:$0xff]
        %v2963 = vld [vmem:[#allocation3 + $0x28] sm:$0xff]
        %v2964 = vld [vmem:[#allocation3 + $0x30] sm:$0xff]
        %v2965 = vld [vmem:[#allocation3 + $0x38] sm:$0xff]
        %v2966 = vld [vmem:[#allocation3 + $0x40] sm:$0xff]
        %v2967 = vld [vmem:[#allocation3 + $0x48] sm:$0xff]
        %v2968 = vld [vmem:[#allocation3 + $0x50] sm:$0xff]
        %v2969 = vld [vmem:[#allocation3 + $0x58] sm:$0xff]
        %v2970 = vld [vmem:[#allocation3 + $0x60] sm:$0xff]
        %v2971 = vld [vmem:[#allocation3 + $0x68] sm:$0xff]
        %v2972 = vld [vmem:[#allocation3 + $0x70] sm:$0xff]
        %v2973 = vld [vmem:[#allocation3 + $0x78] sm:$0xff]
        %v2974 = vpack.c.bf16 %v2899, %v2896
        %v2975 = vpack.c.bf16 %v2907, %v2904
        %v2976 = vpack.c.bf16 %v2915, %v2912
        %v2977 = vpack.c.bf16 %v2923, %v2920
        %v2978 = vpack.c.bf16 %v2931, %v2928
        %v2979 = vpack.c.bf16 %v2939, %v2936
        %v2980 = vpack.c.bf16 %v2947, %v2944
        %v2981 = vpack.c.bf16 %v2955, %v2952
        %v2982 = vld [vmem:[#allocation9 + $0x10] sm:$0xf]
        %v2983 = vld [vmem:[#allocation9 + $0x14] sm:$0xf]
        %v2986 = vunpack.c.l.b16 %v2982
        %v2987 = vunpack.c.l.b16 %v2983
        %v2988 = vpack.c.b16 %v2987, %v2986
        %v2991 = vsel %vm1045, %v2974, 0
        %v2994 = vsel %vm1045, %v2975, 0
        %v2997 = vsel %vm1045, %v2976, 0
        %v3000 = vsel %vm1045, %v2977, 0
        %v3003 = vsel %vm1045, %v2978, 0
        %v3006 = vsel %vm1045, %v2979, 0
        %v3009 = vsel %vm1045, %v2980, 0
        %v3012 = vsel %vm1045, %v2981, 0
        %3014 = vmatprep.subr.bf16.mxu0 0
        %3015 = vmatpush1.bf16.msra.mxu0 %v2988
        %3016 = vmatprep.subr.bf16.mxu0 0
        %3017 = vmatpush1.bf16.msra.mxu0 0
        %3018 = vmatprep.subr.bf16.mxu0 0
        %3019 = vmatpush1.bf16.msra.mxu0 0
        %3020 = vmatprep.subr.bf16.mxu0 0
        %3021 = vmatpush1.bf16.msra.mxu0 0
        %3022 = vmatprep.subr.bf16.mxu0 0
        %3023 = vmatpush1.bf16.msra.mxu0 0
        %3024 = vmatprep.subr.bf16.mxu0 0
        %3025 = vmatpush1.bf16.msra.mxu0 0
        %3026 = vmatprep.subr.bf16.mxu0 0
        %3027 = vmatpush1.bf16.msra.mxu0 0
        %3028 = vmatprep.subr.bf16.mxu0 0
        %3029 = vmatpush1.bf16.msra.mxu0 0
        %3030 = vmatprep.subr.bf16.mxu0 0
        %3031 = vmatpush1.bf16.msra.mxu0 0
        %3032 = vmatprep.subr.bf16.mxu0 0
        %3033 = vmatpush1.bf16.msra.mxu0 0
        %3034 = vmatprep.subr.bf16.mxu0 0
        %3035 = vmatpush1.bf16.msra.mxu0 0
        %3036 = vmatprep.subr.bf16.mxu0 0
        %3037 = vmatpush1.bf16.msra.mxu0 0
        %3038 = vmatprep.subr.bf16.mxu0 0
        %3039 = vmatpush1.bf16.msra.mxu0 0
        %3040 = vmatprep.subr.bf16.mxu0 0
        %3041 = vmatpush1.bf16.msra.mxu0 0
        %3042 = vmatprep.subr.bf16.mxu0 0
        %3043 = vmatpush1.bf16.msra.mxu0 0
        %3044 = vmatprep.subr.bf16.mxu0 0
        %3045 = vmatpush1.bf16.msra.mxu0 0
        %3046 = vmatprep.mubr.bf16.mxu0 0
        %3047 = vmatmul.mubr.bf16.gmra.mrb[0].mxu0 %v2991
        %v3048 = vpop.f32.mrb[0].mxu0
        %v3049 = vadd.f32 0.0, %v3048
        %v3050 = vpop.f32.mrb[0].mxu0
        %v3051 = vpop.f32.mrb[0].mxu0
        %v3052 = vadd.f32 0.0, %v3051
        %v3053 = vpop.f32.mrb[0].mxu0
        %3054 = vmatprep.mubr.bf16.mxu0 0
        %3055 = vmatmul.mubr.bf16.gmra.mrb[0].mxu0 %v2994
        %v3056 = vpop.f32.mrb[0].mxu0
        %v3057 = vadd.f32 0.0, %v3056
        %v3058 = vpop.f32.mrb[0].mxu0
        %v3059 = vpop.f32.mrb[0].mxu0
        %v3060 = vadd.f32 0.0, %v3059
        %v3061 = vpop.f32.mrb[0].mxu0
        %3062 = vmatprep.mubr.bf16.mxu0 0
        %3063 = vmatmul.mubr.bf16.gmra.mrb[0].mxu0 %v2997
        %v3064 = vpop.f32.mrb[0].mxu0
        %v3065 = vadd.f32 0.0, %v3064
        %v3066 = vpop.f32.mrb[0].mxu0
        %v3067 = vpop.f32.mrb[0].mxu0
        %v3068 = vadd.f32 0.0, %v3067
        %v3069 = vpop.f32.mrb[0].mxu0
        %3070 = vmatprep.mubr.bf16.mxu0 0
        %3071 = vmatmul.mubr.bf16.gmra.mrb[0].mxu0 %v3000
        %v3072 = vpop.f32.mrb[0].mxu0
        %v3073 = vadd.f32 0.0, %v3072
        %v3074 = vpop.f32.mrb[0].mxu0
        %v3075 = vpop.f32.mrb[0].mxu0
        %v3076 = vadd.f32 0.0, %v3075
        %v3077 = vpop.f32.mrb[0].mxu0
        %3078 = vmatprep.mubr.bf16.mxu0 0
        %3079 = vmatmul.mubr.bf16.gmra.mrb[0].mxu0 %v3003
        %v3080 = vpop.f32.mrb[0].mxu0
        %v3081 = vadd.f32 0.0, %v3080
        %v3082 = vpop.f32.mrb[0].mxu0
        %v3083 = vpop.f32.mrb[0].mxu0
        %v3084 = vadd.f32 0.0, %v3083
        %v3085 = vpop.f32.mrb[0].mxu0
        %3086 = vmatprep.mubr.bf16.mxu0 0
        %3087 = vmatmul.mubr.bf16.gmra.mrb[0].mxu0 %v3006
        %v3088 = vpop.f32.mrb[0].mxu0
        %v3089 = vadd.f32 0.0, %v3088
        %v3090 = vpop.f32.mrb[0].mxu0
        %v3091 = vpop.f32.mrb[0].mxu0
        %v3092 = vadd.f32 0.0, %v3091
        %v3093 = vpop.f32.mrb[0].mxu0
        %3094 = vmatprep.mubr.bf16.mxu0 0
        %3095 = vmatmul.mubr.bf16.gmra.mrb[0].mxu0 %v3009
        %v3096 = vpop.f32.mrb[0].mxu0
        %v3097 = vadd.f32 0.0, %v3096
        %v3098 = vpop.f32.mrb[0].mxu0
        %v3099 = vpop.f32.mrb[0].mxu0
        %v3100 = vadd.f32 0.0, %v3099
        %v3101 = vpop.f32.mrb[0].mxu0
        %3102 = vmatprep.mubr.bf16.mxu0 0
        %3103 = vmatmul.mubr.bf16.gmra.mrb[0].mxu0 %v3012
        %v3104 = vpop.f32.mrb[0].mxu0
        %v3105 = vadd.f32 0.0, %v3104
        %v3106 = vpop.f32.mrb[0].mxu0
        %v3107 = vpop.f32.mrb[0].mxu0
        %v3108 = vadd.f32 0.0, %v3107
        %v3109 = vpop.f32.mrb[0].mxu0
        %3110 = vdwg.mxu0
        %v3111 = vadd.f32 %v2958, %v3049
        %v3112 = vadd.f32 %v2959, %v3052
        %v3113 = vadd.f32 %v2960, %v3057
        %v3114 = vadd.f32 %v2961, %v3060
        %v3115 = vadd.f32 %v2962, %v3065
        %v3116 = vadd.f32 %v2963, %v3068
        %v3117 = vadd.f32 %v2964, %v3073
        %v3118 = vadd.f32 %v2965, %v3076
        %v3119 = vadd.f32 %v2966, %v3081
        %v3120 = vadd.f32 %v2967, %v3084
        %v3121 = vadd.f32 %v2968, %v3089
        %v3122 = vadd.f32 %v2969, %v3092
        %v3123 = vadd.f32 %v2970, %v3097
        %v3124 = vadd.f32 %v2971, %v3100
        %v3125 = vadd.f32 %v2972, %v3105
        %v3126 = vadd.f32 %v2973, %v3108
        %3127 = vst [vmem:[#allocation3] sm:$0xff] %v3111
        %3128 = vst [vmem:[#allocation3 + $0x8] sm:$0xff] %v3112
        %3129 = vst [vmem:[#allocation3 + $0x10] sm:$0xff] %v3113
        %3130 = vst [vmem:[#allocation3 + $0x18] sm:$0xff] %v3114
        %3131 = vst [vmem:[#allocation3 + $0x20] sm:$0xff] %v3115
        %3132 = vst [vmem:[#allocation3 + $0x28] sm:$0xff] %v3116
        %3133 = vst [vmem:[#allocation3 + $0x30] sm:$0xff] %v3117
        %3134 = vst [vmem:[#allocation3 + $0x38] sm:$0xff] %v3118
        %3135 = vst [vmem:[#allocation3 + $0x40] sm:$0xff] %v3119
        %3136 = vst [vmem:[#allocation3 + $0x48] sm:$0xff] %v3120
        %3137 = vst [vmem:[#allocation3 + $0x50] sm:$0xff] %v3121
        %3138 = vst [vmem:[#allocation3 + $0x58] sm:$0xff] %v3122
        %3139 = vst [vmem:[#allocation3 + $0x60] sm:$0xff] %v3123
        %3140 = vst [vmem:[#allocation3 + $0x68] sm:$0xff] %v3124
        %3141 = vst [vmem:[#allocation3 + $0x70] sm:$0xff] %v3125
        %3142 = vst [vmem:[#allocation3 + $0x78] sm:$0xff] %v3126
        %v3143 = vld [vmem:[#allocation2] sm:$0xff]
        %v3144 = vld [vmem:[#allocation2 + $0x18] sm:$0xff]
        %v3145 = vld [vmem:[#allocation2 + $0x30] sm:$0xff]
        %v3146 = vld [vmem:[#allocation2 + $0x48] sm:$0xff]
        %v3147 = vld [vmem:[#allocation2 + $0x60] sm:$0xff]
        %v3148 = vld [vmem:[#allocation2 + $0x78] sm:$0xff]
        %v3149 = vld [vmem:[#allocation2 + $0x90] sm:$0xff]
        %v3150 = vld [vmem:[#allocation2 + $0xa8] sm:$0xff]
        %v3151 = vld [vmem:[#allocation2 + $0xc0] sm:$0xff]
        %v3152 = vld [vmem:[#allocation2 + $0xd8] sm:$0xff]
        %v3153 = vld [vmem:[#allocation2 + $0xf0] sm:$0xff]
        %v3154 = vld [vmem:[#allocation2 + $0x108] sm:$0xff]
        %v3155 = vld [vmem:[#allocation2 + $0x120] sm:$0xff]
        %v3156 = vld [vmem:[#allocation2 + $0x138] sm:$0xff]
        %v3157 = vld [vmem:[#allocation2 + $0x150] sm:$0xff]
        %v3158 = vld [vmem:[#allocation2 + $0x168] sm:$0xff]
        %v3159 = vld [vmem:[#allocation2 + $0x8] sm:$0xff]
        %v3160 = vld [vmem:[#allocation2 + $0x20] sm:$0xff]
        %v3161 = vld [vmem:[#allocation2 + $0x38] sm:$0xff]
        %v3162 = vld [vmem:[#allocation2 + $0x50] sm:$0xff]
        %v3163 = vld [vmem:[#allocation2 + $0x68] sm:$0xff]
        %v3164 = vld [vmem:[#allocation2 + $0x80] sm:$0xff]
        %v3165 = vld [vmem:[#allocation2 + $0x98] sm:$0xff]
        %v3166 = vld [vmem:[#allocation2 + $0xb0] sm:$0xff]
        %v3167 = vld [vmem:[#allocation2 + $0xc8] sm:$0xff]
        %v3168 = vld [vmem:[#allocation2 + $0xe0] sm:$0xff]
        %v3169 = vld [vmem:[#allocation2 + $0xf8] sm:$0xff]
        %v3170 = vld [vmem:[#allocation2 + $0x110] sm:$0xff]
        %v3171 = vld [vmem:[#allocation2 + $0x128] sm:$0xff]
        %v3172 = vld [vmem:[#allocation2 + $0x140] sm:$0xff]
        %v3173 = vld [vmem:[#allocation2 + $0x158] sm:$0xff]
        %v3174 = vld [vmem:[#allocation2 + $0x170] sm:$0xff]
        %v3175 = vld [vmem:[#allocation2 + $0x10] sm:$0xff]
        %v3176 = vld [vmem:[#allocation2 + $0x28] sm:$0xff]
        %v3177 = vld [vmem:[#allocation2 + $0x40] sm:$0xff]
        %v3178 = vld [vmem:[#allocation2 + $0x58] sm:$0xff]
        %v3179 = vld [vmem:[#allocation2 + $0x70] sm:$0xff]
        %v3180 = vld [vmem:[#allocation2 + $0x88] sm:$0xff]
        %v3181 = vld [vmem:[#allocation2 + $0xa0] sm:$0xff]
        %v3182 = vld [vmem:[#allocation2 + $0xb8] sm:$0xff]
        %v3183 = vld [vmem:[#allocation2 + $0xd0] sm:$0xff]
        %v3184 = vld [vmem:[#allocation2 + $0xe8] sm:$0xff]
        %v3185 = vld [vmem:[#allocation2 + $0x100] sm:$0xff]
        %v3186 = vld [vmem:[#allocation2 + $0x118] sm:$0xff]
        %v3187 = vld [vmem:[#allocation2 + $0x130] sm:$0xff]
        %v3188 = vld [vmem:[#allocation2 + $0x148] sm:$0xff]
        %v3189 = vld [vmem:[#allocation2 + $0x160] sm:$0xff]
        %v3190 = vld [vmem:[#allocation2 + $0x178] sm:$0xff]
        %v3191 = vpack.c.bf16 %v3144, %v3143
        %v3192 = vpack.c.bf16 %v3146, %v3145
        %v3193 = vpack.c.bf16 %v3148, %v3147
        %v3194 = vpack.c.bf16 %v3150, %v3149
        %v3195 = vpack.c.bf16 %v3152, %v3151
        %v3196 = vpack.c.bf16 %v3154, %v3153
        %v3197 = vpack.c.bf16 %v3156, %v3155
        %v3198 = vpack.c.bf16 %v3158, %v3157
        %v3199 = vpack.c.bf16 %v3160, %v3159
        %v3200 = vpack.c.bf16 %v3162, %v3161
        %v3201 = vpack.c.bf16 %v3164, %v3163
        %v3202 = vpack.c.bf16 %v3166, %v3165
        %v3203 = vpack.c.bf16 %v3168, %v3167
        %v3204 = vpack.c.bf16 %v3170, %v3169
        %v3205 = vpack.c.bf16 %v3172, %v3171
        %v3206 = vpack.c.bf16 %v3174, %v3173
        %3215 = vrot.lane.b32.xlu0 %v3191, 80
        %v3216 = vpop.permute.xlu0 %3215
        %3217 = vrot.lane.b32.xlu0 %v3192, 80
        %v3218 = vpop.permute.xlu0 %3217
        %3219 = vrot.lane.b32.xlu0 %v3193, 80
        %v3220 = vpop.permute.xlu0 %3219
        %3221 = vrot.lane.b32.xlu0 %v3194, 80
        %v3222 = vpop.permute.xlu0 %3221
        %3223 = vrot.lane.b32.xlu0 %v3195, 80
        %v3224 = vpop.permute.xlu0 %3223
        %3225 = vrot.lane.b32.xlu0 %v3196, 80
        %v3226 = vpop.permute.xlu0 %3225
        %3227 = vrot.lane.b32.xlu0 %v3197, 80
        %v3228 = vpop.permute.xlu0 %3227
        %3229 = vrot.lane.b32.xlu0 %v3198, 80
        %v3230 = vpop.permute.xlu0 %3229
        %3239 = vrot.lane.b32.xlu0 %v3199, 80
        %v3240 = vpop.permute.xlu0 %3239
        %3241 = vrot.lane.b32.xlu0 %v3200, 80
        %v3242 = vpop.permute.xlu0 %3241
        %3243 = vrot.lane.b32.xlu0 %v3201, 80
        %v3244 = vpop.permute.xlu0 %3243
        %3245 = vrot.lane.b32.xlu0 %v3202, 80
        %v3246 = vpop.permute.xlu0 %3245
        %3247 = vrot.lane.b32.xlu0 %v3203, 80
        %v3248 = vpop.permute.xlu0 %3247
        %3249 = vrot.lane.b32.xlu0 %v3204, 80
        %v3250 = vpop.permute.xlu0 %3249
        %3251 = vrot.lane.b32.xlu0 %v3205, 80
        %v3252 = vpop.permute.xlu0 %3251
        %3253 = vrot.lane.b32.xlu0 %v3206, 80
        %v3254 = vpop.permute.xlu0 %3253
        %v3256 = vsel %vm1045, %v3216, 0
        %v3259 = vsel %vm1045, %v3218, 0
        %v3262 = vsel %vm1045, %v3220, 0
        %v3265 = vsel %vm1045, %v3222, 0
        %v3268 = vsel %vm1045, %v3224, 0
        %v3271 = vsel %vm1045, %v3226, 0
        %v3274 = vsel %vm1045, %v3228, 0
        %v3277 = vsel %vm1045, %v3230, 0
        %v3280 = vsel %vm1045, %v3240, 0
        %v3283 = vsel %vm1045, %v3242, 0
        %v3286 = vsel %vm1045, %v3244, 0
        %v3289 = vsel %vm1045, %v3246, 0
        %v3292 = vsel %vm1045, %v3248, 0
        %v3295 = vsel %vm1045, %v3250, 0
        %v3298 = vsel %vm1045, %v3252, 0
        %v3301 = vsel %vm1045, %v3254, 0
        %3303 = vmatprep.subr.bf16.mxu0 0
        %3304 = vmatpush1.bf16.xpose.msra.mxu0 %v3280
        %3305 = vmatprep.subr.bf16.mxu0 0
        %3306 = vmatpush1.bf16.xpose.msra.mxu0 %v3283
        %3307 = vmatprep.subr.bf16.mxu0 0
        %3308 = vmatpush1.bf16.xpose.msra.mxu0 %v3286
        %3309 = vmatprep.subr.bf16.mxu0 0
        %3310 = vmatpush1.bf16.xpose.msra.mxu0 %v3289
        %3311 = vmatprep.subr.bf16.mxu0 0
        %3312 = vmatpush1.bf16.xpose.msra.mxu0 %v3292
        %3313 = vmatprep.subr.bf16.mxu0 0
        %3314 = vmatpush1.bf16.xpose.msra.mxu0 %v3295
        %3315 = vmatprep.subr.bf16.mxu0 0
        %3316 = vmatpush1.bf16.xpose.msra.mxu0 %v3298
        %3317 = vmatprep.subr.bf16.mxu0 0
        %3318 = vmatpush1.bf16.xpose.msra.mxu0 %v3301
        %3319 = vmatprep.subr.bf16.mxu0 0
        %3320 = vmatpush1.bf16.xpose.msra.mxu0 0
        %3321 = vmatprep.subr.bf16.mxu0 0
        %3322 = vmatpush1.bf16.xpose.msra.mxu0 0
        %3323 = vmatprep.subr.bf16.mxu0 0
        %3324 = vmatpush1.bf16.xpose.msra.mxu0 0
        %3325 = vmatprep.subr.bf16.mxu0 0
        %3326 = vmatpush1.bf16.xpose.msra.mxu0 0
        %3327 = vmatprep.subr.bf16.mxu0 0
        %3328 = vmatpush1.bf16.xpose.msra.mxu0 0
        %3329 = vmatprep.subr.bf16.mxu0 0
        %3330 = vmatpush1.bf16.xpose.msra.mxu0 0
        %3331 = vmatprep.subr.bf16.mxu0 0
        %3332 = vmatpush1.bf16.xpose.msra.mxu0 0
        %3333 = vmatprep.subr.bf16.mxu0 0
        %3334 = vmatpush1.bf16.xpose.msra.mxu0 0
        %3335 = vmatprep.mubr.bf16.mxu0 0
        %3336 = vmatmul.mubr.bf16.gmra.mrb[0].mxu0 %v3256
        %v3337 = vpop.f32.mrb[0].mxu0
        %v3338 = vadd.f32 0.0, %v3337
        %v3339 = vpop.f32.mrb[0].mxu0
        %v3340 = vpop.f32.mrb[0].mxu0
        %v3341 = vadd.f32 0.0, %v3340
        %v3342 = vpop.f32.mrb[0].mxu0
        %3343 = vmatprep.mubr.bf16.mxu0 0
        %3344 = vmatmul.mubr.bf16.gmra.mrb[0].mxu0 %v3259
        %v3345 = vpop.f32.mrb[0].mxu0
        %v3346 = vadd.f32 0.0, %v3345
        %v3347 = vpop.f32.mrb[0].mxu0
        %v3348 = vpop.f32.mrb[0].mxu0
        %v3349 = vadd.f32 0.0, %v3348
        %v3350 = vpop.f32.mrb[0].mxu0
        %3351 = vmatprep.mubr.bf16.mxu0 0
        %3352 = vmatmul.mubr.bf16.gmra.mrb[0].mxu0 %v3262
        %v3353 = vpop.f32.mrb[0].mxu0
        %v3354 = vadd.f32 0.0, %v3353
        %v3355 = vpop.f32.mrb[0].mxu0
        %v3356 = vpop.f32.mrb[0].mxu0
        %v3357 = vadd.f32 0.0, %v3356
        %v3358 = vpop.f32.mrb[0].mxu0
        %3359 = vmatprep.mubr.bf16.mxu0 0
        %3360 = vmatmul.mubr.bf16.gmra.mrb[0].mxu0 %v3265
        %v3361 = vpop.f32.mrb[0].mxu0
        %v3362 = vadd.f32 0.0, %v3361
        %v3363 = vpop.f32.mrb[0].mxu0
        %v3364 = vpop.f32.mrb[0].mxu0
        %v3365 = vadd.f32 0.0, %v3364
        %v3366 = vpop.f32.mrb[0].mxu0
        %3367 = vmatprep.mubr.bf16.mxu0 0
        %3368 = vmatmul.mubr.bf16.gmra.mrb[0].mxu0 %v3268
        %v3369 = vpop.f32.mrb[0].mxu0
        %v3370 = vadd.f32 0.0, %v3369
        %v3371 = vpop.f32.mrb[0].mxu0
        %v3372 = vpop.f32.mrb[0].mxu0
        %v3373 = vadd.f32 0.0, %v3372
        %v3374 = vpop.f32.mrb[0].mxu0
        %3375 = vmatprep.mubr.bf16.mxu0 0
        %3376 = vmatmul.mubr.bf16.gmra.mrb[0].mxu0 %v3271
        %v3377 = vpop.f32.mrb[0].mxu0
        %v3378 = vadd.f32 0.0, %v3377
        %v3379 = vpop.f32.mrb[0].mxu0
        %v3380 = vpop.f32.mrb[0].mxu0
        %v3381 = vadd.f32 0.0, %v3380
        %v3382 = vpop.f32.mrb[0].mxu0
        %3383 = vmatprep.mubr.bf16.mxu0 0
        %3384 = vmatmul.mubr.bf16.gmra.mrb[0].mxu0 %v3274
        %v3385 = vpop.f32.mrb[0].mxu0
        %v3386 = vadd.f32 0.0, %v3385
        %v3387 = vpop.f32.mrb[0].mxu0
        %v3388 = vpop.f32.mrb[0].mxu0
        %v3389 = vadd.f32 0.0, %v3388
        %v3390 = vpop.f32.mrb[0].mxu0
        %3391 = vmatprep.mubr.bf16.mxu0 0
        %3392 = vmatmul.mubr.bf16.gmra.mrb[0].mxu0 %v3277
        %v3393 = vpop.f32.mrb[0].mxu0
        %v3394 = vadd.f32 0.0, %v3393
        %v3395 = vpop.f32.mrb[0].mxu0
        %v3396 = vpop.f32.mrb[0].mxu0
        %v3397 = vadd.f32 0.0, %v3396
        %v3398 = vpop.f32.mrb[0].mxu0
        %3399 = vdwg.mxu0
        %v3400 = vmul.f32 %v3338, 0.25
        %v3401 = vmul.f32 %v3341, 0.25
        %v3402 = vmul.f32 %v3346, 0.25
        %v3403 = vmul.f32 %v3349, 0.25
        %v3404 = vmul.f32 %v3354, 0.25
        %v3405 = vmul.f32 %v3357, 0.25
        %v3406 = vmul.f32 %v3362, 0.25
        %v3407 = vmul.f32 %v3365, 0.25
        %v3408 = vmul.f32 %v3370, 0.25
        %v3409 = vmul.f32 %v3373, 0.25
        %v3410 = vmul.f32 %v3378, 0.25
        %v3411 = vmul.f32 %v3381, 0.25
        %v3412 = vmul.f32 %v3386, 0.25
        %v3413 = vmul.f32 %v3389, 0.25
        %v3414 = vmul.f32 %v3394, 0.25
        %v3415 = vmul.f32 %v3397, 0.25
        %3416 = vmax.xlane.f32.xlu0 %v3400
        %v3417 = vpop.xlane.xlu0 %3416
        %3418 = vmax.xlane.f32.xlu0 %v3401
        %v3419 = vpop.xlane.xlu0 %3418
        %3420 = vmax.xlane.f32.xlu0 %v3402
        %v3421 = vpop.xlane.xlu0 %3420
        %3422 = vmax.xlane.f32.xlu0 %v3403
        %v3423 = vpop.xlane.xlu0 %3422
        %3424 = vmax.xlane.f32.xlu0 %v3404
        %v3425 = vpop.xlane.xlu0 %3424
        %3426 = vmax.xlane.f32.xlu0 %v3405
        %v3427 = vpop.xlane.xlu0 %3426
        %3428 = vmax.xlane.f32.xlu0 %v3406
        %v3429 = vpop.xlane.xlu0 %3428
        %3430 = vmax.xlane.f32.xlu0 %v3407
        %v3431 = vpop.xlane.xlu0 %3430
        %3432 = vmax.xlane.f32.xlu0 %v3408
        %v3433 = vpop.xlane.xlu0 %3432
        %3434 = vmax.xlane.f32.xlu0 %v3409
        %v3435 = vpop.xlane.xlu0 %3434
        %3436 = vmax.xlane.f32.xlu0 %v3410
        %v3437 = vpop.xlane.xlu0 %3436
        %3438 = vmax.xlane.f32.xlu0 %v3411
        %v3439 = vpop.xlane.xlu0 %3438
        %3440 = vmax.xlane.f32.xlu0 %v3412
        %v3441 = vpop.xlane.xlu0 %3440
        %3442 = vmax.xlane.f32.xlu0 %v3413
        %v3443 = vpop.xlane.xlu0 %3442
        %3444 = vmax.xlane.f32.xlu0 %v3414
        %v3445 = vpop.xlane.xlu0 %3444
        %3446 = vmax.xlane.f32.xlu0 %v3415
        %v3447 = vpop.xlane.xlu0 %3446
        %v3448 = vsub.f32 %v3400, %v3417
        %v3449 = vsub.f32 %v3401, %v3419
        %v3450 = vsub.f32 %v3402, %v3421
        %v3451 = vsub.f32 %v3403, %v3423
        %v3452 = vsub.f32 %v3404, %v3425
        %v3453 = vsub.f32 %v3405, %v3427
        %v3454 = vsub.f32 %v3406, %v3429
        %v3455 = vsub.f32 %v3407, %v3431
        %v3456 = vsub.f32 %v3408, %v3433
        %v3457 = vsub.f32 %v3409, %v3435
        %v3458 = vsub.f32 %v3410, %v3437
        %v3459 = vsub.f32 %v3411, %v3439
        %v3460 = vsub.f32 %v3412, %v3441
        %v3461 = vsub.f32 %v3413, %v3443
        %v3462 = vsub.f32 %v3414, %v3445
        %v3463 = vsub.f32 %v3415, %v3447
        %v3464 = vmul.f32 %v3448, 1.442695
        %v3465 = vpow.pop %v3464
        %v3466 = vmul.f32 %v3449, 1.442695
        %v3467 = vpow.pop %v3466
        %v3468 = vmul.f32 %v3450, 1.442695
        %v3469 = vpow.pop %v3468
        %v3470 = vmul.f32 %v3451, 1.442695
        %v3471 = vpow.pop %v3470
        %v3472 = vmul.f32 %v3452, 1.442695
        %v3473 = vpow.pop %v3472
        %v3474 = vmul.f32 %v3453, 1.442695
        %v3475 = vpow.pop %v3474
        %v3476 = vmul.f32 %v3454, 1.442695
        %v3477 = vpow.pop %v3476
        %v3478 = vmul.f32 %v3455, 1.442695
        %v3479 = vpow.pop %v3478
        %v3480 = vmul.f32 %v3456, 1.442695
        %v3481 = vpow.pop %v3480
        %v3482 = vmul.f32 %v3457, 1.442695
        %v3483 = vpow.pop %v3482
        %v3484 = vmul.f32 %v3458, 1.442695
        %v3485 = vpow.pop %v3484
        %v3486 = vmul.f32 %v3459, 1.442695
        %v3487 = vpow.pop %v3486
        %v3488 = vmul.f32 %v3460, 1.442695
        %v3489 = vpow.pop %v3488
        %v3490 = vmul.f32 %v3461, 1.442695
        %v3491 = vpow.pop %v3490
        %v3492 = vmul.f32 %v3462, 1.442695
        %v3493 = vpow.pop %v3492
        %v3494 = vmul.f32 %v3463, 1.442695
        %v3495 = vpow.pop %v3494
        %3496 = vadd.xlane.f32.xlu0 %v3465
        %v3497 = vpop.xlane.xlu0 %3496
        %3498 = vadd.xlane.f32.xlu0 %v3467
        %v3499 = vpop.xlane.xlu0 %3498
        %3500 = vadd.xlane.f32.xlu0 %v3469
        %v3501 = vpop.xlane.xlu0 %3500
        %3502 = vadd.xlane.f32.xlu0 %v3471
        %v3503 = vpop.xlane.xlu0 %3502
        %3504 = vadd.xlane.f32.xlu0 %v3473
        %v3505 = vpop.xlane.xlu0 %3504
        %3506 = vadd.xlane.f32.xlu0 %v3475
        %v3507 = vpop.xlane.xlu0 %3506
        %3508 = vadd.xlane.f32.xlu0 %v3477
        %v3509 = vpop.xlane.xlu0 %3508
        %3510 = vadd.xlane.f32.xlu0 %v3479
        %v3511 = vpop.xlane.xlu0 %3510
        %3512 = vadd.xlane.f32.xlu0 %v3481
        %v3513 = vpop.xlane.xlu0 %3512
        %3514 = vadd.xlane.f32.xlu0 %v3483
        %v3515 = vpop.xlane.xlu0 %3514
        %3516 = vadd.xlane.f32.xlu0 %v3485
        %v3517 = vpop.xlane.xlu0 %3516
        %3518 = vadd.xlane.f32.xlu0 %v3487
        %v3519 = vpop.xlane.xlu0 %3518
        %3520 = vadd.xlane.f32.xlu0 %v3489
        %v3521 = vpop.xlane.xlu0 %3520
        %3522 = vadd.xlane.f32.xlu0 %v3491
        %v3523 = vpop.xlane.xlu0 %3522
        %3524 = vadd.xlane.f32.xlu0 %v3493
        %v3525 = vpop.xlane.xlu0 %3524
        %3526 = vadd.xlane.f32.xlu0 %v3495
        %v3527 = vpop.xlane.xlu0 %3526
        %v3528 = vrcp.pop %v3497
        %v3529 = vmul.f32 %v3465, %v3528
        %v3530 = vrcp.pop %v3499
        %v3531 = vmul.f32 %v3467, %v3530
        %v3532 = vrcp.pop %v3501
        %v3533 = vmul.f32 %v3469, %v3532
        %v3534 = vrcp.pop %v3503
        %v3535 = vmul.f32 %v3471, %v3534
        %v3536 = vrcp.pop %v3505
        %v3537 = vmul.f32 %v3473, %v3536
        %v3538 = vrcp.pop %v3507
        %v3539 = vmul.f32 %v3475, %v3538
        %v3540 = vrcp.pop %v3509
        %v3541 = vmul.f32 %v3477, %v3540
        %v3542 = vrcp.pop %v3511
        %v3543 = vmul.f32 %v3479, %v3542
        %v3544 = vrcp.pop %v3513
        %v3545 = vmul.f32 %v3481, %v3544
        %v3546 = vrcp.pop %v3515
        %v3547 = vmul.f32 %v3483, %v3546
        %v3548 = vrcp.pop %v3517
        %v3549 = vmul.f32 %v3485, %v3548
        %v3550 = vrcp.pop %v3519
        %v3551 = vmul.f32 %v3487, %v3550
        %v3552 = vrcp.pop %v3521
        %v3553 = vmul.f32 %v3489, %v3552
        %v3554 = vrcp.pop %v3523
        %v3555 = vmul.f32 %v3491, %v3554
        %v3556 = vrcp.pop %v3525
        %v3557 = vmul.f32 %v3493, %v3556
        %v3558 = vrcp.pop %v3527
        %v3559 = vmul.f32 %v3495, %v3558
        %v3560 = vpack.c.bf16 %v3531, %v3529
        %v3561 = vpack.c.bf16 %v3535, %v3533
        %v3562 = vpack.c.bf16 %v3539, %v3537
        %v3563 = vpack.c.bf16 %v3543, %v3541
        %v3564 = vpack.c.bf16 %v3547, %v3545
        %v3565 = vpack.c.bf16 %v3551, %v3549
        %v3566 = vpack.c.bf16 %v3555, %v3553
        %v3567 = vpack.c.bf16 %v3559, %v3557
        %v3568 = vpack.c.bf16 %v3176, %v3175
        %v3569 = vpack.c.bf16 %v3178, %v3177
        %v3570 = vpack.c.bf16 %v3180, %v3179
        %v3571 = vpack.c.bf16 %v3182, %v3181
        %v3572 = vpack.c.bf16 %v3184, %v3183
        %v3573 = vpack.c.bf16 %v3186, %v3185
        %v3574 = vpack.c.bf16 %v3188, %v3187
        %v3575 = vpack.c.bf16 %v3190, %v3189
        %3584 = vrot.lane.b32.xlu0 %v3568, 80
        %v3585 = vpop.permute.xlu0 %3584
        %3586 = vrot.lane.b32.xlu0 %v3569, 80
        %v3587 = vpop.permute.xlu0 %3586
        %3588 = vrot.lane.b32.xlu0 %v3570, 80
        %v3589 = vpop.permute.xlu0 %3588
        %3590 = vrot.lane.b32.xlu0 %v3571, 80
        %v3591 = vpop.permute.xlu0 %3590
        %3592 = vrot.lane.b32.xlu0 %v3572, 80
        %v3593 = vpop.permute.xlu0 %3592
        %3594 = vrot.lane.b32.xlu0 %v3573, 80
        %v3595 = vpop.permute.xlu0 %3594
        %3596 = vrot.lane.b32.xlu0 %v3574, 80
        %v3597 = vpop.permute.xlu0 %3596
        %3598 = vrot.lane.b32.xlu0 %v3575, 80
        %v3599 = vpop.permute.xlu0 %3598
        %3608 = vmatprep.subr.bf16.mxu0 0
        %3609 = vmatpush1.bf16.msra.mxu0 %v3585
        %3610 = vmatprep.subr.bf16.mxu0 0
        %3611 = vmatpush1.bf16.msra.mxu0 %v3587
        %3612 = vmatprep.subr.bf16.mxu0 0
        %3613 = vmatpush1.bf16.msra.mxu0 %v3589
        %3614 = vmatprep.subr.bf16.mxu0 0
        %3615 = vmatpush1.bf16.msra.mxu0 %v3591
        %3616 = vmatprep.subr.bf16.mxu0 0
        %3617 = vmatpush1.bf16.msra.mxu0 %v3593
        %3618 = vmatprep.subr.bf16.mxu0 0
        %3619 = vmatpush1.bf16.msra.mxu0 %v3595
        %3620 = vmatprep.subr.bf16.mxu0 0
        %3621 = vmatpush1.bf16.msra.mxu0 %v3597
        %3622 = vmatprep.subr.bf16.mxu0 0
        %3623 = vmatpush1.bf16.msra.mxu0 %v3599
        %3624 = vmatprep.subr.bf16.mxu0 0
        %3625 = vmatpush1.bf16.msra.mxu0 0
        %3626 = vmatprep.subr.bf16.mxu0 0
        %3627 = vmatpush1.bf16.msra.mxu0 0
        %3628 = vmatprep.subr.bf16.mxu0 0
        %3629 = vmatpush1.bf16.msra.mxu0 0
        %3630 = vmatprep.subr.bf16.mxu0 0
        %3631 = vmatpush1.bf16.msra.mxu0 0
        %3632 = vmatprep.subr.bf16.mxu0 0
        %3633 = vmatpush1.bf16.msra.mxu0 0
        %3634 = vmatprep.subr.bf16.mxu0 0
        %3635 = vmatpush1.bf16.msra.mxu0 0
        %3636 = vmatprep.subr.bf16.mxu0 0
        %3637 = vmatpush1.bf16.msra.mxu0 0
        %3638 = vmatprep.subr.bf16.mxu0 0
        %3639 = vmatpush1.bf16.msra.mxu0 0
        %3640 = vmatprep.mubr.bf16.mxu0 0
        %3641 = vmatmul.mubr.bf16.gmra.mrb[0].mxu0 %v3560
        %v3642 = vpop.f32.mrb[0].mxu0
        %v3643 = vadd.f32 0.0, %v3642
        %v3644 = vpop.f32.mrb[0].mxu0
        %v3645 = vpop.f32.mrb[0].mxu0
        %v3646 = vadd.f32 0.0, %v3645
        %v3647 = vpop.f32.mrb[0].mxu0
        %3648 = vmatprep.mubr.bf16.mxu0 0
        %3649 = vmatmul.mubr.bf16.gmra.mrb[0].mxu0 %v3561
        %v3650 = vpop.f32.mrb[0].mxu0
        %v3651 = vadd.f32 0.0, %v3650
        %v3652 = vpop.f32.mrb[0].mxu0
        %v3653 = vpop.f32.mrb[0].mxu0
        %v3654 = vadd.f32 0.0, %v3653
        %v3655 = vpop.f32.mrb[0].mxu0
        %3656 = vmatprep.mubr.bf16.mxu0 0
        %3657 = vmatmul.mubr.bf16.gmra.mrb[0].mxu0 %v3562
        %v3658 = vpop.f32.mrb[0].mxu0
        %v3659 = vadd.f32 0.0, %v3658
        %v3660 = vpop.f32.mrb[0].mxu0
        %v3661 = vpop.f32.mrb[0].mxu0
        %v3662 = vadd.f32 0.0, %v3661
        %v3663 = vpop.f32.mrb[0].mxu0
        %3664 = vmatprep.mubr.bf16.mxu0 0
        %3665 = vmatmul.mubr.bf16.gmra.mrb[0].mxu0 %v3563
        %v3666 = vpop.f32.mrb[0].mxu0
        %v3667 = vadd.f32 0.0, %v3666
        %v3668 = vpop.f32.mrb[0].mxu0
        %v3669 = vpop.f32.mrb[0].mxu0
        %v3670 = vadd.f32 0.0, %v3669
        %v3671 = vpop.f32.mrb[0].mxu0
        %3672 = vmatprep.mubr.bf16.mxu0 0
        %3673 = vmatmul.mubr.bf16.gmra.mrb[0].mxu0 %v3564
        %v3674 = vpop.f32.mrb[0].mxu0
        %v3675 = vadd.f32 0.0, %v3674
        %v3676 = vpop.f32.mrb[0].mxu0
        %v3677 = vpop.f32.mrb[0].mxu0
        %v3678 = vadd.f32 0.0, %v3677
        %v3679 = vpop.f32.mrb[0].mxu0
        %3680 = vmatprep.mubr.bf16.mxu0 0
        %3681 = vmatmul.mubr.bf16.gmra.mrb[0].mxu0 %v3565
        %v3682 = vpop.f32.mrb[0].mxu0
        %v3683 = vadd.f32 0.0, %v3682
        %v3684 = vpop.f32.mrb[0].mxu0
        %v3685 = vpop.f32.mrb[0].mxu0
        %v3686 = vadd.f32 0.0, %v3685
        %v3687 = vpop.f32.mrb[0].mxu0
        %3688 = vmatprep.mubr.bf16.mxu0 0
        %3689 = vmatmul.mubr.bf16.gmra.mrb[0].mxu0 %v3566
        %v3690 = vpop.f32.mrb[0].mxu0
        %v3691 = vadd.f32 0.0, %v3690
        %v3692 = vpop.f32.mrb[0].mxu0
        %v3693 = vpop.f32.mrb[0].mxu0
        %v3694 = vadd.f32 0.0, %v3693
        %v3695 = vpop.f32.mrb[0].mxu0
        %3696 = vmatprep.mubr.bf16.mxu0 0
        %3697 = vmatmul.mubr.bf16.gmra.mrb[0].mxu0 %v3567
        %v3698 = vpop.f32.mrb[0].mxu0
        %v3699 = vadd.f32 0.0, %v3698
        %v3700 = vpop.f32.mrb[0].mxu0
        %v3701 = vpop.f32.mrb[0].mxu0
        %v3702 = vadd.f32 0.0, %v3701
        %v3703 = vpop.f32.mrb[0].mxu0
        %3704 = vdwg.mxu0
        %v3705 = vld [vmem:[#allocation3] sm:$0xff]
        %v3706 = vld [vmem:[#allocation3 + $0x8] sm:$0xff]
        %v3707 = vld [vmem:[#allocation3 + $0x10] sm:$0xff]
        %v3708 = vld [vmem:[#allocation3 + $0x18] sm:$0xff]
        %v3709 = vld [vmem:[#allocation3 + $0x20] sm:$0xff]
        %v3710 = vld [vmem:[#allocation3 + $0x28] sm:$0xff]
        %v3711 = vld [vmem:[#allocation3 + $0x30] sm:$0xff]
        %v3712 = vld [vmem:[#allocation3 + $0x38] sm:$0xff]
        %v3713 = vld [vmem:[#allocation3 + $0x40] sm:$0xff]
        %v3714 = vld [vmem:[#allocation3 + $0x48] sm:$0xff]
        %v3715 = vld [vmem:[#allocation3 + $0x50] sm:$0xff]
        %v3716 = vld [vmem:[#allocation3 + $0x58] sm:$0xff]
        %v3717 = vld [vmem:[#allocation3 + $0x60] sm:$0xff]
        %v3718 = vld [vmem:[#allocation3 + $0x68] sm:$0xff]
        %v3719 = vld [vmem:[#allocation3 + $0x70] sm:$0xff]
        %v3720 = vld [vmem:[#allocation3 + $0x78] sm:$0xff]
        %v3721 = vpack.c.bf16 %v3646, %v3643
        %v3722 = vpack.c.bf16 %v3654, %v3651
        %v3723 = vpack.c.bf16 %v3662, %v3659
        %v3724 = vpack.c.bf16 %v3670, %v3667
        %v3725 = vpack.c.bf16 %v3678, %v3675
        %v3726 = vpack.c.bf16 %v3686, %v3683
        %v3727 = vpack.c.bf16 %v3694, %v3691
        %v3728 = vpack.c.bf16 %v3702, %v3699
        %v3729 = vld [vmem:[#allocation9 + $0x18] sm:$0xf]
        %v3730 = vld [vmem:[#allocation9 + $0x1c] sm:$0xf]
        %v3733 = vunpack.c.l.b16 %v3729
        %v3734 = vunpack.c.l.b16 %v3730
        %v3735 = vpack.c.b16 %v3734, %v3733
        %v3738 = vsel %vm1045, %v3721, 0
        %v3741 = vsel %vm1045, %v3722, 0
        %v3744 = vsel %vm1045, %v3723, 0
        %v3747 = vsel %vm1045, %v3724, 0
        %v3750 = vsel %vm1045, %v3725, 0
        %v3753 = vsel %vm1045, %v3726, 0
        %v3756 = vsel %vm1045, %v3727, 0
        %v3759 = vsel %vm1045, %v3728, 0
        %3761 = vmatprep.subr.bf16.mxu0 0
        %3762 = vmatpush1.bf16.msra.mxu0 %v3735
        %3763 = vmatprep.subr.bf16.mxu0 0
        %3764 = vmatpush1.bf16.msra.mxu0 0
        %3765 = vmatprep.subr.bf16.mxu0 0
        %3766 = vmatpush1.bf16.msra.mxu0 0
        %3767 = vmatprep.subr.bf16.mxu0 0
        %3768 = vmatpush1.bf16.msra.mxu0 0
        %3769 = vmatprep.subr.bf16.mxu0 0
        %3770 = vmatpush1.bf16.msra.mxu0 0
        %3771 = vmatprep.subr.bf16.mxu0 0
        %3772 = vmatpush1.bf16.msra.mxu0 0
        %3773 = vmatprep.subr.bf16.mxu0 0
        %3774 = vmatpush1.bf16.msra.mxu0 0
        %3775 = vmatprep.subr.bf16.mxu0 0
        %3776 = vmatpush1.bf16.msra.mxu0 0
        %3777 = vmatprep.subr.bf16.mxu0 0
        %3778 = vmatpush1.bf16.msra.mxu0 0
        %3779 = vmatprep.subr.bf16.mxu0 0
        %3780 = vmatpush1.bf16.msra.mxu0 0
        %3781 = vmatprep.subr.bf16.mxu0 0
        %3782 = vmatpush1.bf16.msra.mxu0 0
        %3783 = vmatprep.subr.bf16.mxu0 0
        %3784 = vmatpush1.bf16.msra.mxu0 0
        %3785 = vmatprep.subr.bf16.mxu0 0
        %3786 = vmatpush1.bf16.msra.mxu0 0
        %3787 = vmatprep.subr.bf16.mxu0 0
        %3788 = vmatpush1.bf16.msra.mxu0 0
        %3789 = vmatprep.subr.bf16.mxu0 0
        %3790 = vmatpush1.bf16.msra.mxu0 0
        %3791 = vmatprep.subr.bf16.mxu0 0
        %3792 = vmatpush1.bf16.msra.mxu0 0
        %3793 = vmatprep.mubr.bf16.mxu0 0
        %3794 = vmatmul.mubr.bf16.gmra.mrb[0].mxu0 %v3738
        %v3795 = vpop.f32.mrb[0].mxu0
        %v3796 = vadd.f32 0.0, %v3795
        %v3797 = vpop.f32.mrb[0].mxu0
        %v3798 = vpop.f32.mrb[0].mxu0
        %v3799 = vadd.f32 0.0, %v3798
        %v3800 = vpop.f32.mrb[0].mxu0
        %3801 = vmatprep.mubr.bf16.mxu0 0
        %3802 = vmatmul.mubr.bf16.gmra.mrb[0].mxu0 %v3741
        %v3803 = vpop.f32.mrb[0].mxu0
        %v3804 = vadd.f32 0.0, %v3803
        %v3805 = vpop.f32.mrb[0].mxu0
        %v3806 = vpop.f32.mrb[0].mxu0
        %v3807 = vadd.f32 0.0, %v3806
        %v3808 = vpop.f32.mrb[0].mxu0
        %3809 = vmatprep.mubr.bf16.mxu0 0
        %3810 = vmatmul.mubr.bf16.gmra.mrb[0].mxu0 %v3744
        %v3811 = vpop.f32.mrb[0].mxu0
        %v3812 = vadd.f32 0.0, %v3811
        %v3813 = vpop.f32.mrb[0].mxu0
        %v3814 = vpop.f32.mrb[0].mxu0
        %v3815 = vadd.f32 0.0, %v3814
        %v3816 = vpop.f32.mrb[0].mxu0
        %3817 = vmatprep.mubr.bf16.mxu0 0
        %3818 = vmatmul.mubr.bf16.gmra.mrb[0].mxu0 %v3747
        %v3819 = vpop.f32.mrb[0].mxu0
        %v3820 = vadd.f32 0.0, %v3819
        %v3821 = vpop.f32.mrb[0].mxu0
        %v3822 = vpop.f32.mrb[0].mxu0
        %v3823 = vadd.f32 0.0, %v3822
        %v3824 = vpop.f32.mrb[0].mxu0
        %3825 = vmatprep.mubr.bf16.mxu0 0
        %3826 = vmatmul.mubr.bf16.gmra.mrb[0].mxu0 %v3750
        %v3827 = vpop.f32.mrb[0].mxu0
        %v3828 = vadd.f32 0.0, %v3827
        %v3829 = vpop.f32.mrb[0].mxu0
        %v3830 = vpop.f32.mrb[0].mxu0
        %v3831 = vadd.f32 0.0, %v3830
        %v3832 = vpop.f32.mrb[0].mxu0
        %3833 = vmatprep.mubr.bf16.mxu0 0
        %3834 = vmatmul.mubr.bf16.gmra.mrb[0].mxu0 %v3753
        %v3835 = vpop.f32.mrb[0].mxu0
        %v3836 = vadd.f32 0.0, %v3835
        %v3837 = vpop.f32.mrb[0].mxu0
        %v3838 = vpop.f32.mrb[0].mxu0
        %v3839 = vadd.f32 0.0, %v3838
        %v3840 = vpop.f32.mrb[0].mxu0
        %3841 = vmatprep.mubr.bf16.mxu0 0
        %3842 = vmatmul.mubr.bf16.gmra.mrb[0].mxu0 %v3756
        %v3843 = vpop.f32.mrb[0].mxu0
        %v3844 = vadd.f32 0.0, %v3843
        %v3845 = vpop.f32.mrb[0].mxu0
        %v3846 = vpop.f32.mrb[0].mxu0
        %v3847 = vadd.f32 0.0, %v3846
        %v3848 = vpop.f32.mrb[0].mxu0
        %3849 = vmatprep.mubr.bf16.mxu0 0
        %3850 = vmatmul.mubr.bf16.gmra.mrb[0].mxu0 %v3759
        %v3851 = vpop.f32.mrb[0].mxu0
        %v3852 = vadd.f32 0.0, %v3851
        %v3853 = vpop.f32.mrb[0].mxu0
        %v3854 = vpop.f32.mrb[0].mxu0
        %v3855 = vadd.f32 0.0, %v3854
        %v3856 = vpop.f32.mrb[0].mxu0
        %3857 = vdwg.mxu0
        %v3858 = vadd.f32 %v3705, %v3796
        %v3859 = vadd.f32 %v3706, %v3799
        %v3860 = vadd.f32 %v3707, %v3804
        %v3861 = vadd.f32 %v3708, %v3807
        %v3862 = vadd.f32 %v3709, %v3812
        %v3863 = vadd.f32 %v3710, %v3815
        %v3864 = vadd.f32 %v3711, %v3820
        %v3865 = vadd.f32 %v3712, %v3823
        %v3866 = vadd.f32 %v3713, %v3828
        %v3867 = vadd.f32 %v3714, %v3831
        %v3868 = vadd.f32 %v3715, %v3836
        %v3869 = vadd.f32 %v3716, %v3839
        %v3870 = vadd.f32 %v3717, %v3844
        %v3871 = vadd.f32 %v3718, %v3847
        %v3872 = vadd.f32 %v3719, %v3852
        %v3873 = vadd.f32 %v3720, %v3855
        %3874 = vst [vmem:[#allocation3] sm:$0xff] %v3858
        %3875 = vst [vmem:[#allocation3 + $0x8] sm:$0xff] %v3859
        %3876 = vst [vmem:[#allocation3 + $0x10] sm:$0xff] %v3860
        %3877 = vst [vmem:[#allocation3 + $0x18] sm:$0xff] %v3861
        %3878 = vst [vmem:[#allocation3 + $0x20] sm:$0xff] %v3862
        %3879 = vst [vmem:[#allocation3 + $0x28] sm:$0xff] %v3863
        %3880 = vst [vmem:[#allocation3 + $0x30] sm:$0xff] %v3864
        %3881 = vst [vmem:[#allocation3 + $0x38] sm:$0xff] %v3865
        %3882 = vst [vmem:[#allocation3 + $0x40] sm:$0xff] %v3866
        %3883 = vst [vmem:[#allocation3 + $0x48] sm:$0xff] %v3867
        %3884 = vst [vmem:[#allocation3 + $0x50] sm:$0xff] %v3868
        %3885 = vst [vmem:[#allocation3 + $0x58] sm:$0xff] %v3869
        %3886 = vst [vmem:[#allocation3 + $0x60] sm:$0xff] %v3870
        %3887 = vst [vmem:[#allocation3 + $0x68] sm:$0xff] %v3871
        %3888 = vst [vmem:[#allocation3 + $0x70] sm:$0xff] %v3872
        %3889 = vst [vmem:[#allocation3 + $0x78] sm:$0xff] %v3873
        %v3890 = vld [vmem:[#allocation2] sm:$0xff]
        %v3891 = vld [vmem:[#allocation2 + $0x18] sm:$0xff]
        %v3892 = vld [vmem:[#allocation2 + $0x30] sm:$0xff]
        %v3893 = vld [vmem:[#allocation2 + $0x48] sm:$0xff]
        %v3894 = vld [vmem:[#allocation2 + $0x60] sm:$0xff]
        %v3895 = vld [vmem:[#allocation2 + $0x78] sm:$0xff]
        %v3896 = vld [vmem:[#allocation2 + $0x90] sm:$0xff]
        %v3897 = vld [vmem:[#allocation2 + $0xa8] sm:$0xff]
        %v3898 = vld [vmem:[#allocation2 + $0xc0] sm:$0xff]
        %v3899 = vld [vmem:[#allocation2 + $0xd8] sm:$0xff]
        %v3900 = vld [vmem:[#allocation2 + $0xf0] sm:$0xff]
        %v3901 = vld [vmem:[#allocation2 + $0x108] sm:$0xff]
        %v3902 = vld [vmem:[#allocation2 + $0x120] sm:$0xff]
        %v3903 = vld [vmem:[#allocation2 + $0x138] sm:$0xff]
        %v3904 = vld [vmem:[#allocation2 + $0x150] sm:$0xff]
        %v3905 = vld [vmem:[#allocation2 + $0x168] sm:$0xff]
        %v3906 = vld [vmem:[#allocation2 + $0x8] sm:$0xff]
        %v3907 = vld [vmem:[#allocation2 + $0x20] sm:$0xff]
        %v3908 = vld [vmem:[#allocation2 + $0x38] sm:$0xff]
        %v3909 = vld [vmem:[#allocation2 + $0x50] sm:$0xff]
        %v3910 = vld [vmem:[#allocation2 + $0x68] sm:$0xff]
        %v3911 = vld [vmem:[#allocation2 + $0x80] sm:$0xff]
        %v3912 = vld [vmem:[#allocation2 + $0x98] sm:$0xff]
        %v3913 = vld [vmem:[#allocation2 + $0xb0] sm:$0xff]
        %v3914 = vld [vmem:[#allocation2 + $0xc8] sm:$0xff]
        %v3915 = vld [vmem:[#allocation2 + $0xe0] sm:$0xff]
        %v3916 = vld [vmem:[#allocation2 + $0xf8] sm:$0xff]
        %v3917 = vld [vmem:[#allocation2 + $0x110] sm:$0xff]
        %v3918 = vld [vmem:[#allocation2 + $0x128] sm:$0xff]
        %v3919 = vld [vmem:[#allocation2 + $0x140] sm:$0xff]
        %v3920 = vld [vmem:[#allocation2 + $0x158] sm:$0xff]
        %v3921 = vld [vmem:[#allocation2 + $0x170] sm:$0xff]
        %v3922 = vld [vmem:[#allocation2 + $0x10] sm:$0xff]
        %v3923 = vld [vmem:[#allocation2 + $0x28] sm:$0xff]
        %v3924 = vld [vmem:[#allocation2 + $0x40] sm:$0xff]
        %v3925 = vld [vmem:[#allocation2 + $0x58] sm:$0xff]
        %v3926 = vld [vmem:[#allocation2 + $0x70] sm:$0xff]
        %v3927 = vld [vmem:[#allocation2 + $0x88] sm:$0xff]
        %v3928 = vld [vmem:[#allocation2 + $0xa0] sm:$0xff]
        %v3929 = vld [vmem:[#allocation2 + $0xb8] sm:$0xff]
        %v3930 = vld [vmem:[#allocation2 + $0xd0] sm:$0xff]
        %v3931 = vld [vmem:[#allocation2 + $0xe8] sm:$0xff]
        %v3932 = vld [vmem:[#allocation2 + $0x100] sm:$0xff]
        %v3933 = vld [vmem:[#allocation2 + $0x118] sm:$0xff]
        %v3934 = vld [vmem:[#allocation2 + $0x130] sm:$0xff]
        %v3935 = vld [vmem:[#allocation2 + $0x148] sm:$0xff]
        %v3936 = vld [vmem:[#allocation2 + $0x160] sm:$0xff]
        %v3937 = vld [vmem:[#allocation2 + $0x178] sm:$0xff]
        %v3938 = vpack.c.bf16 %v3891, %v3890
        %v3939 = vpack.c.bf16 %v3893, %v3892
        %v3940 = vpack.c.bf16 %v3895, %v3894
        %v3941 = vpack.c.bf16 %v3897, %v3896
        %v3942 = vpack.c.bf16 %v3899, %v3898
        %v3943 = vpack.c.bf16 %v3901, %v3900
        %v3944 = vpack.c.bf16 %v3903, %v3902
        %v3945 = vpack.c.bf16 %v3905, %v3904
        %v3946 = vpack.c.bf16 %v3907, %v3906
        %v3947 = vpack.c.bf16 %v3909, %v3908
        %v3948 = vpack.c.bf16 %v3911, %v3910
        %v3949 = vpack.c.bf16 %v3913, %v3912
        %v3950 = vpack.c.bf16 %v3915, %v3914
        %v3951 = vpack.c.bf16 %v3917, %v3916
        %v3952 = vpack.c.bf16 %v3919, %v3918
        %v3953 = vpack.c.bf16 %v3921, %v3920
        %3962 = vrot.lane.b32.xlu0 %v3938, 64
        %v3963 = vpop.permute.xlu0 %3962
        %3964 = vrot.lane.b32.xlu0 %v3939, 64
        %v3965 = vpop.permute.xlu0 %3964
        %3966 = vrot.lane.b32.xlu0 %v3940, 64
        %v3967 = vpop.permute.xlu0 %3966
        %3968 = vrot.lane.b32.xlu0 %v3941, 64
        %v3969 = vpop.permute.xlu0 %3968
        %3970 = vrot.lane.b32.xlu0 %v3942, 64
        %v3971 = vpop.permute.xlu0 %3970
        %3972 = vrot.lane.b32.xlu0 %v3943, 64
        %v3973 = vpop.permute.xlu0 %3972
        %3974 = vrot.lane.b32.xlu0 %v3944, 64
        %v3975 = vpop.permute.xlu0 %3974
        %3976 = vrot.lane.b32.xlu0 %v3945, 64
        %v3977 = vpop.permute.xlu0 %3976
        %3986 = vrot.lane.b32.xlu0 %v3946, 64
        %v3987 = vpop.permute.xlu0 %3986
        %3988 = vrot.lane.b32.xlu0 %v3947, 64
        %v3989 = vpop.permute.xlu0 %3988
        %3990 = vrot.lane.b32.xlu0 %v3948, 64
        %v3991 = vpop.permute.xlu0 %3990
        %3992 = vrot.lane.b32.xlu0 %v3949, 64
        %v3993 = vpop.permute.xlu0 %3992
        %3994 = vrot.lane.b32.xlu0 %v3950, 64
        %v3995 = vpop.permute.xlu0 %3994
        %3996 = vrot.lane.b32.xlu0 %v3951, 64
        %v3997 = vpop.permute.xlu0 %3996
        %3998 = vrot.lane.b32.xlu0 %v3952, 64
        %v3999 = vpop.permute.xlu0 %3998
        %4000 = vrot.lane.b32.xlu0 %v3953, 64
        %v4001 = vpop.permute.xlu0 %4000
        %v4003 = vsel %vm1045, %v3963, 0
        %v4006 = vsel %vm1045, %v3965, 0
        %v4009 = vsel %vm1045, %v3967, 0
        %v4012 = vsel %vm1045, %v3969, 0
        %v4015 = vsel %vm1045, %v3971, 0
        %v4018 = vsel %vm1045, %v3973, 0
        %v4021 = vsel %vm1045, %v3975, 0
        %v4024 = vsel %vm1045, %v3977, 0
        %v4027 = vsel %vm1045, %v3987, 0
        %v4030 = vsel %vm1045, %v3989, 0
        %v4033 = vsel %vm1045, %v3991, 0
        %v4036 = vsel %vm1045, %v3993, 0
        %v4039 = vsel %vm1045, %v3995, 0
        %v4042 = vsel %vm1045, %v3997, 0
        %v4045 = vsel %vm1045, %v3999, 0
        %v4048 = vsel %vm1045, %v4001, 0
        %4050 = vmatprep.subr.bf16.mxu0 0
        %4051 = vmatpush1.bf16.xpose.msra.mxu0 %v4027
        %4052 = vmatprep.subr.bf16.mxu0 0
        %4053 = vmatpush1.bf16.xpose.msra.mxu0 %v4030
        %4054 = vmatprep.subr.bf16.mxu0 0
        %4055 = vmatpush1.bf16.xpose.msra.mxu0 %v4033
        %4056 = vmatprep.subr.bf16.mxu0 0
        %4057 = vmatpush1.bf16.xpose.msra.mxu0 %v4036
        %4058 = vmatprep.subr.bf16.mxu0 0
        %4059 = vmatpush1.bf16.xpose.msra.mxu0 %v4039
        %4060 = vmatprep.subr.bf16.mxu0 0
        %4061 = vmatpush1.bf16.xpose.msra.mxu0 %v4042
        %4062 = vmatprep.subr.bf16.mxu0 0
        %4063 = vmatpush1.bf16.xpose.msra.mxu0 %v4045
        %4064 = vmatprep.subr.bf16.mxu0 0
        %4065 = vmatpush1.bf16.xpose.msra.mxu0 %v4048
        %4066 = vmatprep.subr.bf16.mxu0 0
        %4067 = vmatpush1.bf16.xpose.msra.mxu0 0
        %4068 = vmatprep.subr.bf16.mxu0 0
        %4069 = vmatpush1.bf16.xpose.msra.mxu0 0
        %4070 = vmatprep.subr.bf16.mxu0 0
        %4071 = vmatpush1.bf16.xpose.msra.mxu0 0
        %4072 = vmatprep.subr.bf16.mxu0 0
        %4073 = vmatpush1.bf16.xpose.msra.mxu0 0
        %4074 = vmatprep.subr.bf16.mxu0 0
        %4075 = vmatpush1.bf16.xpose.msra.mxu0 0
        %4076 = vmatprep.subr.bf16.mxu0 0
        %4077 = vmatpush1.bf16.xpose.msra.mxu0 0
        %4078 = vmatprep.subr.bf16.mxu0 0
        %4079 = vmatpush1.bf16.xpose.msra.mxu0 0
        %4080 = vmatprep.subr.bf16.mxu0 0
        %4081 = vmatpush1.bf16.xpose.msra.mxu0 0
        %4082 = vmatprep.mubr.bf16.mxu0 0
        %4083 = vmatmul.mubr.bf16.gmra.mrb[0].mxu0 %v4003
        %v4084 = vpop.f32.mrb[0].mxu0
        %v4085 = vadd.f32 0.0, %v4084
        %v4086 = vpop.f32.mrb[0].mxu0
        %v4087 = vpop.f32.mrb[0].mxu0
        %v4088 = vadd.f32 0.0, %v4087
        %v4089 = vpop.f32.mrb[0].mxu0
        %4090 = vmatprep.mubr.bf16.mxu0 0
        %4091 = vmatmul.mubr.bf16.gmra.mrb[0].mxu0 %v4006
        %v4092 = vpop.f32.mrb[0].mxu0
        %v4093 = vadd.f32 0.0, %v4092
        %v4094 = vpop.f32.mrb[0].mxu0
        %v4095 = vpop.f32.mrb[0].mxu0
        %v4096 = vadd.f32 0.0, %v4095
        %v4097 = vpop.f32.mrb[0].mxu0
        %4098 = vmatprep.mubr.bf16.mxu0 0
        %4099 = vmatmul.mubr.bf16.gmra.mrb[0].mxu0 %v4009
        %v4100 = vpop.f32.mrb[0].mxu0
        %v4101 = vadd.f32 0.0, %v4100
        %v4102 = vpop.f32.mrb[0].mxu0
        %v4103 = vpop.f32.mrb[0].mxu0
        %v4104 = vadd.f32 0.0, %v4103
        %v4105 = vpop.f32.mrb[0].mxu0
        %4106 = vmatprep.mubr.bf16.mxu0 0
        %4107 = vmatmul.mubr.bf16.gmra.mrb[0].mxu0 %v4012
        %v4108 = vpop.f32.mrb[0].mxu0
        %v4109 = vadd.f32 0.0, %v4108
        %v4110 = vpop.f32.mrb[0].mxu0
        %v4111 = vpop.f32.mrb[0].mxu0
        %v4112 = vadd.f32 0.0, %v4111
        %v4113 = vpop.f32.mrb[0].mxu0
        %4114 = vmatprep.mubr.bf16.mxu0 0
        %4115 = vmatmul.mubr.bf16.gmra.mrb[0].mxu0 %v4015
        %v4116 = vpop.f32.mrb[0].mxu0
        %v4117 = vadd.f32 0.0, %v4116
        %v4118 = vpop.f32.mrb[0].mxu0
        %v4119 = vpop.f32.mrb[0].mxu0
        %v4120 = vadd.f32 0.0, %v4119
        %v4121 = vpop.f32.mrb[0].mxu0
        %4122 = vmatprep.mubr.bf16.mxu0 0
        %4123 = vmatmul.mubr.bf16.gmra.mrb[0].mxu0 %v4018
        %v4124 = vpop.f32.mrb[0].mxu0
        %v4125 = vadd.f32 0.0, %v4124
        %v4126 = vpop.f32.mrb[0].mxu0
        %v4127 = vpop.f32.mrb[0].mxu0
        %v4128 = vadd.f32 0.0, %v4127
        %v4129 = vpop.f32.mrb[0].mxu0
        %4130 = vmatprep.mubr.bf16.mxu0 0
        %4131 = vmatmul.mubr.bf16.gmra.mrb[0].mxu0 %v4021
        %v4132 = vpop.f32.mrb[0].mxu0
        %v4133 = vadd.f32 0.0, %v4132
        %v4134 = vpop.f32.mrb[0].mxu0
        %v4135 = vpop.f32.mrb[0].mxu0
        %v4136 = vadd.f32 0.0, %v4135
        %v4137 = vpop.f32.mrb[0].mxu0
        %4138 = vmatprep.mubr.bf16.mxu0 0
        %4139 = vmatmul.mubr.bf16.gmra.mrb[0].mxu0 %v4024
        %v4140 = vpop.f32.mrb[0].mxu0
        %v4141 = vadd.f32 0.0, %v4140
        %v4142 = vpop.f32.mrb[0].mxu0
        %v4143 = vpop.f32.mrb[0].mxu0
        %v4144 = vadd.f32 0.0, %v4143
        %v4145 = vpop.f32.mrb[0].mxu0
        %4146 = vdwg.mxu0
        %v4147 = vmul.f32 %v4085, 0.25
        %v4148 = vmul.f32 %v4088, 0.25
        %v4149 = vmul.f32 %v4093, 0.25
        %v4150 = vmul.f32 %v4096, 0.25
        %v4151 = vmul.f32 %v4101, 0.25
        %v4152 = vmul.f32 %v4104, 0.25
        %v4153 = vmul.f32 %v4109, 0.25
        %v4154 = vmul.f32 %v4112, 0.25
        %v4155 = vmul.f32 %v4117, 0.25
        %v4156 = vmul.f32 %v4120, 0.25
        %v4157 = vmul.f32 %v4125, 0.25
        %v4158 = vmul.f32 %v4128, 0.25
        %v4159 = vmul.f32 %v4133, 0.25
        %v4160 = vmul.f32 %v4136, 0.25
        %v4161 = vmul.f32 %v4141, 0.25
        %v4162 = vmul.f32 %v4144, 0.25
        %4163 = vmax.xlane.f32.xlu0 %v4147
        %v4164 = vpop.xlane.xlu0 %4163
        %4165 = vmax.xlane.f32.xlu0 %v4148
        %v4166 = vpop.xlane.xlu0 %4165
        %4167 = vmax.xlane.f32.xlu0 %v4149
        %v4168 = vpop.xlane.xlu0 %4167
        %4169 = vmax.xlane.f32.xlu0 %v4150
        %v4170 = vpop.xlane.xlu0 %4169
        %4171 = vmax.xlane.f32.xlu0 %v4151
        %v4172 = vpop.xlane.xlu0 %4171
        %4173 = vmax.xlane.f32.xlu0 %v4152
        %v4174 = vpop.xlane.xlu0 %4173
        %4175 = vmax.xlane.f32.xlu0 %v4153
        %v4176 = vpop.xlane.xlu0 %4175
        %4177 = vmax.xlane.f32.xlu0 %v4154
        %v4178 = vpop.xlane.xlu0 %4177
        %4179 = vmax.xlane.f32.xlu0 %v4155
        %v4180 = vpop.xlane.xlu0 %4179
        %4181 = vmax.xlane.f32.xlu0 %v4156
        %v4182 = vpop.xlane.xlu0 %4181
        %4183 = vmax.xlane.f32.xlu0 %v4157
        %v4184 = vpop.xlane.xlu0 %4183
        %4185 = vmax.xlane.f32.xlu0 %v4158
        %v4186 = vpop.xlane.xlu0 %4185
        %4187 = vmax.xlane.f32.xlu0 %v4159
        %v4188 = vpop.xlane.xlu0 %4187
        %4189 = vmax.xlane.f32.xlu0 %v4160
        %v4190 = vpop.xlane.xlu0 %4189
        %4191 = vmax.xlane.f32.xlu0 %v4161
        %v4192 = vpop.xlane.xlu0 %4191
        %4193 = vmax.xlane.f32.xlu0 %v4162
        %v4194 = vpop.xlane.xlu0 %4193
        %v4195 = vsub.f32 %v4147, %v4164
        %v4196 = vsub.f32 %v4148, %v4166
        %v4197 = vsub.f32 %v4149, %v4168
        %v4198 = vsub.f32 %v4150, %v4170
        %v4199 = vsub.f32 %v4151, %v4172
        %v4200 = vsub.f32 %v4152, %v4174
        %v4201 = vsub.f32 %v4153, %v4176
        %v4202 = vsub.f32 %v4154, %v4178
        %v4203 = vsub.f32 %v4155, %v4180
        %v4204 = vsub.f32 %v4156, %v4182
        %v4205 = vsub.f32 %v4157, %v4184
        %v4206 = vsub.f32 %v4158, %v4186
        %v4207 = vsub.f32 %v4159, %v4188
        %v4208 = vsub.f32 %v4160, %v4190
        %v4209 = vsub.f32 %v4161, %v4192
        %v4210 = vsub.f32 %v4162, %v4194
        %v4211 = vmul.f32 %v4195, 1.442695
        %v4212 = vpow.pop %v4211
        %v4213 = vmul.f32 %v4196, 1.442695
        %v4214 = vpow.pop %v4213
        %v4215 = vmul.f32 %v4197, 1.442695
        %v4216 = vpow.pop %v4215
        %v4217 = vmul.f32 %v4198, 1.442695
        %v4218 = vpow.pop %v4217
        %v4219 = vmul.f32 %v4199, 1.442695
        %v4220 = vpow.pop %v4219
        %v4221 = vmul.f32 %v4200, 1.442695
        %v4222 = vpow.pop %v4221
        %v4223 = vmul.f32 %v4201, 1.442695
        %v4224 = vpow.pop %v4223
        %v4225 = vmul.f32 %v4202, 1.442695
        %v4226 = vpow.pop %v4225
        %v4227 = vmul.f32 %v4203, 1.442695
        %v4228 = vpow.pop %v4227
        %v4229 = vmul.f32 %v4204, 1.442695
        %v4230 = vpow.pop %v4229
        %v4231 = vmul.f32 %v4205, 1.442695
        %v4232 = vpow.pop %v4231
        %v4233 = vmul.f32 %v4206, 1.442695
        %v4234 = vpow.pop %v4233
        %v4235 = vmul.f32 %v4207, 1.442695
        %v4236 = vpow.pop %v4235
        %v4237 = vmul.f32 %v4208, 1.442695
        %v4238 = vpow.pop %v4237
        %v4239 = vmul.f32 %v4209, 1.442695
        %v4240 = vpow.pop %v4239
        %v4241 = vmul.f32 %v4210, 1.442695
        %v4242 = vpow.pop %v4241
        %4243 = vadd.xlane.f32.xlu0 %v4212
        %v4244 = vpop.xlane.xlu0 %4243
        %4245 = vadd.xlane.f32.xlu0 %v4214
        %v4246 = vpop.xlane.xlu0 %4245
        %4247 = vadd.xlane.f32.xlu0 %v4216
        %v4248 = vpop.xlane.xlu0 %4247
        %4249 = vadd.xlane.f32.xlu0 %v4218
        %v4250 = vpop.xlane.xlu0 %4249
        %4251 = vadd.xlane.f32.xlu0 %v4220
        %v4252 = vpop.xlane.xlu0 %4251
        %4253 = vadd.xlane.f32.xlu0 %v4222
        %v4254 = vpop.xlane.xlu0 %4253
        %4255 = vadd.xlane.f32.xlu0 %v4224
        %v4256 = vpop.xlane.xlu0 %4255
        %4257 = vadd.xlane.f32.xlu0 %v4226
        %v4258 = vpop.xlane.xlu0 %4257
        %4259 = vadd.xlane.f32.xlu0 %v4228
        %v4260 = vpop.xlane.xlu0 %4259
        %4261 = vadd.xlane.f32.xlu0 %v4230
        %v4262 = vpop.xlane.xlu0 %4261
        %4263 = vadd.xlane.f32.xlu0 %v4232
        %v4264 = vpop.xlane.xlu0 %4263
        %4265 = vadd.xlane.f32.xlu0 %v4234
        %v4266 = vpop.xlane.xlu0 %4265
        %4267 = vadd.xlane.f32.xlu0 %v4236
        %v4268 = vpop.xlane.xlu0 %4267
        %4269 = vadd.xlane.f32.xlu0 %v4238
        %v4270 = vpop.xlane.xlu0 %4269
        %4271 = vadd.xlane.f32.xlu0 %v4240
        %v4272 = vpop.xlane.xlu0 %4271
        %4273 = vadd.xlane.f32.xlu0 %v4242
        %v4274 = vpop.xlane.xlu0 %4273
        %v4275 = vrcp.pop %v4244
        %v4276 = vmul.f32 %v4212, %v4275
        %v4277 = vrcp.pop %v4246
        %v4278 = vmul.f32 %v4214, %v4277
        %v4279 = vrcp.pop %v4248
        %v4280 = vmul.f32 %v4216, %v4279
        %v4281 = vrcp.pop %v4250
        %v4282 = vmul.f32 %v4218, %v4281
        %v4283 = vrcp.pop %v4252
        %v4284 = vmul.f32 %v4220, %v4283
        %v4285 = vrcp.pop %v4254
        %v4286 = vmul.f32 %v4222, %v4285
        %v4287 = vrcp.pop %v4256
        %v4288 = vmul.f32 %v4224, %v4287
        %v4289 = vrcp.pop %v4258
        %v4290 = vmul.f32 %v4226, %v4289
        %v4291 = vrcp.pop %v4260
        %v4292 = vmul.f32 %v4228, %v4291
        %v4293 = vrcp.pop %v4262
        %v4294 = vmul.f32 %v4230, %v4293
        %v4295 = vrcp.pop %v4264
        %v4296 = vmul.f32 %v4232, %v4295
        %v4297 = vrcp.pop %v4266
        %v4298 = vmul.f32 %v4234, %v4297
        %v4299 = vrcp.pop %v4268
        %v4300 = vmul.f32 %v4236, %v4299
        %v4301 = vrcp.pop %v4270
        %v4302 = vmul.f32 %v4238, %v4301
        %v4303 = vrcp.pop %v4272
        %v4304 = vmul.f32 %v4240, %v4303
        %v4305 = vrcp.pop %v4274
        %v4306 = vmul.f32 %v4242, %v4305
        %v4307 = vpack.c.bf16 %v4278, %v4276
        %v4308 = vpack.c.bf16 %v4282, %v4280
        %v4309 = vpack.c.bf16 %v4286, %v4284
        %v4310 = vpack.c.bf16 %v4290, %v4288
        %v4311 = vpack.c.bf16 %v4294, %v4292
        %v4312 = vpack.c.bf16 %v4298, %v4296
        %v4313 = vpack.c.bf16 %v4302, %v4300
        %v4314 = vpack.c.bf16 %v4306, %v4304
        %v4315 = vpack.c.bf16 %v3923, %v3922
        %v4316 = vpack.c.bf16 %v3925, %v3924
        %v4317 = vpack.c.bf16 %v3927, %v3926
        %v4318 = vpack.c.bf16 %v3929, %v3928
        %v4319 = vpack.c.bf16 %v3931, %v3930
        %v4320 = vpack.c.bf16 %v3933, %v3932
        %v4321 = vpack.c.bf16 %v3935, %v3934
        %v4322 = vpack.c.bf16 %v3937, %v3936
        %4331 = vrot.lane.b32.xlu0 %v4315, 64
        %v4332 = vpop.permute.xlu0 %4331
        %4333 = vrot.lane.b32.xlu0 %v4316, 64
        %v4334 = vpop.permute.xlu0 %4333
        %4335 = vrot.lane.b32.xlu0 %v4317, 64
        %v4336 = vpop.permute.xlu0 %4335
        %4337 = vrot.lane.b32.xlu0 %v4318, 64
        %v4338 = vpop.permute.xlu0 %4337
        %4339 = vrot.lane.b32.xlu0 %v4319, 64
        %v4340 = vpop.permute.xlu0 %4339
        %4341 = vrot.lane.b32.xlu0 %v4320, 64
        %v4342 = vpop.permute.xlu0 %4341
        %4343 = vrot.lane.b32.xlu0 %v4321, 64
        %v4344 = vpop.permute.xlu0 %4343
        %4345 = vrot.lane.b32.xlu0 %v4322, 64
        %v4346 = vpop.permute.xlu0 %4345
        %4355 = vmatprep.subr.bf16.mxu0 0
        %4356 = vmatpush1.bf16.msra.mxu0 %v4332
        %4357 = vmatprep.subr.bf16.mxu0 0
        %4358 = vmatpush1.bf16.msra.mxu0 %v4334
        %4359 = vmatprep.subr.bf16.mxu0 0
        %4360 = vmatpush1.bf16.msra.mxu0 %v4336
        %4361 = vmatprep.subr.bf16.mxu0 0
        %4362 = vmatpush1.bf16.msra.mxu0 %v4338
        %4363 = vmatprep.subr.bf16.mxu0 0
        %4364 = vmatpush1.bf16.msra.mxu0 %v4340
        %4365 = vmatprep.subr.bf16.mxu0 0
        %4366 = vmatpush1.bf16.msra.mxu0 %v4342
        %4367 = vmatprep.subr.bf16.mxu0 0
        %4368 = vmatpush1.bf16.msra.mxu0 %v4344
        %4369 = vmatprep.subr.bf16.mxu0 0
        %4370 = vmatpush1.bf16.msra.mxu0 %v4346
        %4371 = vmatprep.subr.bf16.mxu0 0
        %4372 = vmatpush1.bf16.msra.mxu0 0
        %4373 = vmatprep.subr.bf16.mxu0 0
        %4374 = vmatpush1.bf16.msra.mxu0 0
        %4375 = vmatprep.subr.bf16.mxu0 0
        %4376 = vmatpush1.bf16.msra.mxu0 0
        %4377 = vmatprep.subr.bf16.mxu0 0
        %4378 = vmatpush1.bf16.msra.mxu0 0
        %4379 = vmatprep.subr.bf16.mxu0 0
        %4380 = vmatpush1.bf16.msra.mxu0 0
        %4381 = vmatprep.subr.bf16.mxu0 0
        %4382 = vmatpush1.bf16.msra.mxu0 0
        %4383 = vmatprep.subr.bf16.mxu0 0
        %4384 = vmatpush1.bf16.msra.mxu0 0
        %4385 = vmatprep.subr.bf16.mxu0 0
        %4386 = vmatpush1.bf16.msra.mxu0 0
        %4387 = vmatprep.mubr.bf16.mxu0 0
        %4388 = vmatmul.mubr.bf16.gmra.mrb[0].mxu0 %v4307
        %v4389 = vpop.f32.mrb[0].mxu0
        %v4390 = vadd.f32 0.0, %v4389
        %v4391 = vpop.f32.mrb[0].mxu0
        %v4392 = vpop.f32.mrb[0].mxu0
        %v4393 = vadd.f32 0.0, %v4392
        %v4394 = vpop.f32.mrb[0].mxu0
        %4395 = vmatprep.mubr.bf16.mxu0 0
        %4396 = vmatmul.mubr.bf16.gmra.mrb[0].mxu0 %v4308
        %v4397 = vpop.f32.mrb[0].mxu0
        %v4398 = vadd.f32 0.0, %v4397
        %v4399 = vpop.f32.mrb[0].mxu0
        %v4400 = vpop.f32.mrb[0].mxu0
        %v4401 = vadd.f32 0.0, %v4400
        %v4402 = vpop.f32.mrb[0].mxu0
        %4403 = vmatprep.mubr.bf16.mxu0 0
        %4404 = vmatmul.mubr.bf16.gmra.mrb[0].mxu0 %v4309
        %v4405 = vpop.f32.mrb[0].mxu0
        %v4406 = vadd.f32 0.0, %v4405
        %v4407 = vpop.f32.mrb[0].mxu0
        %v4408 = vpop.f32.mrb[0].mxu0
        %v4409 = vadd.f32 0.0, %v4408
        %v4410 = vpop.f32.mrb[0].mxu0
        %4411 = vmatprep.mubr.bf16.mxu0 0
        %4412 = vmatmul.mubr.bf16.gmra.mrb[0].mxu0 %v4310
        %v4413 = vpop.f32.mrb[0].mxu0
        %v4414 = vadd.f32 0.0, %v4413
        %v4415 = vpop.f32.mrb[0].mxu0
        %v4416 = vpop.f32.mrb[0].mxu0
        %v4417 = vadd.f32 0.0, %v4416
        %v4418 = vpop.f32.mrb[0].mxu0
        %4419 = vmatprep.mubr.bf16.mxu0 0
        %4420 = vmatmul.mubr.bf16.gmra.mrb[0].mxu0 %v4311
        %v4421 = vpop.f32.mrb[0].mxu0
        %v4422 = vadd.f32 0.0, %v4421
        %v4423 = vpop.f32.mrb[0].mxu0
        %v4424 = vpop.f32.mrb[0].mxu0
        %v4425 = vadd.f32 0.0, %v4424
        %v4426 = vpop.f32.mrb[0].mxu0
        %4427 = vmatprep.mubr.bf16.mxu0 0
        %4428 = vmatmul.mubr.bf16.gmra.mrb[0].mxu0 %v4312
        %v4429 = vpop.f32.mrb[0].mxu0
        %v4430 = vadd.f32 0.0, %v4429
        %v4431 = vpop.f32.mrb[0].mxu0
        %v4432 = vpop.f32.mrb[0].mxu0
        %v4433 = vadd.f32 0.0, %v4432
        %v4434 = vpop.f32.mrb[0].mxu0
        %4435 = vmatprep.mubr.bf16.mxu0 0
        %4436 = vmatmul.mubr.bf16.gmra.mrb[0].mxu0 %v4313
        %v4437 = vpop.f32.mrb[0].mxu0
        %v4438 = vadd.f32 0.0, %v4437
        %v4439 = vpop.f32.mrb[0].mxu0
        %v4440 = vpop.f32.mrb[0].mxu0
        %v4441 = vadd.f32 0.0, %v4440
        %v4442 = vpop.f32.mrb[0].mxu0
        %4443 = vmatprep.mubr.bf16.mxu0 0
        %4444 = vmatmul.mubr.bf16.gmra.mrb[0].mxu0 %v4314
        %v4445 = vpop.f32.mrb[0].mxu0
        %v4446 = vadd.f32 0.0, %v4445
        %v4447 = vpop.f32.mrb[0].mxu0
        %v4448 = vpop.f32.mrb[0].mxu0
        %v4449 = vadd.f32 0.0, %v4448
        %v4450 = vpop.f32.mrb[0].mxu0
        %4451 = vdwg.mxu0
        %v4452 = vld [vmem:[#allocation3] sm:$0xff]
        %v4453 = vld [vmem:[#allocation3 + $0x8] sm:$0xff]
        %v4454 = vld [vmem:[#allocation3 + $0x10] sm:$0xff]
        %v4455 = vld [vmem:[#allocation3 + $0x18] sm:$0xff]
        %v4456 = vld [vmem:[#allocation3 + $0x20] sm:$0xff]
        %v4457 = vld [vmem:[#allocation3 + $0x28] sm:$0xff]
        %v4458 = vld [vmem:[#allocation3 + $0x30] sm:$0xff]
        %v4459 = vld [vmem:[#allocation3 + $0x38] sm:$0xff]
        %v4460 = vld [vmem:[#allocation3 + $0x40] sm:$0xff]
        %v4461 = vld [vmem:[#allocation3 + $0x48] sm:$0xff]
        %v4462 = vld [vmem:[#allocation3 + $0x50] sm:$0xff]
        %v4463 = vld [vmem:[#allocation3 + $0x58] sm:$0xff]
        %v4464 = vld [vmem:[#allocation3 + $0x60] sm:$0xff]
        %v4465 = vld [vmem:[#allocation3 + $0x68] sm:$0xff]
        %v4466 = vld [vmem:[#allocation3 + $0x70] sm:$0xff]
        %v4467 = vld [vmem:[#allocation3 + $0x78] sm:$0xff]
        %v4468 = vpack.c.bf16 %v4393, %v4390
        %v4469 = vpack.c.bf16 %v4401, %v4398
        %v4470 = vpack.c.bf16 %v4409, %v4406
        %v4471 = vpack.c.bf16 %v4417, %v4414
        %v4472 = vpack.c.bf16 %v4425, %v4422
        %v4473 = vpack.c.bf16 %v4433, %v4430
        %v4474 = vpack.c.bf16 %v4441, %v4438
        %v4475 = vpack.c.bf16 %v4449, %v4446
        %v4476 = vld [vmem:[#allocation9 + $0x20] sm:$0xf]
        %v4477 = vld [vmem:[#allocation9 + $0x24] sm:$0xf]
        %v4480 = vunpack.c.l.b16 %v4476
        %v4481 = vunpack.c.l.b16 %v4477
        %v4482 = vpack.c.b16 %v4481, %v4480
        %v4485 = vsel %vm1045, %v4468, 0
        %v4488 = vsel %vm1045, %v4469, 0
        %v4491 = vsel %vm1045, %v4470, 0
        %v4494 = vsel %vm1045, %v4471, 0
        %v4497 = vsel %vm1045, %v4472, 0
        %v4500 = vsel %vm1045, %v4473, 0
        %v4503 = vsel %vm1045, %v4474, 0
        %v4506 = vsel %vm1045, %v4475, 0
        %4508 = vmatprep.subr.bf16.mxu0 0
        %4509 = vmatpush1.bf16.msra.mxu0 %v4482
        %4510 = vmatprep.subr.bf16.mxu0 0
        %4511 = vmatpush1.bf16.msra.mxu0 0
        %4512 = vmatprep.subr.bf16.mxu0 0
        %4513 = vmatpush1.bf16.msra.mxu0 0
        %4514 = vmatprep.subr.bf16.mxu0 0
        %4515 = vmatpush1.bf16.msra.mxu0 0
        %4516 = vmatprep.subr.bf16.mxu0 0
        %4517 = vmatpush1.bf16.msra.mxu0 0
        %4518 = vmatprep.subr.bf16.mxu0 0
        %4519 = vmatpush1.bf16.msra.mxu0 0
        %4520 = vmatprep.subr.bf16.mxu0 0
        %4521 = vmatpush1.bf16.msra.mxu0 0
        %4522 = vmatprep.subr.bf16.mxu0 0
        %4523 = vmatpush1.bf16.msra.mxu0 0
        %4524 = vmatprep.subr.bf16.mxu0 0
        %4525 = vmatpush1.bf16.msra.mxu0 0
        %4526 = vmatprep.subr.bf16.mxu0 0
        %4527 = vmatpush1.bf16.msra.mxu0 0
        %4528 = vmatprep.subr.bf16.mxu0 0
        %4529 = vmatpush1.bf16.msra.mxu0 0
        %4530 = vmatprep.subr.bf16.mxu0 0
        %4531 = vmatpush1.bf16.msra.mxu0 0
        %4532 = vmatprep.subr.bf16.mxu0 0
        %4533 = vmatpush1.bf16.msra.mxu0 0
        %4534 = vmatprep.subr.bf16.mxu0 0
        %4535 = vmatpush1.bf16.msra.mxu0 0
        %4536 = vmatprep.subr.bf16.mxu0 0
        %4537 = vmatpush1.bf16.msra.mxu0 0
        %4538 = vmatprep.subr.bf16.mxu0 0
        %4539 = vmatpush1.bf16.msra.mxu0 0
        %4540 = vmatprep.mubr.bf16.mxu0 0
        %4541 = vmatmul.mubr.bf16.gmra.mrb[0].mxu0 %v4485
        %v4542 = vpop.f32.mrb[0].mxu0
        %v4543 = vadd.f32 0.0, %v4542
        %v4544 = vpop.f32.mrb[0].mxu0
        %v4545 = vpop.f32.mrb[0].mxu0
        %v4546 = vadd.f32 0.0, %v4545
        %v4547 = vpop.f32.mrb[0].mxu0
        %4548 = vmatprep.mubr.bf16.mxu0 0
        %4549 = vmatmul.mubr.bf16.gmra.mrb[0].mxu0 %v4488
        %v4550 = vpop.f32.mrb[0].mxu0
        %v4551 = vadd.f32 0.0, %v4550
        %v4552 = vpop.f32.mrb[0].mxu0
        %v4553 = vpop.f32.mrb[0].mxu0
        %v4554 = vadd.f32 0.0, %v4553
        %v4555 = vpop.f32.mrb[0].mxu0
        %4556 = vmatprep.mubr.bf16.mxu0 0
        %4557 = vmatmul.mubr.bf16.gmra.mrb[0].mxu0 %v4491
        %v4558 = vpop.f32.mrb[0].mxu0
        %v4559 = vadd.f32 0.0, %v4558
        %v4560 = vpop.f32.mrb[0].mxu0
        %v4561 = vpop.f32.mrb[0].mxu0
        %v4562 = vadd.f32 0.0, %v4561
        %v4563 = vpop.f32.mrb[0].mxu0
        %4564 = vmatprep.mubr.bf16.mxu0 0
        %4565 = vmatmul.mubr.bf16.gmra.mrb[0].mxu0 %v4494
        %v4566 = vpop.f32.mrb[0].mxu0
        %v4567 = vadd.f32 0.0, %v4566
        %v4568 = vpop.f32.mrb[0].mxu0
        %v4569 = vpop.f32.mrb[0].mxu0
        %v4570 = vadd.f32 0.0, %v4569
        %v4571 = vpop.f32.mrb[0].mxu0
        %4572 = vmatprep.mubr.bf16.mxu0 0
        %4573 = vmatmul.mubr.bf16.gmra.mrb[0].mxu0 %v4497
        %v4574 = vpop.f32.mrb[0].mxu0
        %v4575 = vadd.f32 0.0, %v4574
        %v4576 = vpop.f32.mrb[0].mxu0
        %v4577 = vpop.f32.mrb[0].mxu0
        %v4578 = vadd.f32 0.0, %v4577
        %v4579 = vpop.f32.mrb[0].mxu0
        %4580 = vmatprep.mubr.bf16.mxu0 0
        %4581 = vmatmul.mubr.bf16.gmra.mrb[0].mxu0 %v4500
        %v4582 = vpop.f32.mrb[0].mxu0
        %v4583 = vadd.f32 0.0, %v4582
        %v4584 = vpop.f32.mrb[0].mxu0
        %v4585 = vpop.f32.mrb[0].mxu0
        %v4586 = vadd.f32 0.0, %v4585
        %v4587 = vpop.f32.mrb[0].mxu0
        %4588 = vmatprep.mubr.bf16.mxu0 0
        %4589 = vmatmul.mubr.bf16.gmra.mrb[0].mxu0 %v4503
        %v4590 = vpop.f32.mrb[0].mxu0
        %v4591 = vadd.f32 0.0, %v4590
        %v4592 = vpop.f32.mrb[0].mxu0
        %v4593 = vpop.f32.mrb[0].mxu0
        %v4594 = vadd.f32 0.0, %v4593
        %v4595 = vpop.f32.mrb[0].mxu0
        %4596 = vmatprep.mubr.bf16.mxu0 0
        %4597 = vmatmul.mubr.bf16.gmra.mrb[0].mxu0 %v4506
        %v4598 = vpop.f32.mrb[0].mxu0
        %v4599 = vadd.f32 0.0, %v4598
        %v4600 = vpop.f32.mrb[0].mxu0
        %v4601 = vpop.f32.mrb[0].mxu0
        %v4602 = vadd.f32 0.0, %v4601
        %v4603 = vpop.f32.mrb[0].mxu0
        %4604 = vdwg.mxu0
        %v4605 = vadd.f32 %v4452, %v4543
        %v4606 = vadd.f32 %v4453, %v4546
        %v4607 = vadd.f32 %v4454, %v4551
        %v4608 = vadd.f32 %v4455, %v4554
        %v4609 = vadd.f32 %v4456, %v4559
        %v4610 = vadd.f32 %v4457, %v4562
        %v4611 = vadd.f32 %v4458, %v4567
        %v4612 = vadd.f32 %v4459, %v4570
        %v4613 = vadd.f32 %v4460, %v4575
        %v4614 = vadd.f32 %v4461, %v4578
        %v4615 = vadd.f32 %v4462, %v4583
        %v4616 = vadd.f32 %v4463, %v4586
        %v4617 = vadd.f32 %v4464, %v4591
        %v4618 = vadd.f32 %v4465, %v4594
        %v4619 = vadd.f32 %v4466, %v4599
        %v4620 = vadd.f32 %v4467, %v4602
        %4621 = vst [vmem:[#allocation3] sm:$0xff] %v4605
        %4622 = vst [vmem:[#allocation3 + $0x8] sm:$0xff] %v4606
        %4623 = vst [vmem:[#allocation3 + $0x10] sm:$0xff] %v4607
        %4624 = vst [vmem:[#allocation3 + $0x18] sm:$0xff] %v4608
        %4625 = vst [vmem:[#allocation3 + $0x20] sm:$0xff] %v4609
        %4626 = vst [vmem:[#allocation3 + $0x28] sm:$0xff] %v4610
        %4627 = vst [vmem:[#allocation3 + $0x30] sm:$0xff] %v4611
        %4628 = vst [vmem:[#allocation3 + $0x38] sm:$0xff] %v4612
        %4629 = vst [vmem:[#allocation3 + $0x40] sm:$0xff] %v4613
        %4630 = vst [vmem:[#allocation3 + $0x48] sm:$0xff] %v4614
        %4631 = vst [vmem:[#allocation3 + $0x50] sm:$0xff] %v4615
        %4632 = vst [vmem:[#allocation3 + $0x58] sm:$0xff] %v4616
        %4633 = vst [vmem:[#allocation3 + $0x60] sm:$0xff] %v4617
        %4634 = vst [vmem:[#allocation3 + $0x68] sm:$0xff] %v4618
        %4635 = vst [vmem:[#allocation3 + $0x70] sm:$0xff] %v4619
        %4636 = vst [vmem:[#allocation3 + $0x78] sm:$0xff] %v4620
        %v4637 = vld [vmem:[#allocation2] sm:$0xff]
        %v4638 = vld [vmem:[#allocation2 + $0x18] sm:$0xff]
        %v4639 = vld [vmem:[#allocation2 + $0x30] sm:$0xff]
        %v4640 = vld [vmem:[#allocation2 + $0x48] sm:$0xff]
        %v4641 = vld [vmem:[#allocation2 + $0x60] sm:$0xff]
        %v4642 = vld [vmem:[#allocation2 + $0x78] sm:$0xff]
        %v4643 = vld [vmem:[#allocation2 + $0x90] sm:$0xff]
        %v4644 = vld [vmem:[#allocation2 + $0xa8] sm:$0xff]
        %v4645 = vld [vmem:[#allocation2 + $0xc0] sm:$0xff]
        %v4646 = vld [vmem:[#allocation2 + $0xd8] sm:$0xff]
        %v4647 = vld [vmem:[#allocation2 + $0xf0] sm:$0xff]
        %v4648 = vld [vmem:[#allocation2 + $0x108] sm:$0xff]
        %v4649 = vld [vmem:[#allocation2 + $0x120] sm:$0xff]
        %v4650 = vld [vmem:[#allocation2 + $0x138] sm:$0xff]
        %v4651 = vld [vmem:[#allocation2 + $0x150] sm:$0xff]
        %v4652 = vld [vmem:[#allocation2 + $0x168] sm:$0xff]
        %v4653 = vld [vmem:[#allocation2 + $0x8] sm:$0xff]
        %v4654 = vld [vmem:[#allocation2 + $0x20] sm:$0xff]
        %v4655 = vld [vmem:[#allocation2 + $0x38] sm:$0xff]
        %v4656 = vld [vmem:[#allocation2 + $0x50] sm:$0xff]
        %v4657 = vld [vmem:[#allocation2 + $0x68] sm:$0xff]
        %v4658 = vld [vmem:[#allocation2 + $0x80] sm:$0xff]
        %v4659 = vld [vmem:[#allocation2 + $0x98] sm:$0xff]
        %v4660 = vld [vmem:[#allocation2 + $0xb0] sm:$0xff]
        %v4661 = vld [vmem:[#allocation2 + $0xc8] sm:$0xff]
        %v4662 = vld [vmem:[#allocation2 + $0xe0] sm:$0xff]
        %v4663 = vld [vmem:[#allocation2 + $0xf8] sm:$0xff]
        %v4664 = vld [vmem:[#allocation2 + $0x110] sm:$0xff]
        %v4665 = vld [vmem:[#allocation2 + $0x128] sm:$0xff]
        %v4666 = vld [vmem:[#allocation2 + $0x140] sm:$0xff]
        %v4667 = vld [vmem:[#allocation2 + $0x158] sm:$0xff]
        %v4668 = vld [vmem:[#allocation2 + $0x170] sm:$0xff]
        %v4669 = vld [vmem:[#allocation2 + $0x10] sm:$0xff]
        %v4670 = vld [vmem:[#allocation2 + $0x28] sm:$0xff]
        %v4671 = vld [vmem:[#allocation2 + $0x40] sm:$0xff]
        %v4672 = vld [vmem:[#allocation2 + $0x58] sm:$0xff]
        %v4673 = vld [vmem:[#allocation2 + $0x70] sm:$0xff]
        %v4674 = vld [vmem:[#allocation2 + $0x88] sm:$0xff]
        %v4675 = vld [vmem:[#allocation2 + $0xa0] sm:$0xff]
        %v4676 = vld [vmem:[#allocation2 + $0xb8] sm:$0xff]
        %v4677 = vld [vmem:[#allocation2 + $0xd0] sm:$0xff]
        %v4678 = vld [vmem:[#allocation2 + $0xe8] sm:$0xff]
        %v4679 = vld [vmem:[#allocation2 + $0x100] sm:$0xff]
        %v4680 = vld [vmem:[#allocation2 + $0x118] sm:$0xff]
        %v4681 = vld [vmem:[#allocation2 + $0x130] sm:$0xff]
        %v4682 = vld [vmem:[#allocation2 + $0x148] sm:$0xff]
        %v4683 = vld [vmem:[#allocation2 + $0x160] sm:$0xff]
        %v4684 = vld [vmem:[#allocation2 + $0x178] sm:$0xff]
        %v4685 = vpack.c.bf16 %v4638, %v4637
        %v4686 = vpack.c.bf16 %v4640, %v4639
        %v4687 = vpack.c.bf16 %v4642, %v4641
        %v4688 = vpack.c.bf16 %v4644, %v4643
        %v4689 = vpack.c.bf16 %v4646, %v4645
        %v4690 = vpack.c.bf16 %v4648, %v4647
        %v4691 = vpack.c.bf16 %v4650, %v4649
        %v4692 = vpack.c.bf16 %v4652, %v4651
        %v4693 = vpack.c.bf16 %v4654, %v4653
        %v4694 = vpack.c.bf16 %v4656, %v4655
        %v4695 = vpack.c.bf16 %v4658, %v4657
        %v4696 = vpack.c.bf16 %v4660, %v4659
        %v4697 = vpack.c.bf16 %v4662, %v4661
        %v4698 = vpack.c.bf16 %v4664, %v4663
        %v4699 = vpack.c.bf16 %v4666, %v4665
        %v4700 = vpack.c.bf16 %v4668, %v4667
        %4709 = vrot.lane.b32.xlu0 %v4685, 48
        %v4710 = vpop.permute.xlu0 %4709
        %4711 = vrot.lane.b32.xlu0 %v4686, 48
        %v4712 = vpop.permute.xlu0 %4711
        %4713 = vrot.lane.b32.xlu0 %v4687, 48
        %v4714 = vpop.permute.xlu0 %4713
        %4715 = vrot.lane.b32.xlu0 %v4688, 48
        %v4716 = vpop.permute.xlu0 %4715
        %4717 = vrot.lane.b32.xlu0 %v4689, 48
        %v4718 = vpop.permute.xlu0 %4717
        %4719 = vrot.lane.b32.xlu0 %v4690, 48
        %v4720 = vpop.permute.xlu0 %4719
        %4721 = vrot.lane.b32.xlu0 %v4691, 48
        %v4722 = vpop.permute.xlu0 %4721
        %4723 = vrot.lane.b32.xlu0 %v4692, 48
        %v4724 = vpop.permute.xlu0 %4723
        %4733 = vrot.lane.b32.xlu0 %v4693, 48
        %v4734 = vpop.permute.xlu0 %4733
        %4735 = vrot.lane.b32.xlu0 %v4694, 48
        %v4736 = vpop.permute.xlu0 %4735
        %4737 = vrot.lane.b32.xlu0 %v4695, 48
        %v4738 = vpop.permute.xlu0 %4737
        %4739 = vrot.lane.b32.xlu0 %v4696, 48
        %v4740 = vpop.permute.xlu0 %4739
        %4741 = vrot.lane.b32.xlu0 %v4697, 48
        %v4742 = vpop.permute.xlu0 %4741
        %4743 = vrot.lane.b32.xlu0 %v4698, 48
        %v4744 = vpop.permute.xlu0 %4743
        %4745 = vrot.lane.b32.xlu0 %v4699, 48
        %v4746 = vpop.permute.xlu0 %4745
        %4747 = vrot.lane.b32.xlu0 %v4700, 48
        %v4748 = vpop.permute.xlu0 %4747
        %v4750 = vsel %vm1045, %v4710, 0
        %v4753 = vsel %vm1045, %v4712, 0
        %v4756 = vsel %vm1045, %v4714, 0
        %v4759 = vsel %vm1045, %v4716, 0
        %v4762 = vsel %vm1045, %v4718, 0
        %v4765 = vsel %vm1045, %v4720, 0
        %v4768 = vsel %vm1045, %v4722, 0
        %v4771 = vsel %vm1045, %v4724, 0
        %v4774 = vsel %vm1045, %v4734, 0
        %v4777 = vsel %vm1045, %v4736, 0
        %v4780 = vsel %vm1045, %v4738, 0
        %v4783 = vsel %vm1045, %v4740, 0
        %v4786 = vsel %vm1045, %v4742, 0
        %v4789 = vsel %vm1045, %v4744, 0
        %v4792 = vsel %vm1045, %v4746, 0
        %v4795 = vsel %vm1045, %v4748, 0
        %4797 = vmatprep.subr.bf16.mxu0 0
        %4798 = vmatpush1.bf16.xpose.msra.mxu0 %v4774
        %4799 = vmatprep.subr.bf16.mxu0 0
        %4800 = vmatpush1.bf16.xpose.msra.mxu0 %v4777
        %4801 = vmatprep.subr.bf16.mxu0 0
        %4802 = vmatpush1.bf16.xpose.msra.mxu0 %v4780
        %4803 = vmatprep.subr.bf16.mxu0 0
        %4804 = vmatpush1.bf16.xpose.msra.mxu0 %v4783
        %4805 = vmatprep.subr.bf16.mxu0 0
        %4806 = vmatpush1.bf16.xpose.msra.mxu0 %v4786
        %4807 = vmatprep.subr.bf16.mxu0 0
        %4808 = vmatpush1.bf16.xpose.msra.mxu0 %v4789
        %4809 = vmatprep.subr.bf16.mxu0 0
        %4810 = vmatpush1.bf16.xpose.msra.mxu0 %v4792
        %4811 = vmatprep.subr.bf16.mxu0 0
        %4812 = vmatpush1.bf16.xpose.msra.mxu0 %v4795
        %4813 = vmatprep.subr.bf16.mxu0 0
        %4814 = vmatpush1.bf16.xpose.msra.mxu0 0
        %4815 = vmatprep.subr.bf16.mxu0 0
        %4816 = vmatpush1.bf16.xpose.msra.mxu0 0
        %4817 = vmatprep.subr.bf16.mxu0 0
        %4818 = vmatpush1.bf16.xpose.msra.mxu0 0
        %4819 = vmatprep.subr.bf16.mxu0 0
        %4820 = vmatpush1.bf16.xpose.msra.mxu0 0
        %4821 = vmatprep.subr.bf16.mxu0 0
        %4822 = vmatpush1.bf16.xpose.msra.mxu0 0
        %4823 = vmatprep.subr.bf16.mxu0 0
        %4824 = vmatpush1.bf16.xpose.msra.mxu0 0
        %4825 = vmatprep.subr.bf16.mxu0 0
        %4826 = vmatpush1.bf16.xpose.msra.mxu0 0
        %4827 = vmatprep.subr.bf16.mxu0 0
        %4828 = vmatpush1.bf16.xpose.msra.mxu0 0
        %4829 = vmatprep.mubr.bf16.mxu0 0
        %4830 = vmatmul.mubr.bf16.gmra.mrb[0].mxu0 %v4750
        %v4831 = vpop.f32.mrb[0].mxu0
        %v4832 = vadd.f32 0.0, %v4831
        %v4833 = vpop.f32.mrb[0].mxu0
        %v4834 = vpop.f32.mrb[0].mxu0
        %v4835 = vadd.f32 0.0, %v4834
        %v4836 = vpop.f32.mrb[0].mxu0
        %4837 = vmatprep.mubr.bf16.mxu0 0
        %4838 = vmatmul.mubr.bf16.gmra.mrb[0].mxu0 %v4753
        %v4839 = vpop.f32.mrb[0].mxu0
        %v4840 = vadd.f32 0.0, %v4839
        %v4841 = vpop.f32.mrb[0].mxu0
        %v4842 = vpop.f32.mrb[0].mxu0
        %v4843 = vadd.f32 0.0, %v4842
        %v4844 = vpop.f32.mrb[0].mxu0
        %4845 = vmatprep.mubr.bf16.mxu0 0
        %4846 = vmatmul.mubr.bf16.gmra.mrb[0].mxu0 %v4756
        %v4847 = vpop.f32.mrb[0].mxu0
        %v4848 = vadd.f32 0.0, %v4847
        %v4849 = vpop.f32.mrb[0].mxu0
        %v4850 = vpop.f32.mrb[0].mxu0
        %v4851 = vadd.f32 0.0, %v4850
        %v4852 = vpop.f32.mrb[0].mxu0
        %4853 = vmatprep.mubr.bf16.mxu0 0
        %4854 = vmatmul.mubr.bf16.gmra.mrb[0].mxu0 %v4759
        %v4855 = vpop.f32.mrb[0].mxu0
        %v4856 = vadd.f32 0.0, %v4855
        %v4857 = vpop.f32.mrb[0].mxu0
        %v4858 = vpop.f32.mrb[0].mxu0
        %v4859 = vadd.f32 0.0, %v4858
        %v4860 = vpop.f32.mrb[0].mxu0
        %4861 = vmatprep.mubr.bf16.mxu0 0
        %4862 = vmatmul.mubr.bf16.gmra.mrb[0].mxu0 %v4762
        %v4863 = vpop.f32.mrb[0].mxu0
        %v4864 = vadd.f32 0.0, %v4863
        %v4865 = vpop.f32.mrb[0].mxu0
        %v4866 = vpop.f32.mrb[0].mxu0
        %v4867 = vadd.f32 0.0, %v4866
        %v4868 = vpop.f32.mrb[0].mxu0
        %4869 = vmatprep.mubr.bf16.mxu0 0
        %4870 = vmatmul.mubr.bf16.gmra.mrb[0].mxu0 %v4765
        %v4871 = vpop.f32.mrb[0].mxu0
        %v4872 = vadd.f32 0.0, %v4871
        %v4873 = vpop.f32.mrb[0].mxu0
        %v4874 = vpop.f32.mrb[0].mxu0
        %v4875 = vadd.f32 0.0, %v4874
        %v4876 = vpop.f32.mrb[0].mxu0
        %4877 = vmatprep.mubr.bf16.mxu0 0
        %4878 = vmatmul.mubr.bf16.gmra.mrb[0].mxu0 %v4768
        %v4879 = vpop.f32.mrb[0].mxu0
        %v4880 = vadd.f32 0.0, %v4879
        %v4881 = vpop.f32.mrb[0].mxu0
        %v4882 = vpop.f32.mrb[0].mxu0
        %v4883 = vadd.f32 0.0, %v4882
        %v4884 = vpop.f32.mrb[0].mxu0
        %4885 = vmatprep.mubr.bf16.mxu0 0
        %4886 = vmatmul.mubr.bf16.gmra.mrb[0].mxu0 %v4771
        %v4887 = vpop.f32.mrb[0].mxu0
        %v4888 = vadd.f32 0.0, %v4887
        %v4889 = vpop.f32.mrb[0].mxu0
        %v4890 = vpop.f32.mrb[0].mxu0
        %v4891 = vadd.f32 0.0, %v4890
        %v4892 = vpop.f32.mrb[0].mxu0
        %4893 = vdwg.mxu0
        %v4894 = vmul.f32 %v4832, 0.25
        %v4895 = vmul.f32 %v4835, 0.25
        %v4896 = vmul.f32 %v4840, 0.25
        %v4897 = vmul.f32 %v4843, 0.25
        %v4898 = vmul.f32 %v4848, 0.25
        %v4899 = vmul.f32 %v4851, 0.25
        %v4900 = vmul.f32 %v4856, 0.25
        %v4901 = vmul.f32 %v4859, 0.25
        %v4902 = vmul.f32 %v4864, 0.25
        %v4903 = vmul.f32 %v4867, 0.25
        %v4904 = vmul.f32 %v4872, 0.25
        %v4905 = vmul.f32 %v4875, 0.25
        %v4906 = vmul.f32 %v4880, 0.25
        %v4907 = vmul.f32 %v4883, 0.25
        %v4908 = vmul.f32 %v4888, 0.25
        %v4909 = vmul.f32 %v4891, 0.25
        %4910 = vmax.xlane.f32.xlu0 %v4894
        %v4911 = vpop.xlane.xlu0 %4910
        %4912 = vmax.xlane.f32.xlu0 %v4895
        %v4913 = vpop.xlane.xlu0 %4912
        %4914 = vmax.xlane.f32.xlu0 %v4896
        %v4915 = vpop.xlane.xlu0 %4914
        %4916 = vmax.xlane.f32.xlu0 %v4897
        %v4917 = vpop.xlane.xlu0 %4916
        %4918 = vmax.xlane.f32.xlu0 %v4898
        %v4919 = vpop.xlane.xlu0 %4918
        %4920 = vmax.xlane.f32.xlu0 %v4899
        %v4921 = vpop.xlane.xlu0 %4920
        %4922 = vmax.xlane.f32.xlu0 %v4900
        %v4923 = vpop.xlane.xlu0 %4922
        %4924 = vmax.xlane.f32.xlu0 %v4901
        %v4925 = vpop.xlane.xlu0 %4924
        %4926 = vmax.xlane.f32.xlu0 %v4902
        %v4927 = vpop.xlane.xlu0 %4926
        %4928 = vmax.xlane.f32.xlu0 %v4903
        %v4929 = vpop.xlane.xlu0 %4928
        %4930 = vmax.xlane.f32.xlu0 %v4904
        %v4931 = vpop.xlane.xlu0 %4930
        %4932 = vmax.xlane.f32.xlu0 %v4905
        %v4933 = vpop.xlane.xlu0 %4932
        %4934 = vmax.xlane.f32.xlu0 %v4906
        %v4935 = vpop.xlane.xlu0 %4934
        %4936 = vmax.xlane.f32.xlu0 %v4907
        %v4937 = vpop.xlane.xlu0 %4936
        %4938 = vmax.xlane.f32.xlu0 %v4908
        %v4939 = vpop.xlane.xlu0 %4938
        %4940 = vmax.xlane.f32.xlu0 %v4909
        %v4941 = vpop.xlane.xlu0 %4940
        %v4942 = vsub.f32 %v4894, %v4911
        %v4943 = vsub.f32 %v4895, %v4913
        %v4944 = vsub.f32 %v4896, %v4915
        %v4945 = vsub.f32 %v4897, %v4917
        %v4946 = vsub.f32 %v4898, %v4919
        %v4947 = vsub.f32 %v4899, %v4921
        %v4948 = vsub.f32 %v4900, %v4923
        %v4949 = vsub.f32 %v4901, %v4925
        %v4950 = vsub.f32 %v4902, %v4927
        %v4951 = vsub.f32 %v4903, %v4929
        %v4952 = vsub.f32 %v4904, %v4931
        %v4953 = vsub.f32 %v4905, %v4933
        %v4954 = vsub.f32 %v4906, %v4935
        %v4955 = vsub.f32 %v4907, %v4937
        %v4956 = vsub.f32 %v4908, %v4939
        %v4957 = vsub.f32 %v4909, %v4941
        %v4958 = vmul.f32 %v4942, 1.442695
        %v4959 = vpow.pop %v4958
        %v4960 = vmul.f32 %v4943, 1.442695
        %v4961 = vpow.pop %v4960
        %v4962 = vmul.f32 %v4944, 1.442695
        %v4963 = vpow.pop %v4962
        %v4964 = vmul.f32 %v4945, 1.442695
        %v4965 = vpow.pop %v4964
        %v4966 = vmul.f32 %v4946, 1.442695
        %v4967 = vpow.pop %v4966
        %v4968 = vmul.f32 %v4947, 1.442695
        %v4969 = vpow.pop %v4968
        %v4970 = vmul.f32 %v4948, 1.442695
        %v4971 = vpow.pop %v4970
        %v4972 = vmul.f32 %v4949, 1.442695
        %v4973 = vpow.pop %v4972
        %v4974 = vmul.f32 %v4950, 1.442695
        %v4975 = vpow.pop %v4974
        %v4976 = vmul.f32 %v4951, 1.442695
        %v4977 = vpow.pop %v4976
        %v4978 = vmul.f32 %v4952, 1.442695
        %v4979 = vpow.pop %v4978
        %v4980 = vmul.f32 %v4953, 1.442695
        %v4981 = vpow.pop %v4980
        %v4982 = vmul.f32 %v4954, 1.442695
        %v4983 = vpow.pop %v4982
        %v4984 = vmul.f32 %v4955, 1.442695
        %v4985 = vpow.pop %v4984
        %v4986 = vmul.f32 %v4956, 1.442695
        %v4987 = vpow.pop %v4986
        %v4988 = vmul.f32 %v4957, 1.442695
        %v4989 = vpow.pop %v4988
        %4990 = vadd.xlane.f32.xlu0 %v4959
        %v4991 = vpop.xlane.xlu0 %4990
        %4992 = vadd.xlane.f32.xlu0 %v4961
        %v4993 = vpop.xlane.xlu0 %4992
        %4994 = vadd.xlane.f32.xlu0 %v4963
        %v4995 = vpop.xlane.xlu0 %4994
        %4996 = vadd.xlane.f32.xlu0 %v4965
        %v4997 = vpop.xlane.xlu0 %4996
        %4998 = vadd.xlane.f32.xlu0 %v4967
        %v4999 = vpop.xlane.xlu0 %4998
        %5000 = vadd.xlane.f32.xlu0 %v4969
        %v5001 = vpop.xlane.xlu0 %5000
        %5002 = vadd.xlane.f32.xlu0 %v4971
        %v5003 = vpop.xlane.xlu0 %5002
        %5004 = vadd.xlane.f32.xlu0 %v4973
        %v5005 = vpop.xlane.xlu0 %5004
        %5006 = vadd.xlane.f32.xlu0 %v4975
        %v5007 = vpop.xlane.xlu0 %5006
        %5008 = vadd.xlane.f32.xlu0 %v4977
        %v5009 = vpop.xlane.xlu0 %5008
        %5010 = vadd.xlane.f32.xlu0 %v4979
        %v5011 = vpop.xlane.xlu0 %5010
        %5012 = vadd.xlane.f32.xlu0 %v4981
        %v5013 = vpop.xlane.xlu0 %5012
        %5014 = vadd.xlane.f32.xlu0 %v4983
        %v5015 = vpop.xlane.xlu0 %5014
        %5016 = vadd.xlane.f32.xlu0 %v4985
        %v5017 = vpop.xlane.xlu0 %5016
        %5018 = vadd.xlane.f32.xlu0 %v4987
        %v5019 = vpop.xlane.xlu0 %5018
        %5020 = vadd.xlane.f32.xlu0 %v4989
        %v5021 = vpop.xlane.xlu0 %5020
        %v5022 = vrcp.pop %v4991
        %v5023 = vmul.f32 %v4959, %v5022
        %v5024 = vrcp.pop %v4993
        %v5025 = vmul.f32 %v4961, %v5024
        %v5026 = vrcp.pop %v4995
        %v5027 = vmul.f32 %v4963, %v5026
        %v5028 = vrcp.pop %v4997
        %v5029 = vmul.f32 %v4965, %v5028
        %v5030 = vrcp.pop %v4999
        %v5031 = vmul.f32 %v4967, %v5030
        %v5032 = vrcp.pop %v5001
        %v5033 = vmul.f32 %v4969, %v5032
        %v5034 = vrcp.pop %v5003
        %v5035 = vmul.f32 %v4971, %v5034
        %v5036 = vrcp.pop %v5005
        %v5037 = vmul.f32 %v4973, %v5036
        %v5038 = vrcp.pop %v5007
        %v5039 = vmul.f32 %v4975, %v5038
        %v5040 = vrcp.pop %v5009
        %v5041 = vmul.f32 %v4977, %v5040
        %v5042 = vrcp.pop %v5011
        %v5043 = vmul.f32 %v4979, %v5042
        %v5044 = vrcp.pop %v5013
        %v5045 = vmul.f32 %v4981, %v5044
        %v5046 = vrcp.pop %v5015
        %v5047 = vmul.f32 %v4983, %v5046
        %v5048 = vrcp.pop %v5017
        %v5049 = vmul.f32 %v4985, %v5048
        %v5050 = vrcp.pop %v5019
        %v5051 = vmul.f32 %v4987, %v5050
        %v5052 = vrcp.pop %v5021
        %v5053 = vmul.f32 %v4989, %v5052
        %v5054 = vpack.c.bf16 %v5025, %v5023
        %v5055 = vpack.c.bf16 %v5029, %v5027
        %v5056 = vpack.c.bf16 %v5033, %v5031
        %v5057 = vpack.c.bf16 %v5037, %v5035
        %v5058 = vpack.c.bf16 %v5041, %v5039
        %v5059 = vpack.c.bf16 %v5045, %v5043
        %v5060 = vpack.c.bf16 %v5049, %v5047
        %v5061 = vpack.c.bf16 %v5053, %v5051
        %v5062 = vpack.c.bf16 %v4670, %v4669
        %v5063 = vpack.c.bf16 %v4672, %v4671
        %v5064 = vpack.c.bf16 %v4674, %v4673
        %v5065 = vpack.c.bf16 %v4676, %v4675
        %v5066 = vpack.c.bf16 %v4678, %v4677
        %v5067 = vpack.c.bf16 %v4680, %v4679
        %v5068 = vpack.c.bf16 %v4682, %v4681
        %v5069 = vpack.c.bf16 %v4684, %v4683
        %5078 = vrot.lane.b32.xlu0 %v5062, 48
        %v5079 = vpop.permute.xlu0 %5078
        %5080 = vrot.lane.b32.xlu0 %v5063, 48
        %v5081 = vpop.permute.xlu0 %5080
        %5082 = vrot.lane.b32.xlu0 %v5064, 48
        %v5083 = vpop.permute.xlu0 %5082
        %5084 = vrot.lane.b32.xlu0 %v5065, 48
        %v5085 = vpop.permute.xlu0 %5084
        %5086 = vrot.lane.b32.xlu0 %v5066, 48
        %v5087 = vpop.permute.xlu0 %5086
        %5088 = vrot.lane.b32.xlu0 %v5067, 48
        %v5089 = vpop.permute.xlu0 %5088
        %5090 = vrot.lane.b32.xlu0 %v5068, 48
        %v5091 = vpop.permute.xlu0 %5090
        %5092 = vrot.lane.b32.xlu0 %v5069, 48
        %v5093 = vpop.permute.xlu0 %5092
        %5102 = vmatprep.subr.bf16.mxu0 0
        %5103 = vmatpush1.bf16.msra.mxu0 %v5079
        %5104 = vmatprep.subr.bf16.mxu0 0
        %5105 = vmatpush1.bf16.msra.mxu0 %v5081
        %5106 = vmatprep.subr.bf16.mxu0 0
        %5107 = vmatpush1.bf16.msra.mxu0 %v5083
        %5108 = vmatprep.subr.bf16.mxu0 0
        %5109 = vmatpush1.bf16.msra.mxu0 %v5085
        %5110 = vmatprep.subr.bf16.mxu0 0
        %5111 = vmatpush1.bf16.msra.mxu0 %v5087
        %5112 = vmatprep.subr.bf16.mxu0 0
        %5113 = vmatpush1.bf16.msra.mxu0 %v5089
        %5114 = vmatprep.subr.bf16.mxu0 0
        %5115 = vmatpush1.bf16.msra.mxu0 %v5091
        %5116 = vmatprep.subr.bf16.mxu0 0
        %5117 = vmatpush1.bf16.msra.mxu0 %v5093
        %5118 = vmatprep.subr.bf16.mxu0 0
        %5119 = vmatpush1.bf16.msra.mxu0 0
        %5120 = vmatprep.subr.bf16.mxu0 0
        %5121 = vmatpush1.bf16.msra.mxu0 0
        %5122 = vmatprep.subr.bf16.mxu0 0
        %5123 = vmatpush1.bf16.msra.mxu0 0
        %5124 = vmatprep.subr.bf16.mxu0 0
        %5125 = vmatpush1.bf16.msra.mxu0 0
        %5126 = vmatprep.subr.bf16.mxu0 0
        %5127 = vmatpush1.bf16.msra.mxu0 0
        %5128 = vmatprep.subr.bf16.mxu0 0
        %5129 = vmatpush1.bf16.msra.mxu0 0
        %5130 = vmatprep.subr.bf16.mxu0 0
        %5131 = vmatpush1.bf16.msra.mxu0 0
        %5132 = vmatprep.subr.bf16.mxu0 0
        %5133 = vmatpush1.bf16.msra.mxu0 0
        %5134 = vmatprep.mubr.bf16.mxu0 0
        %5135 = vmatmul.mubr.bf16.gmra.mrb[0].mxu0 %v5054
        %v5136 = vpop.f32.mrb[0].mxu0
        %v5137 = vadd.f32 0.0, %v5136
        %v5138 = vpop.f32.mrb[0].mxu0
        %v5139 = vpop.f32.mrb[0].mxu0
        %v5140 = vadd.f32 0.0, %v5139
        %v5141 = vpop.f32.mrb[0].mxu0
        %5142 = vmatprep.mubr.bf16.mxu0 0
        %5143 = vmatmul.mubr.bf16.gmra.mrb[0].mxu0 %v5055
        %v5144 = vpop.f32.mrb[0].mxu0
        %v5145 = vadd.f32 0.0, %v5144
        %v5146 = vpop.f32.mrb[0].mxu0
        %v5147 = vpop.f32.mrb[0].mxu0
        %v5148 = vadd.f32 0.0, %v5147
        %v5149 = vpop.f32.mrb[0].mxu0
        %5150 = vmatprep.mubr.bf16.mxu0 0
        %5151 = vmatmul.mubr.bf16.gmra.mrb[0].mxu0 %v5056
        %v5152 = vpop.f32.mrb[0].mxu0
        %v5153 = vadd.f32 0.0, %v5152
        %v5154 = vpop.f32.mrb[0].mxu0
        %v5155 = vpop.f32.mrb[0].mxu0
        %v5156 = vadd.f32 0.0, %v5155
        %v5157 = vpop.f32.mrb[0].mxu0
        %5158 = vmatprep.mubr.bf16.mxu0 0
        %5159 = vmatmul.mubr.bf16.gmra.mrb[0].mxu0 %v5057
        %v5160 = vpop.f32.mrb[0].mxu0
        %v5161 = vadd.f32 0.0, %v5160
        %v5162 = vpop.f32.mrb[0].mxu0
        %v5163 = vpop.f32.mrb[0].mxu0
        %v5164 = vadd.f32 0.0, %v5163
        %v5165 = vpop.f32.mrb[0].mxu0
        %5166 = vmatprep.mubr.bf16.mxu0 0
        %5167 = vmatmul.mubr.bf16.gmra.mrb[0].mxu0 %v5058
        %v5168 = vpop.f32.mrb[0].mxu0
        %v5169 = vadd.f32 0.0, %v5168
        %v5170 = vpop.f32.mrb[0].mxu0
        %v5171 = vpop.f32.mrb[0].mxu0
        %v5172 = vadd.f32 0.0, %v5171
        %v5173 = vpop.f32.mrb[0].mxu0
        %5174 = vmatprep.mubr.bf16.mxu0 0
        %5175 = vmatmul.mubr.bf16.gmra.mrb[0].mxu0 %v5059
        %v5176 = vpop.f32.mrb[0].mxu0
        %v5177 = vadd.f32 0.0, %v5176
        %v5178 = vpop.f32.mrb[0].mxu0
        %v5179 = vpop.f32.mrb[0].mxu0
        %v5180 = vadd.f32 0.0, %v5179
        %v5181 = vpop.f32.mrb[0].mxu0
        %5182 = vmatprep.mubr.bf16.mxu0 0
        %5183 = vmatmul.mubr.bf16.gmra.mrb[0].mxu0 %v5060
        %v5184 = vpop.f32.mrb[0].mxu0
        %v5185 = vadd.f32 0.0, %v5184
        %v5186 = vpop.f32.mrb[0].mxu0
        %v5187 = vpop.f32.mrb[0].mxu0
        %v5188 = vadd.f32 0.0, %v5187
        %v5189 = vpop.f32.mrb[0].mxu0
        %5190 = vmatprep.mubr.bf16.mxu0 0
        %5191 = vmatmul.mubr.bf16.gmra.mrb[0].mxu0 %v5061
        %v5192 = vpop.f32.mrb[0].mxu0
        %v5193 = vadd.f32 0.0, %v5192
        %v5194 = vpop.f32.mrb[0].mxu0
        %v5195 = vpop.f32.mrb[0].mxu0
        %v5196 = vadd.f32 0.0, %v5195
        %v5197 = vpop.f32.mrb[0].mxu0
        %5198 = vdwg.mxu0
        %v5199 = vld [vmem:[#allocation3] sm:$0xff]
        %v5200 = vld [vmem:[#allocation3 + $0x8] sm:$0xff]
        %v5201 = vld [vmem:[#allocation3 + $0x10] sm:$0xff]
        %v5202 = vld [vmem:[#allocation3 + $0x18] sm:$0xff]
        %v5203 = vld [vmem:[#allocation3 + $0x20] sm:$0xff]
        %v5204 = vld [vmem:[#allocation3 + $0x28] sm:$0xff]
        %v5205 = vld [vmem:[#allocation3 + $0x30] sm:$0xff]
        %v5206 = vld [vmem:[#allocation3 + $0x38] sm:$0xff]
        %v5207 = vld [vmem:[#allocation3 + $0x40] sm:$0xff]
        %v5208 = vld [vmem:[#allocation3 + $0x48] sm:$0xff]
        %v5209 = vld [vmem:[#allocation3 + $0x50] sm:$0xff]
        %v5210 = vld [vmem:[#allocation3 + $0x58] sm:$0xff]
        %v5211 = vld [vmem:[#allocation3 + $0x60] sm:$0xff]
        %v5212 = vld [vmem:[#allocation3 + $0x68] sm:$0xff]
        %v5213 = vld [vmem:[#allocation3 + $0x70] sm:$0xff]
        %v5214 = vld [vmem:[#allocation3 + $0x78] sm:$0xff]
        %v5215 = vpack.c.bf16 %v5140, %v5137
        %v5216 = vpack.c.bf16 %v5148, %v5145
        %v5217 = vpack.c.bf16 %v5156, %v5153
        %v5218 = vpack.c.bf16 %v5164, %v5161
        %v5219 = vpack.c.bf16 %v5172, %v5169
        %v5220 = vpack.c.bf16 %v5180, %v5177
        %v5221 = vpack.c.bf16 %v5188, %v5185
        %v5222 = vpack.c.bf16 %v5196, %v5193
        %v5223 = vld [vmem:[#allocation9 + $0x28] sm:$0xf]
        %v5224 = vld [vmem:[#allocation9 + $0x2c] sm:$0xf]
        %v5227 = vunpack.c.l.b16 %v5223
        %v5228 = vunpack.c.l.b16 %v5224
        %v5229 = vpack.c.b16 %v5228, %v5227
        %v5232 = vsel %vm1045, %v5215, 0
        %v5235 = vsel %vm1045, %v5216, 0
        %v5238 = vsel %vm1045, %v5217, 0
        %v5241 = vsel %vm1045, %v5218, 0
        %v5244 = vsel %vm1045, %v5219, 0
        %v5247 = vsel %vm1045, %v5220, 0
        %v5250 = vsel %vm1045, %v5221, 0
        %v5253 = vsel %vm1045, %v5222, 0
        %5255 = vmatprep.subr.bf16.mxu0 0
        %5256 = vmatpush1.bf16.msra.mxu0 %v5229
        %5257 = vmatprep.subr.bf16.mxu0 0
        %5258 = vmatpush1.bf16.msra.mxu0 0
        %5259 = vmatprep.subr.bf16.mxu0 0
        %5260 = vmatpush1.bf16.msra.mxu0 0
        %5261 = vmatprep.subr.bf16.mxu0 0
        %5262 = vmatpush1.bf16.msra.mxu0 0
        %5263 = vmatprep.subr.bf16.mxu0 0
        %5264 = vmatpush1.bf16.msra.mxu0 0
        %5265 = vmatprep.subr.bf16.mxu0 0
        %5266 = vmatpush1.bf16.msra.mxu0 0
        %5267 = vmatprep.subr.bf16.mxu0 0
        %5268 = vmatpush1.bf16.msra.mxu0 0
        %5269 = vmatprep.subr.bf16.mxu0 0
        %5270 = vmatpush1.bf16.msra.mxu0 0
        %5271 = vmatprep.subr.bf16.mxu0 0
        %5272 = vmatpush1.bf16.msra.mxu0 0
        %5273 = vmatprep.subr.bf16.mxu0 0
        %5274 = vmatpush1.bf16.msra.mxu0 0
        %5275 = vmatprep.subr.bf16.mxu0 0
        %5276 = vmatpush1.bf16.msra.mxu0 0
        %5277 = vmatprep.subr.bf16.mxu0 0
        %5278 = vmatpush1.bf16.msra.mxu0 0
        %5279 = vmatprep.subr.bf16.mxu0 0
        %5280 = vmatpush1.bf16.msra.mxu0 0
        %5281 = vmatprep.subr.bf16.mxu0 0
        %5282 = vmatpush1.bf16.msra.mxu0 0
        %5283 = vmatprep.subr.bf16.mxu0 0
        %5284 = vmatpush1.bf16.msra.mxu0 0
        %5285 = vmatprep.subr.bf16.mxu0 0
        %5286 = vmatpush1.bf16.msra.mxu0 0
        %5287 = vmatprep.mubr.bf16.mxu0 0
        %5288 = vmatmul.mubr.bf16.gmra.mrb[0].mxu0 %v5232
        %v5289 = vpop.f32.mrb[0].mxu0
        %v5290 = vadd.f32 0.0, %v5289
        %v5291 = vpop.f32.mrb[0].mxu0
        %v5292 = vpop.f32.mrb[0].mxu0
        %v5293 = vadd.f32 0.0, %v5292
        %v5294 = vpop.f32.mrb[0].mxu0
        %5295 = vmatprep.mubr.bf16.mxu0 0
        %5296 = vmatmul.mubr.bf16.gmra.mrb[0].mxu0 %v5235
        %v5297 = vpop.f32.mrb[0].mxu0
        %v5298 = vadd.f32 0.0, %v5297
        %v5299 = vpop.f32.mrb[0].mxu0
        %v5300 = vpop.f32.mrb[0].mxu0
        %v5301 = vadd.f32 0.0, %v5300
        %v5302 = vpop.f32.mrb[0].mxu0
        %5303 = vmatprep.mubr.bf16.mxu0 0
        %5304 = vmatmul.mubr.bf16.gmra.mrb[0].mxu0 %v5238
        %v5305 = vpop.f32.mrb[0].mxu0
        %v5306 = vadd.f32 0.0, %v5305
        %v5307 = vpop.f32.mrb[0].mxu0
        %v5308 = vpop.f32.mrb[0].mxu0
        %v5309 = vadd.f32 0.0, %v5308
        %v5310 = vpop.f32.mrb[0].mxu0
        %5311 = vmatprep.mubr.bf16.mxu0 0
        %5312 = vmatmul.mubr.bf16.gmra.mrb[0].mxu0 %v5241
        %v5313 = vpop.f32.mrb[0].mxu0
        %v5314 = vadd.f32 0.0, %v5313
        %v5315 = vpop.f32.mrb[0].mxu0
        %v5316 = vpop.f32.mrb[0].mxu0
        %v5317 = vadd.f32 0.0, %v5316
        %v5318 = vpop.f32.mrb[0].mxu0
        %5319 = vmatprep.mubr.bf16.mxu0 0
        %5320 = vmatmul.mubr.bf16.gmra.mrb[0].mxu0 %v5244
        %v5321 = vpop.f32.mrb[0].mxu0
        %v5322 = vadd.f32 0.0, %v5321
        %v5323 = vpop.f32.mrb[0].mxu0
        %v5324 = vpop.f32.mrb[0].mxu0
        %v5325 = vadd.f32 0.0, %v5324
        %v5326 = vpop.f32.mrb[0].mxu0
        %5327 = vmatprep.mubr.bf16.mxu0 0
        %5328 = vmatmul.mubr.bf16.gmra.mrb[0].mxu0 %v5247
        %v5329 = vpop.f32.mrb[0].mxu0
        %v5330 = vadd.f32 0.0, %v5329
        %v5331 = vpop.f32.mrb[0].mxu0
        %v5332 = vpop.f32.mrb[0].mxu0
        %v5333 = vadd.f32 0.0, %v5332
        %v5334 = vpop.f32.mrb[0].mxu0
        %5335 = vmatprep.mubr.bf16.mxu0 0
        %5336 = vmatmul.mubr.bf16.gmra.mrb[0].mxu0 %v5250
        %v5337 = vpop.f32.mrb[0].mxu0
        %v5338 = vadd.f32 0.0, %v5337
        %v5339 = vpop.f32.mrb[0].mxu0
        %v5340 = vpop.f32.mrb[0].mxu0
        %v5341 = vadd.f32 0.0, %v5340
        %v5342 = vpop.f32.mrb[0].mxu0
        %5343 = vmatprep.mubr.bf16.mxu0 0
        %5344 = vmatmul.mubr.bf16.gmra.mrb[0].mxu0 %v5253
        %v5345 = vpop.f32.mrb[0].mxu0
        %v5346 = vadd.f32 0.0, %v5345
        %v5347 = vpop.f32.mrb[0].mxu0
        %v5348 = vpop.f32.mrb[0].mxu0
        %v5349 = vadd.f32 0.0, %v5348
        %v5350 = vpop.f32.mrb[0].mxu0
        %5351 = vdwg.mxu0
        %v5352 = vadd.f32 %v5199, %v5290
        %v5353 = vadd.f32 %v5200, %v5293
        %v5354 = vadd.f32 %v5201, %v5298
        %v5355 = vadd.f32 %v5202, %v5301
        %v5356 = vadd.f32 %v5203, %v5306
        %v5357 = vadd.f32 %v5204, %v5309
        %v5358 = vadd.f32 %v5205, %v5314
        %v5359 = vadd.f32 %v5206, %v5317
        %v5360 = vadd.f32 %v5207, %v5322
        %v5361 = vadd.f32 %v5208, %v5325
        %v5362 = vadd.f32 %v5209, %v5330
        %v5363 = vadd.f32 %v5210, %v5333
        %v5364 = vadd.f32 %v5211, %v5338
        %v5365 = vadd.f32 %v5212, %v5341
        %v5366 = vadd.f32 %v5213, %v5346
        %v5367 = vadd.f32 %v5214, %v5349
        %5368 = vst [vmem:[#allocation3] sm:$0xff] %v5352
        %5369 = vst [vmem:[#allocation3 + $0x8] sm:$0xff] %v5353
        %5370 = vst [vmem:[#allocation3 + $0x10] sm:$0xff] %v5354
        %5371 = vst [vmem:[#allocation3 + $0x18] sm:$0xff] %v5355
        %5372 = vst [vmem:[#allocation3 + $0x20] sm:$0xff] %v5356
        %5373 = vst [vmem:[#allocation3 + $0x28] sm:$0xff] %v5357
        %5374 = vst [vmem:[#allocation3 + $0x30] sm:$0xff] %v5358
        %5375 = vst [vmem:[#allocation3 + $0x38] sm:$0xff] %v5359
        %5376 = vst [vmem:[#allocation3 + $0x40] sm:$0xff] %v5360
        %5377 = vst [vmem:[#allocation3 + $0x48] sm:$0xff] %v5361
        %5378 = vst [vmem:[#allocation3 + $0x50] sm:$0xff] %v5362
        %5379 = vst [vmem:[#allocation3 + $0x58] sm:$0xff] %v5363
        %5380 = vst [vmem:[#allocation3 + $0x60] sm:$0xff] %v5364
        %5381 = vst [vmem:[#allocation3 + $0x68] sm:$0xff] %v5365
        %5382 = vst [vmem:[#allocation3 + $0x70] sm:$0xff] %v5366
        %5383 = vst [vmem:[#allocation3 + $0x78] sm:$0xff] %v5367
        %v5384 = vld [vmem:[#allocation2] sm:$0xff]
        %v5385 = vld [vmem:[#allocation2 + $0x18] sm:$0xff]
        %v5386 = vld [vmem:[#allocation2 + $0x30] sm:$0xff]
        %v5387 = vld [vmem:[#allocation2 + $0x48] sm:$0xff]
        %v5388 = vld [vmem:[#allocation2 + $0x60] sm:$0xff]
        %v5389 = vld [vmem:[#allocation2 + $0x78] sm:$0xff]
        %v5390 = vld [vmem:[#allocation2 + $0x90] sm:$0xff]
        %v5391 = vld [vmem:[#allocation2 + $0xa8] sm:$0xff]
        %v5392 = vld [vmem:[#allocation2 + $0xc0] sm:$0xff]
        %v5393 = vld [vmem:[#allocation2 + $0xd8] sm:$0xff]
        %v5394 = vld [vmem:[#allocation2 + $0xf0] sm:$0xff]
        %v5395 = vld [vmem:[#allocation2 + $0x108] sm:$0xff]
        %v5396 = vld [vmem:[#allocation2 + $0x120] sm:$0xff]
        %v5397 = vld [vmem:[#allocation2 + $0x138] sm:$0xff]
        %v5398 = vld [vmem:[#allocation2 + $0x150] sm:$0xff]
        %v5399 = vld [vmem:[#allocation2 + $0x168] sm:$0xff]
        %v5400 = vld [vmem:[#allocation2 + $0x8] sm:$0xff]
        %v5401 = vld [vmem:[#allocation2 + $0x20] sm:$0xff]
        %v5402 = vld [vmem:[#allocation2 + $0x38] sm:$0xff]
        %v5403 = vld [vmem:[#allocation2 + $0x50] sm:$0xff]
        %v5404 = vld [vmem:[#allocation2 + $0x68] sm:$0xff]
        %v5405 = vld [vmem:[#allocation2 + $0x80] sm:$0xff]
        %v5406 = vld [vmem:[#allocation2 + $0x98] sm:$0xff]
        %v5407 = vld [vmem:[#allocation2 + $0xb0] sm:$0xff]
        %v5408 = vld [vmem:[#allocation2 + $0xc8] sm:$0xff]
        %v5409 = vld [vmem:[#allocation2 + $0xe0] sm:$0xff]
        %v5410 = vld [vmem:[#allocation2 + $0xf8] sm:$0xff]
        %v5411 = vld [vmem:[#allocation2 + $0x110] sm:$0xff]
        %v5412 = vld [vmem:[#allocation2 + $0x128] sm:$0xff]
        %v5413 = vld [vmem:[#allocation2 + $0x140] sm:$0xff]
        %v5414 = vld [vmem:[#allocation2 + $0x158] sm:$0xff]
        %v5415 = vld [vmem:[#allocation2 + $0x170] sm:$0xff]
        %v5416 = vld [vmem:[#allocation2 + $0x10] sm:$0xff]
        %v5417 = vld [vmem:[#allocation2 + $0x28] sm:$0xff]
        %v5418 = vld [vmem:[#allocation2 + $0x40] sm:$0xff]
        %v5419 = vld [vmem:[#allocation2 + $0x58] sm:$0xff]
        %v5420 = vld [vmem:[#allocation2 + $0x70] sm:$0xff]
        %v5421 = vld [vmem:[#allocation2 + $0x88] sm:$0xff]
        %v5422 = vld [vmem:[#allocation2 + $0xa0] sm:$0xff]
        %v5423 = vld [vmem:[#allocation2 + $0xb8] sm:$0xff]
        %v5424 = vld [vmem:[#allocation2 + $0xd0] sm:$0xff]
        %v5425 = vld [vmem:[#allocation2 + $0xe8] sm:$0xff]
        %v5426 = vld [vmem:[#allocation2 + $0x100] sm:$0xff]
        %v5427 = vld [vmem:[#allocation2 + $0x118] sm:$0xff]
        %v5428 = vld [vmem:[#allocation2 + $0x130] sm:$0xff]
        %v5429 = vld [vmem:[#allocation2 + $0x148] sm:$0xff]
        %v5430 = vld [vmem:[#allocation2 + $0x160] sm:$0xff]
        %v5431 = vld [vmem:[#allocation2 + $0x178] sm:$0xff]
        %v5432 = vpack.c.bf16 %v5385, %v5384
        %v5433 = vpack.c.bf16 %v5387, %v5386
        %v5434 = vpack.c.bf16 %v5389, %v5388
        %v5435 = vpack.c.bf16 %v5391, %v5390
        %v5436 = vpack.c.bf16 %v5393, %v5392
        %v5437 = vpack.c.bf16 %v5395, %v5394
        %v5438 = vpack.c.bf16 %v5397, %v5396
        %v5439 = vpack.c.bf16 %v5399, %v5398
        %v5440 = vpack.c.bf16 %v5401, %v5400
        %v5441 = vpack.c.bf16 %v5403, %v5402
        %v5442 = vpack.c.bf16 %v5405, %v5404
        %v5443 = vpack.c.bf16 %v5407, %v5406
        %v5444 = vpack.c.bf16 %v5409, %v5408
        %v5445 = vpack.c.bf16 %v5411, %v5410
        %v5446 = vpack.c.bf16 %v5413, %v5412
        %v5447 = vpack.c.bf16 %v5415, %v5414
        %5456 = vrot.lane.b32.xlu0 %v5432, 32
        %v5457 = vpop.permute.xlu0 %5456
        %5458 = vrot.lane.b32.xlu0 %v5433, 32
        %v5459 = vpop.permute.xlu0 %5458
        %5460 = vrot.lane.b32.xlu0 %v5434, 32
        %v5461 = vpop.permute.xlu0 %5460
        %5462 = vrot.lane.b32.xlu0 %v5435, 32
        %v5463 = vpop.permute.xlu0 %5462
        %5464 = vrot.lane.b32.xlu0 %v5436, 32
        %v5465 = vpop.permute.xlu0 %5464
        %5466 = vrot.lane.b32.xlu0 %v5437, 32
        %v5467 = vpop.permute.xlu0 %5466
        %5468 = vrot.lane.b32.xlu0 %v5438, 32
        %v5469 = vpop.permute.xlu0 %5468
        %5470 = vrot.lane.b32.xlu0 %v5439, 32
        %v5471 = vpop.permute.xlu0 %5470
        %5480 = vrot.lane.b32.xlu0 %v5440, 32
        %v5481 = vpop.permute.xlu0 %5480
        %5482 = vrot.lane.b32.xlu0 %v5441, 32
        %v5483 = vpop.permute.xlu0 %5482
        %5484 = vrot.lane.b32.xlu0 %v5442, 32
        %v5485 = vpop.permute.xlu0 %5484
        %5486 = vrot.lane.b32.xlu0 %v5443, 32
        %v5487 = vpop.permute.xlu0 %5486
        %5488 = vrot.lane.b32.xlu0 %v5444, 32
        %v5489 = vpop.permute.xlu0 %5488
        %5490 = vrot.lane.b32.xlu0 %v5445, 32
        %v5491 = vpop.permute.xlu0 %5490
        %5492 = vrot.lane.b32.xlu0 %v5446, 32
        %v5493 = vpop.permute.xlu0 %5492
        %5494 = vrot.lane.b32.xlu0 %v5447, 32
        %v5495 = vpop.permute.xlu0 %5494
        %v5497 = vsel %vm1045, %v5457, 0
        %v5500 = vsel %vm1045, %v5459, 0
        %v5503 = vsel %vm1045, %v5461, 0
        %v5506 = vsel %vm1045, %v5463, 0
        %v5509 = vsel %vm1045, %v5465, 0
        %v5512 = vsel %vm1045, %v5467, 0
        %v5515 = vsel %vm1045, %v5469, 0
        %v5518 = vsel %vm1045, %v5471, 0
        %v5521 = vsel %vm1045, %v5481, 0
        %v5524 = vsel %vm1045, %v5483, 0
        %v5527 = vsel %vm1045, %v5485, 0
        %v5530 = vsel %vm1045, %v5487, 0
        %v5533 = vsel %vm1045, %v5489, 0
        %v5536 = vsel %vm1045, %v5491, 0
        %v5539 = vsel %vm1045, %v5493, 0
        %v5542 = vsel %vm1045, %v5495, 0
        %5544 = vmatprep.subr.bf16.mxu0 0
        %5545 = vmatpush1.bf16.xpose.msra.mxu0 %v5521
        %5546 = vmatprep.subr.bf16.mxu0 0
        %5547 = vmatpush1.bf16.xpose.msra.mxu0 %v5524
        %5548 = vmatprep.subr.bf16.mxu0 0
        %5549 = vmatpush1.bf16.xpose.msra.mxu0 %v5527
        %5550 = vmatprep.subr.bf16.mxu0 0
        %5551 = vmatpush1.bf16.xpose.msra.mxu0 %v5530
        %5552 = vmatprep.subr.bf16.mxu0 0
        %5553 = vmatpush1.bf16.xpose.msra.mxu0 %v5533
        %5554 = vmatprep.subr.bf16.mxu0 0
        %5555 = vmatpush1.bf16.xpose.msra.mxu0 %v5536
        %5556 = vmatprep.subr.bf16.mxu0 0
        %5557 = vmatpush1.bf16.xpose.msra.mxu0 %v5539
        %5558 = vmatprep.subr.bf16.mxu0 0
        %5559 = vmatpush1.bf16.xpose.msra.mxu0 %v5542
        %5560 = vmatprep.subr.bf16.mxu0 0
        %5561 = vmatpush1.bf16.xpose.msra.mxu0 0
        %5562 = vmatprep.subr.bf16.mxu0 0
        %5563 = vmatpush1.bf16.xpose.msra.mxu0 0
        %5564 = vmatprep.subr.bf16.mxu0 0
        %5565 = vmatpush1.bf16.xpose.msra.mxu0 0
        %5566 = vmatprep.subr.bf16.mxu0 0
        %5567 = vmatpush1.bf16.xpose.msra.mxu0 0
        %5568 = vmatprep.subr.bf16.mxu0 0
        %5569 = vmatpush1.bf16.xpose.msra.mxu0 0
        %5570 = vmatprep.subr.bf16.mxu0 0
        %5571 = vmatpush1.bf16.xpose.msra.mxu0 0
        %5572 = vmatprep.subr.bf16.mxu0 0
        %5573 = vmatpush1.bf16.xpose.msra.mxu0 0
        %5574 = vmatprep.subr.bf16.mxu0 0
        %5575 = vmatpush1.bf16.xpose.msra.mxu0 0
        %5576 = vmatprep.mubr.bf16.mxu0 0
        %5577 = vmatmul.mubr.bf16.gmra.mrb[0].mxu0 %v5497
        %v5578 = vpop.f32.mrb[0].mxu0
        %v5579 = vadd.f32 0.0, %v5578
        %v5580 = vpop.f32.mrb[0].mxu0
        %v5581 = vpop.f32.mrb[0].mxu0
        %v5582 = vadd.f32 0.0, %v5581
        %v5583 = vpop.f32.mrb[0].mxu0
        %5584 = vmatprep.mubr.bf16.mxu0 0
        %5585 = vmatmul.mubr.bf16.gmra.mrb[0].mxu0 %v5500
        %v5586 = vpop.f32.mrb[0].mxu0
        %v5587 = vadd.f32 0.0, %v5586
        %v5588 = vpop.f32.mrb[0].mxu0
        %v5589 = vpop.f32.mrb[0].mxu0
        %v5590 = vadd.f32 0.0, %v5589
        %v5591 = vpop.f32.mrb[0].mxu0
        %5592 = vmatprep.mubr.bf16.mxu0 0
        %5593 = vmatmul.mubr.bf16.gmra.mrb[0].mxu0 %v5503
        %v5594 = vpop.f32.mrb[0].mxu0
        %v5595 = vadd.f32 0.0, %v5594
        %v5596 = vpop.f32.mrb[0].mxu0
        %v5597 = vpop.f32.mrb[0].mxu0
        %v5598 = vadd.f32 0.0, %v5597
        %v5599 = vpop.f32.mrb[0].mxu0
        %5600 = vmatprep.mubr.bf16.mxu0 0
        %5601 = vmatmul.mubr.bf16.gmra.mrb[0].mxu0 %v5506
        %v5602 = vpop.f32.mrb[0].mxu0
        %v5603 = vadd.f32 0.0, %v5602
        %v5604 = vpop.f32.mrb[0].mxu0
        %v5605 = vpop.f32.mrb[0].mxu0
        %v5606 = vadd.f32 0.0, %v5605
        %v5607 = vpop.f32.mrb[0].mxu0
        %5608 = vmatprep.mubr.bf16.mxu0 0
        %5609 = vmatmul.mubr.bf16.gmra.mrb[0].mxu0 %v5509
        %v5610 = vpop.f32.mrb[0].mxu0
        %v5611 = vadd.f32 0.0, %v5610
        %v5612 = vpop.f32.mrb[0].mxu0
        %v5613 = vpop.f32.mrb[0].mxu0
        %v5614 = vadd.f32 0.0, %v5613
        %v5615 = vpop.f32.mrb[0].mxu0
        %5616 = vmatprep.mubr.bf16.mxu0 0
        %5617 = vmatmul.mubr.bf16.gmra.mrb[0].mxu0 %v5512
        %v5618 = vpop.f32.mrb[0].mxu0
        %v5619 = vadd.f32 0.0, %v5618
        %v5620 = vpop.f32.mrb[0].mxu0
        %v5621 = vpop.f32.mrb[0].mxu0
        %v5622 = vadd.f32 0.0, %v5621
        %v5623 = vpop.f32.mrb[0].mxu0
        %5624 = vmatprep.mubr.bf16.mxu0 0
        %5625 = vmatmul.mubr.bf16.gmra.mrb[0].mxu0 %v5515
        %v5626 = vpop.f32.mrb[0].mxu0
        %v5627 = vadd.f32 0.0, %v5626
        %v5628 = vpop.f32.mrb[0].mxu0
        %v5629 = vpop.f32.mrb[0].mxu0
        %v5630 = vadd.f32 0.0, %v5629
        %v5631 = vpop.f32.mrb[0].mxu0
        %5632 = vmatprep.mubr.bf16.mxu0 0
        %5633 = vmatmul.mubr.bf16.gmra.mrb[0].mxu0 %v5518
        %v5634 = vpop.f32.mrb[0].mxu0
        %v5635 = vadd.f32 0.0, %v5634
        %v5636 = vpop.f32.mrb[0].mxu0
        %v5637 = vpop.f32.mrb[0].mxu0
        %v5638 = vadd.f32 0.0, %v5637
        %v5639 = vpop.f32.mrb[0].mxu0
        %5640 = vdwg.mxu0
        %v5641 = vmul.f32 %v5579, 0.25
        %v5642 = vmul.f32 %v5582, 0.25
        %v5643 = vmul.f32 %v5587, 0.25
        %v5644 = vmul.f32 %v5590, 0.25
        %v5645 = vmul.f32 %v5595, 0.25
        %v5646 = vmul.f32 %v5598, 0.25
        %v5647 = vmul.f32 %v5603, 0.25
        %v5648 = vmul.f32 %v5606, 0.25
        %v5649 = vmul.f32 %v5611, 0.25
        %v5650 = vmul.f32 %v5614, 0.25
        %v5651 = vmul.f32 %v5619, 0.25
        %v5652 = vmul.f32 %v5622, 0.25
        %v5653 = vmul.f32 %v5627, 0.25
        %v5654 = vmul.f32 %v5630, 0.25
        %v5655 = vmul.f32 %v5635, 0.25
        %v5656 = vmul.f32 %v5638, 0.25
        %5657 = vmax.xlane.f32.xlu0 %v5641
        %v5658 = vpop.xlane.xlu0 %5657
        %5659 = vmax.xlane.f32.xlu0 %v5642
        %v5660 = vpop.xlane.xlu0 %5659
        %5661 = vmax.xlane.f32.xlu0 %v5643
        %v5662 = vpop.xlane.xlu0 %5661
        %5663 = vmax.xlane.f32.xlu0 %v5644
        %v5664 = vpop.xlane.xlu0 %5663
        %5665 = vmax.xlane.f32.xlu0 %v5645
        %v5666 = vpop.xlane.xlu0 %5665
        %5667 = vmax.xlane.f32.xlu0 %v5646
        %v5668 = vpop.xlane.xlu0 %5667
        %5669 = vmax.xlane.f32.xlu0 %v5647
        %v5670 = vpop.xlane.xlu0 %5669
        %5671 = vmax.xlane.f32.xlu0 %v5648
        %v5672 = vpop.xlane.xlu0 %5671
        %5673 = vmax.xlane.f32.xlu0 %v5649
        %v5674 = vpop.xlane.xlu0 %5673
        %5675 = vmax.xlane.f32.xlu0 %v5650
        %v5676 = vpop.xlane.xlu0 %5675
        %5677 = vmax.xlane.f32.xlu0 %v5651
        %v5678 = vpop.xlane.xlu0 %5677
        %5679 = vmax.xlane.f32.xlu0 %v5652
        %v5680 = vpop.xlane.xlu0 %5679
        %5681 = vmax.xlane.f32.xlu0 %v5653
        %v5682 = vpop.xlane.xlu0 %5681
        %5683 = vmax.xlane.f32.xlu0 %v5654
        %v5684 = vpop.xlane.xlu0 %5683
        %5685 = vmax.xlane.f32.xlu0 %v5655
        %v5686 = vpop.xlane.xlu0 %5685
        %5687 = vmax.xlane.f32.xlu0 %v5656
        %v5688 = vpop.xlane.xlu0 %5687
        %v5689 = vsub.f32 %v5641, %v5658
        %v5690 = vsub.f32 %v5642, %v5660
        %v5691 = vsub.f32 %v5643, %v5662
        %v5692 = vsub.f32 %v5644, %v5664
        %v5693 = vsub.f32 %v5645, %v5666
        %v5694 = vsub.f32 %v5646, %v5668
        %v5695 = vsub.f32 %v5647, %v5670
        %v5696 = vsub.f32 %v5648, %v5672
        %v5697 = vsub.f32 %v5649, %v5674
        %v5698 = vsub.f32 %v5650, %v5676
        %v5699 = vsub.f32 %v5651, %v5678
        %v5700 = vsub.f32 %v5652, %v5680
        %v5701 = vsub.f32 %v5653, %v5682
        %v5702 = vsub.f32 %v5654, %v5684
        %v5703 = vsub.f32 %v5655, %v5686
        %v5704 = vsub.f32 %v5656, %v5688
        %v5705 = vmul.f32 %v5689, 1.442695
        %v5706 = vpow.pop %v5705
        %v5707 = vmul.f32 %v5690, 1.442695
        %v5708 = vpow.pop %v5707
        %v5709 = vmul.f32 %v5691, 1.442695
        %v5710 = vpow.pop %v5709
        %v5711 = vmul.f32 %v5692, 1.442695
        %v5712 = vpow.pop %v5711
        %v5713 = vmul.f32 %v5693, 1.442695
        %v5714 = vpow.pop %v5713
        %v5715 = vmul.f32 %v5694, 1.442695
        %v5716 = vpow.pop %v5715
        %v5717 = vmul.f32 %v5695, 1.442695
        %v5718 = vpow.pop %v5717
        %v5719 = vmul.f32 %v5696, 1.442695
        %v5720 = vpow.pop %v5719
        %v5721 = vmul.f32 %v5697, 1.442695
        %v5722 = vpow.pop %v5721
        %v5723 = vmul.f32 %v5698, 1.442695
        %v5724 = vpow.pop %v5723
        %v5725 = vmul.f32 %v5699, 1.442695
        %v5726 = vpow.pop %v5725
        %v5727 = vmul.f32 %v5700, 1.442695
        %v5728 = vpow.pop %v5727
        %v5729 = vmul.f32 %v5701, 1.442695
        %v5730 = vpow.pop %v5729
        %v5731 = vmul.f32 %v5702, 1.442695
        %v5732 = vpow.pop %v5731
        %v5733 = vmul.f32 %v5703, 1.442695
        %v5734 = vpow.pop %v5733
        %v5735 = vmul.f32 %v5704, 1.442695
        %v5736 = vpow.pop %v5735
        %5737 = vadd.xlane.f32.xlu0 %v5706
        %v5738 = vpop.xlane.xlu0 %5737
        %5739 = vadd.xlane.f32.xlu0 %v5708
        %v5740 = vpop.xlane.xlu0 %5739
        %5741 = vadd.xlane.f32.xlu0 %v5710
        %v5742 = vpop.xlane.xlu0 %5741
        %5743 = vadd.xlane.f32.xlu0 %v5712
        %v5744 = vpop.xlane.xlu0 %5743
        %5745 = vadd.xlane.f32.xlu0 %v5714
        %v5746 = vpop.xlane.xlu0 %5745
        %5747 = vadd.xlane.f32.xlu0 %v5716
        %v5748 = vpop.xlane.xlu0 %5747
        %5749 = vadd.xlane.f32.xlu0 %v5718
        %v5750 = vpop.xlane.xlu0 %5749
        %5751 = vadd.xlane.f32.xlu0 %v5720
        %v5752 = vpop.xlane.xlu0 %5751
        %5753 = vadd.xlane.f32.xlu0 %v5722
        %v5754 = vpop.xlane.xlu0 %5753
        %5755 = vadd.xlane.f32.xlu0 %v5724
        %v5756 = vpop.xlane.xlu0 %5755
        %5757 = vadd.xlane.f32.xlu0 %v5726
        %v5758 = vpop.xlane.xlu0 %5757
        %5759 = vadd.xlane.f32.xlu0 %v5728
        %v5760 = vpop.xlane.xlu0 %5759
        %5761 = vadd.xlane.f32.xlu0 %v5730
        %v5762 = vpop.xlane.xlu0 %5761
        %5763 = vadd.xlane.f32.xlu0 %v5732
        %v5764 = vpop.xlane.xlu0 %5763
        %5765 = vadd.xlane.f32.xlu0 %v5734
        %v5766 = vpop.xlane.xlu0 %5765
        %5767 = vadd.xlane.f32.xlu0 %v5736
        %v5768 = vpop.xlane.xlu0 %5767
        %v5769 = vrcp.pop %v5738
        %v5770 = vmul.f32 %v5706, %v5769
        %v5771 = vrcp.pop %v5740
        %v5772 = vmul.f32 %v5708, %v5771
        %v5773 = vrcp.pop %v5742
        %v5774 = vmul.f32 %v5710, %v5773
        %v5775 = vrcp.pop %v5744
        %v5776 = vmul.f32 %v5712, %v5775
        %v5777 = vrcp.pop %v5746
        %v5778 = vmul.f32 %v5714, %v5777
        %v5779 = vrcp.pop %v5748
        %v5780 = vmul.f32 %v5716, %v5779
        %v5781 = vrcp.pop %v5750
        %v5782 = vmul.f32 %v5718, %v5781
        %v5783 = vrcp.pop %v5752
        %v5784 = vmul.f32 %v5720, %v5783
        %v5785 = vrcp.pop %v5754
        %v5786 = vmul.f32 %v5722, %v5785
        %v5787 = vrcp.pop %v5756
        %v5788 = vmul.f32 %v5724, %v5787
        %v5789 = vrcp.pop %v5758
        %v5790 = vmul.f32 %v5726, %v5789
        %v5791 = vrcp.pop %v5760
        %v5792 = vmul.f32 %v5728, %v5791
        %v5793 = vrcp.pop %v5762
        %v5794 = vmul.f32 %v5730, %v5793
        %v5795 = vrcp.pop %v5764
        %v5796 = vmul.f32 %v5732, %v5795
        %v5797 = vrcp.pop %v5766
        %v5798 = vmul.f32 %v5734, %v5797
        %v5799 = vrcp.pop %v5768
        %v5800 = vmul.f32 %v5736, %v5799
        %v5801 = vpack.c.bf16 %v5772, %v5770
        %v5802 = vpack.c.bf16 %v5776, %v5774
        %v5803 = vpack.c.bf16 %v5780, %v5778
        %v5804 = vpack.c.bf16 %v5784, %v5782
        %v5805 = vpack.c.bf16 %v5788, %v5786
        %v5806 = vpack.c.bf16 %v5792, %v5790
        %v5807 = vpack.c.bf16 %v5796, %v5794
        %v5808 = vpack.c.bf16 %v5800, %v5798
        %v5809 = vpack.c.bf16 %v5417, %v5416
        %v5810 = vpack.c.bf16 %v5419, %v5418
        %v5811 = vpack.c.bf16 %v5421, %v5420
        %v5812 = vpack.c.bf16 %v5423, %v5422
        %v5813 = vpack.c.bf16 %v5425, %v5424
        %v5814 = vpack.c.bf16 %v5427, %v5426
        %v5815 = vpack.c.bf16 %v5429, %v5428
        %v5816 = vpack.c.bf16 %v5431, %v5430
        %5825 = vrot.lane.b32.xlu0 %v5809, 32
        %v5826 = vpop.permute.xlu0 %5825
        %5827 = vrot.lane.b32.xlu0 %v5810, 32
        %v5828 = vpop.permute.xlu0 %5827
        %5829 = vrot.lane.b32.xlu0 %v5811, 32
        %v5830 = vpop.permute.xlu0 %5829
        %5831 = vrot.lane.b32.xlu0 %v5812, 32
        %v5832 = vpop.permute.xlu0 %5831
        %5833 = vrot.lane.b32.xlu0 %v5813, 32
        %v5834 = vpop.permute.xlu0 %5833
        %5835 = vrot.lane.b32.xlu0 %v5814, 32
        %v5836 = vpop.permute.xlu0 %5835
        %5837 = vrot.lane.b32.xlu0 %v5815, 32
        %v5838 = vpop.permute.xlu0 %5837
        %5839 = vrot.lane.b32.xlu0 %v5816, 32
        %v5840 = vpop.permute.xlu0 %5839
        %5849 = vmatprep.subr.bf16.mxu0 0
        %5850 = vmatpush1.bf16.msra.mxu0 %v5826
        %5851 = vmatprep.subr.bf16.mxu0 0
        %5852 = vmatpush1.bf16.msra.mxu0 %v5828
        %5853 = vmatprep.subr.bf16.mxu0 0
        %5854 = vmatpush1.bf16.msra.mxu0 %v5830
        %5855 = vmatprep.subr.bf16.mxu0 0
        %5856 = vmatpush1.bf16.msra.mxu0 %v5832
        %5857 = vmatprep.subr.bf16.mxu0 0
        %5858 = vmatpush1.bf16.msra.mxu0 %v5834
        %5859 = vmatprep.subr.bf16.mxu0 0
        %5860 = vmatpush1.bf16.msra.mxu0 %v5836
        %5861 = vmatprep.subr.bf16.mxu0 0
        %5862 = vmatpush1.bf16.msra.mxu0 %v5838
        %5863 = vmatprep.subr.bf16.mxu0 0
        %5864 = vmatpush1.bf16.msra.mxu0 %v5840
        %5865 = vmatprep.subr.bf16.mxu0 0
        %5866 = vmatpush1.bf16.msra.mxu0 0
        %5867 = vmatprep.subr.bf16.mxu0 0
        %5868 = vmatpush1.bf16.msra.mxu0 0
        %5869 = vmatprep.subr.bf16.mxu0 0
        %5870 = vmatpush1.bf16.msra.mxu0 0
        %5871 = vmatprep.subr.bf16.mxu0 0
        %5872 = vmatpush1.bf16.msra.mxu0 0
        %5873 = vmatprep.subr.bf16.mxu0 0
        %5874 = vmatpush1.bf16.msra.mxu0 0
        %5875 = vmatprep.subr.bf16.mxu0 0
        %5876 = vmatpush1.bf16.msra.mxu0 0
        %5877 = vmatprep.subr.bf16.mxu0 0
        %5878 = vmatpush1.bf16.msra.mxu0 0
        %5879 = vmatprep.subr.bf16.mxu0 0
        %5880 = vmatpush1.bf16.msra.mxu0 0
        %5881 = vmatprep.mubr.bf16.mxu0 0
        %5882 = vmatmul.mubr.bf16.gmra.mrb[0].mxu0 %v5801
        %v5883 = vpop.f32.mrb[0].mxu0
        %v5884 = vadd.f32 0.0, %v5883
        %v5885 = vpop.f32.mrb[0].mxu0
        %v5886 = vpop.f32.mrb[0].mxu0
        %v5887 = vadd.f32 0.0, %v5886
        %v5888 = vpop.f32.mrb[0].mxu0
        %5889 = vmatprep.mubr.bf16.mxu0 0
        %5890 = vmatmul.mubr.bf16.gmra.mrb[0].mxu0 %v5802
        %v5891 = vpop.f32.mrb[0].mxu0
        %v5892 = vadd.f32 0.0, %v5891
        %v5893 = vpop.f32.mrb[0].mxu0
        %v5894 = vpop.f32.mrb[0].mxu0
        %v5895 = vadd.f32 0.0, %v5894
        %v5896 = vpop.f32.mrb[0].mxu0
        %5897 = vmatprep.mubr.bf16.mxu0 0
        %5898 = vmatmul.mubr.bf16.gmra.mrb[0].mxu0 %v5803
        %v5899 = vpop.f32.mrb[0].mxu0
        %v5900 = vadd.f32 0.0, %v5899
        %v5901 = vpop.f32.mrb[0].mxu0
        %v5902 = vpop.f32.mrb[0].mxu0
        %v5903 = vadd.f32 0.0, %v5902
        %v5904 = vpop.f32.mrb[0].mxu0
        %5905 = vmatprep.mubr.bf16.mxu0 0
        %5906 = vmatmul.mubr.bf16.gmra.mrb[0].mxu0 %v5804
        %v5907 = vpop.f32.mrb[0].mxu0
        %v5908 = vadd.f32 0.0, %v5907
        %v5909 = vpop.f32.mrb[0].mxu0
        %v5910 = vpop.f32.mrb[0].mxu0
        %v5911 = vadd.f32 0.0, %v5910
        %v5912 = vpop.f32.mrb[0].mxu0
        %5913 = vmatprep.mubr.bf16.mxu0 0
        %5914 = vmatmul.mubr.bf16.gmra.mrb[0].mxu0 %v5805
        %v5915 = vpop.f32.mrb[0].mxu0
        %v5916 = vadd.f32 0.0, %v5915
        %v5917 = vpop.f32.mrb[0].mxu0
        %v5918 = vpop.f32.mrb[0].mxu0
        %v5919 = vadd.f32 0.0, %v5918
        %v5920 = vpop.f32.mrb[0].mxu0
        %5921 = vmatprep.mubr.bf16.mxu0 0
        %5922 = vmatmul.mubr.bf16.gmra.mrb[0].mxu0 %v5806
        %v5923 = vpop.f32.mrb[0].mxu0
        %v5924 = vadd.f32 0.0, %v5923
        %v5925 = vpop.f32.mrb[0].mxu0
        %v5926 = vpop.f32.mrb[0].mxu0
        %v5927 = vadd.f32 0.0, %v5926
        %v5928 = vpop.f32.mrb[0].mxu0
        %5929 = vmatprep.mubr.bf16.mxu0 0
        %5930 = vmatmul.mubr.bf16.gmra.mrb[0].mxu0 %v5807
        %v5931 = vpop.f32.mrb[0].mxu0
        %v5932 = vadd.f32 0.0, %v5931
        %v5933 = vpop.f32.mrb[0].mxu0
        %v5934 = vpop.f32.mrb[0].mxu0
        %v5935 = vadd.f32 0.0, %v5934
        %v5936 = vpop.f32.mrb[0].mxu0
        %5937 = vmatprep.mubr.bf16.mxu0 0
        %5938 = vmatmul.mubr.bf16.gmra.mrb[0].mxu0 %v5808
        %v5939 = vpop.f32.mrb[0].mxu0
        %v5940 = vadd.f32 0.0, %v5939
        %v5941 = vpop.f32.mrb[0].mxu0
        %v5942 = vpop.f32.mrb[0].mxu0
        %v5943 = vadd.f32 0.0, %v5942
        %v5944 = vpop.f32.mrb[0].mxu0
        %5945 = vdwg.mxu0
        %v5946 = vld [vmem:[#allocation3] sm:$0xff]
        %v5947 = vld [vmem:[#allocation3 + $0x8] sm:$0xff]
        %v5948 = vld [vmem:[#allocation3 + $0x10] sm:$0xff]
        %v5949 = vld [vmem:[#allocation3 + $0x18] sm:$0xff]
        %v5950 = vld [vmem:[#allocation3 + $0x20] sm:$0xff]
        %v5951 = vld [vmem:[#allocation3 + $0x28] sm:$0xff]
        %v5952 = vld [vmem:[#allocation3 + $0x30] sm:$0xff]
        %v5953 = vld [vmem:[#allocation3 + $0x38] sm:$0xff]
        %v5954 = vld [vmem:[#allocation3 + $0x40] sm:$0xff]
        %v5955 = vld [vmem:[#allocation3 + $0x48] sm:$0xff]
        %v5956 = vld [vmem:[#allocation3 + $0x50] sm:$0xff]
        %v5957 = vld [vmem:[#allocation3 + $0x58] sm:$0xff]
        %v5958 = vld [vmem:[#allocation3 + $0x60] sm:$0xff]
        %v5959 = vld [vmem:[#allocation3 + $0x68] sm:$0xff]
        %v5960 = vld [vmem:[#allocation3 + $0x70] sm:$0xff]
        %v5961 = vld [vmem:[#allocation3 + $0x78] sm:$0xff]
        %v5962 = vpack.c.bf16 %v5887, %v5884
        %v5963 = vpack.c.bf16 %v5895, %v5892
        %v5964 = vpack.c.bf16 %v5903, %v5900
        %v5965 = vpack.c.bf16 %v5911, %v5908
        %v5966 = vpack.c.bf16 %v5919, %v5916
        %v5967 = vpack.c.bf16 %v5927, %v5924
        %v5968 = vpack.c.bf16 %v5935, %v5932
        %v5969 = vpack.c.bf16 %v5943, %v5940
        %v5970 = vld [vmem:[#allocation9 + $0x30] sm:$0xf]
        %v5971 = vld [vmem:[#allocation9 + $0x34] sm:$0xf]
        %v5974 = vunpack.c.l.b16 %v5970
        %v5975 = vunpack.c.l.b16 %v5971
        %v5976 = vpack.c.b16 %v5975, %v5974
        %v5979 = vsel %vm1045, %v5962, 0
        %v5982 = vsel %vm1045, %v5963, 0
        %v5985 = vsel %vm1045, %v5964, 0
        %v5988 = vsel %vm1045, %v5965, 0
        %v5991 = vsel %vm1045, %v5966, 0
        %v5994 = vsel %vm1045, %v5967, 0
        %v5997 = vsel %vm1045, %v5968, 0
        %v6000 = vsel %vm1045, %v5969, 0
        %6002 = vmatprep.subr.bf16.mxu0 0
        %6003 = vmatpush1.bf16.msra.mxu0 %v5976
        %6004 = vmatprep.subr.bf16.mxu0 0
        %6005 = vmatpush1.bf16.msra.mxu0 0
        %6006 = vmatprep.subr.bf16.mxu0 0
        %6007 = vmatpush1.bf16.msra.mxu0 0
        %6008 = vmatprep.subr.bf16.mxu0 0
        %6009 = vmatpush1.bf16.msra.mxu0 0
        %6010 = vmatprep.subr.bf16.mxu0 0
        %6011 = vmatpush1.bf16.msra.mxu0 0
        %6012 = vmatprep.subr.bf16.mxu0 0
        %6013 = vmatpush1.bf16.msra.mxu0 0
        %6014 = vmatprep.subr.bf16.mxu0 0
        %6015 = vmatpush1.bf16.msra.mxu0 0
        %6016 = vmatprep.subr.bf16.mxu0 0
        %6017 = vmatpush1.bf16.msra.mxu0 0
        %6018 = vmatprep.subr.bf16.mxu0 0
        %6019 = vmatpush1.bf16.msra.mxu0 0
        %6020 = vmatprep.subr.bf16.mxu0 0
        %6021 = vmatpush1.bf16.msra.mxu0 0
        %6022 = vmatprep.subr.bf16.mxu0 0
        %6023 = vmatpush1.bf16.msra.mxu0 0
        %6024 = vmatprep.subr.bf16.mxu0 0
        %6025 = vmatpush1.bf16.msra.mxu0 0
        %6026 = vmatprep.subr.bf16.mxu0 0
        %6027 = vmatpush1.bf16.msra.mxu0 0
        %6028 = vmatprep.subr.bf16.mxu0 0
        %6029 = vmatpush1.bf16.msra.mxu0 0
        %6030 = vmatprep.subr.bf16.mxu0 0
        %6031 = vmatpush1.bf16.msra.mxu0 0
        %6032 = vmatprep.subr.bf16.mxu0 0
        %6033 = vmatpush1.bf16.msra.mxu0 0
        %6034 = vmatprep.mubr.bf16.mxu0 0
        %6035 = vmatmul.mubr.bf16.gmra.mrb[0].mxu0 %v5979
        %v6036 = vpop.f32.mrb[0].mxu0
        %v6037 = vadd.f32 0.0, %v6036
        %v6038 = vpop.f32.mrb[0].mxu0
        %v6039 = vpop.f32.mrb[0].mxu0
        %v6040 = vadd.f32 0.0, %v6039
        %v6041 = vpop.f32.mrb[0].mxu0
        %6042 = vmatprep.mubr.bf16.mxu0 0
        %6043 = vmatmul.mubr.bf16.gmra.mrb[0].mxu0 %v5982
        %v6044 = vpop.f32.mrb[0].mxu0
        %v6045 = vadd.f32 0.0, %v6044
        %v6046 = vpop.f32.mrb[0].mxu0
        %v6047 = vpop.f32.mrb[0].mxu0
        %v6048 = vadd.f32 0.0, %v6047
        %v6049 = vpop.f32.mrb[0].mxu0
        %6050 = vmatprep.mubr.bf16.mxu0 0
        %6051 = vmatmul.mubr.bf16.gmra.mrb[0].mxu0 %v5985
        %v6052 = vpop.f32.mrb[0].mxu0
        %v6053 = vadd.f32 0.0, %v6052
        %v6054 = vpop.f32.mrb[0].mxu0
        %v6055 = vpop.f32.mrb[0].mxu0
        %v6056 = vadd.f32 0.0, %v6055
        %v6057 = vpop.f32.mrb[0].mxu0
        %6058 = vmatprep.mubr.bf16.mxu0 0
        %6059 = vmatmul.mubr.bf16.gmra.mrb[0].mxu0 %v5988
        %v6060 = vpop.f32.mrb[0].mxu0
        %v6061 = vadd.f32 0.0, %v6060
        %v6062 = vpop.f32.mrb[0].mxu0
        %v6063 = vpop.f32.mrb[0].mxu0
        %v6064 = vadd.f32 0.0, %v6063
        %v6065 = vpop.f32.mrb[0].mxu0
        %6066 = vmatprep.mubr.bf16.mxu0 0
        %6067 = vmatmul.mubr.bf16.gmra.mrb[0].mxu0 %v5991
        %v6068 = vpop.f32.mrb[0].mxu0
        %v6069 = vadd.f32 0.0, %v6068
        %v6070 = vpop.f32.mrb[0].mxu0
        %v6071 = vpop.f32.mrb[0].mxu0
        %v6072 = vadd.f32 0.0, %v6071
        %v6073 = vpop.f32.mrb[0].mxu0
        %6074 = vmatprep.mubr.bf16.mxu0 0
        %6075 = vmatmul.mubr.bf16.gmra.mrb[0].mxu0 %v5994
        %v6076 = vpop.f32.mrb[0].mxu0
        %v6077 = vadd.f32 0.0, %v6076
        %v6078 = vpop.f32.mrb[0].mxu0
        %v6079 = vpop.f32.mrb[0].mxu0
        %v6080 = vadd.f32 0.0, %v6079
        %v6081 = vpop.f32.mrb[0].mxu0
        %6082 = vmatprep.mubr.bf16.mxu0 0
        %6083 = vmatmul.mubr.bf16.gmra.mrb[0].mxu0 %v5997
        %v6084 = vpop.f32.mrb[0].mxu0
        %v6085 = vadd.f32 0.0, %v6084
        %v6086 = vpop.f32.mrb[0].mxu0
        %v6087 = vpop.f32.mrb[0].mxu0
        %v6088 = vadd.f32 0.0, %v6087
        %v6089 = vpop.f32.mrb[0].mxu0
        %6090 = vmatprep.mubr.bf16.mxu0 0
        %6091 = vmatmul.mubr.bf16.gmra.mrb[0].mxu0 %v6000
        %v6092 = vpop.f32.mrb[0].mxu0
        %v6093 = vadd.f32 0.0, %v6092
        %v6094 = vpop.f32.mrb[0].mxu0
        %v6095 = vpop.f32.mrb[0].mxu0
        %v6096 = vadd.f32 0.0, %v6095
        %v6097 = vpop.f32.mrb[0].mxu0
        %6098 = vdwg.mxu0
        %v6099 = vadd.f32 %v5946, %v6037
        %v6100 = vadd.f32 %v5947, %v6040
        %v6101 = vadd.f32 %v5948, %v6045
        %v6102 = vadd.f32 %v5949, %v6048
        %v6103 = vadd.f32 %v5950, %v6053
        %v6104 = vadd.f32 %v5951, %v6056
        %v6105 = vadd.f32 %v5952, %v6061
        %v6106 = vadd.f32 %v5953, %v6064
        %v6107 = vadd.f32 %v5954, %v6069
        %v6108 = vadd.f32 %v5955, %v6072
        %v6109 = vadd.f32 %v5956, %v6077
        %v6110 = vadd.f32 %v5957, %v6080
        %v6111 = vadd.f32 %v5958, %v6085
        %v6112 = vadd.f32 %v5959, %v6088
        %v6113 = vadd.f32 %v5960, %v6093
        %v6114 = vadd.f32 %v5961, %v6096
        %6115 = vst [vmem:[#allocation3] sm:$0xff] %v6099
        %6116 = vst [vmem:[#allocation3 + $0x8] sm:$0xff] %v6100
        %6117 = vst [vmem:[#allocation3 + $0x10] sm:$0xff] %v6101
        %6118 = vst [vmem:[#allocation3 + $0x18] sm:$0xff] %v6102
        %6119 = vst [vmem:[#allocation3 + $0x20] sm:$0xff] %v6103
        %6120 = vst [vmem:[#allocation3 + $0x28] sm:$0xff] %v6104
        %6121 = vst [vmem:[#allocation3 + $0x30] sm:$0xff] %v6105
        %6122 = vst [vmem:[#allocation3 + $0x38] sm:$0xff] %v6106
        %6123 = vst [vmem:[#allocation3 + $0x40] sm:$0xff] %v6107
        %6124 = vst [vmem:[#allocation3 + $0x48] sm:$0xff] %v6108
        %6125 = vst [vmem:[#allocation3 + $0x50] sm:$0xff] %v6109
        %6126 = vst [vmem:[#allocation3 + $0x58] sm:$0xff] %v6110
        %6127 = vst [vmem:[#allocation3 + $0x60] sm:$0xff] %v6111
        %6128 = vst [vmem:[#allocation3 + $0x68] sm:$0xff] %v6112
        %6129 = vst [vmem:[#allocation3 + $0x70] sm:$0xff] %v6113
        %6130 = vst [vmem:[#allocation3 + $0x78] sm:$0xff] %v6114
        %v6131 = vld [vmem:[#allocation2] sm:$0xff]
        %v6132 = vld [vmem:[#allocation2 + $0x18] sm:$0xff]
        %v6133 = vld [vmem:[#allocation2 + $0x30] sm:$0xff]
        %v6134 = vld [vmem:[#allocation2 + $0x48] sm:$0xff]
        %v6135 = vld [vmem:[#allocation2 + $0x60] sm:$0xff]
        %v6136 = vld [vmem:[#allocation2 + $0x78] sm:$0xff]
        %v6137 = vld [vmem:[#allocation2 + $0x90] sm:$0xff]
        %v6138 = vld [vmem:[#allocation2 + $0xa8] sm:$0xff]
        %v6139 = vld [vmem:[#allocation2 + $0xc0] sm:$0xff]
        %v6140 = vld [vmem:[#allocation2 + $0xd8] sm:$0xff]
        %v6141 = vld [vmem:[#allocation2 + $0xf0] sm:$0xff]
        %v6142 = vld [vmem:[#allocation2 + $0x108] sm:$0xff]
        %v6143 = vld [vmem:[#allocation2 + $0x120] sm:$0xff]
        %v6144 = vld [vmem:[#allocation2 + $0x138] sm:$0xff]
        %v6145 = vld [vmem:[#allocation2 + $0x150] sm:$0xff]
        %v6146 = vld [vmem:[#allocation2 + $0x168] sm:$0xff]
        %v6147 = vld [vmem:[#allocation2 + $0x8] sm:$0xff]
        %v6148 = vld [vmem:[#allocation2 + $0x20] sm:$0xff]
        %v6149 = vld [vmem:[#allocation2 + $0x38] sm:$0xff]
        %v6150 = vld [vmem:[#allocation2 + $0x50] sm:$0xff]
        %v6151 = vld [vmem:[#allocation2 + $0x68] sm:$0xff]
        %v6152 = vld [vmem:[#allocation2 + $0x80] sm:$0xff]
        %v6153 = vld [vmem:[#allocation2 + $0x98] sm:$0xff]
        %v6154 = vld [vmem:[#allocation2 + $0xb0] sm:$0xff]
        %v6155 = vld [vmem:[#allocation2 + $0xc8] sm:$0xff]
        %v6156 = vld [vmem:[#allocation2 + $0xe0] sm:$0xff]
        %v6157 = vld [vmem:[#allocation2 + $0xf8] sm:$0xff]
        %v6158 = vld [vmem:[#allocation2 + $0x110] sm:$0xff]
        %v6159 = vld [vmem:[#allocation2 + $0x128] sm:$0xff]
        %v6160 = vld [vmem:[#allocation2 + $0x140] sm:$0xff]
        %v6161 = vld [vmem:[#allocation2 + $0x158] sm:$0xff]
        %v6162 = vld [vmem:[#allocation2 + $0x170] sm:$0xff]
        %v6163 = vld [vmem:[#allocation2 + $0x10] sm:$0xff]
        %v6164 = vld [vmem:[#allocation2 + $0x28] sm:$0xff]
        %v6165 = vld [vmem:[#allocation2 + $0x40] sm:$0xff]
        %v6166 = vld [vmem:[#allocation2 + $0x58] sm:$0xff]
        %v6167 = vld [vmem:[#allocation2 + $0x70] sm:$0xff]
        %v6168 = vld [vmem:[#allocation2 + $0x88] sm:$0xff]
        %v6169 = vld [vmem:[#allocation2 + $0xa0] sm:$0xff]
        %v6170 = vld [vmem:[#allocation2 + $0xb8] sm:$0xff]
        %v6171 = vld [vmem:[#allocation2 + $0xd0] sm:$0xff]
        %v6172 = vld [vmem:[#allocation2 + $0xe8] sm:$0xff]
        %v6173 = vld [vmem:[#allocation2 + $0x100] sm:$0xff]
        %v6174 = vld [vmem:[#allocation2 + $0x118] sm:$0xff]
        %v6175 = vld [vmem:[#allocation2 + $0x130] sm:$0xff]
        %v6176 = vld [vmem:[#allocation2 + $0x148] sm:$0xff]
        %v6177 = vld [vmem:[#allocation2 + $0x160] sm:$0xff]
        %v6178 = vld [vmem:[#allocation2 + $0x178] sm:$0xff]
        %v6179 = vpack.c.bf16 %v6132, %v6131
        %v6180 = vpack.c.bf16 %v6134, %v6133
        %v6181 = vpack.c.bf16 %v6136, %v6135
        %v6182 = vpack.c.bf16 %v6138, %v6137
        %v6183 = vpack.c.bf16 %v6140, %v6139
        %v6184 = vpack.c.bf16 %v6142, %v6141
        %v6185 = vpack.c.bf16 %v6144, %v6143
        %v6186 = vpack.c.bf16 %v6146, %v6145
        %v6187 = vpack.c.bf16 %v6148, %v6147
        %v6188 = vpack.c.bf16 %v6150, %v6149
        %v6189 = vpack.c.bf16 %v6152, %v6151
        %v6190 = vpack.c.bf16 %v6154, %v6153
        %v6191 = vpack.c.bf16 %v6156, %v6155
        %v6192 = vpack.c.bf16 %v6158, %v6157
        %v6193 = vpack.c.bf16 %v6160, %v6159
        %v6194 = vpack.c.bf16 %v6162, %v6161
        %6203 = vrot.lane.b32.xlu0 %v6179, 16
        %v6204 = vpop.permute.xlu0 %6203
        %6205 = vrot.lane.b32.xlu0 %v6180, 16
        %v6206 = vpop.permute.xlu0 %6205
        %6207 = vrot.lane.b32.xlu0 %v6181, 16
        %v6208 = vpop.permute.xlu0 %6207
        %6209 = vrot.lane.b32.xlu0 %v6182, 16
        %v6210 = vpop.permute.xlu0 %6209
        %6211 = vrot.lane.b32.xlu0 %v6183, 16
        %v6212 = vpop.permute.xlu0 %6211
        %6213 = vrot.lane.b32.xlu0 %v6184, 16
        %v6214 = vpop.permute.xlu0 %6213
        %6215 = vrot.lane.b32.xlu0 %v6185, 16
        %v6216 = vpop.permute.xlu0 %6215
        %6217 = vrot.lane.b32.xlu0 %v6186, 16
        %v6218 = vpop.permute.xlu0 %6217
        %6227 = vrot.lane.b32.xlu0 %v6187, 16
        %v6228 = vpop.permute.xlu0 %6227
        %6229 = vrot.lane.b32.xlu0 %v6188, 16
        %v6230 = vpop.permute.xlu0 %6229
        %6231 = vrot.lane.b32.xlu0 %v6189, 16
        %v6232 = vpop.permute.xlu0 %6231
        %6233 = vrot.lane.b32.xlu0 %v6190, 16
        %v6234 = vpop.permute.xlu0 %6233
        %6235 = vrot.lane.b32.xlu0 %v6191, 16
        %v6236 = vpop.permute.xlu0 %6235
        %6237 = vrot.lane.b32.xlu0 %v6192, 16
        %v6238 = vpop.permute.xlu0 %6237
        %6239 = vrot.lane.b32.xlu0 %v6193, 16
        %v6240 = vpop.permute.xlu0 %6239
        %6241 = vrot.lane.b32.xlu0 %v6194, 16
        %v6242 = vpop.permute.xlu0 %6241
        %v6244 = vsel %vm1045, %v6204, 0
        %v6247 = vsel %vm1045, %v6206, 0
        %v6250 = vsel %vm1045, %v6208, 0
        %v6253 = vsel %vm1045, %v6210, 0
        %v6256 = vsel %vm1045, %v6212, 0
        %v6259 = vsel %vm1045, %v6214, 0
        %v6262 = vsel %vm1045, %v6216, 0
        %v6265 = vsel %vm1045, %v6218, 0
        %v6268 = vsel %vm1045, %v6228, 0
        %v6271 = vsel %vm1045, %v6230, 0
        %v6274 = vsel %vm1045, %v6232, 0
        %v6277 = vsel %vm1045, %v6234, 0
        %v6280 = vsel %vm1045, %v6236, 0
        %v6283 = vsel %vm1045, %v6238, 0
        %v6286 = vsel %vm1045, %v6240, 0
        %v6289 = vsel %vm1045, %v6242, 0
        %6291 = vmatprep.subr.bf16.mxu0 0
        %6292 = vmatpush1.bf16.xpose.msra.mxu0 %v6268
        %6293 = vmatprep.subr.bf16.mxu0 0
        %6294 = vmatpush1.bf16.xpose.msra.mxu0 %v6271
        %6295 = vmatprep.subr.bf16.mxu0 0
        %6296 = vmatpush1.bf16.xpose.msra.mxu0 %v6274
        %6297 = vmatprep.subr.bf16.mxu0 0
        %6298 = vmatpush1.bf16.xpose.msra.mxu0 %v6277
        %6299 = vmatprep.subr.bf16.mxu0 0
        %6300 = vmatpush1.bf16.xpose.msra.mxu0 %v6280
        %6301 = vmatprep.subr.bf16.mxu0 0
        %6302 = vmatpush1.bf16.xpose.msra.mxu0 %v6283
        %6303 = vmatprep.subr.bf16.mxu0 0
        %6304 = vmatpush1.bf16.xpose.msra.mxu0 %v6286
        %6305 = vmatprep.subr.bf16.mxu0 0
        %6306 = vmatpush1.bf16.xpose.msra.mxu0 %v6289
        %6307 = vmatprep.subr.bf16.mxu0 0
        %6308 = vmatpush1.bf16.xpose.msra.mxu0 0
        %6309 = vmatprep.subr.bf16.mxu0 0
        %6310 = vmatpush1.bf16.xpose.msra.mxu0 0
        %6311 = vmatprep.subr.bf16.mxu0 0
        %6312 = vmatpush1.bf16.xpose.msra.mxu0 0
        %6313 = vmatprep.subr.bf16.mxu0 0
        %6314 = vmatpush1.bf16.xpose.msra.mxu0 0
        %6315 = vmatprep.subr.bf16.mxu0 0
        %6316 = vmatpush1.bf16.xpose.msra.mxu0 0
        %6317 = vmatprep.subr.bf16.mxu0 0
        %6318 = vmatpush1.bf16.xpose.msra.mxu0 0
        %6319 = vmatprep.subr.bf16.mxu0 0
        %6320 = vmatpush1.bf16.xpose.msra.mxu0 0
        %6321 = vmatprep.subr.bf16.mxu0 0
        %6322 = vmatpush1.bf16.xpose.msra.mxu0 0
        %6323 = vmatprep.mubr.bf16.mxu0 0
        %6324 = vmatmul.mubr.bf16.gmra.mrb[0].mxu0 %v6244
        %v6325 = vpop.f32.mrb[0].mxu0
        %v6326 = vadd.f32 0.0, %v6325
        %v6327 = vpop.f32.mrb[0].mxu0
        %v6328 = vpop.f32.mrb[0].mxu0
        %v6329 = vadd.f32 0.0, %v6328
        %v6330 = vpop.f32.mrb[0].mxu0
        %6331 = vmatprep.mubr.bf16.mxu0 0
        %6332 = vmatmul.mubr.bf16.gmra.mrb[0].mxu0 %v6247
        %v6333 = vpop.f32.mrb[0].mxu0
        %v6334 = vadd.f32 0.0, %v6333
        %v6335 = vpop.f32.mrb[0].mxu0
        %v6336 = vpop.f32.mrb[0].mxu0
        %v6337 = vadd.f32 0.0, %v6336
        %v6338 = vpop.f32.mrb[0].mxu0
        %6339 = vmatprep.mubr.bf16.mxu0 0
        %6340 = vmatmul.mubr.bf16.gmra.mrb[0].mxu0 %v6250
        %v6341 = vpop.f32.mrb[0].mxu0
        %v6342 = vadd.f32 0.0, %v6341
        %v6343 = vpop.f32.mrb[0].mxu0
        %v6344 = vpop.f32.mrb[0].mxu0
        %v6345 = vadd.f32 0.0, %v6344
        %v6346 = vpop.f32.mrb[0].mxu0
        %6347 = vmatprep.mubr.bf16.mxu0 0
        %6348 = vmatmul.mubr.bf16.gmra.mrb[0].mxu0 %v6253
        %v6349 = vpop.f32.mrb[0].mxu0
        %v6350 = vadd.f32 0.0, %v6349
        %v6351 = vpop.f32.mrb[0].mxu0
        %v6352 = vpop.f32.mrb[0].mxu0
        %v6353 = vadd.f32 0.0, %v6352
        %v6354 = vpop.f32.mrb[0].mxu0
        %6355 = vmatprep.mubr.bf16.mxu0 0
        %6356 = vmatmul.mubr.bf16.gmra.mrb[0].mxu0 %v6256
        %v6357 = vpop.f32.mrb[0].mxu0
        %v6358 = vadd.f32 0.0, %v6357
        %v6359 = vpop.f32.mrb[0].mxu0
        %v6360 = vpop.f32.mrb[0].mxu0
        %v6361 = vadd.f32 0.0, %v6360
        %v6362 = vpop.f32.mrb[0].mxu0
        %6363 = vmatprep.mubr.bf16.mxu0 0
        %6364 = vmatmul.mubr.bf16.gmra.mrb[0].mxu0 %v6259
        %v6365 = vpop.f32.mrb[0].mxu0
        %v6366 = vadd.f32 0.0, %v6365
        %v6367 = vpop.f32.mrb[0].mxu0
        %v6368 = vpop.f32.mrb[0].mxu0
        %v6369 = vadd.f32 0.0, %v6368
        %v6370 = vpop.f32.mrb[0].mxu0
        %6371 = vmatprep.mubr.bf16.mxu0 0
        %6372 = vmatmul.mubr.bf16.gmra.mrb[0].mxu0 %v6262
        %v6373 = vpop.f32.mrb[0].mxu0
        %v6374 = vadd.f32 0.0, %v6373
        %v6375 = vpop.f32.mrb[0].mxu0
        %v6376 = vpop.f32.mrb[0].mxu0
        %v6377 = vadd.f32 0.0, %v6376
        %v6378 = vpop.f32.mrb[0].mxu0
        %6379 = vmatprep.mubr.bf16.mxu0 0
        %6380 = vmatmul.mubr.bf16.gmra.mrb[0].mxu0 %v6265
        %v6381 = vpop.f32.mrb[0].mxu0
        %v6382 = vadd.f32 0.0, %v6381
        %v6383 = vpop.f32.mrb[0].mxu0
        %v6384 = vpop.f32.mrb[0].mxu0
        %v6385 = vadd.f32 0.0, %v6384
        %v6386 = vpop.f32.mrb[0].mxu0
        %6387 = vdwg.mxu0
        %v6388 = vmul.f32 %v6326, 0.25
        %v6389 = vmul.f32 %v6329, 0.25
        %v6390 = vmul.f32 %v6334, 0.25
        %v6391 = vmul.f32 %v6337, 0.25
        %v6392 = vmul.f32 %v6342, 0.25
        %v6393 = vmul.f32 %v6345, 0.25
        %v6394 = vmul.f32 %v6350, 0.25
        %v6395 = vmul.f32 %v6353, 0.25
        %v6396 = vmul.f32 %v6358, 0.25
        %v6397 = vmul.f32 %v6361, 0.25
        %v6398 = vmul.f32 %v6366, 0.25
        %v6399 = vmul.f32 %v6369, 0.25
        %v6400 = vmul.f32 %v6374, 0.25
        %v6401 = vmul.f32 %v6377, 0.25
        %v6402 = vmul.f32 %v6382, 0.25
        %v6403 = vmul.f32 %v6385, 0.25
        %6404 = vmax.xlane.f32.xlu0 %v6388
        %v6405 = vpop.xlane.xlu0 %6404
        %6406 = vmax.xlane.f32.xlu0 %v6389
        %v6407 = vpop.xlane.xlu0 %6406
        %6408 = vmax.xlane.f32.xlu0 %v6390
        %v6409 = vpop.xlane.xlu0 %6408
        %6410 = vmax.xlane.f32.xlu0 %v6391
        %v6411 = vpop.xlane.xlu0 %6410
        %6412 = vmax.xlane.f32.xlu0 %v6392
        %v6413 = vpop.xlane.xlu0 %6412
        %6414 = vmax.xlane.f32.xlu0 %v6393
        %v6415 = vpop.xlane.xlu0 %6414
        %6416 = vmax.xlane.f32.xlu0 %v6394
        %v6417 = vpop.xlane.xlu0 %6416
        %6418 = vmax.xlane.f32.xlu0 %v6395
        %v6419 = vpop.xlane.xlu0 %6418
        %6420 = vmax.xlane.f32.xlu0 %v6396
        %v6421 = vpop.xlane.xlu0 %6420
        %6422 = vmax.xlane.f32.xlu0 %v6397
        %v6423 = vpop.xlane.xlu0 %6422
        %6424 = vmax.xlane.f32.xlu0 %v6398
        %v6425 = vpop.xlane.xlu0 %6424
        %6426 = vmax.xlane.f32.xlu0 %v6399
        %v6427 = vpop.xlane.xlu0 %6426
        %6428 = vmax.xlane.f32.xlu0 %v6400
        %v6429 = vpop.xlane.xlu0 %6428
        %6430 = vmax.xlane.f32.xlu0 %v6401
        %v6431 = vpop.xlane.xlu0 %6430
        %6432 = vmax.xlane.f32.xlu0 %v6402
        %v6433 = vpop.xlane.xlu0 %6432
        %6434 = vmax.xlane.f32.xlu0 %v6403
        %v6435 = vpop.xlane.xlu0 %6434
        %v6436 = vsub.f32 %v6388, %v6405
        %v6437 = vsub.f32 %v6389, %v6407
        %v6438 = vsub.f32 %v6390, %v6409
        %v6439 = vsub.f32 %v6391, %v6411
        %v6440 = vsub.f32 %v6392, %v6413
        %v6441 = vsub.f32 %v6393, %v6415
        %v6442 = vsub.f32 %v6394, %v6417
        %v6443 = vsub.f32 %v6395, %v6419
        %v6444 = vsub.f32 %v6396, %v6421
        %v6445 = vsub.f32 %v6397, %v6423
        %v6446 = vsub.f32 %v6398, %v6425
        %v6447 = vsub.f32 %v6399, %v6427
        %v6448 = vsub.f32 %v6400, %v6429
        %v6449 = vsub.f32 %v6401, %v6431
        %v6450 = vsub.f32 %v6402, %v6433
        %v6451 = vsub.f32 %v6403, %v6435
        %v6452 = vmul.f32 %v6436, 1.442695
        %v6453 = vpow.pop %v6452
        %v6454 = vmul.f32 %v6437, 1.442695
        %v6455 = vpow.pop %v6454
        %v6456 = vmul.f32 %v6438, 1.442695
        %v6457 = vpow.pop %v6456
        %v6458 = vmul.f32 %v6439, 1.442695
        %v6459 = vpow.pop %v6458
        %v6460 = vmul.f32 %v6440, 1.442695
        %v6461 = vpow.pop %v6460
        %v6462 = vmul.f32 %v6441, 1.442695
        %v6463 = vpow.pop %v6462
        %v6464 = vmul.f32 %v6442, 1.442695
        %v6465 = vpow.pop %v6464
        %v6466 = vmul.f32 %v6443, 1.442695
        %v6467 = vpow.pop %v6466
        %v6468 = vmul.f32 %v6444, 1.442695
        %v6469 = vpow.pop %v6468
        %v6470 = vmul.f32 %v6445, 1.442695
        %v6471 = vpow.pop %v6470
        %v6472 = vmul.f32 %v6446, 1.442695
        %v6473 = vpow.pop %v6472
        %v6474 = vmul.f32 %v6447, 1.442695
        %v6475 = vpow.pop %v6474
        %v6476 = vmul.f32 %v6448, 1.442695
        %v6477 = vpow.pop %v6476
        %v6478 = vmul.f32 %v6449, 1.442695
        %v6479 = vpow.pop %v6478
        %v6480 = vmul.f32 %v6450, 1.442695
        %v6481 = vpow.pop %v6480
        %v6482 = vmul.f32 %v6451, 1.442695
        %v6483 = vpow.pop %v6482
        %6484 = vadd.xlane.f32.xlu0 %v6453
        %v6485 = vpop.xlane.xlu0 %6484
        %6486 = vadd.xlane.f32.xlu0 %v6455
        %v6487 = vpop.xlane.xlu0 %6486
        %6488 = vadd.xlane.f32.xlu0 %v6457
        %v6489 = vpop.xlane.xlu0 %6488
        %6490 = vadd.xlane.f32.xlu0 %v6459
        %v6491 = vpop.xlane.xlu0 %6490
        %6492 = vadd.xlane.f32.xlu0 %v6461
        %v6493 = vpop.xlane.xlu0 %6492
        %6494 = vadd.xlane.f32.xlu0 %v6463
        %v6495 = vpop.xlane.xlu0 %6494
        %6496 = vadd.xlane.f32.xlu0 %v6465
        %v6497 = vpop.xlane.xlu0 %6496
        %6498 = vadd.xlane.f32.xlu0 %v6467
        %v6499 = vpop.xlane.xlu0 %6498
        %6500 = vadd.xlane.f32.xlu0 %v6469
        %v6501 = vpop.xlane.xlu0 %6500
        %6502 = vadd.xlane.f32.xlu0 %v6471
        %v6503 = vpop.xlane.xlu0 %6502
        %6504 = vadd.xlane.f32.xlu0 %v6473
        %v6505 = vpop.xlane.xlu0 %6504
        %6506 = vadd.xlane.f32.xlu0 %v6475
        %v6507 = vpop.xlane.xlu0 %6506
        %6508 = vadd.xlane.f32.xlu0 %v6477
        %v6509 = vpop.xlane.xlu0 %6508
        %6510 = vadd.xlane.f32.xlu0 %v6479
        %v6511 = vpop.xlane.xlu0 %6510
        %6512 = vadd.xlane.f32.xlu0 %v6481
        %v6513 = vpop.xlane.xlu0 %6512
        %6514 = vadd.xlane.f32.xlu0 %v6483
        %v6515 = vpop.xlane.xlu0 %6514
        %v6516 = vrcp.pop %v6485
        %v6517 = vmul.f32 %v6453, %v6516
        %v6518 = vrcp.pop %v6487
        %v6519 = vmul.f32 %v6455, %v6518
        %v6520 = vrcp.pop %v6489
        %v6521 = vmul.f32 %v6457, %v6520
        %v6522 = vrcp.pop %v6491
        %v6523 = vmul.f32 %v6459, %v6522
        %v6524 = vrcp.pop %v6493
        %v6525 = vmul.f32 %v6461, %v6524
        %v6526 = vrcp.pop %v6495
        %v6527 = vmul.f32 %v6463, %v6526
        %v6528 = vrcp.pop %v6497
        %v6529 = vmul.f32 %v6465, %v6528
        %v6530 = vrcp.pop %v6499
        %v6531 = vmul.f32 %v6467, %v6530
        %v6532 = vrcp.pop %v6501
        %v6533 = vmul.f32 %v6469, %v6532
        %v6534 = vrcp.pop %v6503
        %v6535 = vmul.f32 %v6471, %v6534
        %v6536 = vrcp.pop %v6505
        %v6537 = vmul.f32 %v6473, %v6536
        %v6538 = vrcp.pop %v6507
        %v6539 = vmul.f32 %v6475, %v6538
        %v6540 = vrcp.pop %v6509
        %v6541 = vmul.f32 %v6477, %v6540
        %v6542 = vrcp.pop %v6511
        %v6543 = vmul.f32 %v6479, %v6542
        %v6544 = vrcp.pop %v6513
        %v6545 = vmul.f32 %v6481, %v6544
        %v6546 = vrcp.pop %v6515
        %v6547 = vmul.f32 %v6483, %v6546
        %v6548 = vpack.c.bf16 %v6519, %v6517
        %v6549 = vpack.c.bf16 %v6523, %v6521
        %v6550 = vpack.c.bf16 %v6527, %v6525
        %v6551 = vpack.c.bf16 %v6531, %v6529
        %v6552 = vpack.c.bf16 %v6535, %v6533
        %v6553 = vpack.c.bf16 %v6539, %v6537
        %v6554 = vpack.c.bf16 %v6543, %v6541
        %v6555 = vpack.c.bf16 %v6547, %v6545
        %v6556 = vpack.c.bf16 %v6164, %v6163
        %v6557 = vpack.c.bf16 %v6166, %v6165
        %v6558 = vpack.c.bf16 %v6168, %v6167
        %v6559 = vpack.c.bf16 %v6170, %v6169
        %v6560 = vpack.c.bf16 %v6172, %v6171
        %v6561 = vpack.c.bf16 %v6174, %v6173
        %v6562 = vpack.c.bf16 %v6176, %v6175
        %v6563 = vpack.c.bf16 %v6178, %v6177
        %6572 = vrot.lane.b32.xlu0 %v6556, 16
        %v6573 = vpop.permute.xlu0 %6572
        %6574 = vrot.lane.b32.xlu0 %v6557, 16
        %v6575 = vpop.permute.xlu0 %6574
        %6576 = vrot.lane.b32.xlu0 %v6558, 16
        %v6577 = vpop.permute.xlu0 %6576
        %6578 = vrot.lane.b32.xlu0 %v6559, 16
        %v6579 = vpop.permute.xlu0 %6578
        %6580 = vrot.lane.b32.xlu0 %v6560, 16
        %v6581 = vpop.permute.xlu0 %6580
        %6582 = vrot.lane.b32.xlu0 %v6561, 16
        %v6583 = vpop.permute.xlu0 %6582
        %6584 = vrot.lane.b32.xlu0 %v6562, 16
        %v6585 = vpop.permute.xlu0 %6584
        %6586 = vrot.lane.b32.xlu0 %v6563, 16
        %v6587 = vpop.permute.xlu0 %6586
        %6596 = vmatprep.subr.bf16.mxu0 0
        %6597 = vmatpush1.bf16.msra.mxu0 %v6573
        %6598 = vmatprep.subr.bf16.mxu0 0
        %6599 = vmatpush1.bf16.msra.mxu0 %v6575
        %6600 = vmatprep.subr.bf16.mxu0 0
        %6601 = vmatpush1.bf16.msra.mxu0 %v6577
        %6602 = vmatprep.subr.bf16.mxu0 0
        %6603 = vmatpush1.bf16.msra.mxu0 %v6579
        %6604 = vmatprep.subr.bf16.mxu0 0
        %6605 = vmatpush1.bf16.msra.mxu0 %v6581
        %6606 = vmatprep.subr.bf16.mxu0 0
        %6607 = vmatpush1.bf16.msra.mxu0 %v6583
        %6608 = vmatprep.subr.bf16.mxu0 0
        %6609 = vmatpush1.bf16.msra.mxu0 %v6585
        %6610 = vmatprep.subr.bf16.mxu0 0
        %6611 = vmatpush1.bf16.msra.mxu0 %v6587
        %6612 = vmatprep.subr.bf16.mxu0 0
        %6613 = vmatpush1.bf16.msra.mxu0 0
        %6614 = vmatprep.subr.bf16.mxu0 0
        %6615 = vmatpush1.bf16.msra.mxu0 0
        %6616 = vmatprep.subr.bf16.mxu0 0
        %6617 = vmatpush1.bf16.msra.mxu0 0
        %6618 = vmatprep.subr.bf16.mxu0 0
        %6619 = vmatpush1.bf16.msra.mxu0 0
        %6620 = vmatprep.subr.bf16.mxu0 0
        %6621 = vmatpush1.bf16.msra.mxu0 0
        %6622 = vmatprep.subr.bf16.mxu0 0
        %6623 = vmatpush1.bf16.msra.mxu0 0
        %6624 = vmatprep.subr.bf16.mxu0 0
        %6625 = vmatpush1.bf16.msra.mxu0 0
        %6626 = vmatprep.subr.bf16.mxu0 0
        %6627 = vmatpush1.bf16.msra.mxu0 0
        %6628 = vmatprep.mubr.bf16.mxu0 0
        %6629 = vmatmul.mubr.bf16.gmra.mrb[0].mxu0 %v6548
        %v6630 = vpop.f32.mrb[0].mxu0
        %v6631 = vadd.f32 0.0, %v6630
        %v6632 = vpop.f32.mrb[0].mxu0
        %v6633 = vpop.f32.mrb[0].mxu0
        %v6634 = vadd.f32 0.0, %v6633
        %v6635 = vpop.f32.mrb[0].mxu0
        %6636 = vmatprep.mubr.bf16.mxu0 0
        %6637 = vmatmul.mubr.bf16.gmra.mrb[0].mxu0 %v6549
        %v6638 = vpop.f32.mrb[0].mxu0
        %v6639 = vadd.f32 0.0, %v6638
        %v6640 = vpop.f32.mrb[0].mxu0
        %v6641 = vpop.f32.mrb[0].mxu0
        %v6642 = vadd.f32 0.0, %v6641
        %v6643 = vpop.f32.mrb[0].mxu0
        %6644 = vmatprep.mubr.bf16.mxu0 0
        %6645 = vmatmul.mubr.bf16.gmra.mrb[0].mxu0 %v6550
        %v6646 = vpop.f32.mrb[0].mxu0
        %v6647 = vadd.f32 0.0, %v6646
        %v6648 = vpop.f32.mrb[0].mxu0
        %v6649 = vpop.f32.mrb[0].mxu0
        %v6650 = vadd.f32 0.0, %v6649
        %v6651 = vpop.f32.mrb[0].mxu0
        %6652 = vmatprep.mubr.bf16.mxu0 0
        %6653 = vmatmul.mubr.bf16.gmra.mrb[0].mxu0 %v6551
        %v6654 = vpop.f32.mrb[0].mxu0
        %v6655 = vadd.f32 0.0, %v6654
        %v6656 = vpop.f32.mrb[0].mxu0
        %v6657 = vpop.f32.mrb[0].mxu0
        %v6658 = vadd.f32 0.0, %v6657
        %v6659 = vpop.f32.mrb[0].mxu0
        %6660 = vmatprep.mubr.bf16.mxu0 0
        %6661 = vmatmul.mubr.bf16.gmra.mrb[0].mxu0 %v6552
        %v6662 = vpop.f32.mrb[0].mxu0
        %v6663 = vadd.f32 0.0, %v6662
        %v6664 = vpop.f32.mrb[0].mxu0
        %v6665 = vpop.f32.mrb[0].mxu0
        %v6666 = vadd.f32 0.0, %v6665
        %v6667 = vpop.f32.mrb[0].mxu0
        %6668 = vmatprep.mubr.bf16.mxu0 0
        %6669 = vmatmul.mubr.bf16.gmra.mrb[0].mxu0 %v6553
        %v6670 = vpop.f32.mrb[0].mxu0
        %v6671 = vadd.f32 0.0, %v6670
        %v6672 = vpop.f32.mrb[0].mxu0
        %v6673 = vpop.f32.mrb[0].mxu0
        %v6674 = vadd.f32 0.0, %v6673
        %v6675 = vpop.f32.mrb[0].mxu0
        %6676 = vmatprep.mubr.bf16.mxu0 0
        %6677 = vmatmul.mubr.bf16.gmra.mrb[0].mxu0 %v6554
        %v6678 = vpop.f32.mrb[0].mxu0
        %v6679 = vadd.f32 0.0, %v6678
        %v6680 = vpop.f32.mrb[0].mxu0
        %v6681 = vpop.f32.mrb[0].mxu0
        %v6682 = vadd.f32 0.0, %v6681
        %v6683 = vpop.f32.mrb[0].mxu0
        %6684 = vmatprep.mubr.bf16.mxu0 0
        %6685 = vmatmul.mubr.bf16.gmra.mrb[0].mxu0 %v6555
        %v6686 = vpop.f32.mrb[0].mxu0
        %v6687 = vadd.f32 0.0, %v6686
        %v6688 = vpop.f32.mrb[0].mxu0
        %v6689 = vpop.f32.mrb[0].mxu0
        %v6690 = vadd.f32 0.0, %v6689
        %v6691 = vpop.f32.mrb[0].mxu0
        %6692 = vdwg.mxu0
        %v6693 = vld [vmem:[#allocation3] sm:$0xff]
        %v6694 = vld [vmem:[#allocation3 + $0x8] sm:$0xff]
        %v6695 = vld [vmem:[#allocation3 + $0x10] sm:$0xff]
        %v6696 = vld [vmem:[#allocation3 + $0x18] sm:$0xff]
        %v6697 = vld [vmem:[#allocation3 + $0x20] sm:$0xff]
        %v6698 = vld [vmem:[#allocation3 + $0x28] sm:$0xff]
        %v6699 = vld [vmem:[#allocation3 + $0x30] sm:$0xff]
        %v6700 = vld [vmem:[#allocation3 + $0x38] sm:$0xff]
        %v6701 = vld [vmem:[#allocation3 + $0x40] sm:$0xff]
        %v6702 = vld [vmem:[#allocation3 + $0x48] sm:$0xff]
        %v6703 = vld [vmem:[#allocation3 + $0x50] sm:$0xff]
        %v6704 = vld [vmem:[#allocation3 + $0x58] sm:$0xff]
        %v6705 = vld [vmem:[#allocation3 + $0x60] sm:$0xff]
        %v6706 = vld [vmem:[#allocation3 + $0x68] sm:$0xff]
        %v6707 = vld [vmem:[#allocation3 + $0x70] sm:$0xff]
        %v6708 = vld [vmem:[#allocation3 + $0x78] sm:$0xff]
        %v6709 = vpack.c.bf16 %v6634, %v6631
        %v6710 = vpack.c.bf16 %v6642, %v6639
        %v6711 = vpack.c.bf16 %v6650, %v6647
        %v6712 = vpack.c.bf16 %v6658, %v6655
        %v6713 = vpack.c.bf16 %v6666, %v6663
        %v6714 = vpack.c.bf16 %v6674, %v6671
        %v6715 = vpack.c.bf16 %v6682, %v6679
        %v6716 = vpack.c.bf16 %v6690, %v6687
        %v6717 = vld [vmem:[#allocation9 + $0x38] sm:$0xf]
        %v6718 = vld [vmem:[#allocation9 + $0x3c] sm:$0xf]
        %v6721 = vunpack.c.l.b16 %v6717
        %v6722 = vunpack.c.l.b16 %v6718
        %v6723 = vpack.c.b16 %v6722, %v6721
        %v6726 = vsel %vm1045, %v6709, 0
        %v6729 = vsel %vm1045, %v6710, 0
        %v6732 = vsel %vm1045, %v6711, 0
        %v6735 = vsel %vm1045, %v6712, 0
        %v6738 = vsel %vm1045, %v6713, 0
        %v6741 = vsel %vm1045, %v6714, 0
        %v6744 = vsel %vm1045, %v6715, 0
        %v6747 = vsel %vm1045, %v6716, 0
        %6749 = vmatprep.subr.bf16.mxu0 0
        %6750 = vmatpush1.bf16.msra.mxu0 %v6723
        %6751 = vmatprep.subr.bf16.mxu0 0
        %6752 = vmatpush1.bf16.msra.mxu0 0
        %6753 = vmatprep.subr.bf16.mxu0 0
        %6754 = vmatpush1.bf16.msra.mxu0 0
        %6755 = vmatprep.subr.bf16.mxu0 0
        %6756 = vmatpush1.bf16.msra.mxu0 0
        %6757 = vmatprep.subr.bf16.mxu0 0
        %6758 = vmatpush1.bf16.msra.mxu0 0
        %6759 = vmatprep.subr.bf16.mxu0 0
        %6760 = vmatpush1.bf16.msra.mxu0 0
        %6761 = vmatprep.subr.bf16.mxu0 0
        %6762 = vmatpush1.bf16.msra.mxu0 0
        %6763 = vmatprep.subr.bf16.mxu0 0
        %6764 = vmatpush1.bf16.msra.mxu0 0
        %6765 = vmatprep.subr.bf16.mxu0 0
        %6766 = vmatpush1.bf16.msra.mxu0 0
        %6767 = vmatprep.subr.bf16.mxu0 0
        %6768 = vmatpush1.bf16.msra.mxu0 0
        %6769 = vmatprep.subr.bf16.mxu0 0
        %6770 = vmatpush1.bf16.msra.mxu0 0
        %6771 = vmatprep.subr.bf16.mxu0 0
        %6772 = vmatpush1.bf16.msra.mxu0 0
        %6773 = vmatprep.subr.bf16.mxu0 0
        %6774 = vmatpush1.bf16.msra.mxu0 0
        %6775 = vmatprep.subr.bf16.mxu0 0
        %6776 = vmatpush1.bf16.msra.mxu0 0
        %6777 = vmatprep.subr.bf16.mxu0 0
        %6778 = vmatpush1.bf16.msra.mxu0 0
        %6779 = vmatprep.subr.bf16.mxu0 0
        %6780 = vmatpush1.bf16.msra.mxu0 0
        %6781 = vmatprep.mubr.bf16.mxu0 0
        %6782 = vmatmul.mubr.bf16.gmra.mrb[0].mxu0 %v6726
        %v6783 = vpop.f32.mrb[0].mxu0
        %v6784 = vadd.f32 0.0, %v6783
        %v6785 = vpop.f32.mrb[0].mxu0
        %v6786 = vpop.f32.mrb[0].mxu0
        %v6787 = vadd.f32 0.0, %v6786
        %v6788 = vpop.f32.mrb[0].mxu0
        %6789 = vmatprep.mubr.bf16.mxu0 0
        %6790 = vmatmul.mubr.bf16.gmra.mrb[0].mxu0 %v6729
        %v6791 = vpop.f32.mrb[0].mxu0
        %v6792 = vadd.f32 0.0, %v6791
        %v6793 = vpop.f32.mrb[0].mxu0
        %v6794 = vpop.f32.mrb[0].mxu0
        %v6795 = vadd.f32 0.0, %v6794
        %v6796 = vpop.f32.mrb[0].mxu0
        %6797 = vmatprep.mubr.bf16.mxu0 0
        %6798 = vmatmul.mubr.bf16.gmra.mrb[0].mxu0 %v6732
        %v6799 = vpop.f32.mrb[0].mxu0
        %v6800 = vadd.f32 0.0, %v6799
        %v6801 = vpop.f32.mrb[0].mxu0
        %v6802 = vpop.f32.mrb[0].mxu0
        %v6803 = vadd.f32 0.0, %v6802
        %v6804 = vpop.f32.mrb[0].mxu0
        %6805 = vmatprep.mubr.bf16.mxu0 0
        %6806 = vmatmul.mubr.bf16.gmra.mrb[0].mxu0 %v6735
        %v6807 = vpop.f32.mrb[0].mxu0
        %v6808 = vadd.f32 0.0, %v6807
        %v6809 = vpop.f32.mrb[0].mxu0
        %v6810 = vpop.f32.mrb[0].mxu0
        %v6811 = vadd.f32 0.0, %v6810
        %v6812 = vpop.f32.mrb[0].mxu0
        %6813 = vmatprep.mubr.bf16.mxu0 0
        %6814 = vmatmul.mubr.bf16.gmra.mrb[0].mxu0 %v6738
        %v6815 = vpop.f32.mrb[0].mxu0
        %v6816 = vadd.f32 0.0, %v6815
        %v6817 = vpop.f32.mrb[0].mxu0
        %v6818 = vpop.f32.mrb[0].mxu0
        %v6819 = vadd.f32 0.0, %v6818
        %v6820 = vpop.f32.mrb[0].mxu0
        %6821 = vmatprep.mubr.bf16.mxu0 0
        %6822 = vmatmul.mubr.bf16.gmra.mrb[0].mxu0 %v6741
        %v6823 = vpop.f32.mrb[0].mxu0
        %v6824 = vadd.f32 0.0, %v6823
        %v6825 = vpop.f32.mrb[0].mxu0
        %v6826 = vpop.f32.mrb[0].mxu0
        %v6827 = vadd.f32 0.0, %v6826
        %v6828 = vpop.f32.mrb[0].mxu0
        %6829 = vmatprep.mubr.bf16.mxu0 0
        %6830 = vmatmul.mubr.bf16.gmra.mrb[0].mxu0 %v6744
        %v6831 = vpop.f32.mrb[0].mxu0
        %v6832 = vadd.f32 0.0, %v6831
        %v6833 = vpop.f32.mrb[0].mxu0
        %v6834 = vpop.f32.mrb[0].mxu0
        %v6835 = vadd.f32 0.0, %v6834
        %v6836 = vpop.f32.mrb[0].mxu0
        %6837 = vmatprep.mubr.bf16.mxu0 0
        %6838 = vmatmul.mubr.bf16.gmra.mrb[0].mxu0 %v6747
        %v6839 = vpop.f32.mrb[0].mxu0
        %v6840 = vadd.f32 0.0, %v6839
        %v6841 = vpop.f32.mrb[0].mxu0
        %v6842 = vpop.f32.mrb[0].mxu0
        %v6843 = vadd.f32 0.0, %v6842
        %v6844 = vpop.f32.mrb[0].mxu0
        %6845 = vdwg.mxu0
        %v6846 = vadd.f32 %v6693, %v6784
        %v6847 = vadd.f32 %v6694, %v6787
        %v6848 = vadd.f32 %v6695, %v6792
        %v6849 = vadd.f32 %v6696, %v6795
        %v6850 = vadd.f32 %v6697, %v6800
        %v6851 = vadd.f32 %v6698, %v6803
        %v6852 = vadd.f32 %v6699, %v6808
        %v6853 = vadd.f32 %v6700, %v6811
        %v6854 = vadd.f32 %v6701, %v6816
        %v6855 = vadd.f32 %v6702, %v6819
        %v6856 = vadd.f32 %v6703, %v6824
        %v6857 = vadd.f32 %v6704, %v6827
        %v6858 = vadd.f32 %v6705, %v6832
        %v6859 = vadd.f32 %v6706, %v6835
        %v6860 = vadd.f32 %v6707, %v6840
        %v6861 = vadd.f32 %v6708, %v6843
        %6862 = vst [vmem:[#allocation3] sm:$0xff] %v6846
        %6863 = vst [vmem:[#allocation3 + $0x8] sm:$0xff] %v6847
        %6864 = vst [vmem:[#allocation3 + $0x10] sm:$0xff] %v6848
        %6865 = vst [vmem:[#allocation3 + $0x18] sm:$0xff] %v6849
        %6866 = vst [vmem:[#allocation3 + $0x20] sm:$0xff] %v6850
        %6867 = vst [vmem:[#allocation3 + $0x28] sm:$0xff] %v6851
        %6868 = vst [vmem:[#allocation3 + $0x30] sm:$0xff] %v6852
        %6869 = vst [vmem:[#allocation3 + $0x38] sm:$0xff] %v6853
        %6870 = vst [vmem:[#allocation3 + $0x40] sm:$0xff] %v6854
        %6871 = vst [vmem:[#allocation3 + $0x48] sm:$0xff] %v6855
        %6872 = vst [vmem:[#allocation3 + $0x50] sm:$0xff] %v6856
        %6873 = vst [vmem:[#allocation3 + $0x58] sm:$0xff] %v6857
        %6874 = vst [vmem:[#allocation3 + $0x60] sm:$0xff] %v6858
        %6875 = vst [vmem:[#allocation3 + $0x68] sm:$0xff] %v6859
        %6876 = vst [vmem:[#allocation3 + $0x70] sm:$0xff] %v6860
        %6877 = vst [vmem:[#allocation3 + $0x78] sm:$0xff] %v6861
        %v6878 = vld [vmem:[%s262] sm:$0xff]
        %v6879 = vld [vmem:[%s262 + $0x8] sm:$0xff]
        %v6880 = vld [vmem:[%s262 + $0x10] sm:$0xff]
        %v6881 = vld [vmem:[%s262 + $0x18] sm:$0xff]
        %v6882 = vld [vmem:[%s262 + $0x20] sm:$0xff]
        %v6883 = vld [vmem:[%s262 + $0x28] sm:$0xff]
        %v6884 = vld [vmem:[%s262 + $0x30] sm:$0xff]
        %v6885 = vld [vmem:[%s262 + $0x38] sm:$0xff]
        %v6886 = vld [vmem:[%s262 + $0x40] sm:$0xff]
        %v6887 = vld [vmem:[%s262 + $0x48] sm:$0xff]
        %v6888 = vld [vmem:[%s262 + $0x50] sm:$0xff]
        %v6889 = vld [vmem:[%s262 + $0x58] sm:$0xff]
        %v6890 = vld [vmem:[%s262 + $0x60] sm:$0xff]
        %v6891 = vld [vmem:[%s262 + $0x68] sm:$0xff]
        %v6892 = vld [vmem:[%s262 + $0x70] sm:$0xff]
        %v6893 = vld [vmem:[%s262 + $0x78] sm:$0xff]
        %v6894 = vld [vmem:[#allocation3] sm:$0xff]
        %v6895 = vld [vmem:[#allocation3 + $0x8] sm:$0xff]
        %v6896 = vld [vmem:[#allocation3 + $0x10] sm:$0xff]
        %v6897 = vld [vmem:[#allocation3 + $0x18] sm:$0xff]
        %v6898 = vld [vmem:[#allocation3 + $0x20] sm:$0xff]
        %v6899 = vld [vmem:[#allocation3 + $0x28] sm:$0xff]
        %v6900 = vld [vmem:[#allocation3 + $0x30] sm:$0xff]
        %v6901 = vld [vmem:[#allocation3 + $0x38] sm:$0xff]
        %v6902 = vld [vmem:[#allocation3 + $0x40] sm:$0xff]
        %v6903 = vld [vmem:[#allocation3 + $0x48] sm:$0xff]
        %v6904 = vld [vmem:[#allocation3 + $0x50] sm:$0xff]
        %v6905 = vld [vmem:[#allocation3 + $0x58] sm:$0xff]
        %v6906 = vld [vmem:[#allocation3 + $0x60] sm:$0xff]
        %v6907 = vld [vmem:[#allocation3 + $0x68] sm:$0xff]
        %v6908 = vld [vmem:[#allocation3 + $0x70] sm:$0xff]
        %v6909 = vld [vmem:[#allocation3 + $0x78] sm:$0xff]
        %v6910 = vadd.f32 %v6878, %v6894
        %v6911 = vadd.f32 %v6879, %v6895
        %v6912 = vadd.f32 %v6880, %v6896
        %v6913 = vadd.f32 %v6881, %v6897
        %v6914 = vadd.f32 %v6882, %v6898
        %v6915 = vadd.f32 %v6883, %v6899
        %v6916 = vadd.f32 %v6884, %v6900
        %v6917 = vadd.f32 %v6885, %v6901
        %v6918 = vadd.f32 %v6886, %v6902
        %v6919 = vadd.f32 %v6887, %v6903
        %v6920 = vadd.f32 %v6888, %v6904
        %v6921 = vadd.f32 %v6889, %v6905
        %v6922 = vadd.f32 %v6890, %v6906
        %v6923 = vadd.f32 %v6891, %v6907
        %v6924 = vadd.f32 %v6892, %v6908
        %v6925 = vadd.f32 %v6893, %v6909
        %v6926 = vld [vmem:[%s5] sm:$0x1]
        %v6928 = vlaneseq
        %v6929 = vshrl.u32 %v6928, 7
        %v6930 = vsub.s32 0, %v6929
        %v6931 = vrot.slane %v6926, %v6930
        %v6933 = vadd.f32 %v6910, %v6931
        %v6934 = vadd.f32 %v6911, %v6931
        %v6935 = vadd.f32 %v6912, %v6931
        %v6936 = vadd.f32 %v6913, %v6931
        %v6937 = vadd.f32 %v6914, %v6931
        %v6938 = vadd.f32 %v6915, %v6931
        %v6939 = vadd.f32 %v6916, %v6931
        %v6940 = vadd.f32 %v6917, %v6931
        %v6941 = vadd.f32 %v6918, %v6931
        %v6942 = vadd.f32 %v6919, %v6931
        %v6943 = vadd.f32 %v6920, %v6931
        %v6944 = vadd.f32 %v6921, %v6931
        %v6945 = vadd.f32 %v6922, %v6931
        %v6946 = vadd.f32 %v6923, %v6931
        %v6947 = vadd.f32 %v6924, %v6931
        %v6948 = vadd.f32 %v6925, %v6931
        %6949 = vst [vmem:[%s298] sm:$0xff] %v6933
        %6950 = vst [vmem:[%s298 + $0x8] sm:$0xff] %v6934
        %6951 = vst [vmem:[%s298 + $0x10] sm:$0xff] %v6935
        %6952 = vst [vmem:[%s298 + $0x18] sm:$0xff] %v6936
        %6953 = vst [vmem:[%s298 + $0x20] sm:$0xff] %v6937
        %6954 = vst [vmem:[%s298 + $0x28] sm:$0xff] %v6938
        %6955 = vst [vmem:[%s298 + $0x30] sm:$0xff] %v6939
        %6956 = vst [vmem:[%s298 + $0x38] sm:$0xff] %v6940
        %6957 = vst [vmem:[%s298 + $0x40] sm:$0xff] %v6941
        %6958 = vst [vmem:[%s298 + $0x48] sm:$0xff] %v6942
        %6959 = vst [vmem:[%s298 + $0x50] sm:$0xff] %v6943
        %6960 = vst [vmem:[%s298 + $0x58] sm:$0xff] %v6944
        %6961 = vst [vmem:[%s298 + $0x60] sm:$0xff] %v6945
        %6962 = vst [vmem:[%s298 + $0x68] sm:$0xff] %v6946
        %6963 = vst [vmem:[%s298 + $0x70] sm:$0xff] %v6947
        %6964 = vst [vmem:[%s298 + $0x78] sm:$0xff] %v6948
        %s6965 = sand.u32 %s163, 1
        %s6966 = scalar_lea.sflag [#allocation6], %s6965
        %s6967 = sand.u32 %s163, 1
        %s6968 = smul.addr %s6967, 128
        %s6969 = scalar_lea.vmem [#allocation10], %s6968
        // Predicated region
        $region57: #{tpu_custom_call.1} parent=43 // pred_check
          %p6970 = pneg %p173
        $region58: #{tpu_custom_call.1} parent=43 // pred_check_branch
          %6972 = sbr.rel (%p6970) target = $region60
        $region59: #{tpu_custom_call.1} parent=43 // pred_region
          %s6974 = ssub.s32 2048, 2048
          %6975 = vsyncadd %s6966, %s6974
          %s6976 = smul.addr %s24, 16
          %s6977 = smul.addr %s6976, 128
          %s6978 = scalar_lea.hbm %s6, %s6977
          %s6979 = sshll.u32 %s6969, 4
          %s6980 = int_to_ptr.vmem [resolvable:$true] %s6979
          %6985 = dma.vmem_to_hbm [thread:$0]  %s6980, 2048, %s6978, %s6966, 128, 128, 8
        $region60: #{tpu_custom_call.1} parent=43 // pred_fallthru
          _
      $region44: #{tpu_custom_call.1} parent=5 // pred_fallthru
        _
      %p6986 = scmp.le.s32.totalorder 2, %s19
      // Predicated region
      $region61: #{tpu_custom_call.1} parent=5 // pred_check
        %p6987 = pneg %p6986
      $region62: #{tpu_custom_call.1} parent=5 // pred_check_branch
        %6989 = sbr.rel (%p6987) target = $region64
      $region63: #{tpu_custom_call.1} parent=5 // pred_region
        %s6990 = ssub.s32 %s19, 2
        // Predicated region
        $region65: #{tpu_custom_call.1} parent=63 // pred_check
          %p6991 = pneg %p179
        $region66: #{tpu_custom_call.1} parent=63 // pred_check_branch
          %6993 = sbr.rel (%p6991) target = $region68
        $region67: #{tpu_custom_call.1} parent=63 // pred_region
          %s6994 = sand.u32 %s164, 1
          %s6995 = scalar_lea.sflag [#allocation6], %s6994
          %s6996 = sand.u32 %s164, 1
          %s6997 = smul.addr %s6996, 128
          %s6998 = scalar_lea.vmem [#allocation10], %s6997
          %6999 = dma.done %s6995, 2048
        $region68: #{tpu_custom_call.1} parent=63 // pred_fallthru
          _
      $region64: #{tpu_custom_call.1} parent=5 // pred_fallthru
        _
    $region6: #{tpu_custom_call.1} parent=1 // loop_footer
      %s23 = sadd.s32 1, %s19
    $region7: #{tpu_custom_call.1} parent=1 // loop_footer_branch
      %18 = sbr.rel target = $region3
    $region8: #{tpu_custom_call.1} parent=1 // loop_exit
      _
    %7000 = vsyncpa [#allocation5], 1
    %s7001 = scalar_lea.sflag [#allocation5], 1
    %7002 = vsyncpa %s7001, 1
    %7003 = vsyncpa [#allocation8], 1
    %7004 = vsyncpa [#allocation6], 1
    %s7005 = scalar_lea.sflag [#allocation6], 1
    %7006 = vsyncpa %s7005, 1

</llo_original>
